<compile_context>
chip_gen: v6e
topology: v6e:2x2x1
jax: 0.10.0
libtpu: 0.0.40
codegen_flags: <defaults>
</compile_context>

<pallas_src>
import functools
import math

import jax
import jax.numpy as jnp
from jax import lax
from jax.experimental import pallas as pl
from jax.experimental.pallas import tpu as pltpu


# ------------------------------------------------------------------------- fused kernel
def _styled_res_block_kernel(x_ref, mask_ref, w1_ref, w2_ref, o_ref, *, H, W):
    # x_ref:    (B*C, H*W)    input feature maps, batch folded into sublanes
    # mask_ref: (8,   H*W)    f32 {0,1} boundary masks, one row per non-center tap
    #                         (row order = (dy, dx) row-major, center tap skipped)
    # w*_ref:   (9, B*C, B*C) per-tap block-diagonal combined weights for conv1 / conv2
    # o_ref:    (B*C, H*W)    output = (conv2(conv1(x)) + x) / sqrt(2)
    BC, HW = x_ref.shape

    x = x_ref[...]
    w1 = w1_ref[...]                       # load each weight tile once, slice in-register
    w2 = w2_ref[...]
    masks = mask_ref[...]

    # Hoisted, broadcast once, shared by both conv blocks.
    bmask = [jnp.broadcast_to(masks[j:j + 1, :], (BC, HW)) for j in range(8)]

    def conv_block(z, w):
        # Center tap (dy=1, dx=1): no roll, no mask -- initializes the accumulator (MXU).
        acc = jnp.dot(w[4], z, preferred_element_type=jnp.float32,
                      precision=lax.Precision.HIGHEST)
        j = 0
        for dy in range(3):
            for dx in range(3):
                if dy == 1 and dx == 1:
                    continue
                off = (dy - 1) * W + (dx - 1)                      # flat source offset
                tap = pltpu.roll(z, shift=(-off) % HW, axis=1)     # XLU
                tap = tap * bmask[j]                               # zero-pad boundary (VPU)
                k = dy * 3 + dx
                acc = acc + jnp.dot(w[k], tap,
                                    preferred_element_type=jnp.float32,
                                    precision=lax.Precision.HIGHEST)   # MXU
                j += 1
        return acc

    y1 = conv_block(x, w1)
    y2 = conv_block(y1, w2)
    o_ref[...] = ((y2 + x) * (1.0 / math.sqrt(2.0))).astype(o_ref.dtype)


# ------------------------------------------------------------------------- params
def init_params(key, channels, style_dim):
    ks = jax.random.split(key, 8)

    def conv_params(k0, k1, k2, k3):
        return {
            "w_dw": jax.random.normal(k0, (channels, 1, 3, 3), jnp.float32),
            "w_perm": jax.random.normal(k1, (channels, channels, 1, 1), jnp.float32),
            "mod_w": jax.random.normal(k2, (channels, style_dim), jnp.float32)
                     / math.sqrt(style_dim),
            "mod_b": jnp.ones((channels,), jnp.float32),          # bias.data.fill_(1.0)
            "style_inv": jax.random.normal(k3, (channels,), jnp.float32),
        }

    return {"conv1": conv_params(*ks[0:4]), "conv2": conv_params(*ks[4:8])}


def _modulation(p, style, scale):
    # scale * (style @ W_mod^T + b_mod)   -> (B, C)
    return scale * (style @ p["mod_w"].T + p["mod_b"])


def _demodulation(p, scale):
    # style-independent, as in the PyTorch module (uses the fixed style_inv buffer)
    wdw = p["w_dw"][:, 0]                                          # (Cin, 3, 3)
    wp = p["w_perm"][:, :, 0, 0]                                   # (Cout, Cin)
    w = wdw[None, :, :, :] * wp[:, :, None, None]                  # (Cout, Cin, 3, 3)
    s = scale * p["style_inv"][None, :, None, None] * w
    return lax.rsqrt(jnp.sum(s * s, axis=(1, 2, 3)) + 1e-8)        # (Cout,)


def _combined_tap_weights(p, mod, demod, B, C):
    # W_k[b*C+o, b*C+c] = demod[o] * wp[o,c] * mod[b,c] * wdw[c,k]   (block-diagonal in b)
    wdw = p["w_dw"][:, 0].reshape(C, 9)                            # (Cin, 9), k = dy*3+dx
    wp = p["w_perm"][:, :, 0, 0]                                   # (Cout, Cin)
    w_oc = demod[:, None] * wp                                     # (Cout, Cin)
    w_bkoc = (w_oc[None, None, :, :]
              * mod[:, None, None, :]
              * wdw.T[None, :, None, :])                           # (B, 9, Cout, Cin)
    eye = jnp.eye(B, dtype=w_bkoc.dtype)
    wk = jnp.einsum("bd,bkoc->kbodc", eye, w_bkoc).reshape(9, B * C, B * C)
    return wk.astype(jnp.float32)


def _tap_masks(H, W):
    # (8, H*W) f32 validity masks for the 8 non-center taps (zero padding at the boundary).
    HW = H * W
    hh = jnp.arange(HW, dtype=jnp.int32) // W
    ww = jnp.arange(HW, dtype=jnp.int32) % W
    rows = []
    for dy in range(3):
        for dx in range(3):
            if dy == 1 and dx == 1:
                continue
            ok = jnp.ones((HW,), dtype=bool)
            if dy == 0:
                ok = ok & (hh >= 1)
            if dy == 2:
                ok = ok & (hh <= H - 2)
            if dx == 0:
                ok = ok & (ww >= 1)
            if dx == 2:
                ok = ok & (ww <= W - 2)
            rows.append(ok)
    return jnp.stack(rows, axis=0).astype(jnp.float32)


# ------------------------------------------------------------------------- wrapper
def styled_res_blockcr(params, x, style, demodulate=True):
    B, C, H, W = x.shape
    assert H >= 2 and W >= 2, "roll+mask depthwise conv assumes H >= 2 and W >= 2"
    HW = H * W
    BC = B * C
    scale = 1.0 / math.sqrt(C * 9)                                 # 1/sqrt(Cin * k^2)

    p1, p2 = params["conv1"], params["conv2"]
    mod1 = _modulation(p1, style, scale)                           # (B, C)
    mod2 = _modulation(p2, style, scale)
    if demodulate:
        demod1 = _demodulation(p1, scale)                          # (C,)
        demod2 = _demodulation(p2, scale)
    else:
        demod1 = jnp.ones((C,), jnp.float32)
        demod2 = jnp.ones((C,), jnp.float32)

    w1 = _combined_tap_weights(p1, mod1, demod1, B, C)             # (9, BC, BC)
    w2 = _combined_tap_weights(p2, mod2, demod2, B, C)
    masks = _tap_masks(H, W)                                       # (8, HW)

    x_flat = x.reshape(BC, HW).astype(jnp.float32)

    # Rough VMEM footprint (double-buffered operands + output) -- ~40 KiB at toy shapes.
    vmem_bytes = 2 * 4 * (2 * BC * HW + 8 * HW + 2 * 9 * BC * BC)
    assert vmem_bytes < 8 * 1024 * 1024, (
        "Single whole-problem block no longer fits comfortably in VMEM "
        "(v5e: 16 MiB default scoped, v7x: 64 MiB physical); "
        "tile the H*W lane axis in multiples of 128 with halo masks.")
    # TODO(synk): for production sizes (large C, H*W) tile the lane axis and/or set
    # pltpu.CompilerParams(vmem_limit_bytes=...) instead of a single full-plane block.

    kernel = functools.partial(_styled_res_block_kernel, H=H, W=W)

    out_flat = pl.pallas_call(
        kernel,
        out_shape=jax.ShapeDtypeStruct((BC, HW), jnp.float32),
        grid_spec=pltpu.PrefetchScalarGridSpec(
            num_scalar_prefetch=0,
            grid=(1,),                                             # single fused step
            in_specs=[
                pl.BlockSpec((BC, HW), lambda i: (0, 0)),          # x (batch folded)
                pl.BlockSpec((8, HW), lambda i: (0, 0)),           # tap masks
                pl.BlockSpec((9, BC, BC), lambda i: (0, 0, 0)),    # combined weights conv1
                pl.BlockSpec((9, BC, BC), lambda i: (0, 0, 0)),    # combined weights conv2
            ],
            out_specs=pl.BlockSpec((BC, HW), lambda i: (0, 0)),
        ),
        compiler_params=pltpu.CompilerParams(
            dimension_semantics=("arbitrary",)),                   # one step: no megacore split
    )(x_flat, masks, w1, w2)

    return out_flat.reshape(B, C, H, W)


# ------------------------------------------------------------------ pure-JAX reference
def _modulated_dw_conv_ref(p, x, style, scale, demodulate):
    B, C, H, W = x.shape
    mod = _modulation(p, style, scale)
    z = x * mod[:, :, None, None]
    zp = jnp.pad(z, ((0, 0), (0, 0), (1, 1), (1, 1)))
    wdw = p["w_dw"][:, 0]                                          # (C, 3, 3)
    dw = jnp.zeros_like(z)
    for dy in range(3):
        for dx in range(3):
            dw = dw + zp[:, :, dy:dy + H, dx:dx + W] * wdw[None, :, dy, dx, None, None]
    y = jnp.einsum("bchw,oc->bohw", dw, p["w_perm"][:, :, 0, 0],
                   precision=lax.Precision.HIGHEST)
    if demodulate:
        y = y * _demodulation(p, scale)[None, :, None, None]
    return y


def reference_forward(params, x, style, demodulate=True):
    C = x.shape[1]
    scale = 1.0 / math.sqrt(C * 9)
    y1 = _modulated_dw_conv_ref(params["conv1"], x, style, scale, demodulate)
    y2 = _modulated_dw_conv_ref(params["conv2"], y1, style, scale, demodulate)
    return (y2 + x) / math.sqrt(2.0)


# ------------------------------------------------------------------------- main
if __name__ == "__main__":
    B, C, STYLE_DIM, H, W = 2, 4, 16, 16, 16

    key = jax.random.PRNGKey(0)
    k_p, k_x, k_s = jax.random.split(key, 3)
    params = init_params(k_p, C, STYLE_DIM)
    x = jax.random.normal(k_x, (B, C, H, W), jnp.float32)
    style = jax.random.normal(k_s, (B, STYLE_DIM), jnp.float32)

    out = jax.block_until_ready(styled_res_blockcr(params, x, style))
    assert out.shape == (B, C, H, W), out.shape

    ref = jax.block_until_ready(reference_forward(params, x, style))
    # Both paths run their matmuls at HIGHEST precision (accurate f32), so a tight
    # tolerance is meaningful and will catch tap / mask / shift indexing bugs.
    err = float(jnp.max(jnp.abs(out - ref)))
    tol = 1e-3 * (1.0 + float(jnp.max(jnp.abs(ref))))
    assert err < tol, f"max abs diff {err} exceeds tol {tol}"

    print("KERNEL_OK")
</pallas_src>

<mosaic_0001>
module attributes {stable_mosaic.version = 11 : i64} {
  func.func @_styled_res_block_kernel(%arg0: i32, %arg1: memref<8x256xf32, #tpu.memory_space<vmem>>, %arg2: memref<8x256xf32, #tpu.memory_space<vmem>>, %arg3: memref<9x8x8xf32, #tpu.memory_space<vmem>>, %arg4: memref<9x8x8xf32, #tpu.memory_space<vmem>>, %arg5: memref<8x256xf32, #tpu.memory_space<vmem>>) attributes {dimension_semantics = [#tpu.dimension_semantics<arbitrary>], iteration_bounds = array<i64: 1>, scalar_prefetch = 0 : i64, scratch_operands = 0 : i64, tpu.core_type = #tpu.core_type<tc>, window_params = [{pipeline_mode = #tpu.pipeline_mode<synchronous>, transform_indices = @transform_0, window_bounds = array<i64: 8, 256>}, {pipeline_mode = #tpu.pipeline_mode<synchronous>, transform_indices = @transform_1, window_bounds = array<i64: 8, 256>}, {pipeline_mode = #tpu.pipeline_mode<synchronous>, transform_indices = @transform_2, window_bounds = array<i64: 9, 8, 8>}, {pipeline_mode = #tpu.pipeline_mode<synchronous>, transform_indices = @transform_3, window_bounds = array<i64: 9, 8, 8>}, {pipeline_mode = #tpu.pipeline_mode<synchronous>, transform_indices = @transform_4, window_bounds = array<i64: 8, 256>}]} {
    %c0 = arith.constant 0 : index
    %c0_0 = arith.constant 0 : index
    %0 = vector.load %arg1[%c0, %c0_0] : memref<8x256xf32, #tpu.memory_space<vmem>>, vector<8x256xf32>
    %c0_1 = arith.constant 0 : index
    %c0_2 = arith.constant 0 : index
    %c0_3 = arith.constant 0 : index
    %1 = vector.load %arg3[%c0_1, %c0_2, %c0_3] : memref<9x8x8xf32, #tpu.memory_space<vmem>>, vector<9x8x8xf32>
    %c0_4 = arith.constant 0 : index
    %c0_5 = arith.constant 0 : index
    %c0_6 = arith.constant 0 : index
    %2 = vector.load %arg4[%c0_4, %c0_5, %c0_6] : memref<9x8x8xf32, #tpu.memory_space<vmem>>, vector<9x8x8xf32>
    %c0_7 = arith.constant 0 : index
    %c0_8 = arith.constant 0 : index
    %3 = vector.load %arg2[%c0_7, %c0_8] : memref<8x256xf32, #tpu.memory_space<vmem>>, vector<8x256xf32>
    %4 = vector.extract_strided_slice %3 {offsets = [0, 0], sizes = [1, 256], strides = [1, 1]} : vector<8x256xf32> to vector<1x256xf32>
    %5 = vector.shape_cast %4 : vector<1x256xf32> to vector<1x256xf32>
    %6 = vector.broadcast %5 : vector<1x256xf32> to vector<8x256xf32>
    %7 = vector.extract_strided_slice %3 {offsets = [1, 0], sizes = [1, 256], strides = [1, 1]} : vector<8x256xf32> to vector<1x256xf32>
    %8 = vector.shape_cast %7 : vector<1x256xf32> to vector<1x256xf32>
    %9 = vector.broadcast %8 : vector<1x256xf32> to vector<8x256xf32>
    %10 = vector.extract_strided_slice %3 {offsets = [2, 0], sizes = [1, 256], strides = [1, 1]} : vector<8x256xf32> to vector<1x256xf32>
    %11 = vector.shape_cast %10 : vector<1x256xf32> to vector<1x256xf32>
    %12 = vector.broadcast %11 : vector<1x256xf32> to vector<8x256xf32>
    %13 = vector.extract_strided_slice %3 {offsets = [3, 0], sizes = [1, 256], strides = [1, 1]} : vector<8x256xf32> to vector<1x256xf32>
    %14 = vector.shape_cast %13 : vector<1x256xf32> to vector<1x256xf32>
    %15 = vector.broadcast %14 : vector<1x256xf32> to vector<8x256xf32>
    %16 = vector.extract_strided_slice %3 {offsets = [4, 0], sizes = [1, 256], strides = [1, 1]} : vector<8x256xf32> to vector<1x256xf32>
    %17 = vector.shape_cast %16 : vector<1x256xf32> to vector<1x256xf32>
    %18 = vector.broadcast %17 : vector<1x256xf32> to vector<8x256xf32>
    %19 = vector.extract_strided_slice %3 {offsets = [5, 0], sizes = [1, 256], strides = [1, 1]} : vector<8x256xf32> to vector<1x256xf32>
    %20 = vector.shape_cast %19 : vector<1x256xf32> to vector<1x256xf32>
    %21 = vector.broadcast %20 : vector<1x256xf32> to vector<8x256xf32>
    %22 = vector.extract_strided_slice %3 {offsets = [6, 0], sizes = [1, 256], strides = [1, 1]} : vector<8x256xf32> to vector<1x256xf32>
    %23 = vector.shape_cast %22 : vector<1x256xf32> to vector<1x256xf32>
    %24 = vector.broadcast %23 : vector<1x256xf32> to vector<8x256xf32>
    %25 = vector.extract_strided_slice %3 {offsets = [7, 0], sizes = [1, 256], strides = [1, 1]} : vector<8x256xf32> to vector<1x256xf32>
    %26 = vector.shape_cast %25 : vector<1x256xf32> to vector<1x256xf32>
    %27 = vector.broadcast %26 : vector<1x256xf32> to vector<8x256xf32>
    %28 = vector.extract_strided_slice %1 {offsets = [4, 0, 0], sizes = [1, 8, 8], strides = [1, 1, 1]} : vector<9x8x8xf32> to vector<1x8x8xf32>
    %29 = vector.shape_cast %28 : vector<1x8x8xf32> to vector<8x8xf32>
    %cst = arith.constant dense<0.000000e+00> : vector<8x256xf32>
    %30 = tpu.matmul %29, %0, %cst {dimension_numbers = #tpu.dot_dimension_numbers<[1], [0], [0], [1], [0, 0, 1, 1], [], []>, precision = #tpu.contract_precision<fp32>} : vector<8x8xf32>, vector<8x256xf32>, vector<8x256xf32> -> vector<8x256xf32>
    %c17_i32 = arith.constant 17 : i32
    %31 = tpu.dynamic_rotate %0 by %c17_i32 dim 1 : vector<8x256xf32>, i32 -> vector<8x256xf32>
    %32 = arith.mulf %31, %6 : vector<8x256xf32>
    %33 = vector.extract_strided_slice %1 {offsets = [0, 0, 0], sizes = [1, 8, 8], strides = [1, 1, 1]} : vector<9x8x8xf32> to vector<1x8x8xf32>
    %34 = vector.shape_cast %33 : vector<1x8x8xf32> to vector<8x8xf32>
    %cst_9 = arith.constant dense<0.000000e+00> : vector<8x256xf32>
    %35 = tpu.matmul %34, %32, %cst_9 {dimension_numbers = #tpu.dot_dimension_numbers<[1], [0], [0], [1], [0, 0, 1, 1], [], []>, precision = #tpu.contract_precision<fp32>} : vector<8x8xf32>, vector<8x256xf32>, vector<8x256xf32> -> vector<8x256xf32>
    %36 = arith.addf %30, %35 : vector<8x256xf32>
    %c16_i32 = arith.constant 16 : i32
    %37 = tpu.dynamic_rotate %0 by %c16_i32 dim 1 : vector<8x256xf32>, i32 -> vector<8x256xf32>
    %38 = arith.mulf %37, %9 : vector<8x256xf32>
    %39 = vector.extract_strided_slice %1 {offsets = [1, 0, 0], sizes = [1, 8, 8], strides = [1, 1, 1]} : vector<9x8x8xf32> to vector<1x8x8xf32>
    %40 = vector.shape_cast %39 : vector<1x8x8xf32> to vector<8x8xf32>
    %cst_10 = arith.constant dense<0.000000e+00> : vector<8x256xf32>
    %41 = tpu.matmul %40, %38, %cst_10 {dimension_numbers = #tpu.dot_dimension_numbers<[1], [0], [0], [1], [0, 0, 1, 1], [], []>, precision = #tpu.contract_precision<fp32>} : vector<8x8xf32>, vector<8x256xf32>, vector<8x256xf32> -> vector<8x256xf32>
    %42 = arith.addf %36, %41 : vector<8x256xf32>
    %c15_i32 = arith.constant 15 : i32
    %43 = tpu.dynamic_rotate %0 by %c15_i32 dim 1 : vector<8x256xf32>, i32 -> vector<8x256xf32>
    %44 = arith.mulf %43, %12 : vector<8x256xf32>
    %45 = vector.extract_strided_slice %1 {offsets = [2, 0, 0], sizes = [1, 8, 8], strides = [1, 1, 1]} : vector<9x8x8xf32> to vector<1x8x8xf32>
    %46 = vector.shape_cast %45 : vector<1x8x8xf32> to vector<8x8xf32>
    %cst_11 = arith.constant dense<0.000000e+00> : vector<8x256xf32>
    %47 = tpu.matmul %46, %44, %cst_11 {dimension_numbers = #tpu.dot_dimension_numbers<[1], [0], [0], [1], [0, 0, 1, 1], [], []>, precision = #tpu.contract_precision<fp32>} : vector<8x8xf32>, vector<8x256xf32>, vector<8x256xf32> -> vector<8x256xf32>
    %48 = arith.addf %42, %47 : vector<8x256xf32>
    %c1_i32 = arith.constant 1 : i32
    %49 = tpu.dynamic_rotate %0 by %c1_i32 dim 1 : vector<8x256xf32>, i32 -> vector<8x256xf32>
    %50 = arith.mulf %49, %15 : vector<8x256xf32>
    %51 = vector.extract_strided_slice %1 {offsets = [3, 0, 0], sizes = [1, 8, 8], strides = [1, 1, 1]} : vector<9x8x8xf32> to vector<1x8x8xf32>
    %52 = vector.shape_cast %51 : vector<1x8x8xf32> to vector<8x8xf32>
    %cst_12 = arith.constant dense<0.000000e+00> : vector<8x256xf32>
    %53 = tpu.matmul %52, %50, %cst_12 {dimension_numbers = #tpu.dot_dimension_numbers<[1], [0], [0], [1], [0, 0, 1, 1], [], []>, precision = #tpu.contract_precision<fp32>} : vector<8x8xf32>, vector<8x256xf32>, vector<8x256xf32> -> vector<8x256xf32>
    %54 = arith.addf %48, %53 : vector<8x256xf32>
    %c255_i32 = arith.constant 255 : i32
    %55 = tpu.dynamic_rotate %0 by %c255_i32 dim 1 : vector<8x256xf32>, i32 -> vector<8x256xf32>
    %56 = arith.mulf %55, %18 : vector<8x256xf32>
    %57 = vector.extract_strided_slice %1 {offsets = [5, 0, 0], sizes = [1, 8, 8], strides = [1, 1, 1]} : vector<9x8x8xf32> to vector<1x8x8xf32>
    %58 = vector.shape_cast %57 : vector<1x8x8xf32> to vector<8x8xf32>
    %cst_13 = arith.constant dense<0.000000e+00> : vector<8x256xf32>
    %59 = tpu.matmul %58, %56, %cst_13 {dimension_numbers = #tpu.dot_dimension_numbers<[1], [0], [0], [1], [0, 0, 1, 1], [], []>, precision = #tpu.contract_precision<fp32>} : vector<8x8xf32>, vector<8x256xf32>, vector<8x256xf32> -> vector<8x256xf32>
    %60 = arith.addf %54, %59 : vector<8x256xf32>
    %c241_i32 = arith.constant 241 : i32
    %61 = tpu.dynamic_rotate %0 by %c241_i32 dim 1 : vector<8x256xf32>, i32 -> vector<8x256xf32>
    %62 = arith.mulf %61, %21 : vector<8x256xf32>
    %63 = vector.extract_strided_slice %1 {offsets = [6, 0, 0], sizes = [1, 8, 8], strides = [1, 1, 1]} : vector<9x8x8xf32> to vector<1x8x8xf32>
    %64 = vector.shape_cast %63 : vector<1x8x8xf32> to vector<8x8xf32>
    %cst_14 = arith.constant dense<0.000000e+00> : vector<8x256xf32>
    %65 = tpu.matmul %64, %62, %cst_14 {dimension_numbers = #tpu.dot_dimension_numbers<[1], [0], [0], [1], [0, 0, 1, 1], [], []>, precision = #tpu.contract_precision<fp32>} : vector<8x8xf32>, vector<8x256xf32>, vector<8x256xf32> -> vector<8x256xf32>
    %66 = arith.addf %60, %65 : vector<8x256xf32>
    %c240_i32 = arith.constant 240 : i32
    %67 = tpu.dynamic_rotate %0 by %c240_i32 dim 1 : vector<8x256xf32>, i32 -> vector<8x256xf32>
    %68 = arith.mulf %67, %24 : vector<8x256xf32>
    %69 = vector.extract_strided_slice %1 {offsets = [7, 0, 0], sizes = [1, 8, 8], strides = [1, 1, 1]} : vector<9x8x8xf32> to vector<1x8x8xf32>
    %70 = vector.shape_cast %69 : vector<1x8x8xf32> to vector<8x8xf32>
    %cst_15 = arith.constant dense<0.000000e+00> : vector<8x256xf32>
    %71 = tpu.matmul %70, %68, %cst_15 {dimension_numbers = #tpu.dot_dimension_numbers<[1], [0], [0], [1], [0, 0, 1, 1], [], []>, precision = #tpu.contract_precision<fp32>} : vector<8x8xf32>, vector<8x256xf32>, vector<8x256xf32> -> vector<8x256xf32>
    %72 = arith.addf %66, %71 : vector<8x256xf32>
    %c239_i32 = arith.constant 239 : i32
    %73 = tpu.dynamic_rotate %0 by %c239_i32 dim 1 : vector<8x256xf32>, i32 -> vector<8x256xf32>
    %74 = arith.mulf %73, %27 : vector<8x256xf32>
    %75 = vector.extract_strided_slice %1 {offsets = [8, 0, 0], sizes = [1, 8, 8], strides = [1, 1, 1]} : vector<9x8x8xf32> to vector<1x8x8xf32>
    %76 = vector.shape_cast %75 : vector<1x8x8xf32> to vector<8x8xf32>
    %cst_16 = arith.constant dense<0.000000e+00> : vector<8x256xf32>
    %77 = tpu.matmul %76, %74, %cst_16 {dimension_numbers = #tpu.dot_dimension_numbers<[1], [0], [0], [1], [0, 0, 1, 1], [], []>, precision = #tpu.contract_precision<fp32>} : vector<8x8xf32>, vector<8x256xf32>, vector<8x256xf32> -> vector<8x256xf32>
    %78 = arith.addf %72, %77 : vector<8x256xf32>
    %79 = vector.extract_strided_slice %2 {offsets = [4, 0, 0], sizes = [1, 8, 8], strides = [1, 1, 1]} : vector<9x8x8xf32> to vector<1x8x8xf32>
    %80 = vector.shape_cast %79 : vector<1x8x8xf32> to vector<8x8xf32>
    %cst_17 = arith.constant dense<0.000000e+00> : vector<8x256xf32>
    %81 = tpu.matmul %80, %78, %cst_17 {dimension_numbers = #tpu.dot_dimension_numbers<[1], [0], [0], [1], [0, 0, 1, 1], [], []>, precision = #tpu.contract_precision<fp32>} : vector<8x8xf32>, vector<8x256xf32>, vector<8x256xf32> -> vector<8x256xf32>
    %c17_i32_18 = arith.constant 17 : i32
    %82 = tpu.dynamic_rotate %78 by %c17_i32_18 dim 1 : vector<8x256xf32>, i32 -> vector<8x256xf32>
    %83 = arith.mulf %82, %6 : vector<8x256xf32>
    %84 = vector.extract_strided_slice %2 {offsets = [0, 0, 0], sizes = [1, 8, 8], strides = [1, 1, 1]} : vector<9x8x8xf32> to vector<1x8x8xf32>
    %85 = vector.shape_cast %84 : vector<1x8x8xf32> to vector<8x8xf32>
    %cst_19 = arith.constant dense<0.000000e+00> : vector<8x256xf32>
    %86 = tpu.matmul %85, %83, %cst_19 {dimension_numbers = #tpu.dot_dimension_numbers<[1], [0], [0], [1], [0, 0, 1, 1], [], []>, precision = #tpu.contract_precision<fp32>} : vector<8x8xf32>, vector<8x256xf32>, vector<8x256xf32> -> vector<8x256xf32>
    %87 = arith.addf %81, %86 : vector<8x256xf32>
    %c16_i32_20 = arith.constant 16 : i32
    %88 = tpu.dynamic_rotate %78 by %c16_i32_20 dim 1 : vector<8x256xf32>, i32 -> vector<8x256xf32>
    %89 = arith.mulf %88, %9 : vector<8x256xf32>
    %90 = vector.extract_strided_slice %2 {offsets = [1, 0, 0], sizes = [1, 8, 8], strides = [1, 1, 1]} : vector<9x8x8xf32> to vector<1x8x8xf32>
    %91 = vector.shape_cast %90 : vector<1x8x8xf32> to vector<8x8xf32>
    %cst_21 = arith.constant dense<0.000000e+00> : vector<8x256xf32>
    %92 = tpu.matmul %91, %89, %cst_21 {dimension_numbers = #tpu.dot_dimension_numbers<[1], [0], [0], [1], [0, 0, 1, 1], [], []>, precision = #tpu.contract_precision<fp32>} : vector<8x8xf32>, vector<8x256xf32>, vector<8x256xf32> -> vector<8x256xf32>
    %93 = arith.addf %87, %92 : vector<8x256xf32>
    %c15_i32_22 = arith.constant 15 : i32
    %94 = tpu.dynamic_rotate %78 by %c15_i32_22 dim 1 : vector<8x256xf32>, i32 -> vector<8x256xf32>
    %95 = arith.mulf %94, %12 : vector<8x256xf32>
    %96 = vector.extract_strided_slice %2 {offsets = [2, 0, 0], sizes = [1, 8, 8], strides = [1, 1, 1]} : vector<9x8x8xf32> to vector<1x8x8xf32>
    %97 = vector.shape_cast %96 : vector<1x8x8xf32> to vector<8x8xf32>
    %cst_23 = arith.constant dense<0.000000e+00> : vector<8x256xf32>
    %98 = tpu.matmul %97, %95, %cst_23 {dimension_numbers = #tpu.dot_dimension_numbers<[1], [0], [0], [1], [0, 0, 1, 1], [], []>, precision = #tpu.contract_precision<fp32>} : vector<8x8xf32>, vector<8x256xf32>, vector<8x256xf32> -> vector<8x256xf32>
    %99 = arith.addf %93, %98 : vector<8x256xf32>
    %c1_i32_24 = arith.constant 1 : i32
    %100 = tpu.dynamic_rotate %78 by %c1_i32_24 dim 1 : vector<8x256xf32>, i32 -> vector<8x256xf32>
    %101 = arith.mulf %100, %15 : vector<8x256xf32>
    %102 = vector.extract_strided_slice %2 {offsets = [3, 0, 0], sizes = [1, 8, 8], strides = [1, 1, 1]} : vector<9x8x8xf32> to vector<1x8x8xf32>
    %103 = vector.shape_cast %102 : vector<1x8x8xf32> to vector<8x8xf32>
    %cst_25 = arith.constant dense<0.000000e+00> : vector<8x256xf32>
    %104 = tpu.matmul %103, %101, %cst_25 {dimension_numbers = #tpu.dot_dimension_numbers<[1], [0], [0], [1], [0, 0, 1, 1], [], []>, precision = #tpu.contract_precision<fp32>} : vector<8x8xf32>, vector<8x256xf32>, vector<8x256xf32> -> vector<8x256xf32>
    %105 = arith.addf %99, %104 : vector<8x256xf32>
    %c255_i32_26 = arith.constant 255 : i32
    %106 = tpu.dynamic_rotate %78 by %c255_i32_26 dim 1 : vector<8x256xf32>, i32 -> vector<8x256xf32>
    %107 = arith.mulf %106, %18 : vector<8x256xf32>
    %108 = vector.extract_strided_slice %2 {offsets = [5, 0, 0], sizes = [1, 8, 8], strides = [1, 1, 1]} : vector<9x8x8xf32> to vector<1x8x8xf32>
    %109 = vector.shape_cast %108 : vector<1x8x8xf32> to vector<8x8xf32>
    %cst_27 = arith.constant dense<0.000000e+00> : vector<8x256xf32>
    %110 = tpu.matmul %109, %107, %cst_27 {dimension_numbers = #tpu.dot_dimension_numbers<[1], [0], [0], [1], [0, 0, 1, 1], [], []>, precision = #tpu.contract_precision<fp32>} : vector<8x8xf32>, vector<8x256xf32>, vector<8x256xf32> -> vector<8x256xf32>
    %111 = arith.addf %105, %110 : vector<8x256xf32>
    %c241_i32_28 = arith.constant 241 : i32
    %112 = tpu.dynamic_rotate %78 by %c241_i32_28 dim 1 : vector<8x256xf32>, i32 -> vector<8x256xf32>
    %113 = arith.mulf %112, %21 : vector<8x256xf32>
    %114 = vector.extract_strided_slice %2 {offsets = [6, 0, 0], sizes = [1, 8, 8], strides = [1, 1, 1]} : vector<9x8x8xf32> to vector<1x8x8xf32>
    %115 = vector.shape_cast %114 : vector<1x8x8xf32> to vector<8x8xf32>
    %cst_29 = arith.constant dense<0.000000e+00> : vector<8x256xf32>
    %116 = tpu.matmul %115, %113, %cst_29 {dimension_numbers = #tpu.dot_dimension_numbers<[1], [0], [0], [1], [0, 0, 1, 1], [], []>, precision = #tpu.contract_precision<fp32>} : vector<8x8xf32>, vector<8x256xf32>, vector<8x256xf32> -> vector<8x256xf32>
    %117 = arith.addf %111, %116 : vector<8x256xf32>
    %c240_i32_30 = arith.constant 240 : i32
    %118 = tpu.dynamic_rotate %78 by %c240_i32_30 dim 1 : vector<8x256xf32>, i32 -> vector<8x256xf32>
    %119 = arith.mulf %118, %24 : vector<8x256xf32>
    %120 = vector.extract_strided_slice %2 {offsets = [7, 0, 0], sizes = [1, 8, 8], strides = [1, 1, 1]} : vector<9x8x8xf32> to vector<1x8x8xf32>
    %121 = vector.shape_cast %120 : vector<1x8x8xf32> to vector<8x8xf32>
    %cst_31 = arith.constant dense<0.000000e+00> : vector<8x256xf32>
    %122 = tpu.matmul %121, %119, %cst_31 {dimension_numbers = #tpu.dot_dimension_numbers<[1], [0], [0], [1], [0, 0, 1, 1], [], []>, precision = #tpu.contract_precision<fp32>} : vector<8x8xf32>, vector<8x256xf32>, vector<8x256xf32> -> vector<8x256xf32>
    %123 = arith.addf %117, %122 : vector<8x256xf32>
    %c239_i32_32 = arith.constant 239 : i32
    %124 = tpu.dynamic_rotate %78 by %c239_i32_32 dim 1 : vector<8x256xf32>, i32 -> vector<8x256xf32>
    %125 = arith.mulf %124, %27 : vector<8x256xf32>
    %126 = vector.extract_strided_slice %2 {offsets = [8, 0, 0], sizes = [1, 8, 8], strides = [1, 1, 1]} : vector<9x8x8xf32> to vector<1x8x8xf32>
    %127 = vector.shape_cast %126 : vector<1x8x8xf32> to vector<8x8xf32>
    %cst_33 = arith.constant dense<0.000000e+00> : vector<8x256xf32>
    %128 = tpu.matmul %127, %125, %cst_33 {dimension_numbers = #tpu.dot_dimension_numbers<[1], [0], [0], [1], [0, 0, 1, 1], [], []>, precision = #tpu.contract_precision<fp32>} : vector<8x8xf32>, vector<8x256xf32>, vector<8x256xf32> -> vector<8x256xf32>
    %129 = arith.addf %123, %128 : vector<8x256xf32>
    %130 = arith.addf %129, %0 : vector<8x256xf32>
    %cst_34 = arith.constant 0.707106769 : f32
    %131 = vector.broadcast %cst_34 : f32 to vector<8x256xf32>
    %132 = arith.mulf %130, %131 : vector<8x256xf32>
    %c0_35 = arith.constant 0 : index
    %c0_36 = arith.constant 0 : index
    %133 = vector.load %arg5[%c0_35, %c0_36] : memref<8x256xf32, #tpu.memory_space<vmem>>, vector<8x256xf32>
    tpu.vector_store %arg5[%c0_35, %c0_36], %132 {strides = array<i32>} : memref<8x256xf32, #tpu.memory_space<vmem>>, vector<8x256xf32>,
    return
  }
  func.func @transform_0(%arg0: i32) -> (i32, i32) {
    %c0_i32 = arith.constant 0 : i32
    %c0_i32_0 = arith.constant 0 : i32
    %c0_i32_1 = arith.constant 0 : i32
    return %c0_i32, %c0_i32_0 : i32, i32
  }
  func.func @transform_1(%arg0: i32) -> (i32, i32) {
    %c0_i32 = arith.constant 0 : i32
    %c0_i32_0 = arith.constant 0 : i32
    %c0_i32_1 = arith.constant 0 : i32
    return %c0_i32, %c0_i32_0 : i32, i32
  }
  func.func @transform_2(%arg0: i32) -> (i32, i32, i32) {
    %c0_i32 = arith.constant 0 : i32
    %c0_i32_0 = arith.constant 0 : i32
    %c0_i32_1 = arith.constant 0 : i32
    %c0_i32_2 = arith.constant 0 : i32
    return %c0_i32, %c0_i32_0, %c0_i32_1 : i32, i32, i32
  }
  func.func @transform_3(%arg0: i32) -> (i32, i32, i32) {
    %c0_i32 = arith.constant 0 : i32
    %c0_i32_0 = arith.constant 0 : i32
    %c0_i32_1 = arith.constant 0 : i32
    %c0_i32_2 = arith.constant 0 : i32
    return %c0_i32, %c0_i32_0, %c0_i32_1 : i32, i32, i32
  }
  func.func @transform_4(%arg0: i32) -> (i32, i32) {
    %c0_i32 = arith.constant 0 : i32
    %c0_i32_0 = arith.constant 0 : i32
    %c0_i32_1 = arith.constant 0 : i32
    return %c0_i32, %c0_i32_0 : i32, i32
  }
}

</mosaic_0001>

<llo_original>
// kernel: tpu_custom_call.1
$region0: #{tpu_custom_call.1}
  #allocation0 [shape = 'u32[]', space=smem, size = 0x4, offset = 0x4, fixed_abs, tag = 'smem constant byte address 0x4 - core index']
  #allocation1 [shape = 'u32[144,128]{1,0:T(1,128)}', space=vmem, size = 0x12000, scoped, tag = 'internal scratch']
  %s0 = inlined_call_operand.vmem [shape: f32[8,256], index: 0, kind: input, shape index: {}]
  %s1 = inlined_call_operand.vmem [shape: f32[8,256], index: 1, kind: input, shape index: {}]
  %s2 = inlined_call_operand.vmem [shape: f32[9,8,8], index: 2, kind: input, shape index: {}]
  %s3 = inlined_call_operand.vmem [shape: f32[9,8,8], index: 3, kind: input, shape index: {}]
  %s4 = inlined_call_operand.hbm [shape: f32[8,256], index: 4, kind: output, shape index: {}]
  %s5 = sld [smem:[#allocation0]]
  $region26: #{tpu_custom_call.1} parent=0
    _
  %s7 = ssub.s32 1, %s5
  %s8 = scalar_select 0, %s7, %s5
  $region1: #{tpu_custom_call.1} parent=0
    #allocation2 [shape = 'u8[8192]{0}', space=vmem, size = 0x2000, scoped, tag = 'output window, operand 0, single buffered']
    #allocation3 [shape = 's32[1]{0}', space=sflag, size = 0x4, scoped, tag = 'scoped memory for tpu_custom_call.1']
    %9 = vsyncpa [#allocation3], 0
    // Predicated region
    $region2: #{tpu_custom_call.1} parent=1 // pred_check
      _
    $region3: #{tpu_custom_call.1} parent=1 // pred_check_branch
      %11 = sbr.rel (0) target = $region5
    $region4: #{tpu_custom_call.1} parent=1 // pred_region
      _
    $region5: #{tpu_custom_call.1} parent=1 // pred_fallthru
      _
    // Predicated region
    $region6: #{tpu_custom_call.1} parent=1 // pred_check
      _
    $region7: #{tpu_custom_call.1} parent=1 // pred_check_branch
      %13 = sbr.rel (0) target = $region9
    $region8: #{tpu_custom_call.1} parent=1 // pred_region
      _
    $region9: #{tpu_custom_call.1} parent=1 // pred_fallthru
      _
    // Predicated region
    $region10: #{tpu_custom_call.1} parent=1 // pred_check
      _
    $region11: #{tpu_custom_call.1} parent=1 // pred_check_branch
      %15 = sbr.rel (0) target = $region13
    $region12: #{tpu_custom_call.1} parent=1 // pred_region
      _
    $region13: #{tpu_custom_call.1} parent=1 // pred_fallthru
      _
    // Predicated region
    $region14: #{tpu_custom_call.1} parent=1 // pred_check
      _
    $region15: #{tpu_custom_call.1} parent=1 // pred_check_branch
      %17 = sbr.rel (0) target = $region17
    $region16: #{tpu_custom_call.1} parent=1 // pred_region
      _
    $region17: #{tpu_custom_call.1} parent=1 // pred_fallthru
      _
    %v18 = vld [vmem:[%s0] sm:$0xff]
    %v19 = vld [vmem:[%s0 + $0x8] sm:$0xff]
    %v20 = vld [vmem:[%s2] sm:$0xff]
    %v21 = vld [vmem:[%s2 + $0x8] sm:$0xff]
    %v22 = vld [vmem:[%s2 + $0x10] sm:$0xff]
    %v23 = vld [vmem:[%s2 + $0x18] sm:$0xff]
    %v24 = vld [vmem:[%s2 + $0x20] sm:$0xff]
    %v25 = vld [vmem:[%s2 + $0x28] sm:$0xff]
    %v26 = vld [vmem:[%s2 + $0x30] sm:$0xff]
    %v27 = vld [vmem:[%s2 + $0x38] sm:$0xff]
    %v28 = vld [vmem:[%s2 + $0x40] sm:$0xff]
    %v29 = vld [vmem:[%s3] sm:$0xff]
    %v30 = vld [vmem:[%s3 + $0x8] sm:$0xff]
    %v31 = vld [vmem:[%s3 + $0x10] sm:$0xff]
    %v32 = vld [vmem:[%s3 + $0x18] sm:$0xff]
    %v33 = vld [vmem:[%s3 + $0x20] sm:$0xff]
    %v34 = vld [vmem:[%s3 + $0x28] sm:$0xff]
    %v35 = vld [vmem:[%s3 + $0x30] sm:$0xff]
    %v36 = vld [vmem:[%s3 + $0x38] sm:$0xff]
    %v37 = vld [vmem:[%s3 + $0x40] sm:$0xff]
    %v38 = vld [vmem:[%s1] sm:$0xff]
    %v39 = vld [vmem:[%s1 + $0x8] sm:$0xff]
    %v40 = vlaneseq
    %v41 = vshrl.u32 %v40, 7
    %v42 = vsub.s32 0, %v41
    %v43 = vrot.slane %v38, %v42
    %v44 = vlaneseq
    %v45 = vshrl.u32 %v44, 7
    %v46 = vsub.s32 0, %v45
    %v47 = vrot.slane %v39, %v46
    %v48 = vlaneseq
    %v49 = vshrl.u32 %v48, 7
    %v50 = vsub.s32 1, %v49
    %v51 = vrot.slane %v38, %v50
    %v52 = vlaneseq
    %v53 = vshrl.u32 %v52, 7
    %v54 = vsub.s32 1, %v53
    %v55 = vrot.slane %v39, %v54
    %v56 = vlaneseq
    %v57 = vshrl.u32 %v56, 7
    %v58 = vsub.s32 2, %v57
    %v59 = vrot.slane %v38, %v58
    %v60 = vlaneseq
    %v61 = vshrl.u32 %v60, 7
    %v62 = vsub.s32 2, %v61
    %v63 = vrot.slane %v39, %v62
    %v64 = vlaneseq
    %v65 = vshrl.u32 %v64, 7
    %v66 = vsub.s32 3, %v65
    %v67 = vrot.slane %v38, %v66
    %v68 = vlaneseq
    %v69 = vshrl.u32 %v68, 7
    %v70 = vsub.s32 3, %v69
    %v71 = vrot.slane %v39, %v70
    %v72 = vlaneseq
    %v73 = vshrl.u32 %v72, 7
    %v74 = vsub.s32 4, %v73
    %v75 = vrot.slane %v38, %v74
    %v76 = vlaneseq
    %v77 = vshrl.u32 %v76, 7
    %v78 = vsub.s32 4, %v77
    %v79 = vrot.slane %v39, %v78
    %v80 = vlaneseq
    %v81 = vshrl.u32 %v80, 7
    %v82 = vsub.s32 5, %v81
    %v83 = vrot.slane %v38, %v82
    %v84 = vlaneseq
    %v85 = vshrl.u32 %v84, 7
    %v86 = vsub.s32 5, %v85
    %v87 = vrot.slane %v39, %v86
    %v88 = vlaneseq
    %v89 = vshrl.u32 %v88, 7
    %v90 = vsub.s32 6, %v89
    %v91 = vrot.slane %v38, %v90
    %v92 = vlaneseq
    %v93 = vshrl.u32 %v92, 7
    %v94 = vsub.s32 6, %v93
    %v95 = vrot.slane %v39, %v94
    %v96 = vlaneseq
    %v97 = vshrl.u32 %v96, 7
    %v98 = vsub.s32 7, %v97
    %v99 = vrot.slane %v38, %v98
    %v100 = vlaneseq
    %v101 = vshrl.u32 %v100, 7
    %v102 = vsub.s32 7, %v101
    %v103 = vrot.slane %v39, %v102
    %104 = vrot.lane.b32.xlu0 %v18, 17
    %v105 = vpop.permute.xlu0 %104
    %106 = vrot.lane.b32.xlu0 %v19, 17
    %v107 = vpop.permute.xlu0 %106
    %v108 = vlaneseq
    %v109 = vand.u32 %v108, 127
    %vm110 = vcmp.lt.s32.totalorder %v109, 17
    %v111 = vsel %vm110, %v105, %v107
    %v112 = vsel %vm110, %v107, %v105
    %v113 = vmul.f32 %v112, %v43
    %v114 = vmul.f32 %v111, %v47
    %vm115 = vcmask 64512
    %v117 = vsel %vm115, %v20, 0
    %119 = vmatprep.subr.mxu0 0.0
    %120 = vmatpush1.msra.mxu0 0.0
    %121 = vmatprep.subr.mxu0 0.0
    %122 = vmatpush1.msra.mxu0 0.0
    %123 = vmatprep.subr.mxu0 0.0
    %124 = vmatpush1.msra.mxu0 0.0
    %125 = vmatprep.subr.mxu0 0.0
    %126 = vmatpush1.msra.mxu0 0.0
    %127 = vmatprep.subr.mxu0 0.0
    %128 = vmatpush1.msra.mxu0 0.0
    %129 = vmatprep.subr.mxu0 0.0
    %130 = vmatpush1.msra.mxu0 0.0
    %131 = vmatprep.subr.mxu0 0.0
    %132 = vmatpush1.msra.mxu0 0.0
    %133 = vmatprep.subr.mxu0 0.0
    %134 = vmatpush1.msra.mxu0 0.0
    %135 = vmatprep.subr.mxu0 0.0
    %136 = vmatpush1.msra.mxu0 0.0
    %137 = vmatprep.subr.mxu0 0.0
    %138 = vmatpush1.msra.mxu0 0.0
    %139 = vmatprep.subr.mxu0 0.0
    %140 = vmatpush1.msra.mxu0 0.0
    %141 = vmatprep.subr.mxu0 0.0
    %142 = vmatpush1.msra.mxu0 0.0
    %143 = vmatprep.subr.mxu0 0.0
    %144 = vmatpush1.msra.mxu0 0.0
    %145 = vmatprep.subr.mxu0 0.0
    %146 = vmatpush1.msra.mxu0 0.0
    %147 = vmatprep.subr.mxu0 0.0
    %148 = vmatpush1.msra.mxu0 0.0
    %v149 = vand.u32 %v114, 4294901760
    %150 = vmatprep.subr.mxu0 %v149
    %v151 = vand.u32 %v113, 4294901760
    %152 = vmatpush1.msra.mxu0 %v151
    %153 = vmatprep.subr.mxu0 0.0
    %154 = vmatpush2.msra.mxu0 0.0
    %155 = vmatprep.subr.mxu0 0.0
    %156 = vmatpush2.msra.mxu0 0.0
    %157 = vmatprep.subr.mxu0 0.0
    %158 = vmatpush2.msra.mxu0 0.0
    %159 = vmatprep.subr.mxu0 0.0
    %160 = vmatpush2.msra.mxu0 0.0
    %161 = vmatprep.subr.mxu0 0.0
    %162 = vmatpush2.msra.mxu0 0.0
    %163 = vmatprep.subr.mxu0 0.0
    %164 = vmatpush2.msra.mxu0 0.0
    %165 = vmatprep.subr.mxu0 0.0
    %166 = vmatpush2.msra.mxu0 0.0
    %167 = vmatprep.subr.mxu0 0.0
    %168 = vmatpush2.msra.mxu0 0.0
    %169 = vmatprep.subr.mxu0 0.0
    %170 = vmatpush2.msra.mxu0 0.0
    %171 = vmatprep.subr.mxu0 0.0
    %172 = vmatpush2.msra.mxu0 0.0
    %173 = vmatprep.subr.mxu0 0.0
    %174 = vmatpush2.msra.mxu0 0.0
    %175 = vmatprep.subr.mxu0 0.0
    %176 = vmatpush2.msra.mxu0 0.0
    %177 = vmatprep.subr.mxu0 0.0
    %178 = vmatpush2.msra.mxu0 0.0
    %179 = vmatprep.subr.mxu0 0.0
    %180 = vmatpush2.msra.mxu0 0.0
    %181 = vmatprep.subr.mxu0 0.0
    %182 = vmatpush2.msra.mxu0 0.0
    %183 = vmatprep.subr.mxu0 0.0
    %184 = vmatpush2.msra.mxu0 0.0
    %185 = vmatprep.mubr.f32.mxu0 0.0
    %v186 = vand.u32 %v117, 4294901760
    %v187 = vsub.f32 %v117, %v186
    %v188 = vand.u32 %v187, 4294901760
    %v189 = vsub.f32 %v187, %v188
    %v190 = vand.u32 %v189, 4294901760
    %191 = vmatmul.mubr.f32.gmra.mxu0 %v190
    %v192 = vpop.f32.mrf.mxu0
    %v193 = vadd.f32 0.0, %v192
    %v194 = vpop.f32.mrf.mxu0
    %v195 = vadd.f32 0.0, %v194
    %196 = vdwg.mxu0
    %197 = vmatprep.subr.mxu0 0.0
    %198 = vmatpush1.msra.mxu0 0.0
    %199 = vmatprep.subr.mxu0 0.0
    %200 = vmatpush1.msra.mxu0 0.0
    %201 = vmatprep.subr.mxu0 0.0
    %202 = vmatpush1.msra.mxu0 0.0
    %203 = vmatprep.subr.mxu0 0.0
    %204 = vmatpush1.msra.mxu0 0.0
    %205 = vmatprep.subr.mxu0 0.0
    %206 = vmatpush1.msra.mxu0 0.0
    %207 = vmatprep.subr.mxu0 0.0
    %208 = vmatpush1.msra.mxu0 0.0
    %209 = vmatprep.subr.mxu0 0.0
    %210 = vmatpush1.msra.mxu0 0.0
    %211 = vmatprep.subr.mxu0 0.0
    %212 = vmatpush1.msra.mxu0 0.0
    %213 = vmatprep.subr.mxu0 0.0
    %214 = vmatpush1.msra.mxu0 0.0
    %215 = vmatprep.subr.mxu0 0.0
    %216 = vmatpush1.msra.mxu0 0.0
    %217 = vmatprep.subr.mxu0 0.0
    %218 = vmatpush1.msra.mxu0 0.0
    %219 = vmatprep.subr.mxu0 0.0
    %220 = vmatpush1.msra.mxu0 0.0
    %221 = vmatprep.subr.mxu0 0.0
    %222 = vmatpush1.msra.mxu0 0.0
    %223 = vmatprep.subr.mxu0 0.0
    %224 = vmatpush1.msra.mxu0 0.0
    %225 = vmatprep.subr.mxu0 0.0
    %226 = vmatpush1.msra.mxu0 0.0
    %v227 = vand.u32 %v114, 4294901760
    %v228 = vsub.f32 %v114, %v227
    %v229 = vand.u32 %v228, 4294901760
    %v230 = vsub.f32 %v228, %v229
    %v231 = vand.u32 %v230, 4294901760
    %232 = vmatprep.subr.mxu0 %v231
    %v233 = vand.u32 %v113, 4294901760
    %v234 = vsub.f32 %v113, %v233
    %v235 = vand.u32 %v234, 4294901760
    %v236 = vsub.f32 %v234, %v235
    %v237 = vand.u32 %v236, 4294901760
    %238 = vmatpush1.msra.mxu0 %v237
    %239 = vmatprep.subr.mxu0 0.0
    %240 = vmatpush2.msra.mxu0 0.0
    %241 = vmatprep.subr.mxu0 0.0
    %242 = vmatpush2.msra.mxu0 0.0
    %243 = vmatprep.subr.mxu0 0.0
    %244 = vmatpush2.msra.mxu0 0.0
    %245 = vmatprep.subr.mxu0 0.0
    %246 = vmatpush2.msra.mxu0 0.0
    %247 = vmatprep.subr.mxu0 0.0
    %248 = vmatpush2.msra.mxu0 0.0
    %249 = vmatprep.subr.mxu0 0.0
    %250 = vmatpush2.msra.mxu0 0.0
    %251 = vmatprep.subr.mxu0 0.0
    %252 = vmatpush2.msra.mxu0 0.0
    %253 = vmatprep.subr.mxu0 0.0
    %254 = vmatpush2.msra.mxu0 0.0
    %255 = vmatprep.subr.mxu0 0.0
    %256 = vmatpush2.msra.mxu0 0.0
    %257 = vmatprep.subr.mxu0 0.0
    %258 = vmatpush2.msra.mxu0 0.0
    %259 = vmatprep.subr.mxu0 0.0
    %260 = vmatpush2.msra.mxu0 0.0
    %261 = vmatprep.subr.mxu0 0.0
    %262 = vmatpush2.msra.mxu0 0.0
    %263 = vmatprep.subr.mxu0 0.0
    %264 = vmatpush2.msra.mxu0 0.0
    %265 = vmatprep.subr.mxu0 0.0
    %266 = vmatpush2.msra.mxu0 0.0
    %267 = vmatprep.subr.mxu0 0.0
    %268 = vmatpush2.msra.mxu0 0.0
    %269 = vmatprep.subr.mxu0 0.0
    %270 = vmatpush2.msra.mxu0 0.0
    %271 = vmatprep.mubr.f32.mxu0 0.0
    %v272 = vand.u32 %v117, 4294901760
    %273 = vmatmul.mubr.f32.gmra.mxu0 %v272
    %v274 = vpop.f32.mrf.mxu0
    %v275 = vadd.f32 %v193, %v274
    %v276 = vpop.f32.mrf.mxu0
    %v277 = vadd.f32 %v195, %v276
    %278 = vdwg.mxu0
    %279 = vmatprep.subr.mxu0 0.0
    %280 = vmatpush1.msra.mxu0 0.0
    %281 = vmatprep.subr.mxu0 0.0
    %282 = vmatpush1.msra.mxu0 0.0
    %283 = vmatprep.subr.mxu0 0.0
    %284 = vmatpush1.msra.mxu0 0.0
    %285 = vmatprep.subr.mxu0 0.0
    %286 = vmatpush1.msra.mxu0 0.0
    %287 = vmatprep.subr.mxu0 0.0
    %288 = vmatpush1.msra.mxu0 0.0
    %289 = vmatprep.subr.mxu0 0.0
    %290 = vmatpush1.msra.mxu0 0.0
    %291 = vmatprep.subr.mxu0 0.0
    %292 = vmatpush1.msra.mxu0 0.0
    %293 = vmatprep.subr.mxu0 0.0
    %294 = vmatpush1.msra.mxu0 0.0
    %295 = vmatprep.subr.mxu0 0.0
    %296 = vmatpush1.msra.mxu0 0.0
    %297 = vmatprep.subr.mxu0 0.0
    %298 = vmatpush1.msra.mxu0 0.0
    %299 = vmatprep.subr.mxu0 0.0
    %300 = vmatpush1.msra.mxu0 0.0
    %301 = vmatprep.subr.mxu0 0.0
    %302 = vmatpush1.msra.mxu0 0.0
    %303 = vmatprep.subr.mxu0 0.0
    %304 = vmatpush1.msra.mxu0 0.0
    %305 = vmatprep.subr.mxu0 0.0
    %306 = vmatpush1.msra.mxu0 0.0
    %307 = vmatprep.subr.mxu0 0.0
    %308 = vmatpush1.msra.mxu0 0.0
    %v309 = vand.u32 %v114, 4294901760
    %v310 = vsub.f32 %v114, %v309
    %311 = vmatprep.subr.mxu0 %v310
    %v312 = vand.u32 %v113, 4294901760
    %v313 = vsub.f32 %v113, %v312
    %314 = vmatpush1.msra.mxu0 %v313
    %315 = vmatprep.subr.mxu0 0.0
    %316 = vmatpush2.msra.mxu0 0.0
    %317 = vmatprep.subr.mxu0 0.0
    %318 = vmatpush2.msra.mxu0 0.0
    %319 = vmatprep.subr.mxu0 0.0
    %320 = vmatpush2.msra.mxu0 0.0
    %321 = vmatprep.subr.mxu0 0.0
    %322 = vmatpush2.msra.mxu0 0.0
    %323 = vmatprep.subr.mxu0 0.0
    %324 = vmatpush2.msra.mxu0 0.0
    %325 = vmatprep.subr.mxu0 0.0
    %326 = vmatpush2.msra.mxu0 0.0
    %327 = vmatprep.subr.mxu0 0.0
    %328 = vmatpush2.msra.mxu0 0.0
    %329 = vmatprep.subr.mxu0 0.0
    %330 = vmatpush2.msra.mxu0 0.0
    %331 = vmatprep.subr.mxu0 0.0
    %332 = vmatpush2.msra.mxu0 0.0
    %333 = vmatprep.subr.mxu0 0.0
    %334 = vmatpush2.msra.mxu0 0.0
    %335 = vmatprep.subr.mxu0 0.0
    %336 = vmatpush2.msra.mxu0 0.0
    %337 = vmatprep.subr.mxu0 0.0
    %338 = vmatpush2.msra.mxu0 0.0
    %339 = vmatprep.subr.mxu0 0.0
    %340 = vmatpush2.msra.mxu0 0.0
    %341 = vmatprep.subr.mxu0 0.0
    %342 = vmatpush2.msra.mxu0 0.0
    %343 = vmatprep.subr.mxu0 0.0
    %344 = vmatpush2.msra.mxu0 0.0
    %345 = vmatprep.subr.mxu0 0.0
    %346 = vmatpush2.msra.mxu0 0.0
    %347 = vmatprep.mubr.f32.mxu0 0.0
    %v348 = vand.u32 %v117, 4294901760
    %v349 = vsub.f32 %v117, %v348
    %350 = vmatmul.mubr.f32.gmra.mxu0 %v349
    %v351 = vpop.f32.mrf.mxu0
    %v352 = vadd.f32 %v275, %v351
    %v353 = vpop.f32.mrf.mxu0
    %v354 = vadd.f32 %v277, %v353
    %355 = vdwg.mxu0
    %356 = vmatprep.subr.mxu0 0.0
    %357 = vmatpush1.msra.mxu0 0.0
    %358 = vmatprep.subr.mxu0 0.0
    %359 = vmatpush1.msra.mxu0 0.0
    %360 = vmatprep.subr.mxu0 0.0
    %361 = vmatpush1.msra.mxu0 0.0
    %362 = vmatprep.subr.mxu0 0.0
    %363 = vmatpush1.msra.mxu0 0.0
    %364 = vmatprep.subr.mxu0 0.0
    %365 = vmatpush1.msra.mxu0 0.0
    %366 = vmatprep.subr.mxu0 0.0
    %367 = vmatpush1.msra.mxu0 0.0
    %368 = vmatprep.subr.mxu0 0.0
    %369 = vmatpush1.msra.mxu0 0.0
    %370 = vmatprep.subr.mxu0 0.0
    %371 = vmatpush1.msra.mxu0 0.0
    %372 = vmatprep.subr.mxu0 0.0
    %373 = vmatpush1.msra.mxu0 0.0
    %374 = vmatprep.subr.mxu0 0.0
    %375 = vmatpush1.msra.mxu0 0.0
    %376 = vmatprep.subr.mxu0 0.0
    %377 = vmatpush1.msra.mxu0 0.0
    %378 = vmatprep.subr.mxu0 0.0
    %379 = vmatpush1.msra.mxu0 0.0
    %380 = vmatprep.subr.mxu0 0.0
    %381 = vmatpush1.msra.mxu0 0.0
    %382 = vmatprep.subr.mxu0 0.0
    %383 = vmatpush1.msra.mxu0 0.0
    %384 = vmatprep.subr.mxu0 0.0
    %385 = vmatpush1.msra.mxu0 0.0
    %v386 = vand.u32 %v114, 4294901760
    %387 = vmatprep.subr.mxu0 %v386
    %v388 = vand.u32 %v113, 4294901760
    %389 = vmatpush1.msra.mxu0 %v388
    %390 = vmatprep.subr.mxu0 0.0
    %391 = vmatpush2.msra.mxu0 0.0
    %392 = vmatprep.subr.mxu0 0.0
    %393 = vmatpush2.msra.mxu0 0.0
    %394 = vmatprep.subr.mxu0 0.0
    %395 = vmatpush2.msra.mxu0 0.0
    %396 = vmatprep.subr.mxu0 0.0
    %397 = vmatpush2.msra.mxu0 0.0
    %398 = vmatprep.subr.mxu0 0.0
    %399 = vmatpush2.msra.mxu0 0.0
    %400 = vmatprep.subr.mxu0 0.0
    %401 = vmatpush2.msra.mxu0 0.0
    %402 = vmatprep.subr.mxu0 0.0
    %403 = vmatpush2.msra.mxu0 0.0
    %404 = vmatprep.subr.mxu0 0.0
    %405 = vmatpush2.msra.mxu0 0.0
    %406 = vmatprep.subr.mxu0 0.0
    %407 = vmatpush2.msra.mxu0 0.0
    %408 = vmatprep.subr.mxu0 0.0
    %409 = vmatpush2.msra.mxu0 0.0
    %410 = vmatprep.subr.mxu0 0.0
    %411 = vmatpush2.msra.mxu0 0.0
    %412 = vmatprep.subr.mxu0 0.0
    %413 = vmatpush2.msra.mxu0 0.0
    %414 = vmatprep.subr.mxu0 0.0
    %415 = vmatpush2.msra.mxu0 0.0
    %416 = vmatprep.subr.mxu0 0.0
    %417 = vmatpush2.msra.mxu0 0.0
    %418 = vmatprep.subr.mxu0 0.0
    %419 = vmatpush2.msra.mxu0 0.0
    %420 = vmatprep.subr.mxu0 0.0
    %421 = vmatpush2.msra.mxu0 0.0
    %422 = vmatprep.mubr.f32.mxu0 0.0
    %v423 = vand.u32 %v117, 4294901760
    %v424 = vsub.f32 %v117, %v423
    %v425 = vand.u32 %v424, 4294901760
    %426 = vmatmul.mubr.f32.gmra.mxu0 %v425
    %v427 = vpop.f32.mrf.mxu0
    %v428 = vadd.f32 %v352, %v427
    %v429 = vpop.f32.mrf.mxu0
    %v430 = vadd.f32 %v354, %v429
    %431 = vdwg.mxu0
    %432 = vmatprep.subr.mxu0 0.0
    %433 = vmatpush1.msra.mxu0 0.0
    %434 = vmatprep.subr.mxu0 0.0
    %435 = vmatpush1.msra.mxu0 0.0
    %436 = vmatprep.subr.mxu0 0.0
    %437 = vmatpush1.msra.mxu0 0.0
    %438 = vmatprep.subr.mxu0 0.0
    %439 = vmatpush1.msra.mxu0 0.0
    %440 = vmatprep.subr.mxu0 0.0
    %441 = vmatpush1.msra.mxu0 0.0
    %442 = vmatprep.subr.mxu0 0.0
    %443 = vmatpush1.msra.mxu0 0.0
    %444 = vmatprep.subr.mxu0 0.0
    %445 = vmatpush1.msra.mxu0 0.0
    %446 = vmatprep.subr.mxu0 0.0
    %447 = vmatpush1.msra.mxu0 0.0
    %448 = vmatprep.subr.mxu0 0.0
    %449 = vmatpush1.msra.mxu0 0.0
    %450 = vmatprep.subr.mxu0 0.0
    %451 = vmatpush1.msra.mxu0 0.0
    %452 = vmatprep.subr.mxu0 0.0
    %453 = vmatpush1.msra.mxu0 0.0
    %454 = vmatprep.subr.mxu0 0.0
    %455 = vmatpush1.msra.mxu0 0.0
    %456 = vmatprep.subr.mxu0 0.0
    %457 = vmatpush1.msra.mxu0 0.0
    %458 = vmatprep.subr.mxu0 0.0
    %459 = vmatpush1.msra.mxu0 0.0
    %460 = vmatprep.subr.mxu0 0.0
    %461 = vmatpush1.msra.mxu0 0.0
    %v462 = vand.u32 %v114, 4294901760
    %v463 = vsub.f32 %v114, %v462
    %v464 = vand.u32 %v463, 4294901760
    %465 = vmatprep.subr.mxu0 %v464
    %v466 = vand.u32 %v113, 4294901760
    %v467 = vsub.f32 %v113, %v466
    %v468 = vand.u32 %v467, 4294901760
    %469 = vmatpush1.msra.mxu0 %v468
    %470 = vmatprep.subr.mxu0 0.0
    %471 = vmatpush2.msra.mxu0 0.0
    %472 = vmatprep.subr.mxu0 0.0
    %473 = vmatpush2.msra.mxu0 0.0
    %474 = vmatprep.subr.mxu0 0.0
    %475 = vmatpush2.msra.mxu0 0.0
    %476 = vmatprep.subr.mxu0 0.0
    %477 = vmatpush2.msra.mxu0 0.0
    %478 = vmatprep.subr.mxu0 0.0
    %479 = vmatpush2.msra.mxu0 0.0
    %480 = vmatprep.subr.mxu0 0.0
    %481 = vmatpush2.msra.mxu0 0.0
    %482 = vmatprep.subr.mxu0 0.0
    %483 = vmatpush2.msra.mxu0 0.0
    %484 = vmatprep.subr.mxu0 0.0
    %485 = vmatpush2.msra.mxu0 0.0
    %486 = vmatprep.subr.mxu0 0.0
    %487 = vmatpush2.msra.mxu0 0.0
    %488 = vmatprep.subr.mxu0 0.0
    %489 = vmatpush2.msra.mxu0 0.0
    %490 = vmatprep.subr.mxu0 0.0
    %491 = vmatpush2.msra.mxu0 0.0
    %492 = vmatprep.subr.mxu0 0.0
    %493 = vmatpush2.msra.mxu0 0.0
    %494 = vmatprep.subr.mxu0 0.0
    %495 = vmatpush2.msra.mxu0 0.0
    %496 = vmatprep.subr.mxu0 0.0
    %497 = vmatpush2.msra.mxu0 0.0
    %498 = vmatprep.subr.mxu0 0.0
    %499 = vmatpush2.msra.mxu0 0.0
    %500 = vmatprep.subr.mxu0 0.0
    %501 = vmatpush2.msra.mxu0 0.0
    %502 = vmatprep.mubr.f32.mxu0 0.0
    %v503 = vand.u32 %v117, 4294901760
    %504 = vmatmul.mubr.f32.gmra.mxu0 %v503
    %v505 = vpop.f32.mrf.mxu0
    %v506 = vadd.f32 %v428, %v505
    %v507 = vpop.f32.mrf.mxu0
    %v508 = vadd.f32 %v430, %v507
    %509 = vdwg.mxu0
    %510 = vmatprep.subr.mxu0 0.0
    %511 = vmatpush1.msra.mxu0 0.0
    %512 = vmatprep.subr.mxu0 0.0
    %513 = vmatpush1.msra.mxu0 0.0
    %514 = vmatprep.subr.mxu0 0.0
    %515 = vmatpush1.msra.mxu0 0.0
    %516 = vmatprep.subr.mxu0 0.0
    %517 = vmatpush1.msra.mxu0 0.0
    %518 = vmatprep.subr.mxu0 0.0
    %519 = vmatpush1.msra.mxu0 0.0
    %520 = vmatprep.subr.mxu0 0.0
    %521 = vmatpush1.msra.mxu0 0.0
    %522 = vmatprep.subr.mxu0 0.0
    %523 = vmatpush1.msra.mxu0 0.0
    %524 = vmatprep.subr.mxu0 0.0
    %525 = vmatpush1.msra.mxu0 0.0
    %526 = vmatprep.subr.mxu0 0.0
    %527 = vmatpush1.msra.mxu0 0.0
    %528 = vmatprep.subr.mxu0 0.0
    %529 = vmatpush1.msra.mxu0 0.0
    %530 = vmatprep.subr.mxu0 0.0
    %531 = vmatpush1.msra.mxu0 0.0
    %532 = vmatprep.subr.mxu0 0.0
    %533 = vmatpush1.msra.mxu0 0.0
    %534 = vmatprep.subr.mxu0 0.0
    %535 = vmatpush1.msra.mxu0 0.0
    %536 = vmatprep.subr.mxu0 0.0
    %537 = vmatpush1.msra.mxu0 0.0
    %538 = vmatprep.subr.mxu0 0.0
    %539 = vmatpush1.msra.mxu0 0.0
    %v540 = vand.u32 %v114, 4294901760
    %541 = vmatprep.subr.mxu0 %v540
    %v542 = vand.u32 %v113, 4294901760
    %543 = vmatpush1.msra.mxu0 %v542
    %544 = vmatprep.subr.mxu0 0.0
    %545 = vmatpush2.msra.mxu0 0.0
    %546 = vmatprep.subr.mxu0 0.0
    %547 = vmatpush2.msra.mxu0 0.0
    %548 = vmatprep.subr.mxu0 0.0
    %549 = vmatpush2.msra.mxu0 0.0
    %550 = vmatprep.subr.mxu0 0.0
    %551 = vmatpush2.msra.mxu0 0.0
    %552 = vmatprep.subr.mxu0 0.0
    %553 = vmatpush2.msra.mxu0 0.0
    %554 = vmatprep.subr.mxu0 0.0
    %555 = vmatpush2.msra.mxu0 0.0
    %556 = vmatprep.subr.mxu0 0.0
    %557 = vmatpush2.msra.mxu0 0.0
    %558 = vmatprep.subr.mxu0 0.0
    %559 = vmatpush2.msra.mxu0 0.0
    %560 = vmatprep.subr.mxu0 0.0
    %561 = vmatpush2.msra.mxu0 0.0
    %562 = vmatprep.subr.mxu0 0.0
    %563 = vmatpush2.msra.mxu0 0.0
    %564 = vmatprep.subr.mxu0 0.0
    %565 = vmatpush2.msra.mxu0 0.0
    %566 = vmatprep.subr.mxu0 0.0
    %567 = vmatpush2.msra.mxu0 0.0
    %568 = vmatprep.subr.mxu0 0.0
    %569 = vmatpush2.msra.mxu0 0.0
    %570 = vmatprep.subr.mxu0 0.0
    %571 = vmatpush2.msra.mxu0 0.0
    %572 = vmatprep.subr.mxu0 0.0
    %573 = vmatpush2.msra.mxu0 0.0
    %574 = vmatprep.subr.mxu0 0.0
    %575 = vmatpush2.msra.mxu0 0.0
    %576 = vmatprep.mubr.f32.mxu0 0.0
    %v577 = vand.u32 %v117, 4294901760
    %578 = vmatmul.mubr.f32.gmra.mxu0 %v577
    %v579 = vpop.f32.mrf.mxu0
    %v580 = vadd.f32 %v506, %v579
    %v581 = vpop.f32.mrf.mxu0
    %v582 = vadd.f32 %v508, %v581
    %583 = vdwg.mxu0
    %v585 = vsel %vm115, %v24, 0
    %587 = vmatprep.subr.mxu0 0.0
    %588 = vmatpush1.msra.mxu0 0.0
    %589 = vmatprep.subr.mxu0 0.0
    %590 = vmatpush1.msra.mxu0 0.0
    %591 = vmatprep.subr.mxu0 0.0
    %592 = vmatpush1.msra.mxu0 0.0
    %593 = vmatprep.subr.mxu0 0.0
    %594 = vmatpush1.msra.mxu0 0.0
    %595 = vmatprep.subr.mxu0 0.0
    %596 = vmatpush1.msra.mxu0 0.0
    %597 = vmatprep.subr.mxu0 0.0
    %598 = vmatpush1.msra.mxu0 0.0
    %599 = vmatprep.subr.mxu0 0.0
    %600 = vmatpush1.msra.mxu0 0.0
    %601 = vmatprep.subr.mxu0 0.0
    %602 = vmatpush1.msra.mxu0 0.0
    %603 = vmatprep.subr.mxu0 0.0
    %604 = vmatpush1.msra.mxu0 0.0
    %605 = vmatprep.subr.mxu0 0.0
    %606 = vmatpush1.msra.mxu0 0.0
    %607 = vmatprep.subr.mxu0 0.0
    %608 = vmatpush1.msra.mxu0 0.0
    %609 = vmatprep.subr.mxu0 0.0
    %610 = vmatpush1.msra.mxu0 0.0
    %611 = vmatprep.subr.mxu0 0.0
    %612 = vmatpush1.msra.mxu0 0.0
    %613 = vmatprep.subr.mxu0 0.0
    %614 = vmatpush1.msra.mxu0 0.0
    %615 = vmatprep.subr.mxu0 0.0
    %616 = vmatpush1.msra.mxu0 0.0
    %v617 = vand.u32 %v19, 4294901760
    %618 = vmatprep.subr.mxu0 %v617
    %v619 = vand.u32 %v18, 4294901760
    %620 = vmatpush1.msra.mxu0 %v619
    %621 = vmatprep.subr.mxu0 0.0
    %622 = vmatpush2.msra.mxu0 0.0
    %623 = vmatprep.subr.mxu0 0.0
    %624 = vmatpush2.msra.mxu0 0.0
    %625 = vmatprep.subr.mxu0 0.0
    %626 = vmatpush2.msra.mxu0 0.0
    %627 = vmatprep.subr.mxu0 0.0
    %628 = vmatpush2.msra.mxu0 0.0
    %629 = vmatprep.subr.mxu0 0.0
    %630 = vmatpush2.msra.mxu0 0.0
    %631 = vmatprep.subr.mxu0 0.0
    %632 = vmatpush2.msra.mxu0 0.0
    %633 = vmatprep.subr.mxu0 0.0
    %634 = vmatpush2.msra.mxu0 0.0
    %635 = vmatprep.subr.mxu0 0.0
    %636 = vmatpush2.msra.mxu0 0.0
    %637 = vmatprep.subr.mxu0 0.0
    %638 = vmatpush2.msra.mxu0 0.0
    %639 = vmatprep.subr.mxu0 0.0
    %640 = vmatpush2.msra.mxu0 0.0
    %641 = vmatprep.subr.mxu0 0.0
    %642 = vmatpush2.msra.mxu0 0.0
    %643 = vmatprep.subr.mxu0 0.0
    %644 = vmatpush2.msra.mxu0 0.0
    %645 = vmatprep.subr.mxu0 0.0
    %646 = vmatpush2.msra.mxu0 0.0
    %647 = vmatprep.subr.mxu0 0.0
    %648 = vmatpush2.msra.mxu0 0.0
    %649 = vmatprep.subr.mxu0 0.0
    %650 = vmatpush2.msra.mxu0 0.0
    %651 = vmatprep.subr.mxu0 0.0
    %652 = vmatpush2.msra.mxu0 0.0
    %653 = vmatprep.mubr.f32.mxu0 0.0
    %v654 = vand.u32 %v585, 4294901760
    %v655 = vsub.f32 %v585, %v654
    %v656 = vand.u32 %v655, 4294901760
    %v657 = vsub.f32 %v655, %v656
    %v658 = vand.u32 %v657, 4294901760
    %659 = vmatmul.mubr.f32.gmra.mxu0 %v658
    %v660 = vpop.f32.mrf.mxu0
    %v661 = vadd.f32 %v580, %v660
    %v662 = vpop.f32.mrf.mxu0
    %v663 = vadd.f32 %v582, %v662
    %664 = vdwg.mxu0
    %665 = vmatprep.subr.mxu0 0.0
    %666 = vmatpush1.msra.mxu0 0.0
    %667 = vmatprep.subr.mxu0 0.0
    %668 = vmatpush1.msra.mxu0 0.0
    %669 = vmatprep.subr.mxu0 0.0
    %670 = vmatpush1.msra.mxu0 0.0
    %671 = vmatprep.subr.mxu0 0.0
    %672 = vmatpush1.msra.mxu0 0.0
    %673 = vmatprep.subr.mxu0 0.0
    %674 = vmatpush1.msra.mxu0 0.0
    %675 = vmatprep.subr.mxu0 0.0
    %676 = vmatpush1.msra.mxu0 0.0
    %677 = vmatprep.subr.mxu0 0.0
    %678 = vmatpush1.msra.mxu0 0.0
    %679 = vmatprep.subr.mxu0 0.0
    %680 = vmatpush1.msra.mxu0 0.0
    %681 = vmatprep.subr.mxu0 0.0
    %682 = vmatpush1.msra.mxu0 0.0
    %683 = vmatprep.subr.mxu0 0.0
    %684 = vmatpush1.msra.mxu0 0.0
    %685 = vmatprep.subr.mxu0 0.0
    %686 = vmatpush1.msra.mxu0 0.0
    %687 = vmatprep.subr.mxu0 0.0
    %688 = vmatpush1.msra.mxu0 0.0
    %689 = vmatprep.subr.mxu0 0.0
    %690 = vmatpush1.msra.mxu0 0.0
    %691 = vmatprep.subr.mxu0 0.0
    %692 = vmatpush1.msra.mxu0 0.0
    %693 = vmatprep.subr.mxu0 0.0
    %694 = vmatpush1.msra.mxu0 0.0
    %v695 = vand.u32 %v19, 4294901760
    %v696 = vsub.f32 %v19, %v695
    %v697 = vand.u32 %v696, 4294901760
    %v698 = vsub.f32 %v696, %v697
    %v699 = vand.u32 %v698, 4294901760
    %700 = vmatprep.subr.mxu0 %v699
    %v701 = vand.u32 %v18, 4294901760
    %v702 = vsub.f32 %v18, %v701
    %v703 = vand.u32 %v702, 4294901760
    %v704 = vsub.f32 %v702, %v703
    %v705 = vand.u32 %v704, 4294901760
    %706 = vmatpush1.msra.mxu0 %v705
    %707 = vmatprep.subr.mxu0 0.0
    %708 = vmatpush2.msra.mxu0 0.0
    %709 = vmatprep.subr.mxu0 0.0
    %710 = vmatpush2.msra.mxu0 0.0
    %711 = vmatprep.subr.mxu0 0.0
    %712 = vmatpush2.msra.mxu0 0.0
    %713 = vmatprep.subr.mxu0 0.0
    %714 = vmatpush2.msra.mxu0 0.0
    %715 = vmatprep.subr.mxu0 0.0
    %716 = vmatpush2.msra.mxu0 0.0
    %717 = vmatprep.subr.mxu0 0.0
    %718 = vmatpush2.msra.mxu0 0.0
    %719 = vmatprep.subr.mxu0 0.0
    %720 = vmatpush2.msra.mxu0 0.0
    %721 = vmatprep.subr.mxu0 0.0
    %722 = vmatpush2.msra.mxu0 0.0
    %723 = vmatprep.subr.mxu0 0.0
    %724 = vmatpush2.msra.mxu0 0.0
    %725 = vmatprep.subr.mxu0 0.0
    %726 = vmatpush2.msra.mxu0 0.0
    %727 = vmatprep.subr.mxu0 0.0
    %728 = vmatpush2.msra.mxu0 0.0
    %729 = vmatprep.subr.mxu0 0.0
    %730 = vmatpush2.msra.mxu0 0.0
    %731 = vmatprep.subr.mxu0 0.0
    %732 = vmatpush2.msra.mxu0 0.0
    %733 = vmatprep.subr.mxu0 0.0
    %734 = vmatpush2.msra.mxu0 0.0
    %735 = vmatprep.subr.mxu0 0.0
    %736 = vmatpush2.msra.mxu0 0.0
    %737 = vmatprep.subr.mxu0 0.0
    %738 = vmatpush2.msra.mxu0 0.0
    %739 = vmatprep.mubr.f32.mxu0 0.0
    %v740 = vand.u32 %v585, 4294901760
    %741 = vmatmul.mubr.f32.gmra.mxu0 %v740
    %v742 = vpop.f32.mrf.mxu0
    %v743 = vadd.f32 %v661, %v742
    %v744 = vpop.f32.mrf.mxu0
    %v745 = vadd.f32 %v663, %v744
    %746 = vdwg.mxu0
    %747 = vmatprep.subr.mxu0 0.0
    %748 = vmatpush1.msra.mxu0 0.0
    %749 = vmatprep.subr.mxu0 0.0
    %750 = vmatpush1.msra.mxu0 0.0
    %751 = vmatprep.subr.mxu0 0.0
    %752 = vmatpush1.msra.mxu0 0.0
    %753 = vmatprep.subr.mxu0 0.0
    %754 = vmatpush1.msra.mxu0 0.0
    %755 = vmatprep.subr.mxu0 0.0
    %756 = vmatpush1.msra.mxu0 0.0
    %757 = vmatprep.subr.mxu0 0.0
    %758 = vmatpush1.msra.mxu0 0.0
    %759 = vmatprep.subr.mxu0 0.0
    %760 = vmatpush1.msra.mxu0 0.0
    %761 = vmatprep.subr.mxu0 0.0
    %762 = vmatpush1.msra.mxu0 0.0
    %763 = vmatprep.subr.mxu0 0.0
    %764 = vmatpush1.msra.mxu0 0.0
    %765 = vmatprep.subr.mxu0 0.0
    %766 = vmatpush1.msra.mxu0 0.0
    %767 = vmatprep.subr.mxu0 0.0
    %768 = vmatpush1.msra.mxu0 0.0
    %769 = vmatprep.subr.mxu0 0.0
    %770 = vmatpush1.msra.mxu0 0.0
    %771 = vmatprep.subr.mxu0 0.0
    %772 = vmatpush1.msra.mxu0 0.0
    %773 = vmatprep.subr.mxu0 0.0
    %774 = vmatpush1.msra.mxu0 0.0
    %775 = vmatprep.subr.mxu0 0.0
    %776 = vmatpush1.msra.mxu0 0.0
    %v777 = vand.u32 %v19, 4294901760
    %v778 = vsub.f32 %v19, %v777
    %779 = vmatprep.subr.mxu0 %v778
    %v780 = vand.u32 %v18, 4294901760
    %v781 = vsub.f32 %v18, %v780
    %782 = vmatpush1.msra.mxu0 %v781
    %783 = vmatprep.subr.mxu0 0.0
    %784 = vmatpush2.msra.mxu0 0.0
    %785 = vmatprep.subr.mxu0 0.0
    %786 = vmatpush2.msra.mxu0 0.0
    %787 = vmatprep.subr.mxu0 0.0
    %788 = vmatpush2.msra.mxu0 0.0
    %789 = vmatprep.subr.mxu0 0.0
    %790 = vmatpush2.msra.mxu0 0.0
    %791 = vmatprep.subr.mxu0 0.0
    %792 = vmatpush2.msra.mxu0 0.0
    %793 = vmatprep.subr.mxu0 0.0
    %794 = vmatpush2.msra.mxu0 0.0
    %795 = vmatprep.subr.mxu0 0.0
    %796 = vmatpush2.msra.mxu0 0.0
    %797 = vmatprep.subr.mxu0 0.0
    %798 = vmatpush2.msra.mxu0 0.0
    %799 = vmatprep.subr.mxu0 0.0
    %800 = vmatpush2.msra.mxu0 0.0
    %801 = vmatprep.subr.mxu0 0.0
    %802 = vmatpush2.msra.mxu0 0.0
    %803 = vmatprep.subr.mxu0 0.0
    %804 = vmatpush2.msra.mxu0 0.0
    %805 = vmatprep.subr.mxu0 0.0
    %806 = vmatpush2.msra.mxu0 0.0
    %807 = vmatprep.subr.mxu0 0.0
    %808 = vmatpush2.msra.mxu0 0.0
    %809 = vmatprep.subr.mxu0 0.0
    %810 = vmatpush2.msra.mxu0 0.0
    %811 = vmatprep.subr.mxu0 0.0
    %812 = vmatpush2.msra.mxu0 0.0
    %813 = vmatprep.subr.mxu0 0.0
    %814 = vmatpush2.msra.mxu0 0.0
    %815 = vmatprep.mubr.f32.mxu0 0.0
    %v816 = vand.u32 %v585, 4294901760
    %v817 = vsub.f32 %v585, %v816
    %818 = vmatmul.mubr.f32.gmra.mxu0 %v817
    %v819 = vpop.f32.mrf.mxu0
    %v820 = vadd.f32 %v743, %v819
    %v821 = vpop.f32.mrf.mxu0
    %v822 = vadd.f32 %v745, %v821
    %823 = vdwg.mxu0
    %824 = vmatprep.subr.mxu0 0.0
    %825 = vmatpush1.msra.mxu0 0.0
    %826 = vmatprep.subr.mxu0 0.0
    %827 = vmatpush1.msra.mxu0 0.0
    %828 = vmatprep.subr.mxu0 0.0
    %829 = vmatpush1.msra.mxu0 0.0
    %830 = vmatprep.subr.mxu0 0.0
    %831 = vmatpush1.msra.mxu0 0.0
    %832 = vmatprep.subr.mxu0 0.0
    %833 = vmatpush1.msra.mxu0 0.0
    %834 = vmatprep.subr.mxu0 0.0
    %835 = vmatpush1.msra.mxu0 0.0
    %836 = vmatprep.subr.mxu0 0.0
    %837 = vmatpush1.msra.mxu0 0.0
    %838 = vmatprep.subr.mxu0 0.0
    %839 = vmatpush1.msra.mxu0 0.0
    %840 = vmatprep.subr.mxu0 0.0
    %841 = vmatpush1.msra.mxu0 0.0
    %842 = vmatprep.subr.mxu0 0.0
    %843 = vmatpush1.msra.mxu0 0.0
    %844 = vmatprep.subr.mxu0 0.0
    %845 = vmatpush1.msra.mxu0 0.0
    %846 = vmatprep.subr.mxu0 0.0
    %847 = vmatpush1.msra.mxu0 0.0
    %848 = vmatprep.subr.mxu0 0.0
    %849 = vmatpush1.msra.mxu0 0.0
    %850 = vmatprep.subr.mxu0 0.0
    %851 = vmatpush1.msra.mxu0 0.0
    %852 = vmatprep.subr.mxu0 0.0
    %853 = vmatpush1.msra.mxu0 0.0
    %v854 = vand.u32 %v19, 4294901760
    %855 = vmatprep.subr.mxu0 %v854
    %v856 = vand.u32 %v18, 4294901760
    %857 = vmatpush1.msra.mxu0 %v856
    %858 = vmatprep.subr.mxu0 0.0
    %859 = vmatpush2.msra.mxu0 0.0
    %860 = vmatprep.subr.mxu0 0.0
    %861 = vmatpush2.msra.mxu0 0.0
    %862 = vmatprep.subr.mxu0 0.0
    %863 = vmatpush2.msra.mxu0 0.0
    %864 = vmatprep.subr.mxu0 0.0
    %865 = vmatpush2.msra.mxu0 0.0
    %866 = vmatprep.subr.mxu0 0.0
    %867 = vmatpush2.msra.mxu0 0.0
    %868 = vmatprep.subr.mxu0 0.0
    %869 = vmatpush2.msra.mxu0 0.0
    %870 = vmatprep.subr.mxu0 0.0
    %871 = vmatpush2.msra.mxu0 0.0
    %872 = vmatprep.subr.mxu0 0.0
    %873 = vmatpush2.msra.mxu0 0.0
    %874 = vmatprep.subr.mxu0 0.0
    %875 = vmatpush2.msra.mxu0 0.0
    %876 = vmatprep.subr.mxu0 0.0
    %877 = vmatpush2.msra.mxu0 0.0
    %878 = vmatprep.subr.mxu0 0.0
    %879 = vmatpush2.msra.mxu0 0.0
    %880 = vmatprep.subr.mxu0 0.0
    %881 = vmatpush2.msra.mxu0 0.0
    %882 = vmatprep.subr.mxu0 0.0
    %883 = vmatpush2.msra.mxu0 0.0
    %884 = vmatprep.subr.mxu0 0.0
    %885 = vmatpush2.msra.mxu0 0.0
    %886 = vmatprep.subr.mxu0 0.0
    %887 = vmatpush2.msra.mxu0 0.0
    %888 = vmatprep.subr.mxu0 0.0
    %889 = vmatpush2.msra.mxu0 0.0
    %890 = vmatprep.mubr.f32.mxu0 0.0
    %v891 = vand.u32 %v585, 4294901760
    %v892 = vsub.f32 %v585, %v891
    %v893 = vand.u32 %v892, 4294901760
    %894 = vmatmul.mubr.f32.gmra.mxu0 %v893
    %v895 = vpop.f32.mrf.mxu0
    %v896 = vadd.f32 %v820, %v895
    %v897 = vpop.f32.mrf.mxu0
    %v898 = vadd.f32 %v822, %v897
    %899 = vdwg.mxu0
    %900 = vmatprep.subr.mxu0 0.0
    %901 = vmatpush1.msra.mxu0 0.0
    %902 = vmatprep.subr.mxu0 0.0
    %903 = vmatpush1.msra.mxu0 0.0
    %904 = vmatprep.subr.mxu0 0.0
    %905 = vmatpush1.msra.mxu0 0.0
    %906 = vmatprep.subr.mxu0 0.0
    %907 = vmatpush1.msra.mxu0 0.0
    %908 = vmatprep.subr.mxu0 0.0
    %909 = vmatpush1.msra.mxu0 0.0
    %910 = vmatprep.subr.mxu0 0.0
    %911 = vmatpush1.msra.mxu0 0.0
    %912 = vmatprep.subr.mxu0 0.0
    %913 = vmatpush1.msra.mxu0 0.0
    %914 = vmatprep.subr.mxu0 0.0
    %915 = vmatpush1.msra.mxu0 0.0
    %916 = vmatprep.subr.mxu0 0.0
    %917 = vmatpush1.msra.mxu0 0.0
    %918 = vmatprep.subr.mxu0 0.0
    %919 = vmatpush1.msra.mxu0 0.0
    %920 = vmatprep.subr.mxu0 0.0
    %921 = vmatpush1.msra.mxu0 0.0
    %922 = vmatprep.subr.mxu0 0.0
    %923 = vmatpush1.msra.mxu0 0.0
    %924 = vmatprep.subr.mxu0 0.0
    %925 = vmatpush1.msra.mxu0 0.0
    %926 = vmatprep.subr.mxu0 0.0
    %927 = vmatpush1.msra.mxu0 0.0
    %928 = vmatprep.subr.mxu0 0.0
    %929 = vmatpush1.msra.mxu0 0.0
    %v930 = vand.u32 %v19, 4294901760
    %v931 = vsub.f32 %v19, %v930
    %v932 = vand.u32 %v931, 4294901760
    %933 = vmatprep.subr.mxu0 %v932
    %v934 = vand.u32 %v18, 4294901760
    %v935 = vsub.f32 %v18, %v934
    %v936 = vand.u32 %v935, 4294901760
    %937 = vmatpush1.msra.mxu0 %v936
    %938 = vmatprep.subr.mxu0 0.0
    %939 = vmatpush2.msra.mxu0 0.0
    %940 = vmatprep.subr.mxu0 0.0
    %941 = vmatpush2.msra.mxu0 0.0
    %942 = vmatprep.subr.mxu0 0.0
    %943 = vmatpush2.msra.mxu0 0.0
    %944 = vmatprep.subr.mxu0 0.0
    %945 = vmatpush2.msra.mxu0 0.0
    %946 = vmatprep.subr.mxu0 0.0
    %947 = vmatpush2.msra.mxu0 0.0
    %948 = vmatprep.subr.mxu0 0.0
    %949 = vmatpush2.msra.mxu0 0.0
    %950 = vmatprep.subr.mxu0 0.0
    %951 = vmatpush2.msra.mxu0 0.0
    %952 = vmatprep.subr.mxu0 0.0
    %953 = vmatpush2.msra.mxu0 0.0
    %954 = vmatprep.subr.mxu0 0.0
    %955 = vmatpush2.msra.mxu0 0.0
    %956 = vmatprep.subr.mxu0 0.0
    %957 = vmatpush2.msra.mxu0 0.0
    %958 = vmatprep.subr.mxu0 0.0
    %959 = vmatpush2.msra.mxu0 0.0
    %960 = vmatprep.subr.mxu0 0.0
    %961 = vmatpush2.msra.mxu0 0.0
    %962 = vmatprep.subr.mxu0 0.0
    %963 = vmatpush2.msra.mxu0 0.0
    %964 = vmatprep.subr.mxu0 0.0
    %965 = vmatpush2.msra.mxu0 0.0
    %966 = vmatprep.subr.mxu0 0.0
    %967 = vmatpush2.msra.mxu0 0.0
    %968 = vmatprep.subr.mxu0 0.0
    %969 = vmatpush2.msra.mxu0 0.0
    %970 = vmatprep.mubr.f32.mxu0 0.0
    %v971 = vand.u32 %v585, 4294901760
    %972 = vmatmul.mubr.f32.gmra.mxu0 %v971
    %v973 = vpop.f32.mrf.mxu0
    %v974 = vadd.f32 %v896, %v973
    %v975 = vpop.f32.mrf.mxu0
    %v976 = vadd.f32 %v898, %v975
    %977 = vdwg.mxu0
    %978 = vmatprep.subr.mxu0 0.0
    %979 = vmatpush1.msra.mxu0 0.0
    %980 = vmatprep.subr.mxu0 0.0
    %981 = vmatpush1.msra.mxu0 0.0
    %982 = vmatprep.subr.mxu0 0.0
    %983 = vmatpush1.msra.mxu0 0.0
    %984 = vmatprep.subr.mxu0 0.0
    %985 = vmatpush1.msra.mxu0 0.0
    %986 = vmatprep.subr.mxu0 0.0
    %987 = vmatpush1.msra.mxu0 0.0
    %988 = vmatprep.subr.mxu0 0.0
    %989 = vmatpush1.msra.mxu0 0.0
    %990 = vmatprep.subr.mxu0 0.0
    %991 = vmatpush1.msra.mxu0 0.0
    %992 = vmatprep.subr.mxu0 0.0
    %993 = vmatpush1.msra.mxu0 0.0
    %994 = vmatprep.subr.mxu0 0.0
    %995 = vmatpush1.msra.mxu0 0.0
    %996 = vmatprep.subr.mxu0 0.0
    %997 = vmatpush1.msra.mxu0 0.0
    %998 = vmatprep.subr.mxu0 0.0
    %999 = vmatpush1.msra.mxu0 0.0
    %1000 = vmatprep.subr.mxu0 0.0
    %1001 = vmatpush1.msra.mxu0 0.0
    %1002 = vmatprep.subr.mxu0 0.0
    %1003 = vmatpush1.msra.mxu0 0.0
    %1004 = vmatprep.subr.mxu0 0.0
    %1005 = vmatpush1.msra.mxu0 0.0
    %1006 = vmatprep.subr.mxu0 0.0
    %1007 = vmatpush1.msra.mxu0 0.0
    %v1008 = vand.u32 %v19, 4294901760
    %1009 = vmatprep.subr.mxu0 %v1008
    %v1010 = vand.u32 %v18, 4294901760
    %1011 = vmatpush1.msra.mxu0 %v1010
    %1012 = vmatprep.subr.mxu0 0.0
    %1013 = vmatpush2.msra.mxu0 0.0
    %1014 = vmatprep.subr.mxu0 0.0
    %1015 = vmatpush2.msra.mxu0 0.0
    %1016 = vmatprep.subr.mxu0 0.0
    %1017 = vmatpush2.msra.mxu0 0.0
    %1018 = vmatprep.subr.mxu0 0.0
    %1019 = vmatpush2.msra.mxu0 0.0
    %1020 = vmatprep.subr.mxu0 0.0
    %1021 = vmatpush2.msra.mxu0 0.0
    %1022 = vmatprep.subr.mxu0 0.0
    %1023 = vmatpush2.msra.mxu0 0.0
    %1024 = vmatprep.subr.mxu0 0.0
    %1025 = vmatpush2.msra.mxu0 0.0
    %1026 = vmatprep.subr.mxu0 0.0
    %1027 = vmatpush2.msra.mxu0 0.0
    %1028 = vmatprep.subr.mxu0 0.0
    %1029 = vmatpush2.msra.mxu0 0.0
    %1030 = vmatprep.subr.mxu0 0.0
    %1031 = vmatpush2.msra.mxu0 0.0
    %1032 = vmatprep.subr.mxu0 0.0
    %1033 = vmatpush2.msra.mxu0 0.0
    %1034 = vmatprep.subr.mxu0 0.0
    %1035 = vmatpush2.msra.mxu0 0.0
    %1036 = vmatprep.subr.mxu0 0.0
    %1037 = vmatpush2.msra.mxu0 0.0
    %1038 = vmatprep.subr.mxu0 0.0
    %1039 = vmatpush2.msra.mxu0 0.0
    %1040 = vmatprep.subr.mxu0 0.0
    %1041 = vmatpush2.msra.mxu0 0.0
    %1042 = vmatprep.subr.mxu0 0.0
    %1043 = vmatpush2.msra.mxu0 0.0
    %1044 = vmatprep.mubr.f32.mxu0 0.0
    %v1045 = vand.u32 %v585, 4294901760
    %1046 = vmatmul.mubr.f32.gmra.mxu0 %v1045
    %v1047 = vpop.f32.mrf.mxu0
    %v1048 = vadd.f32 %v974, %v1047
    %v1049 = vpop.f32.mrf.mxu0
    %v1050 = vadd.f32 %v976, %v1049
    %1051 = vdwg.mxu0
    %1052 = vrot.lane.b32.xlu0 %v18, 16
    %v1053 = vpop.permute.xlu0 %1052
    %1054 = vrot.lane.b32.xlu0 %v19, 16
    %v1055 = vpop.permute.xlu0 %1054
    %vm1056 = vcmp.lt.s32.totalorder %v109, 16
    %v1057 = vsel %vm1056, %v1053, %v1055
    %v1058 = vsel %vm1056, %v1055, %v1053
    %v1059 = vmul.f32 %v1058, %v51
    %v1060 = vmul.f32 %v1057, %v55
    %v1062 = vsel %vm115, %v21, 0
    %1064 = vmatprep.subr.mxu0 0.0
    %1065 = vmatpush1.msra.mxu0 0.0
    %1066 = vmatprep.subr.mxu0 0.0
    %1067 = vmatpush1.msra.mxu0 0.0
    %1068 = vmatprep.subr.mxu0 0.0
    %1069 = vmatpush1.msra.mxu0 0.0
    %1070 = vmatprep.subr.mxu0 0.0
    %1071 = vmatpush1.msra.mxu0 0.0
    %1072 = vmatprep.subr.mxu0 0.0
    %1073 = vmatpush1.msra.mxu0 0.0
    %1074 = vmatprep.subr.mxu0 0.0
    %1075 = vmatpush1.msra.mxu0 0.0
    %1076 = vmatprep.subr.mxu0 0.0
    %1077 = vmatpush1.msra.mxu0 0.0
    %1078 = vmatprep.subr.mxu0 0.0
    %1079 = vmatpush1.msra.mxu0 0.0
    %1080 = vmatprep.subr.mxu0 0.0
    %1081 = vmatpush1.msra.mxu0 0.0
    %1082 = vmatprep.subr.mxu0 0.0
    %1083 = vmatpush1.msra.mxu0 0.0
    %1084 = vmatprep.subr.mxu0 0.0
    %1085 = vmatpush1.msra.mxu0 0.0
    %1086 = vmatprep.subr.mxu0 0.0
    %1087 = vmatpush1.msra.mxu0 0.0
    %1088 = vmatprep.subr.mxu0 0.0
    %1089 = vmatpush1.msra.mxu0 0.0
    %1090 = vmatprep.subr.mxu0 0.0
    %1091 = vmatpush1.msra.mxu0 0.0
    %1092 = vmatprep.subr.mxu0 0.0
    %1093 = vmatpush1.msra.mxu0 0.0
    %v1094 = vand.u32 %v1060, 4294901760
    %1095 = vmatprep.subr.mxu0 %v1094
    %v1096 = vand.u32 %v1059, 4294901760
    %1097 = vmatpush1.msra.mxu0 %v1096
    %1098 = vmatprep.subr.mxu0 0.0
    %1099 = vmatpush2.msra.mxu0 0.0
    %1100 = vmatprep.subr.mxu0 0.0
    %1101 = vmatpush2.msra.mxu0 0.0
    %1102 = vmatprep.subr.mxu0 0.0
    %1103 = vmatpush2.msra.mxu0 0.0
    %1104 = vmatprep.subr.mxu0 0.0
    %1105 = vmatpush2.msra.mxu0 0.0
    %1106 = vmatprep.subr.mxu0 0.0
    %1107 = vmatpush2.msra.mxu0 0.0
    %1108 = vmatprep.subr.mxu0 0.0
    %1109 = vmatpush2.msra.mxu0 0.0
    %1110 = vmatprep.subr.mxu0 0.0
    %1111 = vmatpush2.msra.mxu0 0.0
    %1112 = vmatprep.subr.mxu0 0.0
    %1113 = vmatpush2.msra.mxu0 0.0
    %1114 = vmatprep.subr.mxu0 0.0
    %1115 = vmatpush2.msra.mxu0 0.0
    %1116 = vmatprep.subr.mxu0 0.0
    %1117 = vmatpush2.msra.mxu0 0.0
    %1118 = vmatprep.subr.mxu0 0.0
    %1119 = vmatpush2.msra.mxu0 0.0
    %1120 = vmatprep.subr.mxu0 0.0
    %1121 = vmatpush2.msra.mxu0 0.0
    %1122 = vmatprep.subr.mxu0 0.0
    %1123 = vmatpush2.msra.mxu0 0.0
    %1124 = vmatprep.subr.mxu0 0.0
    %1125 = vmatpush2.msra.mxu0 0.0
    %1126 = vmatprep.subr.mxu0 0.0
    %1127 = vmatpush2.msra.mxu0 0.0
    %1128 = vmatprep.subr.mxu0 0.0
    %1129 = vmatpush2.msra.mxu0 0.0
    %1130 = vmatprep.mubr.f32.mxu0 0.0
    %v1131 = vand.u32 %v1062, 4294901760
    %v1132 = vsub.f32 %v1062, %v1131
    %v1133 = vand.u32 %v1132, 4294901760
    %v1134 = vsub.f32 %v1132, %v1133
    %v1135 = vand.u32 %v1134, 4294901760
    %1136 = vmatmul.mubr.f32.gmra.mxu0 %v1135
    %v1137 = vpop.f32.mrf.mxu0
    %v1138 = vadd.f32 0.0, %v1137
    %v1139 = vpop.f32.mrf.mxu0
    %v1140 = vadd.f32 0.0, %v1139
    %1141 = vdwg.mxu0
    %1142 = vmatprep.subr.mxu0 0.0
    %1143 = vmatpush1.msra.mxu0 0.0
    %1144 = vmatprep.subr.mxu0 0.0
    %1145 = vmatpush1.msra.mxu0 0.0
    %1146 = vmatprep.subr.mxu0 0.0
    %1147 = vmatpush1.msra.mxu0 0.0
    %1148 = vmatprep.subr.mxu0 0.0
    %1149 = vmatpush1.msra.mxu0 0.0
    %1150 = vmatprep.subr.mxu0 0.0
    %1151 = vmatpush1.msra.mxu0 0.0
    %1152 = vmatprep.subr.mxu0 0.0
    %1153 = vmatpush1.msra.mxu0 0.0
    %1154 = vmatprep.subr.mxu0 0.0
    %1155 = vmatpush1.msra.mxu0 0.0
    %1156 = vmatprep.subr.mxu0 0.0
    %1157 = vmatpush1.msra.mxu0 0.0
    %1158 = vmatprep.subr.mxu0 0.0
    %1159 = vmatpush1.msra.mxu0 0.0
    %1160 = vmatprep.subr.mxu0 0.0
    %1161 = vmatpush1.msra.mxu0 0.0
    %1162 = vmatprep.subr.mxu0 0.0
    %1163 = vmatpush1.msra.mxu0 0.0
    %1164 = vmatprep.subr.mxu0 0.0
    %1165 = vmatpush1.msra.mxu0 0.0
    %1166 = vmatprep.subr.mxu0 0.0
    %1167 = vmatpush1.msra.mxu0 0.0
    %1168 = vmatprep.subr.mxu0 0.0
    %1169 = vmatpush1.msra.mxu0 0.0
    %1170 = vmatprep.subr.mxu0 0.0
    %1171 = vmatpush1.msra.mxu0 0.0
    %v1172 = vand.u32 %v1060, 4294901760
    %v1173 = vsub.f32 %v1060, %v1172
    %v1174 = vand.u32 %v1173, 4294901760
    %v1175 = vsub.f32 %v1173, %v1174
    %v1176 = vand.u32 %v1175, 4294901760
    %1177 = vmatprep.subr.mxu0 %v1176
    %v1178 = vand.u32 %v1059, 4294901760
    %v1179 = vsub.f32 %v1059, %v1178
    %v1180 = vand.u32 %v1179, 4294901760
    %v1181 = vsub.f32 %v1179, %v1180
    %v1182 = vand.u32 %v1181, 4294901760
    %1183 = vmatpush1.msra.mxu0 %v1182
    %1184 = vmatprep.subr.mxu0 0.0
    %1185 = vmatpush2.msra.mxu0 0.0
    %1186 = vmatprep.subr.mxu0 0.0
    %1187 = vmatpush2.msra.mxu0 0.0
    %1188 = vmatprep.subr.mxu0 0.0
    %1189 = vmatpush2.msra.mxu0 0.0
    %1190 = vmatprep.subr.mxu0 0.0
    %1191 = vmatpush2.msra.mxu0 0.0
    %1192 = vmatprep.subr.mxu0 0.0
    %1193 = vmatpush2.msra.mxu0 0.0
    %1194 = vmatprep.subr.mxu0 0.0
    %1195 = vmatpush2.msra.mxu0 0.0
    %1196 = vmatprep.subr.mxu0 0.0
    %1197 = vmatpush2.msra.mxu0 0.0
    %1198 = vmatprep.subr.mxu0 0.0
    %1199 = vmatpush2.msra.mxu0 0.0
    %1200 = vmatprep.subr.mxu0 0.0
    %1201 = vmatpush2.msra.mxu0 0.0
    %1202 = vmatprep.subr.mxu0 0.0
    %1203 = vmatpush2.msra.mxu0 0.0
    %1204 = vmatprep.subr.mxu0 0.0
    %1205 = vmatpush2.msra.mxu0 0.0
    %1206 = vmatprep.subr.mxu0 0.0
    %1207 = vmatpush2.msra.mxu0 0.0
    %1208 = vmatprep.subr.mxu0 0.0
    %1209 = vmatpush2.msra.mxu0 0.0
    %1210 = vmatprep.subr.mxu0 0.0
    %1211 = vmatpush2.msra.mxu0 0.0
    %1212 = vmatprep.subr.mxu0 0.0
    %1213 = vmatpush2.msra.mxu0 0.0
    %1214 = vmatprep.subr.mxu0 0.0
    %1215 = vmatpush2.msra.mxu0 0.0
    %1216 = vmatprep.mubr.f32.mxu0 0.0
    %v1217 = vand.u32 %v1062, 4294901760
    %1218 = vmatmul.mubr.f32.gmra.mxu0 %v1217
    %v1219 = vpop.f32.mrf.mxu0
    %v1220 = vadd.f32 %v1138, %v1219
    %v1221 = vpop.f32.mrf.mxu0
    %v1222 = vadd.f32 %v1140, %v1221
    %1223 = vdwg.mxu0
    %1224 = vmatprep.subr.mxu0 0.0
    %1225 = vmatpush1.msra.mxu0 0.0
    %1226 = vmatprep.subr.mxu0 0.0
    %1227 = vmatpush1.msra.mxu0 0.0
    %1228 = vmatprep.subr.mxu0 0.0
    %1229 = vmatpush1.msra.mxu0 0.0
    %1230 = vmatprep.subr.mxu0 0.0
    %1231 = vmatpush1.msra.mxu0 0.0
    %1232 = vmatprep.subr.mxu0 0.0
    %1233 = vmatpush1.msra.mxu0 0.0
    %1234 = vmatprep.subr.mxu0 0.0
    %1235 = vmatpush1.msra.mxu0 0.0
    %1236 = vmatprep.subr.mxu0 0.0
    %1237 = vmatpush1.msra.mxu0 0.0
    %1238 = vmatprep.subr.mxu0 0.0
    %1239 = vmatpush1.msra.mxu0 0.0
    %1240 = vmatprep.subr.mxu0 0.0
    %1241 = vmatpush1.msra.mxu0 0.0
    %1242 = vmatprep.subr.mxu0 0.0
    %1243 = vmatpush1.msra.mxu0 0.0
    %1244 = vmatprep.subr.mxu0 0.0
    %1245 = vmatpush1.msra.mxu0 0.0
    %1246 = vmatprep.subr.mxu0 0.0
    %1247 = vmatpush1.msra.mxu0 0.0
    %1248 = vmatprep.subr.mxu0 0.0
    %1249 = vmatpush1.msra.mxu0 0.0
    %1250 = vmatprep.subr.mxu0 0.0
    %1251 = vmatpush1.msra.mxu0 0.0
    %1252 = vmatprep.subr.mxu0 0.0
    %1253 = vmatpush1.msra.mxu0 0.0
    %v1254 = vand.u32 %v1060, 4294901760
    %v1255 = vsub.f32 %v1060, %v1254
    %1256 = vmatprep.subr.mxu0 %v1255
    %v1257 = vand.u32 %v1059, 4294901760
    %v1258 = vsub.f32 %v1059, %v1257
    %1259 = vmatpush1.msra.mxu0 %v1258
    %1260 = vmatprep.subr.mxu0 0.0
    %1261 = vmatpush2.msra.mxu0 0.0
    %1262 = vmatprep.subr.mxu0 0.0
    %1263 = vmatpush2.msra.mxu0 0.0
    %1264 = vmatprep.subr.mxu0 0.0
    %1265 = vmatpush2.msra.mxu0 0.0
    %1266 = vmatprep.subr.mxu0 0.0
    %1267 = vmatpush2.msra.mxu0 0.0
    %1268 = vmatprep.subr.mxu0 0.0
    %1269 = vmatpush2.msra.mxu0 0.0
    %1270 = vmatprep.subr.mxu0 0.0
    %1271 = vmatpush2.msra.mxu0 0.0
    %1272 = vmatprep.subr.mxu0 0.0
    %1273 = vmatpush2.msra.mxu0 0.0
    %1274 = vmatprep.subr.mxu0 0.0
    %1275 = vmatpush2.msra.mxu0 0.0
    %1276 = vmatprep.subr.mxu0 0.0
    %1277 = vmatpush2.msra.mxu0 0.0
    %1278 = vmatprep.subr.mxu0 0.0
    %1279 = vmatpush2.msra.mxu0 0.0
    %1280 = vmatprep.subr.mxu0 0.0
    %1281 = vmatpush2.msra.mxu0 0.0
    %1282 = vmatprep.subr.mxu0 0.0
    %1283 = vmatpush2.msra.mxu0 0.0
    %1284 = vmatprep.subr.mxu0 0.0
    %1285 = vmatpush2.msra.mxu0 0.0
    %1286 = vmatprep.subr.mxu0 0.0
    %1287 = vmatpush2.msra.mxu0 0.0
    %1288 = vmatprep.subr.mxu0 0.0
    %1289 = vmatpush2.msra.mxu0 0.0
    %1290 = vmatprep.subr.mxu0 0.0
    %1291 = vmatpush2.msra.mxu0 0.0
    %1292 = vmatprep.mubr.f32.mxu0 0.0
    %v1293 = vand.u32 %v1062, 4294901760
    %v1294 = vsub.f32 %v1062, %v1293
    %1295 = vmatmul.mubr.f32.gmra.mxu0 %v1294
    %v1296 = vpop.f32.mrf.mxu0
    %v1297 = vadd.f32 %v1220, %v1296
    %v1298 = vpop.f32.mrf.mxu0
    %v1299 = vadd.f32 %v1222, %v1298
    %1300 = vdwg.mxu0
    %1301 = vmatprep.subr.mxu0 0.0
    %1302 = vmatpush1.msra.mxu0 0.0
    %1303 = vmatprep.subr.mxu0 0.0
    %1304 = vmatpush1.msra.mxu0 0.0
    %1305 = vmatprep.subr.mxu0 0.0
    %1306 = vmatpush1.msra.mxu0 0.0
    %1307 = vmatprep.subr.mxu0 0.0
    %1308 = vmatpush1.msra.mxu0 0.0
    %1309 = vmatprep.subr.mxu0 0.0
    %1310 = vmatpush1.msra.mxu0 0.0
    %1311 = vmatprep.subr.mxu0 0.0
    %1312 = vmatpush1.msra.mxu0 0.0
    %1313 = vmatprep.subr.mxu0 0.0
    %1314 = vmatpush1.msra.mxu0 0.0
    %1315 = vmatprep.subr.mxu0 0.0
    %1316 = vmatpush1.msra.mxu0 0.0
    %1317 = vmatprep.subr.mxu0 0.0
    %1318 = vmatpush1.msra.mxu0 0.0
    %1319 = vmatprep.subr.mxu0 0.0
    %1320 = vmatpush1.msra.mxu0 0.0
    %1321 = vmatprep.subr.mxu0 0.0
    %1322 = vmatpush1.msra.mxu0 0.0
    %1323 = vmatprep.subr.mxu0 0.0
    %1324 = vmatpush1.msra.mxu0 0.0
    %1325 = vmatprep.subr.mxu0 0.0
    %1326 = vmatpush1.msra.mxu0 0.0
    %1327 = vmatprep.subr.mxu0 0.0
    %1328 = vmatpush1.msra.mxu0 0.0
    %1329 = vmatprep.subr.mxu0 0.0
    %1330 = vmatpush1.msra.mxu0 0.0
    %v1331 = vand.u32 %v1060, 4294901760
    %1332 = vmatprep.subr.mxu0 %v1331
    %v1333 = vand.u32 %v1059, 4294901760
    %1334 = vmatpush1.msra.mxu0 %v1333
    %1335 = vmatprep.subr.mxu0 0.0
    %1336 = vmatpush2.msra.mxu0 0.0
    %1337 = vmatprep.subr.mxu0 0.0
    %1338 = vmatpush2.msra.mxu0 0.0
    %1339 = vmatprep.subr.mxu0 0.0
    %1340 = vmatpush2.msra.mxu0 0.0
    %1341 = vmatprep.subr.mxu0 0.0
    %1342 = vmatpush2.msra.mxu0 0.0
    %1343 = vmatprep.subr.mxu0 0.0
    %1344 = vmatpush2.msra.mxu0 0.0
    %1345 = vmatprep.subr.mxu0 0.0
    %1346 = vmatpush2.msra.mxu0 0.0
    %1347 = vmatprep.subr.mxu0 0.0
    %1348 = vmatpush2.msra.mxu0 0.0
    %1349 = vmatprep.subr.mxu0 0.0
    %1350 = vmatpush2.msra.mxu0 0.0
    %1351 = vmatprep.subr.mxu0 0.0
    %1352 = vmatpush2.msra.mxu0 0.0
    %1353 = vmatprep.subr.mxu0 0.0
    %1354 = vmatpush2.msra.mxu0 0.0
    %1355 = vmatprep.subr.mxu0 0.0
    %1356 = vmatpush2.msra.mxu0 0.0
    %1357 = vmatprep.subr.mxu0 0.0
    %1358 = vmatpush2.msra.mxu0 0.0
    %1359 = vmatprep.subr.mxu0 0.0
    %1360 = vmatpush2.msra.mxu0 0.0
    %1361 = vmatprep.subr.mxu0 0.0
    %1362 = vmatpush2.msra.mxu0 0.0
    %1363 = vmatprep.subr.mxu0 0.0
    %1364 = vmatpush2.msra.mxu0 0.0
    %1365 = vmatprep.subr.mxu0 0.0
    %1366 = vmatpush2.msra.mxu0 0.0
    %1367 = vmatprep.mubr.f32.mxu0 0.0
    %v1368 = vand.u32 %v1062, 4294901760
    %v1369 = vsub.f32 %v1062, %v1368
    %v1370 = vand.u32 %v1369, 4294901760
    %1371 = vmatmul.mubr.f32.gmra.mxu0 %v1370
    %v1372 = vpop.f32.mrf.mxu0
    %v1373 = vadd.f32 %v1297, %v1372
    %v1374 = vpop.f32.mrf.mxu0
    %v1375 = vadd.f32 %v1299, %v1374
    %1376 = vdwg.mxu0
    %1377 = vmatprep.subr.mxu0 0.0
    %1378 = vmatpush1.msra.mxu0 0.0
    %1379 = vmatprep.subr.mxu0 0.0
    %1380 = vmatpush1.msra.mxu0 0.0
    %1381 = vmatprep.subr.mxu0 0.0
    %1382 = vmatpush1.msra.mxu0 0.0
    %1383 = vmatprep.subr.mxu0 0.0
    %1384 = vmatpush1.msra.mxu0 0.0
    %1385 = vmatprep.subr.mxu0 0.0
    %1386 = vmatpush1.msra.mxu0 0.0
    %1387 = vmatprep.subr.mxu0 0.0
    %1388 = vmatpush1.msra.mxu0 0.0
    %1389 = vmatprep.subr.mxu0 0.0
    %1390 = vmatpush1.msra.mxu0 0.0
    %1391 = vmatprep.subr.mxu0 0.0
    %1392 = vmatpush1.msra.mxu0 0.0
    %1393 = vmatprep.subr.mxu0 0.0
    %1394 = vmatpush1.msra.mxu0 0.0
    %1395 = vmatprep.subr.mxu0 0.0
    %1396 = vmatpush1.msra.mxu0 0.0
    %1397 = vmatprep.subr.mxu0 0.0
    %1398 = vmatpush1.msra.mxu0 0.0
    %1399 = vmatprep.subr.mxu0 0.0
    %1400 = vmatpush1.msra.mxu0 0.0
    %1401 = vmatprep.subr.mxu0 0.0
    %1402 = vmatpush1.msra.mxu0 0.0
    %1403 = vmatprep.subr.mxu0 0.0
    %1404 = vmatpush1.msra.mxu0 0.0
    %1405 = vmatprep.subr.mxu0 0.0
    %1406 = vmatpush1.msra.mxu0 0.0
    %v1407 = vand.u32 %v1060, 4294901760
    %v1408 = vsub.f32 %v1060, %v1407
    %v1409 = vand.u32 %v1408, 4294901760
    %1410 = vmatprep.subr.mxu0 %v1409
    %v1411 = vand.u32 %v1059, 4294901760
    %v1412 = vsub.f32 %v1059, %v1411
    %v1413 = vand.u32 %v1412, 4294901760
    %1414 = vmatpush1.msra.mxu0 %v1413
    %1415 = vmatprep.subr.mxu0 0.0
    %1416 = vmatpush2.msra.mxu0 0.0
    %1417 = vmatprep.subr.mxu0 0.0
    %1418 = vmatpush2.msra.mxu0 0.0
    %1419 = vmatprep.subr.mxu0 0.0
    %1420 = vmatpush2.msra.mxu0 0.0
    %1421 = vmatprep.subr.mxu0 0.0
    %1422 = vmatpush2.msra.mxu0 0.0
    %1423 = vmatprep.subr.mxu0 0.0
    %1424 = vmatpush2.msra.mxu0 0.0
    %1425 = vmatprep.subr.mxu0 0.0
    %1426 = vmatpush2.msra.mxu0 0.0
    %1427 = vmatprep.subr.mxu0 0.0
    %1428 = vmatpush2.msra.mxu0 0.0
    %1429 = vmatprep.subr.mxu0 0.0
    %1430 = vmatpush2.msra.mxu0 0.0
    %1431 = vmatprep.subr.mxu0 0.0
    %1432 = vmatpush2.msra.mxu0 0.0
    %1433 = vmatprep.subr.mxu0 0.0
    %1434 = vmatpush2.msra.mxu0 0.0
    %1435 = vmatprep.subr.mxu0 0.0
    %1436 = vmatpush2.msra.mxu0 0.0
    %1437 = vmatprep.subr.mxu0 0.0
    %1438 = vmatpush2.msra.mxu0 0.0
    %1439 = vmatprep.subr.mxu0 0.0
    %1440 = vmatpush2.msra.mxu0 0.0
    %1441 = vmatprep.subr.mxu0 0.0
    %1442 = vmatpush2.msra.mxu0 0.0
    %1443 = vmatprep.subr.mxu0 0.0
    %1444 = vmatpush2.msra.mxu0 0.0
    %1445 = vmatprep.subr.mxu0 0.0
    %1446 = vmatpush2.msra.mxu0 0.0
    %1447 = vmatprep.mubr.f32.mxu0 0.0
    %v1448 = vand.u32 %v1062, 4294901760
    %1449 = vmatmul.mubr.f32.gmra.mxu0 %v1448
    %v1450 = vpop.f32.mrf.mxu0
    %v1451 = vadd.f32 %v1373, %v1450
    %v1452 = vpop.f32.mrf.mxu0
    %v1453 = vadd.f32 %v1375, %v1452
    %1454 = vdwg.mxu0
    %1455 = vmatprep.subr.mxu0 0.0
    %1456 = vmatpush1.msra.mxu0 0.0
    %1457 = vmatprep.subr.mxu0 0.0
    %1458 = vmatpush1.msra.mxu0 0.0
    %1459 = vmatprep.subr.mxu0 0.0
    %1460 = vmatpush1.msra.mxu0 0.0
    %1461 = vmatprep.subr.mxu0 0.0
    %1462 = vmatpush1.msra.mxu0 0.0
    %1463 = vmatprep.subr.mxu0 0.0
    %1464 = vmatpush1.msra.mxu0 0.0
    %1465 = vmatprep.subr.mxu0 0.0
    %1466 = vmatpush1.msra.mxu0 0.0
    %1467 = vmatprep.subr.mxu0 0.0
    %1468 = vmatpush1.msra.mxu0 0.0
    %1469 = vmatprep.subr.mxu0 0.0
    %1470 = vmatpush1.msra.mxu0 0.0
    %1471 = vmatprep.subr.mxu0 0.0
    %1472 = vmatpush1.msra.mxu0 0.0
    %1473 = vmatprep.subr.mxu0 0.0
    %1474 = vmatpush1.msra.mxu0 0.0
    %1475 = vmatprep.subr.mxu0 0.0
    %1476 = vmatpush1.msra.mxu0 0.0
    %1477 = vmatprep.subr.mxu0 0.0
    %1478 = vmatpush1.msra.mxu0 0.0
    %1479 = vmatprep.subr.mxu0 0.0
    %1480 = vmatpush1.msra.mxu0 0.0
    %1481 = vmatprep.subr.mxu0 0.0
    %1482 = vmatpush1.msra.mxu0 0.0
    %1483 = vmatprep.subr.mxu0 0.0
    %1484 = vmatpush1.msra.mxu0 0.0
    %v1485 = vand.u32 %v1060, 4294901760
    %1486 = vmatprep.subr.mxu0 %v1485
    %v1487 = vand.u32 %v1059, 4294901760
    %1488 = vmatpush1.msra.mxu0 %v1487
    %1489 = vmatprep.subr.mxu0 0.0
    %1490 = vmatpush2.msra.mxu0 0.0
    %1491 = vmatprep.subr.mxu0 0.0
    %1492 = vmatpush2.msra.mxu0 0.0
    %1493 = vmatprep.subr.mxu0 0.0
    %1494 = vmatpush2.msra.mxu0 0.0
    %1495 = vmatprep.subr.mxu0 0.0
    %1496 = vmatpush2.msra.mxu0 0.0
    %1497 = vmatprep.subr.mxu0 0.0
    %1498 = vmatpush2.msra.mxu0 0.0
    %1499 = vmatprep.subr.mxu0 0.0
    %1500 = vmatpush2.msra.mxu0 0.0
    %1501 = vmatprep.subr.mxu0 0.0
    %1502 = vmatpush2.msra.mxu0 0.0
    %1503 = vmatprep.subr.mxu0 0.0
    %1504 = vmatpush2.msra.mxu0 0.0
    %1505 = vmatprep.subr.mxu0 0.0
    %1506 = vmatpush2.msra.mxu0 0.0
    %1507 = vmatprep.subr.mxu0 0.0
    %1508 = vmatpush2.msra.mxu0 0.0
    %1509 = vmatprep.subr.mxu0 0.0
    %1510 = vmatpush2.msra.mxu0 0.0
    %1511 = vmatprep.subr.mxu0 0.0
    %1512 = vmatpush2.msra.mxu0 0.0
    %1513 = vmatprep.subr.mxu0 0.0
    %1514 = vmatpush2.msra.mxu0 0.0
    %1515 = vmatprep.subr.mxu0 0.0
    %1516 = vmatpush2.msra.mxu0 0.0
    %1517 = vmatprep.subr.mxu0 0.0
    %1518 = vmatpush2.msra.mxu0 0.0
    %1519 = vmatprep.subr.mxu0 0.0
    %1520 = vmatpush2.msra.mxu0 0.0
    %1521 = vmatprep.mubr.f32.mxu0 0.0
    %v1522 = vand.u32 %v1062, 4294901760
    %1523 = vmatmul.mubr.f32.gmra.mxu0 %v1522
    %v1524 = vpop.f32.mrf.mxu0
    %v1525 = vadd.f32 %v1451, %v1524
    %v1526 = vpop.f32.mrf.mxu0
    %v1527 = vadd.f32 %v1453, %v1526
    %1528 = vdwg.mxu0
    %v1529 = vadd.f32 %v1048, %v1525
    %v1530 = vadd.f32 %v1050, %v1527
    %1531 = vrot.lane.b32.xlu0 %v18, 15
    %v1532 = vpop.permute.xlu0 %1531
    %1533 = vrot.lane.b32.xlu0 %v19, 15
    %v1534 = vpop.permute.xlu0 %1533
    %vm1535 = vcmp.lt.s32.totalorder %v109, 15
    %v1536 = vsel %vm1535, %v1532, %v1534
    %v1537 = vsel %vm1535, %v1534, %v1532
    %v1538 = vmul.f32 %v1537, %v59
    %v1539 = vmul.f32 %v1536, %v63
    %v1541 = vsel %vm115, %v22, 0
    %1543 = vmatprep.subr.mxu0 0.0
    %1544 = vmatpush1.msra.mxu0 0.0
    %1545 = vmatprep.subr.mxu0 0.0
    %1546 = vmatpush1.msra.mxu0 0.0
    %1547 = vmatprep.subr.mxu0 0.0
    %1548 = vmatpush1.msra.mxu0 0.0
    %1549 = vmatprep.subr.mxu0 0.0
    %1550 = vmatpush1.msra.mxu0 0.0
    %1551 = vmatprep.subr.mxu0 0.0
    %1552 = vmatpush1.msra.mxu0 0.0
    %1553 = vmatprep.subr.mxu0 0.0
    %1554 = vmatpush1.msra.mxu0 0.0
    %1555 = vmatprep.subr.mxu0 0.0
    %1556 = vmatpush1.msra.mxu0 0.0
    %1557 = vmatprep.subr.mxu0 0.0
    %1558 = vmatpush1.msra.mxu0 0.0
    %1559 = vmatprep.subr.mxu0 0.0
    %1560 = vmatpush1.msra.mxu0 0.0
    %1561 = vmatprep.subr.mxu0 0.0
    %1562 = vmatpush1.msra.mxu0 0.0
    %1563 = vmatprep.subr.mxu0 0.0
    %1564 = vmatpush1.msra.mxu0 0.0
    %1565 = vmatprep.subr.mxu0 0.0
    %1566 = vmatpush1.msra.mxu0 0.0
    %1567 = vmatprep.subr.mxu0 0.0
    %1568 = vmatpush1.msra.mxu0 0.0
    %1569 = vmatprep.subr.mxu0 0.0
    %1570 = vmatpush1.msra.mxu0 0.0
    %1571 = vmatprep.subr.mxu0 0.0
    %1572 = vmatpush1.msra.mxu0 0.0
    %v1573 = vand.u32 %v1539, 4294901760
    %1574 = vmatprep.subr.mxu0 %v1573
    %v1575 = vand.u32 %v1538, 4294901760
    %1576 = vmatpush1.msra.mxu0 %v1575
    %1577 = vmatprep.subr.mxu0 0.0
    %1578 = vmatpush2.msra.mxu0 0.0
    %1579 = vmatprep.subr.mxu0 0.0
    %1580 = vmatpush2.msra.mxu0 0.0
    %1581 = vmatprep.subr.mxu0 0.0
    %1582 = vmatpush2.msra.mxu0 0.0
    %1583 = vmatprep.subr.mxu0 0.0
    %1584 = vmatpush2.msra.mxu0 0.0
    %1585 = vmatprep.subr.mxu0 0.0
    %1586 = vmatpush2.msra.mxu0 0.0
    %1587 = vmatprep.subr.mxu0 0.0
    %1588 = vmatpush2.msra.mxu0 0.0
    %1589 = vmatprep.subr.mxu0 0.0
    %1590 = vmatpush2.msra.mxu0 0.0
    %1591 = vmatprep.subr.mxu0 0.0
    %1592 = vmatpush2.msra.mxu0 0.0
    %1593 = vmatprep.subr.mxu0 0.0
    %1594 = vmatpush2.msra.mxu0 0.0
    %1595 = vmatprep.subr.mxu0 0.0
    %1596 = vmatpush2.msra.mxu0 0.0
    %1597 = vmatprep.subr.mxu0 0.0
    %1598 = vmatpush2.msra.mxu0 0.0
    %1599 = vmatprep.subr.mxu0 0.0
    %1600 = vmatpush2.msra.mxu0 0.0
    %1601 = vmatprep.subr.mxu0 0.0
    %1602 = vmatpush2.msra.mxu0 0.0
    %1603 = vmatprep.subr.mxu0 0.0
    %1604 = vmatpush2.msra.mxu0 0.0
    %1605 = vmatprep.subr.mxu0 0.0
    %1606 = vmatpush2.msra.mxu0 0.0
    %1607 = vmatprep.subr.mxu0 0.0
    %1608 = vmatpush2.msra.mxu0 0.0
    %1609 = vmatprep.mubr.f32.mxu0 0.0
    %v1610 = vand.u32 %v1541, 4294901760
    %v1611 = vsub.f32 %v1541, %v1610
    %v1612 = vand.u32 %v1611, 4294901760
    %v1613 = vsub.f32 %v1611, %v1612
    %v1614 = vand.u32 %v1613, 4294901760
    %1615 = vmatmul.mubr.f32.gmra.mxu0 %v1614
    %v1616 = vpop.f32.mrf.mxu0
    %v1617 = vadd.f32 0.0, %v1616
    %v1618 = vpop.f32.mrf.mxu0
    %v1619 = vadd.f32 0.0, %v1618
    %1620 = vdwg.mxu0
    %1621 = vmatprep.subr.mxu0 0.0
    %1622 = vmatpush1.msra.mxu0 0.0
    %1623 = vmatprep.subr.mxu0 0.0
    %1624 = vmatpush1.msra.mxu0 0.0
    %1625 = vmatprep.subr.mxu0 0.0
    %1626 = vmatpush1.msra.mxu0 0.0
    %1627 = vmatprep.subr.mxu0 0.0
    %1628 = vmatpush1.msra.mxu0 0.0
    %1629 = vmatprep.subr.mxu0 0.0
    %1630 = vmatpush1.msra.mxu0 0.0
    %1631 = vmatprep.subr.mxu0 0.0
    %1632 = vmatpush1.msra.mxu0 0.0
    %1633 = vmatprep.subr.mxu0 0.0
    %1634 = vmatpush1.msra.mxu0 0.0
    %1635 = vmatprep.subr.mxu0 0.0
    %1636 = vmatpush1.msra.mxu0 0.0
    %1637 = vmatprep.subr.mxu0 0.0
    %1638 = vmatpush1.msra.mxu0 0.0
    %1639 = vmatprep.subr.mxu0 0.0
    %1640 = vmatpush1.msra.mxu0 0.0
    %1641 = vmatprep.subr.mxu0 0.0
    %1642 = vmatpush1.msra.mxu0 0.0
    %1643 = vmatprep.subr.mxu0 0.0
    %1644 = vmatpush1.msra.mxu0 0.0
    %1645 = vmatprep.subr.mxu0 0.0
    %1646 = vmatpush1.msra.mxu0 0.0
    %1647 = vmatprep.subr.mxu0 0.0
    %1648 = vmatpush1.msra.mxu0 0.0
    %1649 = vmatprep.subr.mxu0 0.0
    %1650 = vmatpush1.msra.mxu0 0.0
    %v1651 = vand.u32 %v1539, 4294901760
    %v1652 = vsub.f32 %v1539, %v1651
    %v1653 = vand.u32 %v1652, 4294901760
    %v1654 = vsub.f32 %v1652, %v1653
    %v1655 = vand.u32 %v1654, 4294901760
    %1656 = vmatprep.subr.mxu0 %v1655
    %v1657 = vand.u32 %v1538, 4294901760
    %v1658 = vsub.f32 %v1538, %v1657
    %v1659 = vand.u32 %v1658, 4294901760
    %v1660 = vsub.f32 %v1658, %v1659
    %v1661 = vand.u32 %v1660, 4294901760
    %1662 = vmatpush1.msra.mxu0 %v1661
    %1663 = vmatprep.subr.mxu0 0.0
    %1664 = vmatpush2.msra.mxu0 0.0
    %1665 = vmatprep.subr.mxu0 0.0
    %1666 = vmatpush2.msra.mxu0 0.0
    %1667 = vmatprep.subr.mxu0 0.0
    %1668 = vmatpush2.msra.mxu0 0.0
    %1669 = vmatprep.subr.mxu0 0.0
    %1670 = vmatpush2.msra.mxu0 0.0
    %1671 = vmatprep.subr.mxu0 0.0
    %1672 = vmatpush2.msra.mxu0 0.0
    %1673 = vmatprep.subr.mxu0 0.0
    %1674 = vmatpush2.msra.mxu0 0.0
    %1675 = vmatprep.subr.mxu0 0.0
    %1676 = vmatpush2.msra.mxu0 0.0
    %1677 = vmatprep.subr.mxu0 0.0
    %1678 = vmatpush2.msra.mxu0 0.0
    %1679 = vmatprep.subr.mxu0 0.0
    %1680 = vmatpush2.msra.mxu0 0.0
    %1681 = vmatprep.subr.mxu0 0.0
    %1682 = vmatpush2.msra.mxu0 0.0
    %1683 = vmatprep.subr.mxu0 0.0
    %1684 = vmatpush2.msra.mxu0 0.0
    %1685 = vmatprep.subr.mxu0 0.0
    %1686 = vmatpush2.msra.mxu0 0.0
    %1687 = vmatprep.subr.mxu0 0.0
    %1688 = vmatpush2.msra.mxu0 0.0
    %1689 = vmatprep.subr.mxu0 0.0
    %1690 = vmatpush2.msra.mxu0 0.0
    %1691 = vmatprep.subr.mxu0 0.0
    %1692 = vmatpush2.msra.mxu0 0.0
    %1693 = vmatprep.subr.mxu0 0.0
    %1694 = vmatpush2.msra.mxu0 0.0
    %1695 = vmatprep.mubr.f32.mxu0 0.0
    %v1696 = vand.u32 %v1541, 4294901760
    %1697 = vmatmul.mubr.f32.gmra.mxu0 %v1696
    %v1698 = vpop.f32.mrf.mxu0
    %v1699 = vadd.f32 %v1617, %v1698
    %v1700 = vpop.f32.mrf.mxu0
    %v1701 = vadd.f32 %v1619, %v1700
    %1702 = vdwg.mxu0
    %1703 = vmatprep.subr.mxu0 0.0
    %1704 = vmatpush1.msra.mxu0 0.0
    %1705 = vmatprep.subr.mxu0 0.0
    %1706 = vmatpush1.msra.mxu0 0.0
    %1707 = vmatprep.subr.mxu0 0.0
    %1708 = vmatpush1.msra.mxu0 0.0
    %1709 = vmatprep.subr.mxu0 0.0
    %1710 = vmatpush1.msra.mxu0 0.0
    %1711 = vmatprep.subr.mxu0 0.0
    %1712 = vmatpush1.msra.mxu0 0.0
    %1713 = vmatprep.subr.mxu0 0.0
    %1714 = vmatpush1.msra.mxu0 0.0
    %1715 = vmatprep.subr.mxu0 0.0
    %1716 = vmatpush1.msra.mxu0 0.0
    %1717 = vmatprep.subr.mxu0 0.0
    %1718 = vmatpush1.msra.mxu0 0.0
    %1719 = vmatprep.subr.mxu0 0.0
    %1720 = vmatpush1.msra.mxu0 0.0
    %1721 = vmatprep.subr.mxu0 0.0
    %1722 = vmatpush1.msra.mxu0 0.0
    %1723 = vmatprep.subr.mxu0 0.0
    %1724 = vmatpush1.msra.mxu0 0.0
    %1725 = vmatprep.subr.mxu0 0.0
    %1726 = vmatpush1.msra.mxu0 0.0
    %1727 = vmatprep.subr.mxu0 0.0
    %1728 = vmatpush1.msra.mxu0 0.0
    %1729 = vmatprep.subr.mxu0 0.0
    %1730 = vmatpush1.msra.mxu0 0.0
    %1731 = vmatprep.subr.mxu0 0.0
    %1732 = vmatpush1.msra.mxu0 0.0
    %v1733 = vand.u32 %v1539, 4294901760
    %v1734 = vsub.f32 %v1539, %v1733
    %1735 = vmatprep.subr.mxu0 %v1734
    %v1736 = vand.u32 %v1538, 4294901760
    %v1737 = vsub.f32 %v1538, %v1736
    %1738 = vmatpush1.msra.mxu0 %v1737
    %1739 = vmatprep.subr.mxu0 0.0
    %1740 = vmatpush2.msra.mxu0 0.0
    %1741 = vmatprep.subr.mxu0 0.0
    %1742 = vmatpush2.msra.mxu0 0.0
    %1743 = vmatprep.subr.mxu0 0.0
    %1744 = vmatpush2.msra.mxu0 0.0
    %1745 = vmatprep.subr.mxu0 0.0
    %1746 = vmatpush2.msra.mxu0 0.0
    %1747 = vmatprep.subr.mxu0 0.0
    %1748 = vmatpush2.msra.mxu0 0.0
    %1749 = vmatprep.subr.mxu0 0.0
    %1750 = vmatpush2.msra.mxu0 0.0
    %1751 = vmatprep.subr.mxu0 0.0
    %1752 = vmatpush2.msra.mxu0 0.0
    %1753 = vmatprep.subr.mxu0 0.0
    %1754 = vmatpush2.msra.mxu0 0.0
    %1755 = vmatprep.subr.mxu0 0.0
    %1756 = vmatpush2.msra.mxu0 0.0
    %1757 = vmatprep.subr.mxu0 0.0
    %1758 = vmatpush2.msra.mxu0 0.0
    %1759 = vmatprep.subr.mxu0 0.0
    %1760 = vmatpush2.msra.mxu0 0.0
    %1761 = vmatprep.subr.mxu0 0.0
    %1762 = vmatpush2.msra.mxu0 0.0
    %1763 = vmatprep.subr.mxu0 0.0
    %1764 = vmatpush2.msra.mxu0 0.0
    %1765 = vmatprep.subr.mxu0 0.0
    %1766 = vmatpush2.msra.mxu0 0.0
    %1767 = vmatprep.subr.mxu0 0.0
    %1768 = vmatpush2.msra.mxu0 0.0
    %1769 = vmatprep.subr.mxu0 0.0
    %1770 = vmatpush2.msra.mxu0 0.0
    %1771 = vmatprep.mubr.f32.mxu0 0.0
    %v1772 = vand.u32 %v1541, 4294901760
    %v1773 = vsub.f32 %v1541, %v1772
    %1774 = vmatmul.mubr.f32.gmra.mxu0 %v1773
    %v1775 = vpop.f32.mrf.mxu0
    %v1776 = vadd.f32 %v1699, %v1775
    %v1777 = vpop.f32.mrf.mxu0
    %v1778 = vadd.f32 %v1701, %v1777
    %1779 = vdwg.mxu0
    %1780 = vmatprep.subr.mxu0 0.0
    %1781 = vmatpush1.msra.mxu0 0.0
    %1782 = vmatprep.subr.mxu0 0.0
    %1783 = vmatpush1.msra.mxu0 0.0
    %1784 = vmatprep.subr.mxu0 0.0
    %1785 = vmatpush1.msra.mxu0 0.0
    %1786 = vmatprep.subr.mxu0 0.0
    %1787 = vmatpush1.msra.mxu0 0.0
    %1788 = vmatprep.subr.mxu0 0.0
    %1789 = vmatpush1.msra.mxu0 0.0
    %1790 = vmatprep.subr.mxu0 0.0
    %1791 = vmatpush1.msra.mxu0 0.0
    %1792 = vmatprep.subr.mxu0 0.0
    %1793 = vmatpush1.msra.mxu0 0.0
    %1794 = vmatprep.subr.mxu0 0.0
    %1795 = vmatpush1.msra.mxu0 0.0
    %1796 = vmatprep.subr.mxu0 0.0
    %1797 = vmatpush1.msra.mxu0 0.0
    %1798 = vmatprep.subr.mxu0 0.0
    %1799 = vmatpush1.msra.mxu0 0.0
    %1800 = vmatprep.subr.mxu0 0.0
    %1801 = vmatpush1.msra.mxu0 0.0
    %1802 = vmatprep.subr.mxu0 0.0
    %1803 = vmatpush1.msra.mxu0 0.0
    %1804 = vmatprep.subr.mxu0 0.0
    %1805 = vmatpush1.msra.mxu0 0.0
    %1806 = vmatprep.subr.mxu0 0.0
    %1807 = vmatpush1.msra.mxu0 0.0
    %1808 = vmatprep.subr.mxu0 0.0
    %1809 = vmatpush1.msra.mxu0 0.0
    %v1810 = vand.u32 %v1539, 4294901760
    %1811 = vmatprep.subr.mxu0 %v1810
    %v1812 = vand.u32 %v1538, 4294901760
    %1813 = vmatpush1.msra.mxu0 %v1812
    %1814 = vmatprep.subr.mxu0 0.0
    %1815 = vmatpush2.msra.mxu0 0.0
    %1816 = vmatprep.subr.mxu0 0.0
    %1817 = vmatpush2.msra.mxu0 0.0
    %1818 = vmatprep.subr.mxu0 0.0
    %1819 = vmatpush2.msra.mxu0 0.0
    %1820 = vmatprep.subr.mxu0 0.0
    %1821 = vmatpush2.msra.mxu0 0.0
    %1822 = vmatprep.subr.mxu0 0.0
    %1823 = vmatpush2.msra.mxu0 0.0
    %1824 = vmatprep.subr.mxu0 0.0
    %1825 = vmatpush2.msra.mxu0 0.0
    %1826 = vmatprep.subr.mxu0 0.0
    %1827 = vmatpush2.msra.mxu0 0.0
    %1828 = vmatprep.subr.mxu0 0.0
    %1829 = vmatpush2.msra.mxu0 0.0
    %1830 = vmatprep.subr.mxu0 0.0
    %1831 = vmatpush2.msra.mxu0 0.0
    %1832 = vmatprep.subr.mxu0 0.0
    %1833 = vmatpush2.msra.mxu0 0.0
    %1834 = vmatprep.subr.mxu0 0.0
    %1835 = vmatpush2.msra.mxu0 0.0
    %1836 = vmatprep.subr.mxu0 0.0
    %1837 = vmatpush2.msra.mxu0 0.0
    %1838 = vmatprep.subr.mxu0 0.0
    %1839 = vmatpush2.msra.mxu0 0.0
    %1840 = vmatprep.subr.mxu0 0.0
    %1841 = vmatpush2.msra.mxu0 0.0
    %1842 = vmatprep.subr.mxu0 0.0
    %1843 = vmatpush2.msra.mxu0 0.0
    %1844 = vmatprep.subr.mxu0 0.0
    %1845 = vmatpush2.msra.mxu0 0.0
    %1846 = vmatprep.mubr.f32.mxu0 0.0
    %v1847 = vand.u32 %v1541, 4294901760
    %v1848 = vsub.f32 %v1541, %v1847
    %v1849 = vand.u32 %v1848, 4294901760
    %1850 = vmatmul.mubr.f32.gmra.mxu0 %v1849
    %v1851 = vpop.f32.mrf.mxu0
    %v1852 = vadd.f32 %v1776, %v1851
    %v1853 = vpop.f32.mrf.mxu0
    %v1854 = vadd.f32 %v1778, %v1853
    %1855 = vdwg.mxu0
    %1856 = vmatprep.subr.mxu0 0.0
    %1857 = vmatpush1.msra.mxu0 0.0
    %1858 = vmatprep.subr.mxu0 0.0
    %1859 = vmatpush1.msra.mxu0 0.0
    %1860 = vmatprep.subr.mxu0 0.0
    %1861 = vmatpush1.msra.mxu0 0.0
    %1862 = vmatprep.subr.mxu0 0.0
    %1863 = vmatpush1.msra.mxu0 0.0
    %1864 = vmatprep.subr.mxu0 0.0
    %1865 = vmatpush1.msra.mxu0 0.0
    %1866 = vmatprep.subr.mxu0 0.0
    %1867 = vmatpush1.msra.mxu0 0.0
    %1868 = vmatprep.subr.mxu0 0.0
    %1869 = vmatpush1.msra.mxu0 0.0
    %1870 = vmatprep.subr.mxu0 0.0
    %1871 = vmatpush1.msra.mxu0 0.0
    %1872 = vmatprep.subr.mxu0 0.0
    %1873 = vmatpush1.msra.mxu0 0.0
    %1874 = vmatprep.subr.mxu0 0.0
    %1875 = vmatpush1.msra.mxu0 0.0
    %1876 = vmatprep.subr.mxu0 0.0
    %1877 = vmatpush1.msra.mxu0 0.0
    %1878 = vmatprep.subr.mxu0 0.0
    %1879 = vmatpush1.msra.mxu0 0.0
    %1880 = vmatprep.subr.mxu0 0.0
    %1881 = vmatpush1.msra.mxu0 0.0
    %1882 = vmatprep.subr.mxu0 0.0
    %1883 = vmatpush1.msra.mxu0 0.0
    %1884 = vmatprep.subr.mxu0 0.0
    %1885 = vmatpush1.msra.mxu0 0.0
    %v1886 = vand.u32 %v1539, 4294901760
    %v1887 = vsub.f32 %v1539, %v1886
    %v1888 = vand.u32 %v1887, 4294901760
    %1889 = vmatprep.subr.mxu0 %v1888
    %v1890 = vand.u32 %v1538, 4294901760
    %v1891 = vsub.f32 %v1538, %v1890
    %v1892 = vand.u32 %v1891, 4294901760
    %1893 = vmatpush1.msra.mxu0 %v1892
    %1894 = vmatprep.subr.mxu0 0.0
    %1895 = vmatpush2.msra.mxu0 0.0
    %1896 = vmatprep.subr.mxu0 0.0
    %1897 = vmatpush2.msra.mxu0 0.0
    %1898 = vmatprep.subr.mxu0 0.0
    %1899 = vmatpush2.msra.mxu0 0.0
    %1900 = vmatprep.subr.mxu0 0.0
    %1901 = vmatpush2.msra.mxu0 0.0
    %1902 = vmatprep.subr.mxu0 0.0
    %1903 = vmatpush2.msra.mxu0 0.0
    %1904 = vmatprep.subr.mxu0 0.0
    %1905 = vmatpush2.msra.mxu0 0.0
    %1906 = vmatprep.subr.mxu0 0.0
    %1907 = vmatpush2.msra.mxu0 0.0
    %1908 = vmatprep.subr.mxu0 0.0
    %1909 = vmatpush2.msra.mxu0 0.0
    %1910 = vmatprep.subr.mxu0 0.0
    %1911 = vmatpush2.msra.mxu0 0.0
    %1912 = vmatprep.subr.mxu0 0.0
    %1913 = vmatpush2.msra.mxu0 0.0
    %1914 = vmatprep.subr.mxu0 0.0
    %1915 = vmatpush2.msra.mxu0 0.0
    %1916 = vmatprep.subr.mxu0 0.0
    %1917 = vmatpush2.msra.mxu0 0.0
    %1918 = vmatprep.subr.mxu0 0.0
    %1919 = vmatpush2.msra.mxu0 0.0
    %1920 = vmatprep.subr.mxu0 0.0
    %1921 = vmatpush2.msra.mxu0 0.0
    %1922 = vmatprep.subr.mxu0 0.0
    %1923 = vmatpush2.msra.mxu0 0.0
    %1924 = vmatprep.subr.mxu0 0.0
    %1925 = vmatpush2.msra.mxu0 0.0
    %1926 = vmatprep.mubr.f32.mxu0 0.0
    %v1927 = vand.u32 %v1541, 4294901760
    %1928 = vmatmul.mubr.f32.gmra.mxu0 %v1927
    %v1929 = vpop.f32.mrf.mxu0
    %v1930 = vadd.f32 %v1852, %v1929
    %v1931 = vpop.f32.mrf.mxu0
    %v1932 = vadd.f32 %v1854, %v1931
    %1933 = vdwg.mxu0
    %1934 = vmatprep.subr.mxu0 0.0
    %1935 = vmatpush1.msra.mxu0 0.0
    %1936 = vmatprep.subr.mxu0 0.0
    %1937 = vmatpush1.msra.mxu0 0.0
    %1938 = vmatprep.subr.mxu0 0.0
    %1939 = vmatpush1.msra.mxu0 0.0
    %1940 = vmatprep.subr.mxu0 0.0
    %1941 = vmatpush1.msra.mxu0 0.0
    %1942 = vmatprep.subr.mxu0 0.0
    %1943 = vmatpush1.msra.mxu0 0.0
    %1944 = vmatprep.subr.mxu0 0.0
    %1945 = vmatpush1.msra.mxu0 0.0
    %1946 = vmatprep.subr.mxu0 0.0
    %1947 = vmatpush1.msra.mxu0 0.0
    %1948 = vmatprep.subr.mxu0 0.0
    %1949 = vmatpush1.msra.mxu0 0.0
    %1950 = vmatprep.subr.mxu0 0.0
    %1951 = vmatpush1.msra.mxu0 0.0
    %1952 = vmatprep.subr.mxu0 0.0
    %1953 = vmatpush1.msra.mxu0 0.0
    %1954 = vmatprep.subr.mxu0 0.0
    %1955 = vmatpush1.msra.mxu0 0.0
    %1956 = vmatprep.subr.mxu0 0.0
    %1957 = vmatpush1.msra.mxu0 0.0
    %1958 = vmatprep.subr.mxu0 0.0
    %1959 = vmatpush1.msra.mxu0 0.0
    %1960 = vmatprep.subr.mxu0 0.0
    %1961 = vmatpush1.msra.mxu0 0.0
    %1962 = vmatprep.subr.mxu0 0.0
    %1963 = vmatpush1.msra.mxu0 0.0
    %v1964 = vand.u32 %v1539, 4294901760
    %1965 = vmatprep.subr.mxu0 %v1964
    %v1966 = vand.u32 %v1538, 4294901760
    %1967 = vmatpush1.msra.mxu0 %v1966
    %1968 = vmatprep.subr.mxu0 0.0
    %1969 = vmatpush2.msra.mxu0 0.0
    %1970 = vmatprep.subr.mxu0 0.0
    %1971 = vmatpush2.msra.mxu0 0.0
    %1972 = vmatprep.subr.mxu0 0.0
    %1973 = vmatpush2.msra.mxu0 0.0
    %1974 = vmatprep.subr.mxu0 0.0
    %1975 = vmatpush2.msra.mxu0 0.0
    %1976 = vmatprep.subr.mxu0 0.0
    %1977 = vmatpush2.msra.mxu0 0.0
    %1978 = vmatprep.subr.mxu0 0.0
    %1979 = vmatpush2.msra.mxu0 0.0
    %1980 = vmatprep.subr.mxu0 0.0
    %1981 = vmatpush2.msra.mxu0 0.0
    %1982 = vmatprep.subr.mxu0 0.0
    %1983 = vmatpush2.msra.mxu0 0.0
    %1984 = vmatprep.subr.mxu0 0.0
    %1985 = vmatpush2.msra.mxu0 0.0
    %1986 = vmatprep.subr.mxu0 0.0
    %1987 = vmatpush2.msra.mxu0 0.0
    %1988 = vmatprep.subr.mxu0 0.0
    %1989 = vmatpush2.msra.mxu0 0.0
    %1990 = vmatprep.subr.mxu0 0.0
    %1991 = vmatpush2.msra.mxu0 0.0
    %1992 = vmatprep.subr.mxu0 0.0
    %1993 = vmatpush2.msra.mxu0 0.0
    %1994 = vmatprep.subr.mxu0 0.0
    %1995 = vmatpush2.msra.mxu0 0.0
    %1996 = vmatprep.subr.mxu0 0.0
    %1997 = vmatpush2.msra.mxu0 0.0
    %1998 = vmatprep.subr.mxu0 0.0
    %1999 = vmatpush2.msra.mxu0 0.0
    %2000 = vmatprep.mubr.f32.mxu0 0.0
    %v2001 = vand.u32 %v1541, 4294901760
    %2002 = vmatmul.mubr.f32.gmra.mxu0 %v2001
    %v2003 = vpop.f32.mrf.mxu0
    %v2004 = vadd.f32 %v1930, %v2003
    %v2005 = vpop.f32.mrf.mxu0
    %v2006 = vadd.f32 %v1932, %v2005
    %2007 = vdwg.mxu0
    %v2008 = vadd.f32 %v1529, %v2004
    %v2009 = vadd.f32 %v1530, %v2006
    %2010 = vrot.lane.b32.xlu0 %v18, 1
    %v2011 = vpop.permute.xlu0 %2010
    %2012 = vrot.lane.b32.xlu0 %v19, 1
    %v2013 = vpop.permute.xlu0 %2012
    %vm2014 = vcmp.lt.s32.totalorder %v109, 1
    %v2015 = vsel %vm2014, %v2011, %v2013
    %v2016 = vsel %vm2014, %v2013, %v2011
    %v2017 = vmul.f32 %v2016, %v67
    %v2018 = vmul.f32 %v2015, %v71
    %v2020 = vsel %vm115, %v23, 0
    %2022 = vmatprep.subr.mxu0 0.0
    %2023 = vmatpush1.msra.mxu0 0.0
    %2024 = vmatprep.subr.mxu0 0.0
    %2025 = vmatpush1.msra.mxu0 0.0
    %2026 = vmatprep.subr.mxu0 0.0
    %2027 = vmatpush1.msra.mxu0 0.0
    %2028 = vmatprep.subr.mxu0 0.0
    %2029 = vmatpush1.msra.mxu0 0.0
    %2030 = vmatprep.subr.mxu0 0.0
    %2031 = vmatpush1.msra.mxu0 0.0
    %2032 = vmatprep.subr.mxu0 0.0
    %2033 = vmatpush1.msra.mxu0 0.0
    %2034 = vmatprep.subr.mxu0 0.0
    %2035 = vmatpush1.msra.mxu0 0.0
    %2036 = vmatprep.subr.mxu0 0.0
    %2037 = vmatpush1.msra.mxu0 0.0
    %2038 = vmatprep.subr.mxu0 0.0
    %2039 = vmatpush1.msra.mxu0 0.0
    %2040 = vmatprep.subr.mxu0 0.0
    %2041 = vmatpush1.msra.mxu0 0.0
    %2042 = vmatprep.subr.mxu0 0.0
    %2043 = vmatpush1.msra.mxu0 0.0
    %2044 = vmatprep.subr.mxu0 0.0
    %2045 = vmatpush1.msra.mxu0 0.0
    %2046 = vmatprep.subr.mxu0 0.0
    %2047 = vmatpush1.msra.mxu0 0.0
    %2048 = vmatprep.subr.mxu0 0.0
    %2049 = vmatpush1.msra.mxu0 0.0
    %2050 = vmatprep.subr.mxu0 0.0
    %2051 = vmatpush1.msra.mxu0 0.0
    %v2052 = vand.u32 %v2018, 4294901760
    %2053 = vmatprep.subr.mxu0 %v2052
    %v2054 = vand.u32 %v2017, 4294901760
    %2055 = vmatpush1.msra.mxu0 %v2054
    %2056 = vmatprep.subr.mxu0 0.0
    %2057 = vmatpush2.msra.mxu0 0.0
    %2058 = vmatprep.subr.mxu0 0.0
    %2059 = vmatpush2.msra.mxu0 0.0
    %2060 = vmatprep.subr.mxu0 0.0
    %2061 = vmatpush2.msra.mxu0 0.0
    %2062 = vmatprep.subr.mxu0 0.0
    %2063 = vmatpush2.msra.mxu0 0.0
    %2064 = vmatprep.subr.mxu0 0.0
    %2065 = vmatpush2.msra.mxu0 0.0
    %2066 = vmatprep.subr.mxu0 0.0
    %2067 = vmatpush2.msra.mxu0 0.0
    %2068 = vmatprep.subr.mxu0 0.0
    %2069 = vmatpush2.msra.mxu0 0.0
    %2070 = vmatprep.subr.mxu0 0.0
    %2071 = vmatpush2.msra.mxu0 0.0
    %2072 = vmatprep.subr.mxu0 0.0
    %2073 = vmatpush2.msra.mxu0 0.0
    %2074 = vmatprep.subr.mxu0 0.0
    %2075 = vmatpush2.msra.mxu0 0.0
    %2076 = vmatprep.subr.mxu0 0.0
    %2077 = vmatpush2.msra.mxu0 0.0
    %2078 = vmatprep.subr.mxu0 0.0
    %2079 = vmatpush2.msra.mxu0 0.0
    %2080 = vmatprep.subr.mxu0 0.0
    %2081 = vmatpush2.msra.mxu0 0.0
    %2082 = vmatprep.subr.mxu0 0.0
    %2083 = vmatpush2.msra.mxu0 0.0
    %2084 = vmatprep.subr.mxu0 0.0
    %2085 = vmatpush2.msra.mxu0 0.0
    %2086 = vmatprep.subr.mxu0 0.0
    %2087 = vmatpush2.msra.mxu0 0.0
    %2088 = vmatprep.mubr.f32.mxu0 0.0
    %v2089 = vand.u32 %v2020, 4294901760
    %v2090 = vsub.f32 %v2020, %v2089
    %v2091 = vand.u32 %v2090, 4294901760
    %v2092 = vsub.f32 %v2090, %v2091
    %v2093 = vand.u32 %v2092, 4294901760
    %2094 = vmatmul.mubr.f32.gmra.mxu0 %v2093
    %v2095 = vpop.f32.mrf.mxu0
    %v2096 = vadd.f32 0.0, %v2095
    %v2097 = vpop.f32.mrf.mxu0
    %v2098 = vadd.f32 0.0, %v2097
    %2099 = vdwg.mxu0
    %2100 = vmatprep.subr.mxu0 0.0
    %2101 = vmatpush1.msra.mxu0 0.0
    %2102 = vmatprep.subr.mxu0 0.0
    %2103 = vmatpush1.msra.mxu0 0.0
    %2104 = vmatprep.subr.mxu0 0.0
    %2105 = vmatpush1.msra.mxu0 0.0
    %2106 = vmatprep.subr.mxu0 0.0
    %2107 = vmatpush1.msra.mxu0 0.0
    %2108 = vmatprep.subr.mxu0 0.0
    %2109 = vmatpush1.msra.mxu0 0.0
    %2110 = vmatprep.subr.mxu0 0.0
    %2111 = vmatpush1.msra.mxu0 0.0
    %2112 = vmatprep.subr.mxu0 0.0
    %2113 = vmatpush1.msra.mxu0 0.0
    %2114 = vmatprep.subr.mxu0 0.0
    %2115 = vmatpush1.msra.mxu0 0.0
    %2116 = vmatprep.subr.mxu0 0.0
    %2117 = vmatpush1.msra.mxu0 0.0
    %2118 = vmatprep.subr.mxu0 0.0
    %2119 = vmatpush1.msra.mxu0 0.0
    %2120 = vmatprep.subr.mxu0 0.0
    %2121 = vmatpush1.msra.mxu0 0.0
    %2122 = vmatprep.subr.mxu0 0.0
    %2123 = vmatpush1.msra.mxu0 0.0
    %2124 = vmatprep.subr.mxu0 0.0
    %2125 = vmatpush1.msra.mxu0 0.0
    %2126 = vmatprep.subr.mxu0 0.0
    %2127 = vmatpush1.msra.mxu0 0.0
    %2128 = vmatprep.subr.mxu0 0.0
    %2129 = vmatpush1.msra.mxu0 0.0
    %v2130 = vand.u32 %v2018, 4294901760
    %v2131 = vsub.f32 %v2018, %v2130
    %v2132 = vand.u32 %v2131, 4294901760
    %v2133 = vsub.f32 %v2131, %v2132
    %v2134 = vand.u32 %v2133, 4294901760
    %2135 = vmatprep.subr.mxu0 %v2134
    %v2136 = vand.u32 %v2017, 4294901760
    %v2137 = vsub.f32 %v2017, %v2136
    %v2138 = vand.u32 %v2137, 4294901760
    %v2139 = vsub.f32 %v2137, %v2138
    %v2140 = vand.u32 %v2139, 4294901760
    %2141 = vmatpush1.msra.mxu0 %v2140
    %2142 = vmatprep.subr.mxu0 0.0
    %2143 = vmatpush2.msra.mxu0 0.0
    %2144 = vmatprep.subr.mxu0 0.0
    %2145 = vmatpush2.msra.mxu0 0.0
    %2146 = vmatprep.subr.mxu0 0.0
    %2147 = vmatpush2.msra.mxu0 0.0
    %2148 = vmatprep.subr.mxu0 0.0
    %2149 = vmatpush2.msra.mxu0 0.0
    %2150 = vmatprep.subr.mxu0 0.0
    %2151 = vmatpush2.msra.mxu0 0.0
    %2152 = vmatprep.subr.mxu0 0.0
    %2153 = vmatpush2.msra.mxu0 0.0
    %2154 = vmatprep.subr.mxu0 0.0
    %2155 = vmatpush2.msra.mxu0 0.0
    %2156 = vmatprep.subr.mxu0 0.0
    %2157 = vmatpush2.msra.mxu0 0.0
    %2158 = vmatprep.subr.mxu0 0.0
    %2159 = vmatpush2.msra.mxu0 0.0
    %2160 = vmatprep.subr.mxu0 0.0
    %2161 = vmatpush2.msra.mxu0 0.0
    %2162 = vmatprep.subr.mxu0 0.0
    %2163 = vmatpush2.msra.mxu0 0.0
    %2164 = vmatprep.subr.mxu0 0.0
    %2165 = vmatpush2.msra.mxu0 0.0
    %2166 = vmatprep.subr.mxu0 0.0
    %2167 = vmatpush2.msra.mxu0 0.0
    %2168 = vmatprep.subr.mxu0 0.0
    %2169 = vmatpush2.msra.mxu0 0.0
    %2170 = vmatprep.subr.mxu0 0.0
    %2171 = vmatpush2.msra.mxu0 0.0
    %2172 = vmatprep.subr.mxu0 0.0
    %2173 = vmatpush2.msra.mxu0 0.0
    %2174 = vmatprep.mubr.f32.mxu0 0.0
    %v2175 = vand.u32 %v2020, 4294901760
    %2176 = vmatmul.mubr.f32.gmra.mxu0 %v2175
    %v2177 = vpop.f32.mrf.mxu0
    %v2178 = vadd.f32 %v2096, %v2177
    %v2179 = vpop.f32.mrf.mxu0
    %v2180 = vadd.f32 %v2098, %v2179
    %2181 = vdwg.mxu0
    %2182 = vmatprep.subr.mxu0 0.0
    %2183 = vmatpush1.msra.mxu0 0.0
    %2184 = vmatprep.subr.mxu0 0.0
    %2185 = vmatpush1.msra.mxu0 0.0
    %2186 = vmatprep.subr.mxu0 0.0
    %2187 = vmatpush1.msra.mxu0 0.0
    %2188 = vmatprep.subr.mxu0 0.0
    %2189 = vmatpush1.msra.mxu0 0.0
    %2190 = vmatprep.subr.mxu0 0.0
    %2191 = vmatpush1.msra.mxu0 0.0
    %2192 = vmatprep.subr.mxu0 0.0
    %2193 = vmatpush1.msra.mxu0 0.0
    %2194 = vmatprep.subr.mxu0 0.0
    %2195 = vmatpush1.msra.mxu0 0.0
    %2196 = vmatprep.subr.mxu0 0.0
    %2197 = vmatpush1.msra.mxu0 0.0
    %2198 = vmatprep.subr.mxu0 0.0
    %2199 = vmatpush1.msra.mxu0 0.0
    %2200 = vmatprep.subr.mxu0 0.0
    %2201 = vmatpush1.msra.mxu0 0.0
    %2202 = vmatprep.subr.mxu0 0.0
    %2203 = vmatpush1.msra.mxu0 0.0
    %2204 = vmatprep.subr.mxu0 0.0
    %2205 = vmatpush1.msra.mxu0 0.0
    %2206 = vmatprep.subr.mxu0 0.0
    %2207 = vmatpush1.msra.mxu0 0.0
    %2208 = vmatprep.subr.mxu0 0.0
    %2209 = vmatpush1.msra.mxu0 0.0
    %2210 = vmatprep.subr.mxu0 0.0
    %2211 = vmatpush1.msra.mxu0 0.0
    %v2212 = vand.u32 %v2018, 4294901760
    %v2213 = vsub.f32 %v2018, %v2212
    %2214 = vmatprep.subr.mxu0 %v2213
    %v2215 = vand.u32 %v2017, 4294901760
    %v2216 = vsub.f32 %v2017, %v2215
    %2217 = vmatpush1.msra.mxu0 %v2216
    %2218 = vmatprep.subr.mxu0 0.0
    %2219 = vmatpush2.msra.mxu0 0.0
    %2220 = vmatprep.subr.mxu0 0.0
    %2221 = vmatpush2.msra.mxu0 0.0
    %2222 = vmatprep.subr.mxu0 0.0
    %2223 = vmatpush2.msra.mxu0 0.0
    %2224 = vmatprep.subr.mxu0 0.0
    %2225 = vmatpush2.msra.mxu0 0.0
    %2226 = vmatprep.subr.mxu0 0.0
    %2227 = vmatpush2.msra.mxu0 0.0
    %2228 = vmatprep.subr.mxu0 0.0
    %2229 = vmatpush2.msra.mxu0 0.0
    %2230 = vmatprep.subr.mxu0 0.0
    %2231 = vmatpush2.msra.mxu0 0.0
    %2232 = vmatprep.subr.mxu0 0.0
    %2233 = vmatpush2.msra.mxu0 0.0
    %2234 = vmatprep.subr.mxu0 0.0
    %2235 = vmatpush2.msra.mxu0 0.0
    %2236 = vmatprep.subr.mxu0 0.0
    %2237 = vmatpush2.msra.mxu0 0.0
    %2238 = vmatprep.subr.mxu0 0.0
    %2239 = vmatpush2.msra.mxu0 0.0
    %2240 = vmatprep.subr.mxu0 0.0
    %2241 = vmatpush2.msra.mxu0 0.0
    %2242 = vmatprep.subr.mxu0 0.0
    %2243 = vmatpush2.msra.mxu0 0.0
    %2244 = vmatprep.subr.mxu0 0.0
    %2245 = vmatpush2.msra.mxu0 0.0
    %2246 = vmatprep.subr.mxu0 0.0
    %2247 = vmatpush2.msra.mxu0 0.0
    %2248 = vmatprep.subr.mxu0 0.0
    %2249 = vmatpush2.msra.mxu0 0.0
    %2250 = vmatprep.mubr.f32.mxu0 0.0
    %v2251 = vand.u32 %v2020, 4294901760
    %v2252 = vsub.f32 %v2020, %v2251
    %2253 = vmatmul.mubr.f32.gmra.mxu0 %v2252
    %v2254 = vpop.f32.mrf.mxu0
    %v2255 = vadd.f32 %v2178, %v2254
    %v2256 = vpop.f32.mrf.mxu0
    %v2257 = vadd.f32 %v2180, %v2256
    %2258 = vdwg.mxu0
    %2259 = vmatprep.subr.mxu0 0.0
    %2260 = vmatpush1.msra.mxu0 0.0
    %2261 = vmatprep.subr.mxu0 0.0
    %2262 = vmatpush1.msra.mxu0 0.0
    %2263 = vmatprep.subr.mxu0 0.0
    %2264 = vmatpush1.msra.mxu0 0.0
    %2265 = vmatprep.subr.mxu0 0.0
    %2266 = vmatpush1.msra.mxu0 0.0
    %2267 = vmatprep.subr.mxu0 0.0
    %2268 = vmatpush1.msra.mxu0 0.0
    %2269 = vmatprep.subr.mxu0 0.0
    %2270 = vmatpush1.msra.mxu0 0.0
    %2271 = vmatprep.subr.mxu0 0.0
    %2272 = vmatpush1.msra.mxu0 0.0
    %2273 = vmatprep.subr.mxu0 0.0
    %2274 = vmatpush1.msra.mxu0 0.0
    %2275 = vmatprep.subr.mxu0 0.0
    %2276 = vmatpush1.msra.mxu0 0.0
    %2277 = vmatprep.subr.mxu0 0.0
    %2278 = vmatpush1.msra.mxu0 0.0
    %2279 = vmatprep.subr.mxu0 0.0
    %2280 = vmatpush1.msra.mxu0 0.0
    %2281 = vmatprep.subr.mxu0 0.0
    %2282 = vmatpush1.msra.mxu0 0.0
    %2283 = vmatprep.subr.mxu0 0.0
    %2284 = vmatpush1.msra.mxu0 0.0
    %2285 = vmatprep.subr.mxu0 0.0
    %2286 = vmatpush1.msra.mxu0 0.0
    %2287 = vmatprep.subr.mxu0 0.0
    %2288 = vmatpush1.msra.mxu0 0.0
    %v2289 = vand.u32 %v2018, 4294901760
    %2290 = vmatprep.subr.mxu0 %v2289
    %v2291 = vand.u32 %v2017, 4294901760
    %2292 = vmatpush1.msra.mxu0 %v2291
    %2293 = vmatprep.subr.mxu0 0.0
    %2294 = vmatpush2.msra.mxu0 0.0
    %2295 = vmatprep.subr.mxu0 0.0
    %2296 = vmatpush2.msra.mxu0 0.0
    %2297 = vmatprep.subr.mxu0 0.0
    %2298 = vmatpush2.msra.mxu0 0.0
    %2299 = vmatprep.subr.mxu0 0.0
    %2300 = vmatpush2.msra.mxu0 0.0
    %2301 = vmatprep.subr.mxu0 0.0
    %2302 = vmatpush2.msra.mxu0 0.0
    %2303 = vmatprep.subr.mxu0 0.0
    %2304 = vmatpush2.msra.mxu0 0.0
    %2305 = vmatprep.subr.mxu0 0.0
    %2306 = vmatpush2.msra.mxu0 0.0
    %2307 = vmatprep.subr.mxu0 0.0
    %2308 = vmatpush2.msra.mxu0 0.0
    %2309 = vmatprep.subr.mxu0 0.0
    %2310 = vmatpush2.msra.mxu0 0.0
    %2311 = vmatprep.subr.mxu0 0.0
    %2312 = vmatpush2.msra.mxu0 0.0
    %2313 = vmatprep.subr.mxu0 0.0
    %2314 = vmatpush2.msra.mxu0 0.0
    %2315 = vmatprep.subr.mxu0 0.0
    %2316 = vmatpush2.msra.mxu0 0.0
    %2317 = vmatprep.subr.mxu0 0.0
    %2318 = vmatpush2.msra.mxu0 0.0
    %2319 = vmatprep.subr.mxu0 0.0
    %2320 = vmatpush2.msra.mxu0 0.0
    %2321 = vmatprep.subr.mxu0 0.0
    %2322 = vmatpush2.msra.mxu0 0.0
    %2323 = vmatprep.subr.mxu0 0.0
    %2324 = vmatpush2.msra.mxu0 0.0
    %2325 = vmatprep.mubr.f32.mxu0 0.0
    %v2326 = vand.u32 %v2020, 4294901760
    %v2327 = vsub.f32 %v2020, %v2326
    %v2328 = vand.u32 %v2327, 4294901760
    %2329 = vmatmul.mubr.f32.gmra.mxu0 %v2328
    %v2330 = vpop.f32.mrf.mxu0
    %v2331 = vadd.f32 %v2255, %v2330
    %v2332 = vpop.f32.mrf.mxu0
    %v2333 = vadd.f32 %v2257, %v2332
    %2334 = vdwg.mxu0
    %2335 = vmatprep.subr.mxu0 0.0
    %2336 = vmatpush1.msra.mxu0 0.0
    %2337 = vmatprep.subr.mxu0 0.0
    %2338 = vmatpush1.msra.mxu0 0.0
    %2339 = vmatprep.subr.mxu0 0.0
    %2340 = vmatpush1.msra.mxu0 0.0
    %2341 = vmatprep.subr.mxu0 0.0
    %2342 = vmatpush1.msra.mxu0 0.0
    %2343 = vmatprep.subr.mxu0 0.0
    %2344 = vmatpush1.msra.mxu0 0.0
    %2345 = vmatprep.subr.mxu0 0.0
    %2346 = vmatpush1.msra.mxu0 0.0
    %2347 = vmatprep.subr.mxu0 0.0
    %2348 = vmatpush1.msra.mxu0 0.0
    %2349 = vmatprep.subr.mxu0 0.0
    %2350 = vmatpush1.msra.mxu0 0.0
    %2351 = vmatprep.subr.mxu0 0.0
    %2352 = vmatpush1.msra.mxu0 0.0
    %2353 = vmatprep.subr.mxu0 0.0
    %2354 = vmatpush1.msra.mxu0 0.0
    %2355 = vmatprep.subr.mxu0 0.0
    %2356 = vmatpush1.msra.mxu0 0.0
    %2357 = vmatprep.subr.mxu0 0.0
    %2358 = vmatpush1.msra.mxu0 0.0
    %2359 = vmatprep.subr.mxu0 0.0
    %2360 = vmatpush1.msra.mxu0 0.0
    %2361 = vmatprep.subr.mxu0 0.0
    %2362 = vmatpush1.msra.mxu0 0.0
    %2363 = vmatprep.subr.mxu0 0.0
    %2364 = vmatpush1.msra.mxu0 0.0
    %v2365 = vand.u32 %v2018, 4294901760
    %v2366 = vsub.f32 %v2018, %v2365
    %v2367 = vand.u32 %v2366, 4294901760
    %2368 = vmatprep.subr.mxu0 %v2367
    %v2369 = vand.u32 %v2017, 4294901760
    %v2370 = vsub.f32 %v2017, %v2369
    %v2371 = vand.u32 %v2370, 4294901760
    %2372 = vmatpush1.msra.mxu0 %v2371
    %2373 = vmatprep.subr.mxu0 0.0
    %2374 = vmatpush2.msra.mxu0 0.0
    %2375 = vmatprep.subr.mxu0 0.0
    %2376 = vmatpush2.msra.mxu0 0.0
    %2377 = vmatprep.subr.mxu0 0.0
    %2378 = vmatpush2.msra.mxu0 0.0
    %2379 = vmatprep.subr.mxu0 0.0
    %2380 = vmatpush2.msra.mxu0 0.0
    %2381 = vmatprep.subr.mxu0 0.0
    %2382 = vmatpush2.msra.mxu0 0.0
    %2383 = vmatprep.subr.mxu0 0.0
    %2384 = vmatpush2.msra.mxu0 0.0
    %2385 = vmatprep.subr.mxu0 0.0
    %2386 = vmatpush2.msra.mxu0 0.0
    %2387 = vmatprep.subr.mxu0 0.0
    %2388 = vmatpush2.msra.mxu0 0.0
    %2389 = vmatprep.subr.mxu0 0.0
    %2390 = vmatpush2.msra.mxu0 0.0
    %2391 = vmatprep.subr.mxu0 0.0
    %2392 = vmatpush2.msra.mxu0 0.0
    %2393 = vmatprep.subr.mxu0 0.0
    %2394 = vmatpush2.msra.mxu0 0.0
    %2395 = vmatprep.subr.mxu0 0.0
    %2396 = vmatpush2.msra.mxu0 0.0
    %2397 = vmatprep.subr.mxu0 0.0
    %2398 = vmatpush2.msra.mxu0 0.0
    %2399 = vmatprep.subr.mxu0 0.0
    %2400 = vmatpush2.msra.mxu0 0.0
    %2401 = vmatprep.subr.mxu0 0.0
    %2402 = vmatpush2.msra.mxu0 0.0
    %2403 = vmatprep.subr.mxu0 0.0
    %2404 = vmatpush2.msra.mxu0 0.0
    %2405 = vmatprep.mubr.f32.mxu0 0.0
    %v2406 = vand.u32 %v2020, 4294901760
    %2407 = vmatmul.mubr.f32.gmra.mxu0 %v2406
    %v2408 = vpop.f32.mrf.mxu0
    %v2409 = vadd.f32 %v2331, %v2408
    %v2410 = vpop.f32.mrf.mxu0
    %v2411 = vadd.f32 %v2333, %v2410
    %2412 = vdwg.mxu0
    %2413 = vmatprep.subr.mxu0 0.0
    %2414 = vmatpush1.msra.mxu0 0.0
    %2415 = vmatprep.subr.mxu0 0.0
    %2416 = vmatpush1.msra.mxu0 0.0
    %2417 = vmatprep.subr.mxu0 0.0
    %2418 = vmatpush1.msra.mxu0 0.0
    %2419 = vmatprep.subr.mxu0 0.0
    %2420 = vmatpush1.msra.mxu0 0.0
    %2421 = vmatprep.subr.mxu0 0.0
    %2422 = vmatpush1.msra.mxu0 0.0
    %2423 = vmatprep.subr.mxu0 0.0
    %2424 = vmatpush1.msra.mxu0 0.0
    %2425 = vmatprep.subr.mxu0 0.0
    %2426 = vmatpush1.msra.mxu0 0.0
    %2427 = vmatprep.subr.mxu0 0.0
    %2428 = vmatpush1.msra.mxu0 0.0
    %2429 = vmatprep.subr.mxu0 0.0
    %2430 = vmatpush1.msra.mxu0 0.0
    %2431 = vmatprep.subr.mxu0 0.0
    %2432 = vmatpush1.msra.mxu0 0.0
    %2433 = vmatprep.subr.mxu0 0.0
    %2434 = vmatpush1.msra.mxu0 0.0
    %2435 = vmatprep.subr.mxu0 0.0
    %2436 = vmatpush1.msra.mxu0 0.0
    %2437 = vmatprep.subr.mxu0 0.0
    %2438 = vmatpush1.msra.mxu0 0.0
    %2439 = vmatprep.subr.mxu0 0.0
    %2440 = vmatpush1.msra.mxu0 0.0
    %2441 = vmatprep.subr.mxu0 0.0
    %2442 = vmatpush1.msra.mxu0 0.0
    %v2443 = vand.u32 %v2018, 4294901760
    %2444 = vmatprep.subr.mxu0 %v2443
    %v2445 = vand.u32 %v2017, 4294901760
    %2446 = vmatpush1.msra.mxu0 %v2445
    %2447 = vmatprep.subr.mxu0 0.0
    %2448 = vmatpush2.msra.mxu0 0.0
    %2449 = vmatprep.subr.mxu0 0.0
    %2450 = vmatpush2.msra.mxu0 0.0
    %2451 = vmatprep.subr.mxu0 0.0
    %2452 = vmatpush2.msra.mxu0 0.0
    %2453 = vmatprep.subr.mxu0 0.0
    %2454 = vmatpush2.msra.mxu0 0.0
    %2455 = vmatprep.subr.mxu0 0.0
    %2456 = vmatpush2.msra.mxu0 0.0
    %2457 = vmatprep.subr.mxu0 0.0
    %2458 = vmatpush2.msra.mxu0 0.0
    %2459 = vmatprep.subr.mxu0 0.0
    %2460 = vmatpush2.msra.mxu0 0.0
    %2461 = vmatprep.subr.mxu0 0.0
    %2462 = vmatpush2.msra.mxu0 0.0
    %2463 = vmatprep.subr.mxu0 0.0
    %2464 = vmatpush2.msra.mxu0 0.0
    %2465 = vmatprep.subr.mxu0 0.0
    %2466 = vmatpush2.msra.mxu0 0.0
    %2467 = vmatprep.subr.mxu0 0.0
    %2468 = vmatpush2.msra.mxu0 0.0
    %2469 = vmatprep.subr.mxu0 0.0
    %2470 = vmatpush2.msra.mxu0 0.0
    %2471 = vmatprep.subr.mxu0 0.0
    %2472 = vmatpush2.msra.mxu0 0.0
    %2473 = vmatprep.subr.mxu0 0.0
    %2474 = vmatpush2.msra.mxu0 0.0
    %2475 = vmatprep.subr.mxu0 0.0
    %2476 = vmatpush2.msra.mxu0 0.0
    %2477 = vmatprep.subr.mxu0 0.0
    %2478 = vmatpush2.msra.mxu0 0.0
    %2479 = vmatprep.mubr.f32.mxu0 0.0
    %v2480 = vand.u32 %v2020, 4294901760
    %2481 = vmatmul.mubr.f32.gmra.mxu0 %v2480
    %v2482 = vpop.f32.mrf.mxu0
    %v2483 = vadd.f32 %v2409, %v2482
    %v2484 = vpop.f32.mrf.mxu0
    %v2485 = vadd.f32 %v2411, %v2484
    %2486 = vdwg.mxu0
    %v2487 = vadd.f32 %v2008, %v2483
    %v2488 = vadd.f32 %v2009, %v2485
    %2489 = vrot.lane.b32.xlu0 %v18, 127
    %v2490 = vpop.permute.xlu0 %2489
    %2491 = vrot.lane.b32.xlu0 %v19, 127
    %v2492 = vpop.permute.xlu0 %2491
    %vm2493 = vcmp.lt.s32.totalorder %v109, 127
    %v2494 = vsel %vm2493, %v2490, %v2492
    %v2495 = vsel %vm2493, %v2492, %v2490
    %v2496 = vmul.f32 %v2494, %v75
    %v2497 = vmul.f32 %v2495, %v79
    %v2499 = vsel %vm115, %v25, 0
    %2501 = vmatprep.subr.mxu0 0.0
    %2502 = vmatpush1.msra.mxu0 0.0
    %2503 = vmatprep.subr.mxu0 0.0
    %2504 = vmatpush1.msra.mxu0 0.0
    %2505 = vmatprep.subr.mxu0 0.0
    %2506 = vmatpush1.msra.mxu0 0.0
    %2507 = vmatprep.subr.mxu0 0.0
    %2508 = vmatpush1.msra.mxu0 0.0
    %2509 = vmatprep.subr.mxu0 0.0
    %2510 = vmatpush1.msra.mxu0 0.0
    %2511 = vmatprep.subr.mxu0 0.0
    %2512 = vmatpush1.msra.mxu0 0.0
    %2513 = vmatprep.subr.mxu0 0.0
    %2514 = vmatpush1.msra.mxu0 0.0
    %2515 = vmatprep.subr.mxu0 0.0
    %2516 = vmatpush1.msra.mxu0 0.0
    %2517 = vmatprep.subr.mxu0 0.0
    %2518 = vmatpush1.msra.mxu0 0.0
    %2519 = vmatprep.subr.mxu0 0.0
    %2520 = vmatpush1.msra.mxu0 0.0
    %2521 = vmatprep.subr.mxu0 0.0
    %2522 = vmatpush1.msra.mxu0 0.0
    %2523 = vmatprep.subr.mxu0 0.0
    %2524 = vmatpush1.msra.mxu0 0.0
    %2525 = vmatprep.subr.mxu0 0.0
    %2526 = vmatpush1.msra.mxu0 0.0
    %2527 = vmatprep.subr.mxu0 0.0
    %2528 = vmatpush1.msra.mxu0 0.0
    %2529 = vmatprep.subr.mxu0 0.0
    %2530 = vmatpush1.msra.mxu0 0.0
    %v2531 = vand.u32 %v2497, 4294901760
    %2532 = vmatprep.subr.mxu0 %v2531
    %v2533 = vand.u32 %v2496, 4294901760
    %2534 = vmatpush1.msra.mxu0 %v2533
    %2535 = vmatprep.subr.mxu0 0.0
    %2536 = vmatpush2.msra.mxu0 0.0
    %2537 = vmatprep.subr.mxu0 0.0
    %2538 = vmatpush2.msra.mxu0 0.0
    %2539 = vmatprep.subr.mxu0 0.0
    %2540 = vmatpush2.msra.mxu0 0.0
    %2541 = vmatprep.subr.mxu0 0.0
    %2542 = vmatpush2.msra.mxu0 0.0
    %2543 = vmatprep.subr.mxu0 0.0
    %2544 = vmatpush2.msra.mxu0 0.0
    %2545 = vmatprep.subr.mxu0 0.0
    %2546 = vmatpush2.msra.mxu0 0.0
    %2547 = vmatprep.subr.mxu0 0.0
    %2548 = vmatpush2.msra.mxu0 0.0
    %2549 = vmatprep.subr.mxu0 0.0
    %2550 = vmatpush2.msra.mxu0 0.0
    %2551 = vmatprep.subr.mxu0 0.0
    %2552 = vmatpush2.msra.mxu0 0.0
    %2553 = vmatprep.subr.mxu0 0.0
    %2554 = vmatpush2.msra.mxu0 0.0
    %2555 = vmatprep.subr.mxu0 0.0
    %2556 = vmatpush2.msra.mxu0 0.0
    %2557 = vmatprep.subr.mxu0 0.0
    %2558 = vmatpush2.msra.mxu0 0.0
    %2559 = vmatprep.subr.mxu0 0.0
    %2560 = vmatpush2.msra.mxu0 0.0
    %2561 = vmatprep.subr.mxu0 0.0
    %2562 = vmatpush2.msra.mxu0 0.0
    %2563 = vmatprep.subr.mxu0 0.0
    %2564 = vmatpush2.msra.mxu0 0.0
    %2565 = vmatprep.subr.mxu0 0.0
    %2566 = vmatpush2.msra.mxu0 0.0
    %2567 = vmatprep.mubr.f32.mxu0 0.0
    %v2568 = vand.u32 %v2499, 4294901760
    %v2569 = vsub.f32 %v2499, %v2568
    %v2570 = vand.u32 %v2569, 4294901760
    %v2571 = vsub.f32 %v2569, %v2570
    %v2572 = vand.u32 %v2571, 4294901760
    %2573 = vmatmul.mubr.f32.gmra.mxu0 %v2572
    %v2574 = vpop.f32.mrf.mxu0
    %v2575 = vadd.f32 0.0, %v2574
    %v2576 = vpop.f32.mrf.mxu0
    %v2577 = vadd.f32 0.0, %v2576
    %2578 = vdwg.mxu0
    %2579 = vmatprep.subr.mxu0 0.0
    %2580 = vmatpush1.msra.mxu0 0.0
    %2581 = vmatprep.subr.mxu0 0.0
    %2582 = vmatpush1.msra.mxu0 0.0
    %2583 = vmatprep.subr.mxu0 0.0
    %2584 = vmatpush1.msra.mxu0 0.0
    %2585 = vmatprep.subr.mxu0 0.0
    %2586 = vmatpush1.msra.mxu0 0.0
    %2587 = vmatprep.subr.mxu0 0.0
    %2588 = vmatpush1.msra.mxu0 0.0
    %2589 = vmatprep.subr.mxu0 0.0
    %2590 = vmatpush1.msra.mxu0 0.0
    %2591 = vmatprep.subr.mxu0 0.0
    %2592 = vmatpush1.msra.mxu0 0.0
    %2593 = vmatprep.subr.mxu0 0.0
    %2594 = vmatpush1.msra.mxu0 0.0
    %2595 = vmatprep.subr.mxu0 0.0
    %2596 = vmatpush1.msra.mxu0 0.0
    %2597 = vmatprep.subr.mxu0 0.0
    %2598 = vmatpush1.msra.mxu0 0.0
    %2599 = vmatprep.subr.mxu0 0.0
    %2600 = vmatpush1.msra.mxu0 0.0
    %2601 = vmatprep.subr.mxu0 0.0
    %2602 = vmatpush1.msra.mxu0 0.0
    %2603 = vmatprep.subr.mxu0 0.0
    %2604 = vmatpush1.msra.mxu0 0.0
    %2605 = vmatprep.subr.mxu0 0.0
    %2606 = vmatpush1.msra.mxu0 0.0
    %2607 = vmatprep.subr.mxu0 0.0
    %2608 = vmatpush1.msra.mxu0 0.0
    %v2609 = vand.u32 %v2497, 4294901760
    %v2610 = vsub.f32 %v2497, %v2609
    %v2611 = vand.u32 %v2610, 4294901760
    %v2612 = vsub.f32 %v2610, %v2611
    %v2613 = vand.u32 %v2612, 4294901760
    %2614 = vmatprep.subr.mxu0 %v2613
    %v2615 = vand.u32 %v2496, 4294901760
    %v2616 = vsub.f32 %v2496, %v2615
    %v2617 = vand.u32 %v2616, 4294901760
    %v2618 = vsub.f32 %v2616, %v2617
    %v2619 = vand.u32 %v2618, 4294901760
    %2620 = vmatpush1.msra.mxu0 %v2619
    %2621 = vmatprep.subr.mxu0 0.0
    %2622 = vmatpush2.msra.mxu0 0.0
    %2623 = vmatprep.subr.mxu0 0.0
    %2624 = vmatpush2.msra.mxu0 0.0
    %2625 = vmatprep.subr.mxu0 0.0
    %2626 = vmatpush2.msra.mxu0 0.0
    %2627 = vmatprep.subr.mxu0 0.0
    %2628 = vmatpush2.msra.mxu0 0.0
    %2629 = vmatprep.subr.mxu0 0.0
    %2630 = vmatpush2.msra.mxu0 0.0
    %2631 = vmatprep.subr.mxu0 0.0
    %2632 = vmatpush2.msra.mxu0 0.0
    %2633 = vmatprep.subr.mxu0 0.0
    %2634 = vmatpush2.msra.mxu0 0.0
    %2635 = vmatprep.subr.mxu0 0.0
    %2636 = vmatpush2.msra.mxu0 0.0
    %2637 = vmatprep.subr.mxu0 0.0
    %2638 = vmatpush2.msra.mxu0 0.0
    %2639 = vmatprep.subr.mxu0 0.0
    %2640 = vmatpush2.msra.mxu0 0.0
    %2641 = vmatprep.subr.mxu0 0.0
    %2642 = vmatpush2.msra.mxu0 0.0
    %2643 = vmatprep.subr.mxu0 0.0
    %2644 = vmatpush2.msra.mxu0 0.0
    %2645 = vmatprep.subr.mxu0 0.0
    %2646 = vmatpush2.msra.mxu0 0.0
    %2647 = vmatprep.subr.mxu0 0.0
    %2648 = vmatpush2.msra.mxu0 0.0
    %2649 = vmatprep.subr.mxu0 0.0
    %2650 = vmatpush2.msra.mxu0 0.0
    %2651 = vmatprep.subr.mxu0 0.0
    %2652 = vmatpush2.msra.mxu0 0.0
    %2653 = vmatprep.mubr.f32.mxu0 0.0
    %v2654 = vand.u32 %v2499, 4294901760
    %2655 = vmatmul.mubr.f32.gmra.mxu0 %v2654
    %v2656 = vpop.f32.mrf.mxu0
    %v2657 = vadd.f32 %v2575, %v2656
    %v2658 = vpop.f32.mrf.mxu0
    %v2659 = vadd.f32 %v2577, %v2658
    %2660 = vdwg.mxu0
    %2661 = vmatprep.subr.mxu0 0.0
    %2662 = vmatpush1.msra.mxu0 0.0
    %2663 = vmatprep.subr.mxu0 0.0
    %2664 = vmatpush1.msra.mxu0 0.0
    %2665 = vmatprep.subr.mxu0 0.0
    %2666 = vmatpush1.msra.mxu0 0.0
    %2667 = vmatprep.subr.mxu0 0.0
    %2668 = vmatpush1.msra.mxu0 0.0
    %2669 = vmatprep.subr.mxu0 0.0
    %2670 = vmatpush1.msra.mxu0 0.0
    %2671 = vmatprep.subr.mxu0 0.0
    %2672 = vmatpush1.msra.mxu0 0.0
    %2673 = vmatprep.subr.mxu0 0.0
    %2674 = vmatpush1.msra.mxu0 0.0
    %2675 = vmatprep.subr.mxu0 0.0
    %2676 = vmatpush1.msra.mxu0 0.0
    %2677 = vmatprep.subr.mxu0 0.0
    %2678 = vmatpush1.msra.mxu0 0.0
    %2679 = vmatprep.subr.mxu0 0.0
    %2680 = vmatpush1.msra.mxu0 0.0
    %2681 = vmatprep.subr.mxu0 0.0
    %2682 = vmatpush1.msra.mxu0 0.0
    %2683 = vmatprep.subr.mxu0 0.0
    %2684 = vmatpush1.msra.mxu0 0.0
    %2685 = vmatprep.subr.mxu0 0.0
    %2686 = vmatpush1.msra.mxu0 0.0
    %2687 = vmatprep.subr.mxu0 0.0
    %2688 = vmatpush1.msra.mxu0 0.0
    %2689 = vmatprep.subr.mxu0 0.0
    %2690 = vmatpush1.msra.mxu0 0.0
    %v2691 = vand.u32 %v2497, 4294901760
    %v2692 = vsub.f32 %v2497, %v2691
    %2693 = vmatprep.subr.mxu0 %v2692
    %v2694 = vand.u32 %v2496, 4294901760
    %v2695 = vsub.f32 %v2496, %v2694
    %2696 = vmatpush1.msra.mxu0 %v2695
    %2697 = vmatprep.subr.mxu0 0.0
    %2698 = vmatpush2.msra.mxu0 0.0
    %2699 = vmatprep.subr.mxu0 0.0
    %2700 = vmatpush2.msra.mxu0 0.0
    %2701 = vmatprep.subr.mxu0 0.0
    %2702 = vmatpush2.msra.mxu0 0.0
    %2703 = vmatprep.subr.mxu0 0.0
    %2704 = vmatpush2.msra.mxu0 0.0
    %2705 = vmatprep.subr.mxu0 0.0
    %2706 = vmatpush2.msra.mxu0 0.0
    %2707 = vmatprep.subr.mxu0 0.0
    %2708 = vmatpush2.msra.mxu0 0.0
    %2709 = vmatprep.subr.mxu0 0.0
    %2710 = vmatpush2.msra.mxu0 0.0
    %2711 = vmatprep.subr.mxu0 0.0
    %2712 = vmatpush2.msra.mxu0 0.0
    %2713 = vmatprep.subr.mxu0 0.0
    %2714 = vmatpush2.msra.mxu0 0.0
    %2715 = vmatprep.subr.mxu0 0.0
    %2716 = vmatpush2.msra.mxu0 0.0
    %2717 = vmatprep.subr.mxu0 0.0
    %2718 = vmatpush2.msra.mxu0 0.0
    %2719 = vmatprep.subr.mxu0 0.0
    %2720 = vmatpush2.msra.mxu0 0.0
    %2721 = vmatprep.subr.mxu0 0.0
    %2722 = vmatpush2.msra.mxu0 0.0
    %2723 = vmatprep.subr.mxu0 0.0
    %2724 = vmatpush2.msra.mxu0 0.0
    %2725 = vmatprep.subr.mxu0 0.0
    %2726 = vmatpush2.msra.mxu0 0.0
    %2727 = vmatprep.subr.mxu0 0.0
    %2728 = vmatpush2.msra.mxu0 0.0
    %2729 = vmatprep.mubr.f32.mxu0 0.0
    %v2730 = vand.u32 %v2499, 4294901760
    %v2731 = vsub.f32 %v2499, %v2730
    %2732 = vmatmul.mubr.f32.gmra.mxu0 %v2731
    %v2733 = vpop.f32.mrf.mxu0
    %v2734 = vadd.f32 %v2657, %v2733
    %v2735 = vpop.f32.mrf.mxu0
    %v2736 = vadd.f32 %v2659, %v2735
    %2737 = vdwg.mxu0
    %2738 = vmatprep.subr.mxu0 0.0
    %2739 = vmatpush1.msra.mxu0 0.0
    %2740 = vmatprep.subr.mxu0 0.0
    %2741 = vmatpush1.msra.mxu0 0.0
    %2742 = vmatprep.subr.mxu0 0.0
    %2743 = vmatpush1.msra.mxu0 0.0
    %2744 = vmatprep.subr.mxu0 0.0
    %2745 = vmatpush1.msra.mxu0 0.0
    %2746 = vmatprep.subr.mxu0 0.0
    %2747 = vmatpush1.msra.mxu0 0.0
    %2748 = vmatprep.subr.mxu0 0.0
    %2749 = vmatpush1.msra.mxu0 0.0
    %2750 = vmatprep.subr.mxu0 0.0
    %2751 = vmatpush1.msra.mxu0 0.0
    %2752 = vmatprep.subr.mxu0 0.0
    %2753 = vmatpush1.msra.mxu0 0.0
    %2754 = vmatprep.subr.mxu0 0.0
    %2755 = vmatpush1.msra.mxu0 0.0
    %2756 = vmatprep.subr.mxu0 0.0
    %2757 = vmatpush1.msra.mxu0 0.0
    %2758 = vmatprep.subr.mxu0 0.0
    %2759 = vmatpush1.msra.mxu0 0.0
    %2760 = vmatprep.subr.mxu0 0.0
    %2761 = vmatpush1.msra.mxu0 0.0
    %2762 = vmatprep.subr.mxu0 0.0
    %2763 = vmatpush1.msra.mxu0 0.0
    %2764 = vmatprep.subr.mxu0 0.0
    %2765 = vmatpush1.msra.mxu0 0.0
    %2766 = vmatprep.subr.mxu0 0.0
    %2767 = vmatpush1.msra.mxu0 0.0
    %v2768 = vand.u32 %v2497, 4294901760
    %2769 = vmatprep.subr.mxu0 %v2768
    %v2770 = vand.u32 %v2496, 4294901760
    %2771 = vmatpush1.msra.mxu0 %v2770
    %2772 = vmatprep.subr.mxu0 0.0
    %2773 = vmatpush2.msra.mxu0 0.0
    %2774 = vmatprep.subr.mxu0 0.0
    %2775 = vmatpush2.msra.mxu0 0.0
    %2776 = vmatprep.subr.mxu0 0.0
    %2777 = vmatpush2.msra.mxu0 0.0
    %2778 = vmatprep.subr.mxu0 0.0
    %2779 = vmatpush2.msra.mxu0 0.0
    %2780 = vmatprep.subr.mxu0 0.0
    %2781 = vmatpush2.msra.mxu0 0.0
    %2782 = vmatprep.subr.mxu0 0.0
    %2783 = vmatpush2.msra.mxu0 0.0
    %2784 = vmatprep.subr.mxu0 0.0
    %2785 = vmatpush2.msra.mxu0 0.0
    %2786 = vmatprep.subr.mxu0 0.0
    %2787 = vmatpush2.msra.mxu0 0.0
    %2788 = vmatprep.subr.mxu0 0.0
    %2789 = vmatpush2.msra.mxu0 0.0
    %2790 = vmatprep.subr.mxu0 0.0
    %2791 = vmatpush2.msra.mxu0 0.0
    %2792 = vmatprep.subr.mxu0 0.0
    %2793 = vmatpush2.msra.mxu0 0.0
    %2794 = vmatprep.subr.mxu0 0.0
    %2795 = vmatpush2.msra.mxu0 0.0
    %2796 = vmatprep.subr.mxu0 0.0
    %2797 = vmatpush2.msra.mxu0 0.0
    %2798 = vmatprep.subr.mxu0 0.0
    %2799 = vmatpush2.msra.mxu0 0.0
    %2800 = vmatprep.subr.mxu0 0.0
    %2801 = vmatpush2.msra.mxu0 0.0
    %2802 = vmatprep.subr.mxu0 0.0
    %2803 = vmatpush2.msra.mxu0 0.0
    %2804 = vmatprep.mubr.f32.mxu0 0.0
    %v2805 = vand.u32 %v2499, 4294901760
    %v2806 = vsub.f32 %v2499, %v2805
    %v2807 = vand.u32 %v2806, 4294901760
    %2808 = vmatmul.mubr.f32.gmra.mxu0 %v2807
    %v2809 = vpop.f32.mrf.mxu0
    %v2810 = vadd.f32 %v2734, %v2809
    %v2811 = vpop.f32.mrf.mxu0
    %v2812 = vadd.f32 %v2736, %v2811
    %2813 = vdwg.mxu0
    %2814 = vmatprep.subr.mxu0 0.0
    %2815 = vmatpush1.msra.mxu0 0.0
    %2816 = vmatprep.subr.mxu0 0.0
    %2817 = vmatpush1.msra.mxu0 0.0
    %2818 = vmatprep.subr.mxu0 0.0
    %2819 = vmatpush1.msra.mxu0 0.0
    %2820 = vmatprep.subr.mxu0 0.0
    %2821 = vmatpush1.msra.mxu0 0.0
    %2822 = vmatprep.subr.mxu0 0.0
    %2823 = vmatpush1.msra.mxu0 0.0
    %2824 = vmatprep.subr.mxu0 0.0
    %2825 = vmatpush1.msra.mxu0 0.0
    %2826 = vmatprep.subr.mxu0 0.0
    %2827 = vmatpush1.msra.mxu0 0.0
    %2828 = vmatprep.subr.mxu0 0.0
    %2829 = vmatpush1.msra.mxu0 0.0
    %2830 = vmatprep.subr.mxu0 0.0
    %2831 = vmatpush1.msra.mxu0 0.0
    %2832 = vmatprep.subr.mxu0 0.0
    %2833 = vmatpush1.msra.mxu0 0.0
    %2834 = vmatprep.subr.mxu0 0.0
    %2835 = vmatpush1.msra.mxu0 0.0
    %2836 = vmatprep.subr.mxu0 0.0
    %2837 = vmatpush1.msra.mxu0 0.0
    %2838 = vmatprep.subr.mxu0 0.0
    %2839 = vmatpush1.msra.mxu0 0.0
    %2840 = vmatprep.subr.mxu0 0.0
    %2841 = vmatpush1.msra.mxu0 0.0
    %2842 = vmatprep.subr.mxu0 0.0
    %2843 = vmatpush1.msra.mxu0 0.0
    %v2844 = vand.u32 %v2497, 4294901760
    %v2845 = vsub.f32 %v2497, %v2844
    %v2846 = vand.u32 %v2845, 4294901760
    %2847 = vmatprep.subr.mxu0 %v2846
    %v2848 = vand.u32 %v2496, 4294901760
    %v2849 = vsub.f32 %v2496, %v2848
    %v2850 = vand.u32 %v2849, 4294901760
    %2851 = vmatpush1.msra.mxu0 %v2850
    %2852 = vmatprep.subr.mxu0 0.0
    %2853 = vmatpush2.msra.mxu0 0.0
    %2854 = vmatprep.subr.mxu0 0.0
    %2855 = vmatpush2.msra.mxu0 0.0
    %2856 = vmatprep.subr.mxu0 0.0
    %2857 = vmatpush2.msra.mxu0 0.0
    %2858 = vmatprep.subr.mxu0 0.0
    %2859 = vmatpush2.msra.mxu0 0.0
    %2860 = vmatprep.subr.mxu0 0.0
    %2861 = vmatpush2.msra.mxu0 0.0
    %2862 = vmatprep.subr.mxu0 0.0
    %2863 = vmatpush2.msra.mxu0 0.0
    %2864 = vmatprep.subr.mxu0 0.0
    %2865 = vmatpush2.msra.mxu0 0.0
    %2866 = vmatprep.subr.mxu0 0.0
    %2867 = vmatpush2.msra.mxu0 0.0
    %2868 = vmatprep.subr.mxu0 0.0
    %2869 = vmatpush2.msra.mxu0 0.0
    %2870 = vmatprep.subr.mxu0 0.0
    %2871 = vmatpush2.msra.mxu0 0.0
    %2872 = vmatprep.subr.mxu0 0.0
    %2873 = vmatpush2.msra.mxu0 0.0
    %2874 = vmatprep.subr.mxu0 0.0
    %2875 = vmatpush2.msra.mxu0 0.0
    %2876 = vmatprep.subr.mxu0 0.0
    %2877 = vmatpush2.msra.mxu0 0.0
    %2878 = vmatprep.subr.mxu0 0.0
    %2879 = vmatpush2.msra.mxu0 0.0
    %2880 = vmatprep.subr.mxu0 0.0
    %2881 = vmatpush2.msra.mxu0 0.0
    %2882 = vmatprep.subr.mxu0 0.0
    %2883 = vmatpush2.msra.mxu0 0.0
    %2884 = vmatprep.mubr.f32.mxu0 0.0
    %v2885 = vand.u32 %v2499, 4294901760
    %2886 = vmatmul.mubr.f32.gmra.mxu0 %v2885
    %v2887 = vpop.f32.mrf.mxu0
    %v2888 = vadd.f32 %v2810, %v2887
    %v2889 = vpop.f32.mrf.mxu0
    %v2890 = vadd.f32 %v2812, %v2889
    %2891 = vdwg.mxu0
    %2892 = vmatprep.subr.mxu0 0.0
    %2893 = vmatpush1.msra.mxu0 0.0
    %2894 = vmatprep.subr.mxu0 0.0
    %2895 = vmatpush1.msra.mxu0 0.0
    %2896 = vmatprep.subr.mxu0 0.0
    %2897 = vmatpush1.msra.mxu0 0.0
    %2898 = vmatprep.subr.mxu0 0.0
    %2899 = vmatpush1.msra.mxu0 0.0
    %2900 = vmatprep.subr.mxu0 0.0
    %2901 = vmatpush1.msra.mxu0 0.0
    %2902 = vmatprep.subr.mxu0 0.0
    %2903 = vmatpush1.msra.mxu0 0.0
    %2904 = vmatprep.subr.mxu0 0.0
    %2905 = vmatpush1.msra.mxu0 0.0
    %2906 = vmatprep.subr.mxu0 0.0
    %2907 = vmatpush1.msra.mxu0 0.0
    %2908 = vmatprep.subr.mxu0 0.0
    %2909 = vmatpush1.msra.mxu0 0.0
    %2910 = vmatprep.subr.mxu0 0.0
    %2911 = vmatpush1.msra.mxu0 0.0
    %2912 = vmatprep.subr.mxu0 0.0
    %2913 = vmatpush1.msra.mxu0 0.0
    %2914 = vmatprep.subr.mxu0 0.0
    %2915 = vmatpush1.msra.mxu0 0.0
    %2916 = vmatprep.subr.mxu0 0.0
    %2917 = vmatpush1.msra.mxu0 0.0
    %2918 = vmatprep.subr.mxu0 0.0
    %2919 = vmatpush1.msra.mxu0 0.0
    %2920 = vmatprep.subr.mxu0 0.0
    %2921 = vmatpush1.msra.mxu0 0.0
    %v2922 = vand.u32 %v2497, 4294901760
    %2923 = vmatprep.subr.mxu0 %v2922
    %v2924 = vand.u32 %v2496, 4294901760
    %2925 = vmatpush1.msra.mxu0 %v2924
    %2926 = vmatprep.subr.mxu0 0.0
    %2927 = vmatpush2.msra.mxu0 0.0
    %2928 = vmatprep.subr.mxu0 0.0
    %2929 = vmatpush2.msra.mxu0 0.0
    %2930 = vmatprep.subr.mxu0 0.0
    %2931 = vmatpush2.msra.mxu0 0.0
    %2932 = vmatprep.subr.mxu0 0.0
    %2933 = vmatpush2.msra.mxu0 0.0
    %2934 = vmatprep.subr.mxu0 0.0
    %2935 = vmatpush2.msra.mxu0 0.0
    %2936 = vmatprep.subr.mxu0 0.0
    %2937 = vmatpush2.msra.mxu0 0.0
    %2938 = vmatprep.subr.mxu0 0.0
    %2939 = vmatpush2.msra.mxu0 0.0
    %2940 = vmatprep.subr.mxu0 0.0
    %2941 = vmatpush2.msra.mxu0 0.0
    %2942 = vmatprep.subr.mxu0 0.0
    %2943 = vmatpush2.msra.mxu0 0.0
    %2944 = vmatprep.subr.mxu0 0.0
    %2945 = vmatpush2.msra.mxu0 0.0
    %2946 = vmatprep.subr.mxu0 0.0
    %2947 = vmatpush2.msra.mxu0 0.0
    %2948 = vmatprep.subr.mxu0 0.0
    %2949 = vmatpush2.msra.mxu0 0.0
    %2950 = vmatprep.subr.mxu0 0.0
    %2951 = vmatpush2.msra.mxu0 0.0
    %2952 = vmatprep.subr.mxu0 0.0
    %2953 = vmatpush2.msra.mxu0 0.0
    %2954 = vmatprep.subr.mxu0 0.0
    %2955 = vmatpush2.msra.mxu0 0.0
    %2956 = vmatprep.subr.mxu0 0.0
    %2957 = vmatpush2.msra.mxu0 0.0
    %2958 = vmatprep.mubr.f32.mxu0 0.0
    %v2959 = vand.u32 %v2499, 4294901760
    %2960 = vmatmul.mubr.f32.gmra.mxu0 %v2959
    %v2961 = vpop.f32.mrf.mxu0
    %v2962 = vadd.f32 %v2888, %v2961
    %v2963 = vpop.f32.mrf.mxu0
    %v2964 = vadd.f32 %v2890, %v2963
    %2965 = vdwg.mxu0
    %v2966 = vadd.f32 %v2487, %v2962
    %v2967 = vadd.f32 %v2488, %v2964
    %2968 = vrot.lane.b32.xlu0 %v18, 113
    %v2969 = vpop.permute.xlu0 %2968
    %2970 = vrot.lane.b32.xlu0 %v19, 113
    %v2971 = vpop.permute.xlu0 %2970
    %vm2972 = vcmp.lt.s32.totalorder %v109, 113
    %v2973 = vsel %vm2972, %v2969, %v2971
    %v2974 = vsel %vm2972, %v2971, %v2969
    %v2975 = vmul.f32 %v2973, %v83
    %v2976 = vmul.f32 %v2974, %v87
    %v2978 = vsel %vm115, %v26, 0
    %2980 = vmatprep.subr.mxu0 0.0
    %2981 = vmatpush1.msra.mxu0 0.0
    %2982 = vmatprep.subr.mxu0 0.0
    %2983 = vmatpush1.msra.mxu0 0.0
    %2984 = vmatprep.subr.mxu0 0.0
    %2985 = vmatpush1.msra.mxu0 0.0
    %2986 = vmatprep.subr.mxu0 0.0
    %2987 = vmatpush1.msra.mxu0 0.0
    %2988 = vmatprep.subr.mxu0 0.0
    %2989 = vmatpush1.msra.mxu0 0.0
    %2990 = vmatprep.subr.mxu0 0.0
    %2991 = vmatpush1.msra.mxu0 0.0
    %2992 = vmatprep.subr.mxu0 0.0
    %2993 = vmatpush1.msra.mxu0 0.0
    %2994 = vmatprep.subr.mxu0 0.0
    %2995 = vmatpush1.msra.mxu0 0.0
    %2996 = vmatprep.subr.mxu0 0.0
    %2997 = vmatpush1.msra.mxu0 0.0
    %2998 = vmatprep.subr.mxu0 0.0
    %2999 = vmatpush1.msra.mxu0 0.0
    %3000 = vmatprep.subr.mxu0 0.0
    %3001 = vmatpush1.msra.mxu0 0.0
    %3002 = vmatprep.subr.mxu0 0.0
    %3003 = vmatpush1.msra.mxu0 0.0
    %3004 = vmatprep.subr.mxu0 0.0
    %3005 = vmatpush1.msra.mxu0 0.0
    %3006 = vmatprep.subr.mxu0 0.0
    %3007 = vmatpush1.msra.mxu0 0.0
    %3008 = vmatprep.subr.mxu0 0.0
    %3009 = vmatpush1.msra.mxu0 0.0
    %v3010 = vand.u32 %v2976, 4294901760
    %3011 = vmatprep.subr.mxu0 %v3010
    %v3012 = vand.u32 %v2975, 4294901760
    %3013 = vmatpush1.msra.mxu0 %v3012
    %3014 = vmatprep.subr.mxu0 0.0
    %3015 = vmatpush2.msra.mxu0 0.0
    %3016 = vmatprep.subr.mxu0 0.0
    %3017 = vmatpush2.msra.mxu0 0.0
    %3018 = vmatprep.subr.mxu0 0.0
    %3019 = vmatpush2.msra.mxu0 0.0
    %3020 = vmatprep.subr.mxu0 0.0
    %3021 = vmatpush2.msra.mxu0 0.0
    %3022 = vmatprep.subr.mxu0 0.0
    %3023 = vmatpush2.msra.mxu0 0.0
    %3024 = vmatprep.subr.mxu0 0.0
    %3025 = vmatpush2.msra.mxu0 0.0
    %3026 = vmatprep.subr.mxu0 0.0
    %3027 = vmatpush2.msra.mxu0 0.0
    %3028 = vmatprep.subr.mxu0 0.0
    %3029 = vmatpush2.msra.mxu0 0.0
    %3030 = vmatprep.subr.mxu0 0.0
    %3031 = vmatpush2.msra.mxu0 0.0
    %3032 = vmatprep.subr.mxu0 0.0
    %3033 = vmatpush2.msra.mxu0 0.0
    %3034 = vmatprep.subr.mxu0 0.0
    %3035 = vmatpush2.msra.mxu0 0.0
    %3036 = vmatprep.subr.mxu0 0.0
    %3037 = vmatpush2.msra.mxu0 0.0
    %3038 = vmatprep.subr.mxu0 0.0
    %3039 = vmatpush2.msra.mxu0 0.0
    %3040 = vmatprep.subr.mxu0 0.0
    %3041 = vmatpush2.msra.mxu0 0.0
    %3042 = vmatprep.subr.mxu0 0.0
    %3043 = vmatpush2.msra.mxu0 0.0
    %3044 = vmatprep.subr.mxu0 0.0
    %3045 = vmatpush2.msra.mxu0 0.0
    %3046 = vmatprep.mubr.f32.mxu0 0.0
    %v3047 = vand.u32 %v2978, 4294901760
    %v3048 = vsub.f32 %v2978, %v3047
    %v3049 = vand.u32 %v3048, 4294901760
    %v3050 = vsub.f32 %v3048, %v3049
    %v3051 = vand.u32 %v3050, 4294901760
    %3052 = vmatmul.mubr.f32.gmra.mxu0 %v3051
    %v3053 = vpop.f32.mrf.mxu0
    %v3054 = vadd.f32 0.0, %v3053
    %v3055 = vpop.f32.mrf.mxu0
    %v3056 = vadd.f32 0.0, %v3055
    %3057 = vdwg.mxu0
    %3058 = vmatprep.subr.mxu0 0.0
    %3059 = vmatpush1.msra.mxu0 0.0
    %3060 = vmatprep.subr.mxu0 0.0
    %3061 = vmatpush1.msra.mxu0 0.0
    %3062 = vmatprep.subr.mxu0 0.0
    %3063 = vmatpush1.msra.mxu0 0.0
    %3064 = vmatprep.subr.mxu0 0.0
    %3065 = vmatpush1.msra.mxu0 0.0
    %3066 = vmatprep.subr.mxu0 0.0
    %3067 = vmatpush1.msra.mxu0 0.0
    %3068 = vmatprep.subr.mxu0 0.0
    %3069 = vmatpush1.msra.mxu0 0.0
    %3070 = vmatprep.subr.mxu0 0.0
    %3071 = vmatpush1.msra.mxu0 0.0
    %3072 = vmatprep.subr.mxu0 0.0
    %3073 = vmatpush1.msra.mxu0 0.0
    %3074 = vmatprep.subr.mxu0 0.0
    %3075 = vmatpush1.msra.mxu0 0.0
    %3076 = vmatprep.subr.mxu0 0.0
    %3077 = vmatpush1.msra.mxu0 0.0
    %3078 = vmatprep.subr.mxu0 0.0
    %3079 = vmatpush1.msra.mxu0 0.0
    %3080 = vmatprep.subr.mxu0 0.0
    %3081 = vmatpush1.msra.mxu0 0.0
    %3082 = vmatprep.subr.mxu0 0.0
    %3083 = vmatpush1.msra.mxu0 0.0
    %3084 = vmatprep.subr.mxu0 0.0
    %3085 = vmatpush1.msra.mxu0 0.0
    %3086 = vmatprep.subr.mxu0 0.0
    %3087 = vmatpush1.msra.mxu0 0.0
    %v3088 = vand.u32 %v2976, 4294901760
    %v3089 = vsub.f32 %v2976, %v3088
    %v3090 = vand.u32 %v3089, 4294901760
    %v3091 = vsub.f32 %v3089, %v3090
    %v3092 = vand.u32 %v3091, 4294901760
    %3093 = vmatprep.subr.mxu0 %v3092
    %v3094 = vand.u32 %v2975, 4294901760
    %v3095 = vsub.f32 %v2975, %v3094
    %v3096 = vand.u32 %v3095, 4294901760
    %v3097 = vsub.f32 %v3095, %v3096
    %v3098 = vand.u32 %v3097, 4294901760
    %3099 = vmatpush1.msra.mxu0 %v3098
    %3100 = vmatprep.subr.mxu0 0.0
    %3101 = vmatpush2.msra.mxu0 0.0
    %3102 = vmatprep.subr.mxu0 0.0
    %3103 = vmatpush2.msra.mxu0 0.0
    %3104 = vmatprep.subr.mxu0 0.0
    %3105 = vmatpush2.msra.mxu0 0.0
    %3106 = vmatprep.subr.mxu0 0.0
    %3107 = vmatpush2.msra.mxu0 0.0
    %3108 = vmatprep.subr.mxu0 0.0
    %3109 = vmatpush2.msra.mxu0 0.0
    %3110 = vmatprep.subr.mxu0 0.0
    %3111 = vmatpush2.msra.mxu0 0.0
    %3112 = vmatprep.subr.mxu0 0.0
    %3113 = vmatpush2.msra.mxu0 0.0
    %3114 = vmatprep.subr.mxu0 0.0
    %3115 = vmatpush2.msra.mxu0 0.0
    %3116 = vmatprep.subr.mxu0 0.0
    %3117 = vmatpush2.msra.mxu0 0.0
    %3118 = vmatprep.subr.mxu0 0.0
    %3119 = vmatpush2.msra.mxu0 0.0
    %3120 = vmatprep.subr.mxu0 0.0
    %3121 = vmatpush2.msra.mxu0 0.0
    %3122 = vmatprep.subr.mxu0 0.0
    %3123 = vmatpush2.msra.mxu0 0.0
    %3124 = vmatprep.subr.mxu0 0.0
    %3125 = vmatpush2.msra.mxu0 0.0
    %3126 = vmatprep.subr.mxu0 0.0
    %3127 = vmatpush2.msra.mxu0 0.0
    %3128 = vmatprep.subr.mxu0 0.0
    %3129 = vmatpush2.msra.mxu0 0.0
    %3130 = vmatprep.subr.mxu0 0.0
    %3131 = vmatpush2.msra.mxu0 0.0
    %3132 = vmatprep.mubr.f32.mxu0 0.0
    %v3133 = vand.u32 %v2978, 4294901760
    %3134 = vmatmul.mubr.f32.gmra.mxu0 %v3133
    %v3135 = vpop.f32.mrf.mxu0
    %v3136 = vadd.f32 %v3054, %v3135
    %v3137 = vpop.f32.mrf.mxu0
    %v3138 = vadd.f32 %v3056, %v3137
    %3139 = vdwg.mxu0
    %3140 = vmatprep.subr.mxu0 0.0
    %3141 = vmatpush1.msra.mxu0 0.0
    %3142 = vmatprep.subr.mxu0 0.0
    %3143 = vmatpush1.msra.mxu0 0.0
    %3144 = vmatprep.subr.mxu0 0.0
    %3145 = vmatpush1.msra.mxu0 0.0
    %3146 = vmatprep.subr.mxu0 0.0
    %3147 = vmatpush1.msra.mxu0 0.0
    %3148 = vmatprep.subr.mxu0 0.0
    %3149 = vmatpush1.msra.mxu0 0.0
    %3150 = vmatprep.subr.mxu0 0.0
    %3151 = vmatpush1.msra.mxu0 0.0
    %3152 = vmatprep.subr.mxu0 0.0
    %3153 = vmatpush1.msra.mxu0 0.0
    %3154 = vmatprep.subr.mxu0 0.0
    %3155 = vmatpush1.msra.mxu0 0.0
    %3156 = vmatprep.subr.mxu0 0.0
    %3157 = vmatpush1.msra.mxu0 0.0
    %3158 = vmatprep.subr.mxu0 0.0
    %3159 = vmatpush1.msra.mxu0 0.0
    %3160 = vmatprep.subr.mxu0 0.0
    %3161 = vmatpush1.msra.mxu0 0.0
    %3162 = vmatprep.subr.mxu0 0.0
    %3163 = vmatpush1.msra.mxu0 0.0
    %3164 = vmatprep.subr.mxu0 0.0
    %3165 = vmatpush1.msra.mxu0 0.0
    %3166 = vmatprep.subr.mxu0 0.0
    %3167 = vmatpush1.msra.mxu0 0.0
    %3168 = vmatprep.subr.mxu0 0.0
    %3169 = vmatpush1.msra.mxu0 0.0
    %v3170 = vand.u32 %v2976, 4294901760
    %v3171 = vsub.f32 %v2976, %v3170
    %3172 = vmatprep.subr.mxu0 %v3171
    %v3173 = vand.u32 %v2975, 4294901760
    %v3174 = vsub.f32 %v2975, %v3173
    %3175 = vmatpush1.msra.mxu0 %v3174
    %3176 = vmatprep.subr.mxu0 0.0
    %3177 = vmatpush2.msra.mxu0 0.0
    %3178 = vmatprep.subr.mxu0 0.0
    %3179 = vmatpush2.msra.mxu0 0.0
    %3180 = vmatprep.subr.mxu0 0.0
    %3181 = vmatpush2.msra.mxu0 0.0
    %3182 = vmatprep.subr.mxu0 0.0
    %3183 = vmatpush2.msra.mxu0 0.0
    %3184 = vmatprep.subr.mxu0 0.0
    %3185 = vmatpush2.msra.mxu0 0.0
    %3186 = vmatprep.subr.mxu0 0.0
    %3187 = vmatpush2.msra.mxu0 0.0
    %3188 = vmatprep.subr.mxu0 0.0
    %3189 = vmatpush2.msra.mxu0 0.0
    %3190 = vmatprep.subr.mxu0 0.0
    %3191 = vmatpush2.msra.mxu0 0.0
    %3192 = vmatprep.subr.mxu0 0.0
    %3193 = vmatpush2.msra.mxu0 0.0
    %3194 = vmatprep.subr.mxu0 0.0
    %3195 = vmatpush2.msra.mxu0 0.0
    %3196 = vmatprep.subr.mxu0 0.0
    %3197 = vmatpush2.msra.mxu0 0.0
    %3198 = vmatprep.subr.mxu0 0.0
    %3199 = vmatpush2.msra.mxu0 0.0
    %3200 = vmatprep.subr.mxu0 0.0
    %3201 = vmatpush2.msra.mxu0 0.0
    %3202 = vmatprep.subr.mxu0 0.0
    %3203 = vmatpush2.msra.mxu0 0.0
    %3204 = vmatprep.subr.mxu0 0.0
    %3205 = vmatpush2.msra.mxu0 0.0
    %3206 = vmatprep.subr.mxu0 0.0
    %3207 = vmatpush2.msra.mxu0 0.0
    %3208 = vmatprep.mubr.f32.mxu0 0.0
    %v3209 = vand.u32 %v2978, 4294901760
    %v3210 = vsub.f32 %v2978, %v3209
    %3211 = vmatmul.mubr.f32.gmra.mxu0 %v3210
    %v3212 = vpop.f32.mrf.mxu0
    %v3213 = vadd.f32 %v3136, %v3212
    %v3214 = vpop.f32.mrf.mxu0
    %v3215 = vadd.f32 %v3138, %v3214
    %3216 = vdwg.mxu0
    %3217 = vmatprep.subr.mxu0 0.0
    %3218 = vmatpush1.msra.mxu0 0.0
    %3219 = vmatprep.subr.mxu0 0.0
    %3220 = vmatpush1.msra.mxu0 0.0
    %3221 = vmatprep.subr.mxu0 0.0
    %3222 = vmatpush1.msra.mxu0 0.0
    %3223 = vmatprep.subr.mxu0 0.0
    %3224 = vmatpush1.msra.mxu0 0.0
    %3225 = vmatprep.subr.mxu0 0.0
    %3226 = vmatpush1.msra.mxu0 0.0
    %3227 = vmatprep.subr.mxu0 0.0
    %3228 = vmatpush1.msra.mxu0 0.0
    %3229 = vmatprep.subr.mxu0 0.0
    %3230 = vmatpush1.msra.mxu0 0.0
    %3231 = vmatprep.subr.mxu0 0.0
    %3232 = vmatpush1.msra.mxu0 0.0
    %3233 = vmatprep.subr.mxu0 0.0
    %3234 = vmatpush1.msra.mxu0 0.0
    %3235 = vmatprep.subr.mxu0 0.0
    %3236 = vmatpush1.msra.mxu0 0.0
    %3237 = vmatprep.subr.mxu0 0.0
    %3238 = vmatpush1.msra.mxu0 0.0
    %3239 = vmatprep.subr.mxu0 0.0
    %3240 = vmatpush1.msra.mxu0 0.0
    %3241 = vmatprep.subr.mxu0 0.0
    %3242 = vmatpush1.msra.mxu0 0.0
    %3243 = vmatprep.subr.mxu0 0.0
    %3244 = vmatpush1.msra.mxu0 0.0
    %3245 = vmatprep.subr.mxu0 0.0
    %3246 = vmatpush1.msra.mxu0 0.0
    %v3247 = vand.u32 %v2976, 4294901760
    %3248 = vmatprep.subr.mxu0 %v3247
    %v3249 = vand.u32 %v2975, 4294901760
    %3250 = vmatpush1.msra.mxu0 %v3249
    %3251 = vmatprep.subr.mxu0 0.0
    %3252 = vmatpush2.msra.mxu0 0.0
    %3253 = vmatprep.subr.mxu0 0.0
    %3254 = vmatpush2.msra.mxu0 0.0
    %3255 = vmatprep.subr.mxu0 0.0
    %3256 = vmatpush2.msra.mxu0 0.0
    %3257 = vmatprep.subr.mxu0 0.0
    %3258 = vmatpush2.msra.mxu0 0.0
    %3259 = vmatprep.subr.mxu0 0.0
    %3260 = vmatpush2.msra.mxu0 0.0
    %3261 = vmatprep.subr.mxu0 0.0
    %3262 = vmatpush2.msra.mxu0 0.0
    %3263 = vmatprep.subr.mxu0 0.0
    %3264 = vmatpush2.msra.mxu0 0.0
    %3265 = vmatprep.subr.mxu0 0.0
    %3266 = vmatpush2.msra.mxu0 0.0
    %3267 = vmatprep.subr.mxu0 0.0
    %3268 = vmatpush2.msra.mxu0 0.0
    %3269 = vmatprep.subr.mxu0 0.0
    %3270 = vmatpush2.msra.mxu0 0.0
    %3271 = vmatprep.subr.mxu0 0.0
    %3272 = vmatpush2.msra.mxu0 0.0
    %3273 = vmatprep.subr.mxu0 0.0
    %3274 = vmatpush2.msra.mxu0 0.0
    %3275 = vmatprep.subr.mxu0 0.0
    %3276 = vmatpush2.msra.mxu0 0.0
    %3277 = vmatprep.subr.mxu0 0.0
    %3278 = vmatpush2.msra.mxu0 0.0
    %3279 = vmatprep.subr.mxu0 0.0
    %3280 = vmatpush2.msra.mxu0 0.0
    %3281 = vmatprep.subr.mxu0 0.0
    %3282 = vmatpush2.msra.mxu0 0.0
    %3283 = vmatprep.mubr.f32.mxu0 0.0
    %v3284 = vand.u32 %v2978, 4294901760
    %v3285 = vsub.f32 %v2978, %v3284
    %v3286 = vand.u32 %v3285, 4294901760
    %3287 = vmatmul.mubr.f32.gmra.mxu0 %v3286
    %v3288 = vpop.f32.mrf.mxu0
    %v3289 = vadd.f32 %v3213, %v3288
    %v3290 = vpop.f32.mrf.mxu0
    %v3291 = vadd.f32 %v3215, %v3290
    %3292 = vdwg.mxu0
    %3293 = vmatprep.subr.mxu0 0.0
    %3294 = vmatpush1.msra.mxu0 0.0
    %3295 = vmatprep.subr.mxu0 0.0
    %3296 = vmatpush1.msra.mxu0 0.0
    %3297 = vmatprep.subr.mxu0 0.0
    %3298 = vmatpush1.msra.mxu0 0.0
    %3299 = vmatprep.subr.mxu0 0.0
    %3300 = vmatpush1.msra.mxu0 0.0
    %3301 = vmatprep.subr.mxu0 0.0
    %3302 = vmatpush1.msra.mxu0 0.0
    %3303 = vmatprep.subr.mxu0 0.0
    %3304 = vmatpush1.msra.mxu0 0.0
    %3305 = vmatprep.subr.mxu0 0.0
    %3306 = vmatpush1.msra.mxu0 0.0
    %3307 = vmatprep.subr.mxu0 0.0
    %3308 = vmatpush1.msra.mxu0 0.0
    %3309 = vmatprep.subr.mxu0 0.0
    %3310 = vmatpush1.msra.mxu0 0.0
    %3311 = vmatprep.subr.mxu0 0.0
    %3312 = vmatpush1.msra.mxu0 0.0
    %3313 = vmatprep.subr.mxu0 0.0
    %3314 = vmatpush1.msra.mxu0 0.0
    %3315 = vmatprep.subr.mxu0 0.0
    %3316 = vmatpush1.msra.mxu0 0.0
    %3317 = vmatprep.subr.mxu0 0.0
    %3318 = vmatpush1.msra.mxu0 0.0
    %3319 = vmatprep.subr.mxu0 0.0
    %3320 = vmatpush1.msra.mxu0 0.0
    %3321 = vmatprep.subr.mxu0 0.0
    %3322 = vmatpush1.msra.mxu0 0.0
    %v3323 = vand.u32 %v2976, 4294901760
    %v3324 = vsub.f32 %v2976, %v3323
    %v3325 = vand.u32 %v3324, 4294901760
    %3326 = vmatprep.subr.mxu0 %v3325
    %v3327 = vand.u32 %v2975, 4294901760
    %v3328 = vsub.f32 %v2975, %v3327
    %v3329 = vand.u32 %v3328, 4294901760
    %3330 = vmatpush1.msra.mxu0 %v3329
    %3331 = vmatprep.subr.mxu0 0.0
    %3332 = vmatpush2.msra.mxu0 0.0
    %3333 = vmatprep.subr.mxu0 0.0
    %3334 = vmatpush2.msra.mxu0 0.0
    %3335 = vmatprep.subr.mxu0 0.0
    %3336 = vmatpush2.msra.mxu0 0.0
    %3337 = vmatprep.subr.mxu0 0.0
    %3338 = vmatpush2.msra.mxu0 0.0
    %3339 = vmatprep.subr.mxu0 0.0
    %3340 = vmatpush2.msra.mxu0 0.0
    %3341 = vmatprep.subr.mxu0 0.0
    %3342 = vmatpush2.msra.mxu0 0.0
    %3343 = vmatprep.subr.mxu0 0.0
    %3344 = vmatpush2.msra.mxu0 0.0
    %3345 = vmatprep.subr.mxu0 0.0
    %3346 = vmatpush2.msra.mxu0 0.0
    %3347 = vmatprep.subr.mxu0 0.0
    %3348 = vmatpush2.msra.mxu0 0.0
    %3349 = vmatprep.subr.mxu0 0.0
    %3350 = vmatpush2.msra.mxu0 0.0
    %3351 = vmatprep.subr.mxu0 0.0
    %3352 = vmatpush2.msra.mxu0 0.0
    %3353 = vmatprep.subr.mxu0 0.0
    %3354 = vmatpush2.msra.mxu0 0.0
    %3355 = vmatprep.subr.mxu0 0.0
    %3356 = vmatpush2.msra.mxu0 0.0
    %3357 = vmatprep.subr.mxu0 0.0
    %3358 = vmatpush2.msra.mxu0 0.0
    %3359 = vmatprep.subr.mxu0 0.0
    %3360 = vmatpush2.msra.mxu0 0.0
    %3361 = vmatprep.subr.mxu0 0.0
    %3362 = vmatpush2.msra.mxu0 0.0
    %3363 = vmatprep.mubr.f32.mxu0 0.0
    %v3364 = vand.u32 %v2978, 4294901760
    %3365 = vmatmul.mubr.f32.gmra.mxu0 %v3364
    %v3366 = vpop.f32.mrf.mxu0
    %v3367 = vadd.f32 %v3289, %v3366
    %v3368 = vpop.f32.mrf.mxu0
    %v3369 = vadd.f32 %v3291, %v3368
    %3370 = vdwg.mxu0
    %3371 = vmatprep.subr.mxu0 0.0
    %3372 = vmatpush1.msra.mxu0 0.0
    %3373 = vmatprep.subr.mxu0 0.0
    %3374 = vmatpush1.msra.mxu0 0.0
    %3375 = vmatprep.subr.mxu0 0.0
    %3376 = vmatpush1.msra.mxu0 0.0
    %3377 = vmatprep.subr.mxu0 0.0
    %3378 = vmatpush1.msra.mxu0 0.0
    %3379 = vmatprep.subr.mxu0 0.0
    %3380 = vmatpush1.msra.mxu0 0.0
    %3381 = vmatprep.subr.mxu0 0.0
    %3382 = vmatpush1.msra.mxu0 0.0
    %3383 = vmatprep.subr.mxu0 0.0
    %3384 = vmatpush1.msra.mxu0 0.0
    %3385 = vmatprep.subr.mxu0 0.0
    %3386 = vmatpush1.msra.mxu0 0.0
    %3387 = vmatprep.subr.mxu0 0.0
    %3388 = vmatpush1.msra.mxu0 0.0
    %3389 = vmatprep.subr.mxu0 0.0
    %3390 = vmatpush1.msra.mxu0 0.0
    %3391 = vmatprep.subr.mxu0 0.0
    %3392 = vmatpush1.msra.mxu0 0.0
    %3393 = vmatprep.subr.mxu0 0.0
    %3394 = vmatpush1.msra.mxu0 0.0
    %3395 = vmatprep.subr.mxu0 0.0
    %3396 = vmatpush1.msra.mxu0 0.0
    %3397 = vmatprep.subr.mxu0 0.0
    %3398 = vmatpush1.msra.mxu0 0.0
    %3399 = vmatprep.subr.mxu0 0.0
    %3400 = vmatpush1.msra.mxu0 0.0
    %v3401 = vand.u32 %v2976, 4294901760
    %3402 = vmatprep.subr.mxu0 %v3401
    %v3403 = vand.u32 %v2975, 4294901760
    %3404 = vmatpush1.msra.mxu0 %v3403
    %3405 = vmatprep.subr.mxu0 0.0
    %3406 = vmatpush2.msra.mxu0 0.0
    %3407 = vmatprep.subr.mxu0 0.0
    %3408 = vmatpush2.msra.mxu0 0.0
    %3409 = vmatprep.subr.mxu0 0.0
    %3410 = vmatpush2.msra.mxu0 0.0
    %3411 = vmatprep.subr.mxu0 0.0
    %3412 = vmatpush2.msra.mxu0 0.0
    %3413 = vmatprep.subr.mxu0 0.0
    %3414 = vmatpush2.msra.mxu0 0.0
    %3415 = vmatprep.subr.mxu0 0.0
    %3416 = vmatpush2.msra.mxu0 0.0
    %3417 = vmatprep.subr.mxu0 0.0
    %3418 = vmatpush2.msra.mxu0 0.0
    %3419 = vmatprep.subr.mxu0 0.0
    %3420 = vmatpush2.msra.mxu0 0.0
    %3421 = vmatprep.subr.mxu0 0.0
    %3422 = vmatpush2.msra.mxu0 0.0
    %3423 = vmatprep.subr.mxu0 0.0
    %3424 = vmatpush2.msra.mxu0 0.0
    %3425 = vmatprep.subr.mxu0 0.0
    %3426 = vmatpush2.msra.mxu0 0.0
    %3427 = vmatprep.subr.mxu0 0.0
    %3428 = vmatpush2.msra.mxu0 0.0
    %3429 = vmatprep.subr.mxu0 0.0
    %3430 = vmatpush2.msra.mxu0 0.0
    %3431 = vmatprep.subr.mxu0 0.0
    %3432 = vmatpush2.msra.mxu0 0.0
    %3433 = vmatprep.subr.mxu0 0.0
    %3434 = vmatpush2.msra.mxu0 0.0
    %3435 = vmatprep.subr.mxu0 0.0
    %3436 = vmatpush2.msra.mxu0 0.0
    %3437 = vmatprep.mubr.f32.mxu0 0.0
    %v3438 = vand.u32 %v2978, 4294901760
    %3439 = vmatmul.mubr.f32.gmra.mxu0 %v3438
    %v3440 = vpop.f32.mrf.mxu0
    %v3441 = vadd.f32 %v3367, %v3440
    %v3442 = vpop.f32.mrf.mxu0
    %v3443 = vadd.f32 %v3369, %v3442
    %3444 = vdwg.mxu0
    %v3445 = vadd.f32 %v2966, %v3441
    %v3446 = vadd.f32 %v2967, %v3443
    %3447 = vrot.lane.b32.xlu0 %v18, 112
    %v3448 = vpop.permute.xlu0 %3447
    %3449 = vrot.lane.b32.xlu0 %v19, 112
    %v3450 = vpop.permute.xlu0 %3449
    %vm3451 = vcmp.lt.s32.totalorder %v109, 112
    %v3452 = vsel %vm3451, %v3448, %v3450
    %v3453 = vsel %vm3451, %v3450, %v3448
    %v3454 = vmul.f32 %v3452, %v91
    %v3455 = vmul.f32 %v3453, %v95
    %v3457 = vsel %vm115, %v27, 0
    %3459 = vmatprep.subr.mxu0 0.0
    %3460 = vmatpush1.msra.mxu0 0.0
    %3461 = vmatprep.subr.mxu0 0.0
    %3462 = vmatpush1.msra.mxu0 0.0
    %3463 = vmatprep.subr.mxu0 0.0
    %3464 = vmatpush1.msra.mxu0 0.0
    %3465 = vmatprep.subr.mxu0 0.0
    %3466 = vmatpush1.msra.mxu0 0.0
    %3467 = vmatprep.subr.mxu0 0.0
    %3468 = vmatpush1.msra.mxu0 0.0
    %3469 = vmatprep.subr.mxu0 0.0
    %3470 = vmatpush1.msra.mxu0 0.0
    %3471 = vmatprep.subr.mxu0 0.0
    %3472 = vmatpush1.msra.mxu0 0.0
    %3473 = vmatprep.subr.mxu0 0.0
    %3474 = vmatpush1.msra.mxu0 0.0
    %3475 = vmatprep.subr.mxu0 0.0
    %3476 = vmatpush1.msra.mxu0 0.0
    %3477 = vmatprep.subr.mxu0 0.0
    %3478 = vmatpush1.msra.mxu0 0.0
    %3479 = vmatprep.subr.mxu0 0.0
    %3480 = vmatpush1.msra.mxu0 0.0
    %3481 = vmatprep.subr.mxu0 0.0
    %3482 = vmatpush1.msra.mxu0 0.0
    %3483 = vmatprep.subr.mxu0 0.0
    %3484 = vmatpush1.msra.mxu0 0.0
    %3485 = vmatprep.subr.mxu0 0.0
    %3486 = vmatpush1.msra.mxu0 0.0
    %3487 = vmatprep.subr.mxu0 0.0
    %3488 = vmatpush1.msra.mxu0 0.0
    %v3489 = vand.u32 %v3455, 4294901760
    %3490 = vmatprep.subr.mxu0 %v3489
    %v3491 = vand.u32 %v3454, 4294901760
    %3492 = vmatpush1.msra.mxu0 %v3491
    %3493 = vmatprep.subr.mxu0 0.0
    %3494 = vmatpush2.msra.mxu0 0.0
    %3495 = vmatprep.subr.mxu0 0.0
    %3496 = vmatpush2.msra.mxu0 0.0
    %3497 = vmatprep.subr.mxu0 0.0
    %3498 = vmatpush2.msra.mxu0 0.0
    %3499 = vmatprep.subr.mxu0 0.0
    %3500 = vmatpush2.msra.mxu0 0.0
    %3501 = vmatprep.subr.mxu0 0.0
    %3502 = vmatpush2.msra.mxu0 0.0
    %3503 = vmatprep.subr.mxu0 0.0
    %3504 = vmatpush2.msra.mxu0 0.0
    %3505 = vmatprep.subr.mxu0 0.0
    %3506 = vmatpush2.msra.mxu0 0.0
    %3507 = vmatprep.subr.mxu0 0.0
    %3508 = vmatpush2.msra.mxu0 0.0
    %3509 = vmatprep.subr.mxu0 0.0
    %3510 = vmatpush2.msra.mxu0 0.0
    %3511 = vmatprep.subr.mxu0 0.0
    %3512 = vmatpush2.msra.mxu0 0.0
    %3513 = vmatprep.subr.mxu0 0.0
    %3514 = vmatpush2.msra.mxu0 0.0
    %3515 = vmatprep.subr.mxu0 0.0
    %3516 = vmatpush2.msra.mxu0 0.0
    %3517 = vmatprep.subr.mxu0 0.0
    %3518 = vmatpush2.msra.mxu0 0.0
    %3519 = vmatprep.subr.mxu0 0.0
    %3520 = vmatpush2.msra.mxu0 0.0
    %3521 = vmatprep.subr.mxu0 0.0
    %3522 = vmatpush2.msra.mxu0 0.0
    %3523 = vmatprep.subr.mxu0 0.0
    %3524 = vmatpush2.msra.mxu0 0.0
    %3525 = vmatprep.mubr.f32.mxu0 0.0
    %v3526 = vand.u32 %v3457, 4294901760
    %v3527 = vsub.f32 %v3457, %v3526
    %v3528 = vand.u32 %v3527, 4294901760
    %v3529 = vsub.f32 %v3527, %v3528
    %v3530 = vand.u32 %v3529, 4294901760
    %3531 = vmatmul.mubr.f32.gmra.mxu0 %v3530
    %v3532 = vpop.f32.mrf.mxu0
    %v3533 = vadd.f32 0.0, %v3532
    %v3534 = vpop.f32.mrf.mxu0
    %v3535 = vadd.f32 0.0, %v3534
    %3536 = vdwg.mxu0
    %3537 = vmatprep.subr.mxu0 0.0
    %3538 = vmatpush1.msra.mxu0 0.0
    %3539 = vmatprep.subr.mxu0 0.0
    %3540 = vmatpush1.msra.mxu0 0.0
    %3541 = vmatprep.subr.mxu0 0.0
    %3542 = vmatpush1.msra.mxu0 0.0
    %3543 = vmatprep.subr.mxu0 0.0
    %3544 = vmatpush1.msra.mxu0 0.0
    %3545 = vmatprep.subr.mxu0 0.0
    %3546 = vmatpush1.msra.mxu0 0.0
    %3547 = vmatprep.subr.mxu0 0.0
    %3548 = vmatpush1.msra.mxu0 0.0
    %3549 = vmatprep.subr.mxu0 0.0
    %3550 = vmatpush1.msra.mxu0 0.0
    %3551 = vmatprep.subr.mxu0 0.0
    %3552 = vmatpush1.msra.mxu0 0.0
    %3553 = vmatprep.subr.mxu0 0.0
    %3554 = vmatpush1.msra.mxu0 0.0
    %3555 = vmatprep.subr.mxu0 0.0
    %3556 = vmatpush1.msra.mxu0 0.0
    %3557 = vmatprep.subr.mxu0 0.0
    %3558 = vmatpush1.msra.mxu0 0.0
    %3559 = vmatprep.subr.mxu0 0.0
    %3560 = vmatpush1.msra.mxu0 0.0
    %3561 = vmatprep.subr.mxu0 0.0
    %3562 = vmatpush1.msra.mxu0 0.0
    %3563 = vmatprep.subr.mxu0 0.0
    %3564 = vmatpush1.msra.mxu0 0.0
    %3565 = vmatprep.subr.mxu0 0.0
    %3566 = vmatpush1.msra.mxu0 0.0
    %v3567 = vand.u32 %v3455, 4294901760
    %v3568 = vsub.f32 %v3455, %v3567
    %v3569 = vand.u32 %v3568, 4294901760
    %v3570 = vsub.f32 %v3568, %v3569
    %v3571 = vand.u32 %v3570, 4294901760
    %3572 = vmatprep.subr.mxu0 %v3571
    %v3573 = vand.u32 %v3454, 4294901760
    %v3574 = vsub.f32 %v3454, %v3573
    %v3575 = vand.u32 %v3574, 4294901760
    %v3576 = vsub.f32 %v3574, %v3575
    %v3577 = vand.u32 %v3576, 4294901760
    %3578 = vmatpush1.msra.mxu0 %v3577
    %3579 = vmatprep.subr.mxu0 0.0
    %3580 = vmatpush2.msra.mxu0 0.0
    %3581 = vmatprep.subr.mxu0 0.0
    %3582 = vmatpush2.msra.mxu0 0.0
    %3583 = vmatprep.subr.mxu0 0.0
    %3584 = vmatpush2.msra.mxu0 0.0
    %3585 = vmatprep.subr.mxu0 0.0
    %3586 = vmatpush2.msra.mxu0 0.0
    %3587 = vmatprep.subr.mxu0 0.0
    %3588 = vmatpush2.msra.mxu0 0.0
    %3589 = vmatprep.subr.mxu0 0.0
    %3590 = vmatpush2.msra.mxu0 0.0
    %3591 = vmatprep.subr.mxu0 0.0
    %3592 = vmatpush2.msra.mxu0 0.0
    %3593 = vmatprep.subr.mxu0 0.0
    %3594 = vmatpush2.msra.mxu0 0.0
    %3595 = vmatprep.subr.mxu0 0.0
    %3596 = vmatpush2.msra.mxu0 0.0
    %3597 = vmatprep.subr.mxu0 0.0
    %3598 = vmatpush2.msra.mxu0 0.0
    %3599 = vmatprep.subr.mxu0 0.0
    %3600 = vmatpush2.msra.mxu0 0.0
    %3601 = vmatprep.subr.mxu0 0.0
    %3602 = vmatpush2.msra.mxu0 0.0
    %3603 = vmatprep.subr.mxu0 0.0
    %3604 = vmatpush2.msra.mxu0 0.0
    %3605 = vmatprep.subr.mxu0 0.0
    %3606 = vmatpush2.msra.mxu0 0.0
    %3607 = vmatprep.subr.mxu0 0.0
    %3608 = vmatpush2.msra.mxu0 0.0
    %3609 = vmatprep.subr.mxu0 0.0
    %3610 = vmatpush2.msra.mxu0 0.0
    %3611 = vmatprep.mubr.f32.mxu0 0.0
    %v3612 = vand.u32 %v3457, 4294901760
    %3613 = vmatmul.mubr.f32.gmra.mxu0 %v3612
    %v3614 = vpop.f32.mrf.mxu0
    %v3615 = vadd.f32 %v3533, %v3614
    %v3616 = vpop.f32.mrf.mxu0
    %v3617 = vadd.f32 %v3535, %v3616
    %3618 = vdwg.mxu0
    %3619 = vmatprep.subr.mxu0 0.0
    %3620 = vmatpush1.msra.mxu0 0.0
    %3621 = vmatprep.subr.mxu0 0.0
    %3622 = vmatpush1.msra.mxu0 0.0
    %3623 = vmatprep.subr.mxu0 0.0
    %3624 = vmatpush1.msra.mxu0 0.0
    %3625 = vmatprep.subr.mxu0 0.0
    %3626 = vmatpush1.msra.mxu0 0.0
    %3627 = vmatprep.subr.mxu0 0.0
    %3628 = vmatpush1.msra.mxu0 0.0
    %3629 = vmatprep.subr.mxu0 0.0
    %3630 = vmatpush1.msra.mxu0 0.0
    %3631 = vmatprep.subr.mxu0 0.0
    %3632 = vmatpush1.msra.mxu0 0.0
    %3633 = vmatprep.subr.mxu0 0.0
    %3634 = vmatpush1.msra.mxu0 0.0
    %3635 = vmatprep.subr.mxu0 0.0
    %3636 = vmatpush1.msra.mxu0 0.0
    %3637 = vmatprep.subr.mxu0 0.0
    %3638 = vmatpush1.msra.mxu0 0.0
    %3639 = vmatprep.subr.mxu0 0.0
    %3640 = vmatpush1.msra.mxu0 0.0
    %3641 = vmatprep.subr.mxu0 0.0
    %3642 = vmatpush1.msra.mxu0 0.0
    %3643 = vmatprep.subr.mxu0 0.0
    %3644 = vmatpush1.msra.mxu0 0.0
    %3645 = vmatprep.subr.mxu0 0.0
    %3646 = vmatpush1.msra.mxu0 0.0
    %3647 = vmatprep.subr.mxu0 0.0
    %3648 = vmatpush1.msra.mxu0 0.0
    %v3649 = vand.u32 %v3455, 4294901760
    %v3650 = vsub.f32 %v3455, %v3649
    %3651 = vmatprep.subr.mxu0 %v3650
    %v3652 = vand.u32 %v3454, 4294901760
    %v3653 = vsub.f32 %v3454, %v3652
    %3654 = vmatpush1.msra.mxu0 %v3653
    %3655 = vmatprep.subr.mxu0 0.0
    %3656 = vmatpush2.msra.mxu0 0.0
    %3657 = vmatprep.subr.mxu0 0.0
    %3658 = vmatpush2.msra.mxu0 0.0
    %3659 = vmatprep.subr.mxu0 0.0
    %3660 = vmatpush2.msra.mxu0 0.0
    %3661 = vmatprep.subr.mxu0 0.0
    %3662 = vmatpush2.msra.mxu0 0.0
    %3663 = vmatprep.subr.mxu0 0.0
    %3664 = vmatpush2.msra.mxu0 0.0
    %3665 = vmatprep.subr.mxu0 0.0
    %3666 = vmatpush2.msra.mxu0 0.0
    %3667 = vmatprep.subr.mxu0 0.0
    %3668 = vmatpush2.msra.mxu0 0.0
    %3669 = vmatprep.subr.mxu0 0.0
    %3670 = vmatpush2.msra.mxu0 0.0
    %3671 = vmatprep.subr.mxu0 0.0
    %3672 = vmatpush2.msra.mxu0 0.0
    %3673 = vmatprep.subr.mxu0 0.0
    %3674 = vmatpush2.msra.mxu0 0.0
    %3675 = vmatprep.subr.mxu0 0.0
    %3676 = vmatpush2.msra.mxu0 0.0
    %3677 = vmatprep.subr.mxu0 0.0
    %3678 = vmatpush2.msra.mxu0 0.0
    %3679 = vmatprep.subr.mxu0 0.0
    %3680 = vmatpush2.msra.mxu0 0.0
    %3681 = vmatprep.subr.mxu0 0.0
    %3682 = vmatpush2.msra.mxu0 0.0
    %3683 = vmatprep.subr.mxu0 0.0
    %3684 = vmatpush2.msra.mxu0 0.0
    %3685 = vmatprep.subr.mxu0 0.0
    %3686 = vmatpush2.msra.mxu0 0.0
    %3687 = vmatprep.mubr.f32.mxu0 0.0
    %v3688 = vand.u32 %v3457, 4294901760
    %v3689 = vsub.f32 %v3457, %v3688
    %3690 = vmatmul.mubr.f32.gmra.mxu0 %v3689
    %v3691 = vpop.f32.mrf.mxu0
    %v3692 = vadd.f32 %v3615, %v3691
    %v3693 = vpop.f32.mrf.mxu0
    %v3694 = vadd.f32 %v3617, %v3693
    %3695 = vdwg.mxu0
    %3696 = vmatprep.subr.mxu0 0.0
    %3697 = vmatpush1.msra.mxu0 0.0
    %3698 = vmatprep.subr.mxu0 0.0
    %3699 = vmatpush1.msra.mxu0 0.0
    %3700 = vmatprep.subr.mxu0 0.0
    %3701 = vmatpush1.msra.mxu0 0.0
    %3702 = vmatprep.subr.mxu0 0.0
    %3703 = vmatpush1.msra.mxu0 0.0
    %3704 = vmatprep.subr.mxu0 0.0
    %3705 = vmatpush1.msra.mxu0 0.0
    %3706 = vmatprep.subr.mxu0 0.0
    %3707 = vmatpush1.msra.mxu0 0.0
    %3708 = vmatprep.subr.mxu0 0.0
    %3709 = vmatpush1.msra.mxu0 0.0
    %3710 = vmatprep.subr.mxu0 0.0
    %3711 = vmatpush1.msra.mxu0 0.0
    %3712 = vmatprep.subr.mxu0 0.0
    %3713 = vmatpush1.msra.mxu0 0.0
    %3714 = vmatprep.subr.mxu0 0.0
    %3715 = vmatpush1.msra.mxu0 0.0
    %3716 = vmatprep.subr.mxu0 0.0
    %3717 = vmatpush1.msra.mxu0 0.0
    %3718 = vmatprep.subr.mxu0 0.0
    %3719 = vmatpush1.msra.mxu0 0.0
    %3720 = vmatprep.subr.mxu0 0.0
    %3721 = vmatpush1.msra.mxu0 0.0
    %3722 = vmatprep.subr.mxu0 0.0
    %3723 = vmatpush1.msra.mxu0 0.0
    %3724 = vmatprep.subr.mxu0 0.0
    %3725 = vmatpush1.msra.mxu0 0.0
    %v3726 = vand.u32 %v3455, 4294901760
    %3727 = vmatprep.subr.mxu0 %v3726
    %v3728 = vand.u32 %v3454, 4294901760
    %3729 = vmatpush1.msra.mxu0 %v3728
    %3730 = vmatprep.subr.mxu0 0.0
    %3731 = vmatpush2.msra.mxu0 0.0
    %3732 = vmatprep.subr.mxu0 0.0
    %3733 = vmatpush2.msra.mxu0 0.0
    %3734 = vmatprep.subr.mxu0 0.0
    %3735 = vmatpush2.msra.mxu0 0.0
    %3736 = vmatprep.subr.mxu0 0.0
    %3737 = vmatpush2.msra.mxu0 0.0
    %3738 = vmatprep.subr.mxu0 0.0
    %3739 = vmatpush2.msra.mxu0 0.0
    %3740 = vmatprep.subr.mxu0 0.0
    %3741 = vmatpush2.msra.mxu0 0.0
    %3742 = vmatprep.subr.mxu0 0.0
    %3743 = vmatpush2.msra.mxu0 0.0
    %3744 = vmatprep.subr.mxu0 0.0
    %3745 = vmatpush2.msra.mxu0 0.0
    %3746 = vmatprep.subr.mxu0 0.0
    %3747 = vmatpush2.msra.mxu0 0.0
    %3748 = vmatprep.subr.mxu0 0.0
    %3749 = vmatpush2.msra.mxu0 0.0
    %3750 = vmatprep.subr.mxu0 0.0
    %3751 = vmatpush2.msra.mxu0 0.0
    %3752 = vmatprep.subr.mxu0 0.0
    %3753 = vmatpush2.msra.mxu0 0.0
    %3754 = vmatprep.subr.mxu0 0.0
    %3755 = vmatpush2.msra.mxu0 0.0
    %3756 = vmatprep.subr.mxu0 0.0
    %3757 = vmatpush2.msra.mxu0 0.0
    %3758 = vmatprep.subr.mxu0 0.0
    %3759 = vmatpush2.msra.mxu0 0.0
    %3760 = vmatprep.subr.mxu0 0.0
    %3761 = vmatpush2.msra.mxu0 0.0
    %3762 = vmatprep.mubr.f32.mxu0 0.0
    %v3763 = vand.u32 %v3457, 4294901760
    %v3764 = vsub.f32 %v3457, %v3763
    %v3765 = vand.u32 %v3764, 4294901760
    %3766 = vmatmul.mubr.f32.gmra.mxu0 %v3765
    %v3767 = vpop.f32.mrf.mxu0
    %v3768 = vadd.f32 %v3692, %v3767
    %v3769 = vpop.f32.mrf.mxu0
    %v3770 = vadd.f32 %v3694, %v3769
    %3771 = vdwg.mxu0
    %3772 = vmatprep.subr.mxu0 0.0
    %3773 = vmatpush1.msra.mxu0 0.0
    %3774 = vmatprep.subr.mxu0 0.0
    %3775 = vmatpush1.msra.mxu0 0.0
    %3776 = vmatprep.subr.mxu0 0.0
    %3777 = vmatpush1.msra.mxu0 0.0
    %3778 = vmatprep.subr.mxu0 0.0
    %3779 = vmatpush1.msra.mxu0 0.0
    %3780 = vmatprep.subr.mxu0 0.0
    %3781 = vmatpush1.msra.mxu0 0.0
    %3782 = vmatprep.subr.mxu0 0.0
    %3783 = vmatpush1.msra.mxu0 0.0
    %3784 = vmatprep.subr.mxu0 0.0
    %3785 = vmatpush1.msra.mxu0 0.0
    %3786 = vmatprep.subr.mxu0 0.0
    %3787 = vmatpush1.msra.mxu0 0.0
    %3788 = vmatprep.subr.mxu0 0.0
    %3789 = vmatpush1.msra.mxu0 0.0
    %3790 = vmatprep.subr.mxu0 0.0
    %3791 = vmatpush1.msra.mxu0 0.0
    %3792 = vmatprep.subr.mxu0 0.0
    %3793 = vmatpush1.msra.mxu0 0.0
    %3794 = vmatprep.subr.mxu0 0.0
    %3795 = vmatpush1.msra.mxu0 0.0
    %3796 = vmatprep.subr.mxu0 0.0
    %3797 = vmatpush1.msra.mxu0 0.0
    %3798 = vmatprep.subr.mxu0 0.0
    %3799 = vmatpush1.msra.mxu0 0.0
    %3800 = vmatprep.subr.mxu0 0.0
    %3801 = vmatpush1.msra.mxu0 0.0
    %v3802 = vand.u32 %v3455, 4294901760
    %v3803 = vsub.f32 %v3455, %v3802
    %v3804 = vand.u32 %v3803, 4294901760
    %3805 = vmatprep.subr.mxu0 %v3804
    %v3806 = vand.u32 %v3454, 4294901760
    %v3807 = vsub.f32 %v3454, %v3806
    %v3808 = vand.u32 %v3807, 4294901760
    %3809 = vmatpush1.msra.mxu0 %v3808
    %3810 = vmatprep.subr.mxu0 0.0
    %3811 = vmatpush2.msra.mxu0 0.0
    %3812 = vmatprep.subr.mxu0 0.0
    %3813 = vmatpush2.msra.mxu0 0.0
    %3814 = vmatprep.subr.mxu0 0.0
    %3815 = vmatpush2.msra.mxu0 0.0
    %3816 = vmatprep.subr.mxu0 0.0
    %3817 = vmatpush2.msra.mxu0 0.0
    %3818 = vmatprep.subr.mxu0 0.0
    %3819 = vmatpush2.msra.mxu0 0.0
    %3820 = vmatprep.subr.mxu0 0.0
    %3821 = vmatpush2.msra.mxu0 0.0
    %3822 = vmatprep.subr.mxu0 0.0
    %3823 = vmatpush2.msra.mxu0 0.0
    %3824 = vmatprep.subr.mxu0 0.0
    %3825 = vmatpush2.msra.mxu0 0.0
    %3826 = vmatprep.subr.mxu0 0.0
    %3827 = vmatpush2.msra.mxu0 0.0
    %3828 = vmatprep.subr.mxu0 0.0
    %3829 = vmatpush2.msra.mxu0 0.0
    %3830 = vmatprep.subr.mxu0 0.0
    %3831 = vmatpush2.msra.mxu0 0.0
    %3832 = vmatprep.subr.mxu0 0.0
    %3833 = vmatpush2.msra.mxu0 0.0
    %3834 = vmatprep.subr.mxu0 0.0
    %3835 = vmatpush2.msra.mxu0 0.0
    %3836 = vmatprep.subr.mxu0 0.0
    %3837 = vmatpush2.msra.mxu0 0.0
    %3838 = vmatprep.subr.mxu0 0.0
    %3839 = vmatpush2.msra.mxu0 0.0
    %3840 = vmatprep.subr.mxu0 0.0
    %3841 = vmatpush2.msra.mxu0 0.0
    %3842 = vmatprep.mubr.f32.mxu0 0.0
    %v3843 = vand.u32 %v3457, 4294901760
    %3844 = vmatmul.mubr.f32.gmra.mxu0 %v3843
    %v3845 = vpop.f32.mrf.mxu0
    %v3846 = vadd.f32 %v3768, %v3845
    %v3847 = vpop.f32.mrf.mxu0
    %v3848 = vadd.f32 %v3770, %v3847
    %3849 = vdwg.mxu0
    %3850 = vmatprep.subr.mxu0 0.0
    %3851 = vmatpush1.msra.mxu0 0.0
    %3852 = vmatprep.subr.mxu0 0.0
    %3853 = vmatpush1.msra.mxu0 0.0
    %3854 = vmatprep.subr.mxu0 0.0
    %3855 = vmatpush1.msra.mxu0 0.0
    %3856 = vmatprep.subr.mxu0 0.0
    %3857 = vmatpush1.msra.mxu0 0.0
    %3858 = vmatprep.subr.mxu0 0.0
    %3859 = vmatpush1.msra.mxu0 0.0
    %3860 = vmatprep.subr.mxu0 0.0
    %3861 = vmatpush1.msra.mxu0 0.0
    %3862 = vmatprep.subr.mxu0 0.0
    %3863 = vmatpush1.msra.mxu0 0.0
    %3864 = vmatprep.subr.mxu0 0.0
    %3865 = vmatpush1.msra.mxu0 0.0
    %3866 = vmatprep.subr.mxu0 0.0
    %3867 = vmatpush1.msra.mxu0 0.0
    %3868 = vmatprep.subr.mxu0 0.0
    %3869 = vmatpush1.msra.mxu0 0.0
    %3870 = vmatprep.subr.mxu0 0.0
    %3871 = vmatpush1.msra.mxu0 0.0
    %3872 = vmatprep.subr.mxu0 0.0
    %3873 = vmatpush1.msra.mxu0 0.0
    %3874 = vmatprep.subr.mxu0 0.0
    %3875 = vmatpush1.msra.mxu0 0.0
    %3876 = vmatprep.subr.mxu0 0.0
    %3877 = vmatpush1.msra.mxu0 0.0
    %3878 = vmatprep.subr.mxu0 0.0
    %3879 = vmatpush1.msra.mxu0 0.0
    %v3880 = vand.u32 %v3455, 4294901760
    %3881 = vmatprep.subr.mxu0 %v3880
    %v3882 = vand.u32 %v3454, 4294901760
    %3883 = vmatpush1.msra.mxu0 %v3882
    %3884 = vmatprep.subr.mxu0 0.0
    %3885 = vmatpush2.msra.mxu0 0.0
    %3886 = vmatprep.subr.mxu0 0.0
    %3887 = vmatpush2.msra.mxu0 0.0
    %3888 = vmatprep.subr.mxu0 0.0
    %3889 = vmatpush2.msra.mxu0 0.0
    %3890 = vmatprep.subr.mxu0 0.0
    %3891 = vmatpush2.msra.mxu0 0.0
    %3892 = vmatprep.subr.mxu0 0.0
    %3893 = vmatpush2.msra.mxu0 0.0
    %3894 = vmatprep.subr.mxu0 0.0
    %3895 = vmatpush2.msra.mxu0 0.0
    %3896 = vmatprep.subr.mxu0 0.0
    %3897 = vmatpush2.msra.mxu0 0.0
    %3898 = vmatprep.subr.mxu0 0.0
    %3899 = vmatpush2.msra.mxu0 0.0
    %3900 = vmatprep.subr.mxu0 0.0
    %3901 = vmatpush2.msra.mxu0 0.0
    %3902 = vmatprep.subr.mxu0 0.0
    %3903 = vmatpush2.msra.mxu0 0.0
    %3904 = vmatprep.subr.mxu0 0.0
    %3905 = vmatpush2.msra.mxu0 0.0
    %3906 = vmatprep.subr.mxu0 0.0
    %3907 = vmatpush2.msra.mxu0 0.0
    %3908 = vmatprep.subr.mxu0 0.0
    %3909 = vmatpush2.msra.mxu0 0.0
    %3910 = vmatprep.subr.mxu0 0.0
    %3911 = vmatpush2.msra.mxu0 0.0
    %3912 = vmatprep.subr.mxu0 0.0
    %3913 = vmatpush2.msra.mxu0 0.0
    %3914 = vmatprep.subr.mxu0 0.0
    %3915 = vmatpush2.msra.mxu0 0.0
    %3916 = vmatprep.mubr.f32.mxu0 0.0
    %v3917 = vand.u32 %v3457, 4294901760
    %3918 = vmatmul.mubr.f32.gmra.mxu0 %v3917
    %v3919 = vpop.f32.mrf.mxu0
    %v3920 = vadd.f32 %v3846, %v3919
    %v3921 = vpop.f32.mrf.mxu0
    %v3922 = vadd.f32 %v3848, %v3921
    %3923 = vdwg.mxu0
    %v3924 = vadd.f32 %v3445, %v3920
    %v3925 = vadd.f32 %v3446, %v3922
    %3926 = vrot.lane.b32.xlu0 %v18, 111
    %v3927 = vpop.permute.xlu0 %3926
    %3928 = vrot.lane.b32.xlu0 %v19, 111
    %v3929 = vpop.permute.xlu0 %3928
    %vm3930 = vcmp.lt.s32.totalorder %v109, 111
    %v3931 = vsel %vm3930, %v3927, %v3929
    %v3932 = vsel %vm3930, %v3929, %v3927
    %v3933 = vmul.f32 %v3931, %v99
    %v3934 = vmul.f32 %v3932, %v103
    %v3936 = vsel %vm115, %v28, 0
    %3938 = vmatprep.subr.mxu0 0.0
    %3939 = vmatpush1.msra.mxu0 0.0
    %3940 = vmatprep.subr.mxu0 0.0
    %3941 = vmatpush1.msra.mxu0 0.0
    %3942 = vmatprep.subr.mxu0 0.0
    %3943 = vmatpush1.msra.mxu0 0.0
    %3944 = vmatprep.subr.mxu0 0.0
    %3945 = vmatpush1.msra.mxu0 0.0
    %3946 = vmatprep.subr.mxu0 0.0
    %3947 = vmatpush1.msra.mxu0 0.0
    %3948 = vmatprep.subr.mxu0 0.0
    %3949 = vmatpush1.msra.mxu0 0.0
    %3950 = vmatprep.subr.mxu0 0.0
    %3951 = vmatpush1.msra.mxu0 0.0
    %3952 = vmatprep.subr.mxu0 0.0
    %3953 = vmatpush1.msra.mxu0 0.0
    %3954 = vmatprep.subr.mxu0 0.0
    %3955 = vmatpush1.msra.mxu0 0.0
    %3956 = vmatprep.subr.mxu0 0.0
    %3957 = vmatpush1.msra.mxu0 0.0
    %3958 = vmatprep.subr.mxu0 0.0
    %3959 = vmatpush1.msra.mxu0 0.0
    %3960 = vmatprep.subr.mxu0 0.0
    %3961 = vmatpush1.msra.mxu0 0.0
    %3962 = vmatprep.subr.mxu0 0.0
    %3963 = vmatpush1.msra.mxu0 0.0
    %3964 = vmatprep.subr.mxu0 0.0
    %3965 = vmatpush1.msra.mxu0 0.0
    %3966 = vmatprep.subr.mxu0 0.0
    %3967 = vmatpush1.msra.mxu0 0.0
    %v3968 = vand.u32 %v3934, 4294901760
    %3969 = vmatprep.subr.mxu0 %v3968
    %v3970 = vand.u32 %v3933, 4294901760
    %3971 = vmatpush1.msra.mxu0 %v3970
    %3972 = vmatprep.subr.mxu0 0.0
    %3973 = vmatpush2.msra.mxu0 0.0
    %3974 = vmatprep.subr.mxu0 0.0
    %3975 = vmatpush2.msra.mxu0 0.0
    %3976 = vmatprep.subr.mxu0 0.0
    %3977 = vmatpush2.msra.mxu0 0.0
    %3978 = vmatprep.subr.mxu0 0.0
    %3979 = vmatpush2.msra.mxu0 0.0
    %3980 = vmatprep.subr.mxu0 0.0
    %3981 = vmatpush2.msra.mxu0 0.0
    %3982 = vmatprep.subr.mxu0 0.0
    %3983 = vmatpush2.msra.mxu0 0.0
    %3984 = vmatprep.subr.mxu0 0.0
    %3985 = vmatpush2.msra.mxu0 0.0
    %3986 = vmatprep.subr.mxu0 0.0
    %3987 = vmatpush2.msra.mxu0 0.0
    %3988 = vmatprep.subr.mxu0 0.0
    %3989 = vmatpush2.msra.mxu0 0.0
    %3990 = vmatprep.subr.mxu0 0.0
    %3991 = vmatpush2.msra.mxu0 0.0
    %3992 = vmatprep.subr.mxu0 0.0
    %3993 = vmatpush2.msra.mxu0 0.0
    %3994 = vmatprep.subr.mxu0 0.0
    %3995 = vmatpush2.msra.mxu0 0.0
    %3996 = vmatprep.subr.mxu0 0.0
    %3997 = vmatpush2.msra.mxu0 0.0
    %3998 = vmatprep.subr.mxu0 0.0
    %3999 = vmatpush2.msra.mxu0 0.0
    %4000 = vmatprep.subr.mxu0 0.0
    %4001 = vmatpush2.msra.mxu0 0.0
    %4002 = vmatprep.subr.mxu0 0.0
    %4003 = vmatpush2.msra.mxu0 0.0
    %4004 = vmatprep.mubr.f32.mxu0 0.0
    %v4005 = vand.u32 %v3936, 4294901760
    %v4006 = vsub.f32 %v3936, %v4005
    %v4007 = vand.u32 %v4006, 4294901760
    %v4008 = vsub.f32 %v4006, %v4007
    %v4009 = vand.u32 %v4008, 4294901760
    %4010 = vmatmul.mubr.f32.gmra.mxu0 %v4009
    %v4011 = vpop.f32.mrf.mxu0
    %v4012 = vadd.f32 0.0, %v4011
    %v4013 = vpop.f32.mrf.mxu0
    %v4014 = vadd.f32 0.0, %v4013
    %4015 = vdwg.mxu0
    %4016 = vmatprep.subr.mxu0 0.0
    %4017 = vmatpush1.msra.mxu0 0.0
    %4018 = vmatprep.subr.mxu0 0.0
    %4019 = vmatpush1.msra.mxu0 0.0
    %4020 = vmatprep.subr.mxu0 0.0
    %4021 = vmatpush1.msra.mxu0 0.0
    %4022 = vmatprep.subr.mxu0 0.0
    %4023 = vmatpush1.msra.mxu0 0.0
    %4024 = vmatprep.subr.mxu0 0.0
    %4025 = vmatpush1.msra.mxu0 0.0
    %4026 = vmatprep.subr.mxu0 0.0
    %4027 = vmatpush1.msra.mxu0 0.0
    %4028 = vmatprep.subr.mxu0 0.0
    %4029 = vmatpush1.msra.mxu0 0.0
    %4030 = vmatprep.subr.mxu0 0.0
    %4031 = vmatpush1.msra.mxu0 0.0
    %4032 = vmatprep.subr.mxu0 0.0
    %4033 = vmatpush1.msra.mxu0 0.0
    %4034 = vmatprep.subr.mxu0 0.0
    %4035 = vmatpush1.msra.mxu0 0.0
    %4036 = vmatprep.subr.mxu0 0.0
    %4037 = vmatpush1.msra.mxu0 0.0
    %4038 = vmatprep.subr.mxu0 0.0
    %4039 = vmatpush1.msra.mxu0 0.0
    %4040 = vmatprep.subr.mxu0 0.0
    %4041 = vmatpush1.msra.mxu0 0.0
    %4042 = vmatprep.subr.mxu0 0.0
    %4043 = vmatpush1.msra.mxu0 0.0
    %4044 = vmatprep.subr.mxu0 0.0
    %4045 = vmatpush1.msra.mxu0 0.0
    %v4046 = vand.u32 %v3934, 4294901760
    %v4047 = vsub.f32 %v3934, %v4046
    %v4048 = vand.u32 %v4047, 4294901760
    %v4049 = vsub.f32 %v4047, %v4048
    %v4050 = vand.u32 %v4049, 4294901760
    %4051 = vmatprep.subr.mxu0 %v4050
    %v4052 = vand.u32 %v3933, 4294901760
    %v4053 = vsub.f32 %v3933, %v4052
    %v4054 = vand.u32 %v4053, 4294901760
    %v4055 = vsub.f32 %v4053, %v4054
    %v4056 = vand.u32 %v4055, 4294901760
    %4057 = vmatpush1.msra.mxu0 %v4056
    %4058 = vmatprep.subr.mxu0 0.0
    %4059 = vmatpush2.msra.mxu0 0.0
    %4060 = vmatprep.subr.mxu0 0.0
    %4061 = vmatpush2.msra.mxu0 0.0
    %4062 = vmatprep.subr.mxu0 0.0
    %4063 = vmatpush2.msra.mxu0 0.0
    %4064 = vmatprep.subr.mxu0 0.0
    %4065 = vmatpush2.msra.mxu0 0.0
    %4066 = vmatprep.subr.mxu0 0.0
    %4067 = vmatpush2.msra.mxu0 0.0
    %4068 = vmatprep.subr.mxu0 0.0
    %4069 = vmatpush2.msra.mxu0 0.0
    %4070 = vmatprep.subr.mxu0 0.0
    %4071 = vmatpush2.msra.mxu0 0.0
    %4072 = vmatprep.subr.mxu0 0.0
    %4073 = vmatpush2.msra.mxu0 0.0
    %4074 = vmatprep.subr.mxu0 0.0
    %4075 = vmatpush2.msra.mxu0 0.0
    %4076 = vmatprep.subr.mxu0 0.0
    %4077 = vmatpush2.msra.mxu0 0.0
    %4078 = vmatprep.subr.mxu0 0.0
    %4079 = vmatpush2.msra.mxu0 0.0
    %4080 = vmatprep.subr.mxu0 0.0
    %4081 = vmatpush2.msra.mxu0 0.0
    %4082 = vmatprep.subr.mxu0 0.0
    %4083 = vmatpush2.msra.mxu0 0.0
    %4084 = vmatprep.subr.mxu0 0.0
    %4085 = vmatpush2.msra.mxu0 0.0
    %4086 = vmatprep.subr.mxu0 0.0
    %4087 = vmatpush2.msra.mxu0 0.0
    %4088 = vmatprep.subr.mxu0 0.0
    %4089 = vmatpush2.msra.mxu0 0.0
    %4090 = vmatprep.mubr.f32.mxu0 0.0
    %v4091 = vand.u32 %v3936, 4294901760
    %4092 = vmatmul.mubr.f32.gmra.mxu0 %v4091
    %v4093 = vpop.f32.mrf.mxu0
    %v4094 = vadd.f32 %v4012, %v4093
    %v4095 = vpop.f32.mrf.mxu0
    %v4096 = vadd.f32 %v4014, %v4095
    %4097 = vdwg.mxu0
    %4098 = vmatprep.subr.mxu0 0.0
    %4099 = vmatpush1.msra.mxu0 0.0
    %4100 = vmatprep.subr.mxu0 0.0
    %4101 = vmatpush1.msra.mxu0 0.0
    %4102 = vmatprep.subr.mxu0 0.0
    %4103 = vmatpush1.msra.mxu0 0.0
    %4104 = vmatprep.subr.mxu0 0.0
    %4105 = vmatpush1.msra.mxu0 0.0
    %4106 = vmatprep.subr.mxu0 0.0
    %4107 = vmatpush1.msra.mxu0 0.0
    %4108 = vmatprep.subr.mxu0 0.0
    %4109 = vmatpush1.msra.mxu0 0.0
    %4110 = vmatprep.subr.mxu0 0.0
    %4111 = vmatpush1.msra.mxu0 0.0
    %4112 = vmatprep.subr.mxu0 0.0
    %4113 = vmatpush1.msra.mxu0 0.0
    %4114 = vmatprep.subr.mxu0 0.0
    %4115 = vmatpush1.msra.mxu0 0.0
    %4116 = vmatprep.subr.mxu0 0.0
    %4117 = vmatpush1.msra.mxu0 0.0
    %4118 = vmatprep.subr.mxu0 0.0
    %4119 = vmatpush1.msra.mxu0 0.0
    %4120 = vmatprep.subr.mxu0 0.0
    %4121 = vmatpush1.msra.mxu0 0.0
    %4122 = vmatprep.subr.mxu0 0.0
    %4123 = vmatpush1.msra.mxu0 0.0
    %4124 = vmatprep.subr.mxu0 0.0
    %4125 = vmatpush1.msra.mxu0 0.0
    %4126 = vmatprep.subr.mxu0 0.0
    %4127 = vmatpush1.msra.mxu0 0.0
    %v4128 = vand.u32 %v3934, 4294901760
    %v4129 = vsub.f32 %v3934, %v4128
    %4130 = vmatprep.subr.mxu0 %v4129
    %v4131 = vand.u32 %v3933, 4294901760
    %v4132 = vsub.f32 %v3933, %v4131
    %4133 = vmatpush1.msra.mxu0 %v4132
    %4134 = vmatprep.subr.mxu0 0.0
    %4135 = vmatpush2.msra.mxu0 0.0
    %4136 = vmatprep.subr.mxu0 0.0
    %4137 = vmatpush2.msra.mxu0 0.0
    %4138 = vmatprep.subr.mxu0 0.0
    %4139 = vmatpush2.msra.mxu0 0.0
    %4140 = vmatprep.subr.mxu0 0.0
    %4141 = vmatpush2.msra.mxu0 0.0
    %4142 = vmatprep.subr.mxu0 0.0
    %4143 = vmatpush2.msra.mxu0 0.0
    %4144 = vmatprep.subr.mxu0 0.0
    %4145 = vmatpush2.msra.mxu0 0.0
    %4146 = vmatprep.subr.mxu0 0.0
    %4147 = vmatpush2.msra.mxu0 0.0
    %4148 = vmatprep.subr.mxu0 0.0
    %4149 = vmatpush2.msra.mxu0 0.0
    %4150 = vmatprep.subr.mxu0 0.0
    %4151 = vmatpush2.msra.mxu0 0.0
    %4152 = vmatprep.subr.mxu0 0.0
    %4153 = vmatpush2.msra.mxu0 0.0
    %4154 = vmatprep.subr.mxu0 0.0
    %4155 = vmatpush2.msra.mxu0 0.0
    %4156 = vmatprep.subr.mxu0 0.0
    %4157 = vmatpush2.msra.mxu0 0.0
    %4158 = vmatprep.subr.mxu0 0.0
    %4159 = vmatpush2.msra.mxu0 0.0
    %4160 = vmatprep.subr.mxu0 0.0
    %4161 = vmatpush2.msra.mxu0 0.0
    %4162 = vmatprep.subr.mxu0 0.0
    %4163 = vmatpush2.msra.mxu0 0.0
    %4164 = vmatprep.subr.mxu0 0.0
    %4165 = vmatpush2.msra.mxu0 0.0
    %4166 = vmatprep.mubr.f32.mxu0 0.0
    %v4167 = vand.u32 %v3936, 4294901760
    %v4168 = vsub.f32 %v3936, %v4167
    %4169 = vmatmul.mubr.f32.gmra.mxu0 %v4168
    %v4170 = vpop.f32.mrf.mxu0
    %v4171 = vadd.f32 %v4094, %v4170
    %v4172 = vpop.f32.mrf.mxu0
    %v4173 = vadd.f32 %v4096, %v4172
    %4174 = vdwg.mxu0
    %4175 = vmatprep.subr.mxu0 0.0
    %4176 = vmatpush1.msra.mxu0 0.0
    %4177 = vmatprep.subr.mxu0 0.0
    %4178 = vmatpush1.msra.mxu0 0.0
    %4179 = vmatprep.subr.mxu0 0.0
    %4180 = vmatpush1.msra.mxu0 0.0
    %4181 = vmatprep.subr.mxu0 0.0
    %4182 = vmatpush1.msra.mxu0 0.0
    %4183 = vmatprep.subr.mxu0 0.0
    %4184 = vmatpush1.msra.mxu0 0.0
    %4185 = vmatprep.subr.mxu0 0.0
    %4186 = vmatpush1.msra.mxu0 0.0
    %4187 = vmatprep.subr.mxu0 0.0
    %4188 = vmatpush1.msra.mxu0 0.0
    %4189 = vmatprep.subr.mxu0 0.0
    %4190 = vmatpush1.msra.mxu0 0.0
    %4191 = vmatprep.subr.mxu0 0.0
    %4192 = vmatpush1.msra.mxu0 0.0
    %4193 = vmatprep.subr.mxu0 0.0
    %4194 = vmatpush1.msra.mxu0 0.0
    %4195 = vmatprep.subr.mxu0 0.0
    %4196 = vmatpush1.msra.mxu0 0.0
    %4197 = vmatprep.subr.mxu0 0.0
    %4198 = vmatpush1.msra.mxu0 0.0
    %4199 = vmatprep.subr.mxu0 0.0
    %4200 = vmatpush1.msra.mxu0 0.0
    %4201 = vmatprep.subr.mxu0 0.0
    %4202 = vmatpush1.msra.mxu0 0.0
    %4203 = vmatprep.subr.mxu0 0.0
    %4204 = vmatpush1.msra.mxu0 0.0
    %v4205 = vand.u32 %v3934, 4294901760
    %4206 = vmatprep.subr.mxu0 %v4205
    %v4207 = vand.u32 %v3933, 4294901760
    %4208 = vmatpush1.msra.mxu0 %v4207
    %4209 = vmatprep.subr.mxu0 0.0
    %4210 = vmatpush2.msra.mxu0 0.0
    %4211 = vmatprep.subr.mxu0 0.0
    %4212 = vmatpush2.msra.mxu0 0.0
    %4213 = vmatprep.subr.mxu0 0.0
    %4214 = vmatpush2.msra.mxu0 0.0
    %4215 = vmatprep.subr.mxu0 0.0
    %4216 = vmatpush2.msra.mxu0 0.0
    %4217 = vmatprep.subr.mxu0 0.0
    %4218 = vmatpush2.msra.mxu0 0.0
    %4219 = vmatprep.subr.mxu0 0.0
    %4220 = vmatpush2.msra.mxu0 0.0
    %4221 = vmatprep.subr.mxu0 0.0
    %4222 = vmatpush2.msra.mxu0 0.0
    %4223 = vmatprep.subr.mxu0 0.0
    %4224 = vmatpush2.msra.mxu0 0.0
    %4225 = vmatprep.subr.mxu0 0.0
    %4226 = vmatpush2.msra.mxu0 0.0
    %4227 = vmatprep.subr.mxu0 0.0
    %4228 = vmatpush2.msra.mxu0 0.0
    %4229 = vmatprep.subr.mxu0 0.0
    %4230 = vmatpush2.msra.mxu0 0.0
    %4231 = vmatprep.subr.mxu0 0.0
    %4232 = vmatpush2.msra.mxu0 0.0
    %4233 = vmatprep.subr.mxu0 0.0
    %4234 = vmatpush2.msra.mxu0 0.0
    %4235 = vmatprep.subr.mxu0 0.0
    %4236 = vmatpush2.msra.mxu0 0.0
    %4237 = vmatprep.subr.mxu0 0.0
    %4238 = vmatpush2.msra.mxu0 0.0
    %4239 = vmatprep.subr.mxu0 0.0
    %4240 = vmatpush2.msra.mxu0 0.0
    %4241 = vmatprep.mubr.f32.mxu0 0.0
    %v4242 = vand.u32 %v3936, 4294901760
    %v4243 = vsub.f32 %v3936, %v4242
    %v4244 = vand.u32 %v4243, 4294901760
    %4245 = vmatmul.mubr.f32.gmra.mxu0 %v4244
    %v4246 = vpop.f32.mrf.mxu0
    %v4247 = vadd.f32 %v4171, %v4246
    %v4248 = vpop.f32.mrf.mxu0
    %v4249 = vadd.f32 %v4173, %v4248
    %4250 = vdwg.mxu0
    %4251 = vmatprep.subr.mxu0 0.0
    %4252 = vmatpush1.msra.mxu0 0.0
    %4253 = vmatprep.subr.mxu0 0.0
    %4254 = vmatpush1.msra.mxu0 0.0
    %4255 = vmatprep.subr.mxu0 0.0
    %4256 = vmatpush1.msra.mxu0 0.0
    %4257 = vmatprep.subr.mxu0 0.0
    %4258 = vmatpush1.msra.mxu0 0.0
    %4259 = vmatprep.subr.mxu0 0.0
    %4260 = vmatpush1.msra.mxu0 0.0
    %4261 = vmatprep.subr.mxu0 0.0
    %4262 = vmatpush1.msra.mxu0 0.0
    %4263 = vmatprep.subr.mxu0 0.0
    %4264 = vmatpush1.msra.mxu0 0.0
    %4265 = vmatprep.subr.mxu0 0.0
    %4266 = vmatpush1.msra.mxu0 0.0
    %4267 = vmatprep.subr.mxu0 0.0
    %4268 = vmatpush1.msra.mxu0 0.0
    %4269 = vmatprep.subr.mxu0 0.0
    %4270 = vmatpush1.msra.mxu0 0.0
    %4271 = vmatprep.subr.mxu0 0.0
    %4272 = vmatpush1.msra.mxu0 0.0
    %4273 = vmatprep.subr.mxu0 0.0
    %4274 = vmatpush1.msra.mxu0 0.0
    %4275 = vmatprep.subr.mxu0 0.0
    %4276 = vmatpush1.msra.mxu0 0.0
    %4277 = vmatprep.subr.mxu0 0.0
    %4278 = vmatpush1.msra.mxu0 0.0
    %4279 = vmatprep.subr.mxu0 0.0
    %4280 = vmatpush1.msra.mxu0 0.0
    %v4281 = vand.u32 %v3934, 4294901760
    %v4282 = vsub.f32 %v3934, %v4281
    %v4283 = vand.u32 %v4282, 4294901760
    %4284 = vmatprep.subr.mxu0 %v4283
    %v4285 = vand.u32 %v3933, 4294901760
    %v4286 = vsub.f32 %v3933, %v4285
    %v4287 = vand.u32 %v4286, 4294901760
    %4288 = vmatpush1.msra.mxu0 %v4287
    %4289 = vmatprep.subr.mxu0 0.0
    %4290 = vmatpush2.msra.mxu0 0.0
    %4291 = vmatprep.subr.mxu0 0.0
    %4292 = vmatpush2.msra.mxu0 0.0
    %4293 = vmatprep.subr.mxu0 0.0
    %4294 = vmatpush2.msra.mxu0 0.0
    %4295 = vmatprep.subr.mxu0 0.0
    %4296 = vmatpush2.msra.mxu0 0.0
    %4297 = vmatprep.subr.mxu0 0.0
    %4298 = vmatpush2.msra.mxu0 0.0
    %4299 = vmatprep.subr.mxu0 0.0
    %4300 = vmatpush2.msra.mxu0 0.0
    %4301 = vmatprep.subr.mxu0 0.0
    %4302 = vmatpush2.msra.mxu0 0.0
    %4303 = vmatprep.subr.mxu0 0.0
    %4304 = vmatpush2.msra.mxu0 0.0
    %4305 = vmatprep.subr.mxu0 0.0
    %4306 = vmatpush2.msra.mxu0 0.0
    %4307 = vmatprep.subr.mxu0 0.0
    %4308 = vmatpush2.msra.mxu0 0.0
    %4309 = vmatprep.subr.mxu0 0.0
    %4310 = vmatpush2.msra.mxu0 0.0
    %4311 = vmatprep.subr.mxu0 0.0
    %4312 = vmatpush2.msra.mxu0 0.0
    %4313 = vmatprep.subr.mxu0 0.0
    %4314 = vmatpush2.msra.mxu0 0.0
    %4315 = vmatprep.subr.mxu0 0.0
    %4316 = vmatpush2.msra.mxu0 0.0
    %4317 = vmatprep.subr.mxu0 0.0
    %4318 = vmatpush2.msra.mxu0 0.0
    %4319 = vmatprep.subr.mxu0 0.0
    %4320 = vmatpush2.msra.mxu0 0.0
    %4321 = vmatprep.mubr.f32.mxu0 0.0
    %v4322 = vand.u32 %v3936, 4294901760
    %4323 = vmatmul.mubr.f32.gmra.mxu0 %v4322
    %v4324 = vpop.f32.mrf.mxu0
    %v4325 = vadd.f32 %v4247, %v4324
    %v4326 = vpop.f32.mrf.mxu0
    %v4327 = vadd.f32 %v4249, %v4326
    %4328 = vdwg.mxu0
    %4329 = vmatprep.subr.mxu0 0.0
    %4330 = vmatpush1.msra.mxu0 0.0
    %4331 = vmatprep.subr.mxu0 0.0
    %4332 = vmatpush1.msra.mxu0 0.0
    %4333 = vmatprep.subr.mxu0 0.0
    %4334 = vmatpush1.msra.mxu0 0.0
    %4335 = vmatprep.subr.mxu0 0.0
    %4336 = vmatpush1.msra.mxu0 0.0
    %4337 = vmatprep.subr.mxu0 0.0
    %4338 = vmatpush1.msra.mxu0 0.0
    %4339 = vmatprep.subr.mxu0 0.0
    %4340 = vmatpush1.msra.mxu0 0.0
    %4341 = vmatprep.subr.mxu0 0.0
    %4342 = vmatpush1.msra.mxu0 0.0
    %4343 = vmatprep.subr.mxu0 0.0
    %4344 = vmatpush1.msra.mxu0 0.0
    %4345 = vmatprep.subr.mxu0 0.0
    %4346 = vmatpush1.msra.mxu0 0.0
    %4347 = vmatprep.subr.mxu0 0.0
    %4348 = vmatpush1.msra.mxu0 0.0
    %4349 = vmatprep.subr.mxu0 0.0
    %4350 = vmatpush1.msra.mxu0 0.0
    %4351 = vmatprep.subr.mxu0 0.0
    %4352 = vmatpush1.msra.mxu0 0.0
    %4353 = vmatprep.subr.mxu0 0.0
    %4354 = vmatpush1.msra.mxu0 0.0
    %4355 = vmatprep.subr.mxu0 0.0
    %4356 = vmatpush1.msra.mxu0 0.0
    %4357 = vmatprep.subr.mxu0 0.0
    %4358 = vmatpush1.msra.mxu0 0.0
    %v4359 = vand.u32 %v3934, 4294901760
    %4360 = vmatprep.subr.mxu0 %v4359
    %v4361 = vand.u32 %v3933, 4294901760
    %4362 = vmatpush1.msra.mxu0 %v4361
    %4363 = vmatprep.subr.mxu0 0.0
    %4364 = vmatpush2.msra.mxu0 0.0
    %4365 = vmatprep.subr.mxu0 0.0
    %4366 = vmatpush2.msra.mxu0 0.0
    %4367 = vmatprep.subr.mxu0 0.0
    %4368 = vmatpush2.msra.mxu0 0.0
    %4369 = vmatprep.subr.mxu0 0.0
    %4370 = vmatpush2.msra.mxu0 0.0
    %4371 = vmatprep.subr.mxu0 0.0
    %4372 = vmatpush2.msra.mxu0 0.0
    %4373 = vmatprep.subr.mxu0 0.0
    %4374 = vmatpush2.msra.mxu0 0.0
    %4375 = vmatprep.subr.mxu0 0.0
    %4376 = vmatpush2.msra.mxu0 0.0
    %4377 = vmatprep.subr.mxu0 0.0
    %4378 = vmatpush2.msra.mxu0 0.0
    %4379 = vmatprep.subr.mxu0 0.0
    %4380 = vmatpush2.msra.mxu0 0.0
    %4381 = vmatprep.subr.mxu0 0.0
    %4382 = vmatpush2.msra.mxu0 0.0
    %4383 = vmatprep.subr.mxu0 0.0
    %4384 = vmatpush2.msra.mxu0 0.0
    %4385 = vmatprep.subr.mxu0 0.0
    %4386 = vmatpush2.msra.mxu0 0.0
    %4387 = vmatprep.subr.mxu0 0.0
    %4388 = vmatpush2.msra.mxu0 0.0
    %4389 = vmatprep.subr.mxu0 0.0
    %4390 = vmatpush2.msra.mxu0 0.0
    %4391 = vmatprep.subr.mxu0 0.0
    %4392 = vmatpush2.msra.mxu0 0.0
    %4393 = vmatprep.subr.mxu0 0.0
    %4394 = vmatpush2.msra.mxu0 0.0
    %4395 = vmatprep.mubr.f32.mxu0 0.0
    %v4396 = vand.u32 %v3936, 4294901760
    %4397 = vmatmul.mubr.f32.gmra.mxu0 %v4396
    %v4398 = vpop.f32.mrf.mxu0
    %v4399 = vadd.f32 %v4325, %v4398
    %v4400 = vpop.f32.mrf.mxu0
    %v4401 = vadd.f32 %v4327, %v4400
    %4402 = vdwg.mxu0
    %v4403 = vadd.f32 %v3924, %v4399
    %v4404 = vadd.f32 %v3925, %v4401
    %4405 = vrot.lane.b32.xlu0 %v4403, 17
    %v4406 = vpop.permute.xlu0 %4405
    %4407 = vrot.lane.b32.xlu0 %v4404, 17
    %v4408 = vpop.permute.xlu0 %4407
    %v4409 = vsel %vm110, %v4406, %v4408
    %v4410 = vsel %vm110, %v4408, %v4406
    %v4411 = vmul.f32 %v4410, %v43
    %v4412 = vmul.f32 %v4409, %v47
    %v4414 = vsel %vm115, %v29, 0
    %4416 = vmatprep.subr.mxu0 0.0
    %4417 = vmatpush1.msra.mxu0 0.0
    %4418 = vmatprep.subr.mxu0 0.0
    %4419 = vmatpush1.msra.mxu0 0.0
    %4420 = vmatprep.subr.mxu0 0.0
    %4421 = vmatpush1.msra.mxu0 0.0
    %4422 = vmatprep.subr.mxu0 0.0
    %4423 = vmatpush1.msra.mxu0 0.0
    %4424 = vmatprep.subr.mxu0 0.0
    %4425 = vmatpush1.msra.mxu0 0.0
    %4426 = vmatprep.subr.mxu0 0.0
    %4427 = vmatpush1.msra.mxu0 0.0
    %4428 = vmatprep.subr.mxu0 0.0
    %4429 = vmatpush1.msra.mxu0 0.0
    %4430 = vmatprep.subr.mxu0 0.0
    %4431 = vmatpush1.msra.mxu0 0.0
    %4432 = vmatprep.subr.mxu0 0.0
    %4433 = vmatpush1.msra.mxu0 0.0
    %4434 = vmatprep.subr.mxu0 0.0
    %4435 = vmatpush1.msra.mxu0 0.0
    %4436 = vmatprep.subr.mxu0 0.0
    %4437 = vmatpush1.msra.mxu0 0.0
    %4438 = vmatprep.subr.mxu0 0.0
    %4439 = vmatpush1.msra.mxu0 0.0
    %4440 = vmatprep.subr.mxu0 0.0
    %4441 = vmatpush1.msra.mxu0 0.0
    %4442 = vmatprep.subr.mxu0 0.0
    %4443 = vmatpush1.msra.mxu0 0.0
    %4444 = vmatprep.subr.mxu0 0.0
    %4445 = vmatpush1.msra.mxu0 0.0
    %v4446 = vand.u32 %v4412, 4294901760
    %4447 = vmatprep.subr.mxu0 %v4446
    %v4448 = vand.u32 %v4411, 4294901760
    %4449 = vmatpush1.msra.mxu0 %v4448
    %4450 = vmatprep.subr.mxu0 0.0
    %4451 = vmatpush2.msra.mxu0 0.0
    %4452 = vmatprep.subr.mxu0 0.0
    %4453 = vmatpush2.msra.mxu0 0.0
    %4454 = vmatprep.subr.mxu0 0.0
    %4455 = vmatpush2.msra.mxu0 0.0
    %4456 = vmatprep.subr.mxu0 0.0
    %4457 = vmatpush2.msra.mxu0 0.0
    %4458 = vmatprep.subr.mxu0 0.0
    %4459 = vmatpush2.msra.mxu0 0.0
    %4460 = vmatprep.subr.mxu0 0.0
    %4461 = vmatpush2.msra.mxu0 0.0
    %4462 = vmatprep.subr.mxu0 0.0
    %4463 = vmatpush2.msra.mxu0 0.0
    %4464 = vmatprep.subr.mxu0 0.0
    %4465 = vmatpush2.msra.mxu0 0.0
    %4466 = vmatprep.subr.mxu0 0.0
    %4467 = vmatpush2.msra.mxu0 0.0
    %4468 = vmatprep.subr.mxu0 0.0
    %4469 = vmatpush2.msra.mxu0 0.0
    %4470 = vmatprep.subr.mxu0 0.0
    %4471 = vmatpush2.msra.mxu0 0.0
    %4472 = vmatprep.subr.mxu0 0.0
    %4473 = vmatpush2.msra.mxu0 0.0
    %4474 = vmatprep.subr.mxu0 0.0
    %4475 = vmatpush2.msra.mxu0 0.0
    %4476 = vmatprep.subr.mxu0 0.0
    %4477 = vmatpush2.msra.mxu0 0.0
    %4478 = vmatprep.subr.mxu0 0.0
    %4479 = vmatpush2.msra.mxu0 0.0
    %4480 = vmatprep.subr.mxu0 0.0
    %4481 = vmatpush2.msra.mxu0 0.0
    %4482 = vmatprep.mubr.f32.mxu0 0.0
    %v4483 = vand.u32 %v4414, 4294901760
    %v4484 = vsub.f32 %v4414, %v4483
    %v4485 = vand.u32 %v4484, 4294901760
    %v4486 = vsub.f32 %v4484, %v4485
    %v4487 = vand.u32 %v4486, 4294901760
    %4488 = vmatmul.mubr.f32.gmra.mxu0 %v4487
    %v4489 = vpop.f32.mrf.mxu0
    %v4490 = vadd.f32 0.0, %v4489
    %v4491 = vpop.f32.mrf.mxu0
    %v4492 = vadd.f32 0.0, %v4491
    %4493 = vdwg.mxu0
    %4494 = vmatprep.subr.mxu0 0.0
    %4495 = vmatpush1.msra.mxu0 0.0
    %4496 = vmatprep.subr.mxu0 0.0
    %4497 = vmatpush1.msra.mxu0 0.0
    %4498 = vmatprep.subr.mxu0 0.0
    %4499 = vmatpush1.msra.mxu0 0.0
    %4500 = vmatprep.subr.mxu0 0.0
    %4501 = vmatpush1.msra.mxu0 0.0
    %4502 = vmatprep.subr.mxu0 0.0
    %4503 = vmatpush1.msra.mxu0 0.0
    %4504 = vmatprep.subr.mxu0 0.0
    %4505 = vmatpush1.msra.mxu0 0.0
    %4506 = vmatprep.subr.mxu0 0.0
    %4507 = vmatpush1.msra.mxu0 0.0
    %4508 = vmatprep.subr.mxu0 0.0
    %4509 = vmatpush1.msra.mxu0 0.0
    %4510 = vmatprep.subr.mxu0 0.0
    %4511 = vmatpush1.msra.mxu0 0.0
    %4512 = vmatprep.subr.mxu0 0.0
    %4513 = vmatpush1.msra.mxu0 0.0
    %4514 = vmatprep.subr.mxu0 0.0
    %4515 = vmatpush1.msra.mxu0 0.0
    %4516 = vmatprep.subr.mxu0 0.0
    %4517 = vmatpush1.msra.mxu0 0.0
    %4518 = vmatprep.subr.mxu0 0.0
    %4519 = vmatpush1.msra.mxu0 0.0
    %4520 = vmatprep.subr.mxu0 0.0
    %4521 = vmatpush1.msra.mxu0 0.0
    %4522 = vmatprep.subr.mxu0 0.0
    %4523 = vmatpush1.msra.mxu0 0.0
    %v4524 = vand.u32 %v4412, 4294901760
    %v4525 = vsub.f32 %v4412, %v4524
    %v4526 = vand.u32 %v4525, 4294901760
    %v4527 = vsub.f32 %v4525, %v4526
    %v4528 = vand.u32 %v4527, 4294901760
    %4529 = vmatprep.subr.mxu0 %v4528
    %v4530 = vand.u32 %v4411, 4294901760
    %v4531 = vsub.f32 %v4411, %v4530
    %v4532 = vand.u32 %v4531, 4294901760
    %v4533 = vsub.f32 %v4531, %v4532
    %v4534 = vand.u32 %v4533, 4294901760
    %4535 = vmatpush1.msra.mxu0 %v4534
    %4536 = vmatprep.subr.mxu0 0.0
    %4537 = vmatpush2.msra.mxu0 0.0
    %4538 = vmatprep.subr.mxu0 0.0
    %4539 = vmatpush2.msra.mxu0 0.0
    %4540 = vmatprep.subr.mxu0 0.0
    %4541 = vmatpush2.msra.mxu0 0.0
    %4542 = vmatprep.subr.mxu0 0.0
    %4543 = vmatpush2.msra.mxu0 0.0
    %4544 = vmatprep.subr.mxu0 0.0
    %4545 = vmatpush2.msra.mxu0 0.0
    %4546 = vmatprep.subr.mxu0 0.0
    %4547 = vmatpush2.msra.mxu0 0.0
    %4548 = vmatprep.subr.mxu0 0.0
    %4549 = vmatpush2.msra.mxu0 0.0
    %4550 = vmatprep.subr.mxu0 0.0
    %4551 = vmatpush2.msra.mxu0 0.0
    %4552 = vmatprep.subr.mxu0 0.0
    %4553 = vmatpush2.msra.mxu0 0.0
    %4554 = vmatprep.subr.mxu0 0.0
    %4555 = vmatpush2.msra.mxu0 0.0
    %4556 = vmatprep.subr.mxu0 0.0
    %4557 = vmatpush2.msra.mxu0 0.0
    %4558 = vmatprep.subr.mxu0 0.0
    %4559 = vmatpush2.msra.mxu0 0.0
    %4560 = vmatprep.subr.mxu0 0.0
    %4561 = vmatpush2.msra.mxu0 0.0
    %4562 = vmatprep.subr.mxu0 0.0
    %4563 = vmatpush2.msra.mxu0 0.0
    %4564 = vmatprep.subr.mxu0 0.0
    %4565 = vmatpush2.msra.mxu0 0.0
    %4566 = vmatprep.subr.mxu0 0.0
    %4567 = vmatpush2.msra.mxu0 0.0
    %4568 = vmatprep.mubr.f32.mxu0 0.0
    %v4569 = vand.u32 %v4414, 4294901760
    %4570 = vmatmul.mubr.f32.gmra.mxu0 %v4569
    %v4571 = vpop.f32.mrf.mxu0
    %v4572 = vadd.f32 %v4490, %v4571
    %v4573 = vpop.f32.mrf.mxu0
    %v4574 = vadd.f32 %v4492, %v4573
    %4575 = vdwg.mxu0
    %4576 = vmatprep.subr.mxu0 0.0
    %4577 = vmatpush1.msra.mxu0 0.0
    %4578 = vmatprep.subr.mxu0 0.0
    %4579 = vmatpush1.msra.mxu0 0.0
    %4580 = vmatprep.subr.mxu0 0.0
    %4581 = vmatpush1.msra.mxu0 0.0
    %4582 = vmatprep.subr.mxu0 0.0
    %4583 = vmatpush1.msra.mxu0 0.0
    %4584 = vmatprep.subr.mxu0 0.0
    %4585 = vmatpush1.msra.mxu0 0.0
    %4586 = vmatprep.subr.mxu0 0.0
    %4587 = vmatpush1.msra.mxu0 0.0
    %4588 = vmatprep.subr.mxu0 0.0
    %4589 = vmatpush1.msra.mxu0 0.0
    %4590 = vmatprep.subr.mxu0 0.0
    %4591 = vmatpush1.msra.mxu0 0.0
    %4592 = vmatprep.subr.mxu0 0.0
    %4593 = vmatpush1.msra.mxu0 0.0
    %4594 = vmatprep.subr.mxu0 0.0
    %4595 = vmatpush1.msra.mxu0 0.0
    %4596 = vmatprep.subr.mxu0 0.0
    %4597 = vmatpush1.msra.mxu0 0.0
    %4598 = vmatprep.subr.mxu0 0.0
    %4599 = vmatpush1.msra.mxu0 0.0
    %4600 = vmatprep.subr.mxu0 0.0
    %4601 = vmatpush1.msra.mxu0 0.0
    %4602 = vmatprep.subr.mxu0 0.0
    %4603 = vmatpush1.msra.mxu0 0.0
    %4604 = vmatprep.subr.mxu0 0.0
    %4605 = vmatpush1.msra.mxu0 0.0
    %v4606 = vand.u32 %v4412, 4294901760
    %v4607 = vsub.f32 %v4412, %v4606
    %4608 = vmatprep.subr.mxu0 %v4607
    %v4609 = vand.u32 %v4411, 4294901760
    %v4610 = vsub.f32 %v4411, %v4609
    %4611 = vmatpush1.msra.mxu0 %v4610
    %4612 = vmatprep.subr.mxu0 0.0
    %4613 = vmatpush2.msra.mxu0 0.0
    %4614 = vmatprep.subr.mxu0 0.0
    %4615 = vmatpush2.msra.mxu0 0.0
    %4616 = vmatprep.subr.mxu0 0.0
    %4617 = vmatpush2.msra.mxu0 0.0
    %4618 = vmatprep.subr.mxu0 0.0
    %4619 = vmatpush2.msra.mxu0 0.0
    %4620 = vmatprep.subr.mxu0 0.0
    %4621 = vmatpush2.msra.mxu0 0.0
    %4622 = vmatprep.subr.mxu0 0.0
    %4623 = vmatpush2.msra.mxu0 0.0
    %4624 = vmatprep.subr.mxu0 0.0
    %4625 = vmatpush2.msra.mxu0 0.0
    %4626 = vmatprep.subr.mxu0 0.0
    %4627 = vmatpush2.msra.mxu0 0.0
    %4628 = vmatprep.subr.mxu0 0.0
    %4629 = vmatpush2.msra.mxu0 0.0
    %4630 = vmatprep.subr.mxu0 0.0
    %4631 = vmatpush2.msra.mxu0 0.0
    %4632 = vmatprep.subr.mxu0 0.0
    %4633 = vmatpush2.msra.mxu0 0.0
    %4634 = vmatprep.subr.mxu0 0.0
    %4635 = vmatpush2.msra.mxu0 0.0
    %4636 = vmatprep.subr.mxu0 0.0
    %4637 = vmatpush2.msra.mxu0 0.0
    %4638 = vmatprep.subr.mxu0 0.0
    %4639 = vmatpush2.msra.mxu0 0.0
    %4640 = vmatprep.subr.mxu0 0.0
    %4641 = vmatpush2.msra.mxu0 0.0
    %4642 = vmatprep.subr.mxu0 0.0
    %4643 = vmatpush2.msra.mxu0 0.0
    %4644 = vmatprep.mubr.f32.mxu0 0.0
    %v4645 = vand.u32 %v4414, 4294901760
    %v4646 = vsub.f32 %v4414, %v4645
    %4647 = vmatmul.mubr.f32.gmra.mxu0 %v4646
    %v4648 = vpop.f32.mrf.mxu0
    %v4649 = vadd.f32 %v4572, %v4648
    %v4650 = vpop.f32.mrf.mxu0
    %v4651 = vadd.f32 %v4574, %v4650
    %4652 = vdwg.mxu0
    %4653 = vmatprep.subr.mxu0 0.0
    %4654 = vmatpush1.msra.mxu0 0.0
    %4655 = vmatprep.subr.mxu0 0.0
    %4656 = vmatpush1.msra.mxu0 0.0
    %4657 = vmatprep.subr.mxu0 0.0
    %4658 = vmatpush1.msra.mxu0 0.0
    %4659 = vmatprep.subr.mxu0 0.0
    %4660 = vmatpush1.msra.mxu0 0.0
    %4661 = vmatprep.subr.mxu0 0.0
    %4662 = vmatpush1.msra.mxu0 0.0
    %4663 = vmatprep.subr.mxu0 0.0
    %4664 = vmatpush1.msra.mxu0 0.0
    %4665 = vmatprep.subr.mxu0 0.0
    %4666 = vmatpush1.msra.mxu0 0.0
    %4667 = vmatprep.subr.mxu0 0.0
    %4668 = vmatpush1.msra.mxu0 0.0
    %4669 = vmatprep.subr.mxu0 0.0
    %4670 = vmatpush1.msra.mxu0 0.0
    %4671 = vmatprep.subr.mxu0 0.0
    %4672 = vmatpush1.msra.mxu0 0.0
    %4673 = vmatprep.subr.mxu0 0.0
    %4674 = vmatpush1.msra.mxu0 0.0
    %4675 = vmatprep.subr.mxu0 0.0
    %4676 = vmatpush1.msra.mxu0 0.0
    %4677 = vmatprep.subr.mxu0 0.0
    %4678 = vmatpush1.msra.mxu0 0.0
    %4679 = vmatprep.subr.mxu0 0.0
    %4680 = vmatpush1.msra.mxu0 0.0
    %4681 = vmatprep.subr.mxu0 0.0
    %4682 = vmatpush1.msra.mxu0 0.0
    %v4683 = vand.u32 %v4412, 4294901760
    %4684 = vmatprep.subr.mxu0 %v4683
    %v4685 = vand.u32 %v4411, 4294901760
    %4686 = vmatpush1.msra.mxu0 %v4685
    %4687 = vmatprep.subr.mxu0 0.0
    %4688 = vmatpush2.msra.mxu0 0.0
    %4689 = vmatprep.subr.mxu0 0.0
    %4690 = vmatpush2.msra.mxu0 0.0
    %4691 = vmatprep.subr.mxu0 0.0
    %4692 = vmatpush2.msra.mxu0 0.0
    %4693 = vmatprep.subr.mxu0 0.0
    %4694 = vmatpush2.msra.mxu0 0.0
    %4695 = vmatprep.subr.mxu0 0.0
    %4696 = vmatpush2.msra.mxu0 0.0
    %4697 = vmatprep.subr.mxu0 0.0
    %4698 = vmatpush2.msra.mxu0 0.0
    %4699 = vmatprep.subr.mxu0 0.0
    %4700 = vmatpush2.msra.mxu0 0.0
    %4701 = vmatprep.subr.mxu0 0.0
    %4702 = vmatpush2.msra.mxu0 0.0
    %4703 = vmatprep.subr.mxu0 0.0
    %4704 = vmatpush2.msra.mxu0 0.0
    %4705 = vmatprep.subr.mxu0 0.0
    %4706 = vmatpush2.msra.mxu0 0.0
    %4707 = vmatprep.subr.mxu0 0.0
    %4708 = vmatpush2.msra.mxu0 0.0
    %4709 = vmatprep.subr.mxu0 0.0
    %4710 = vmatpush2.msra.mxu0 0.0
    %4711 = vmatprep.subr.mxu0 0.0
    %4712 = vmatpush2.msra.mxu0 0.0
    %4713 = vmatprep.subr.mxu0 0.0
    %4714 = vmatpush2.msra.mxu0 0.0
    %4715 = vmatprep.subr.mxu0 0.0
    %4716 = vmatpush2.msra.mxu0 0.0
    %4717 = vmatprep.subr.mxu0 0.0
    %4718 = vmatpush2.msra.mxu0 0.0
    %4719 = vmatprep.mubr.f32.mxu0 0.0
    %v4720 = vand.u32 %v4414, 4294901760
    %v4721 = vsub.f32 %v4414, %v4720
    %v4722 = vand.u32 %v4721, 4294901760
    %4723 = vmatmul.mubr.f32.gmra.mxu0 %v4722
    %v4724 = vpop.f32.mrf.mxu0
    %v4725 = vadd.f32 %v4649, %v4724
    %v4726 = vpop.f32.mrf.mxu0
    %v4727 = vadd.f32 %v4651, %v4726
    %4728 = vdwg.mxu0
    %4729 = vmatprep.subr.mxu0 0.0
    %4730 = vmatpush1.msra.mxu0 0.0
    %4731 = vmatprep.subr.mxu0 0.0
    %4732 = vmatpush1.msra.mxu0 0.0
    %4733 = vmatprep.subr.mxu0 0.0
    %4734 = vmatpush1.msra.mxu0 0.0
    %4735 = vmatprep.subr.mxu0 0.0
    %4736 = vmatpush1.msra.mxu0 0.0
    %4737 = vmatprep.subr.mxu0 0.0
    %4738 = vmatpush1.msra.mxu0 0.0
    %4739 = vmatprep.subr.mxu0 0.0
    %4740 = vmatpush1.msra.mxu0 0.0
    %4741 = vmatprep.subr.mxu0 0.0
    %4742 = vmatpush1.msra.mxu0 0.0
    %4743 = vmatprep.subr.mxu0 0.0
    %4744 = vmatpush1.msra.mxu0 0.0
    %4745 = vmatprep.subr.mxu0 0.0
    %4746 = vmatpush1.msra.mxu0 0.0
    %4747 = vmatprep.subr.mxu0 0.0
    %4748 = vmatpush1.msra.mxu0 0.0
    %4749 = vmatprep.subr.mxu0 0.0
    %4750 = vmatpush1.msra.mxu0 0.0
    %4751 = vmatprep.subr.mxu0 0.0
    %4752 = vmatpush1.msra.mxu0 0.0
    %4753 = vmatprep.subr.mxu0 0.0
    %4754 = vmatpush1.msra.mxu0 0.0
    %4755 = vmatprep.subr.mxu0 0.0
    %4756 = vmatpush1.msra.mxu0 0.0
    %4757 = vmatprep.subr.mxu0 0.0
    %4758 = vmatpush1.msra.mxu0 0.0
    %v4759 = vand.u32 %v4412, 4294901760
    %v4760 = vsub.f32 %v4412, %v4759
    %v4761 = vand.u32 %v4760, 4294901760
    %4762 = vmatprep.subr.mxu0 %v4761
    %v4763 = vand.u32 %v4411, 4294901760
    %v4764 = vsub.f32 %v4411, %v4763
    %v4765 = vand.u32 %v4764, 4294901760
    %4766 = vmatpush1.msra.mxu0 %v4765
    %4767 = vmatprep.subr.mxu0 0.0
    %4768 = vmatpush2.msra.mxu0 0.0
    %4769 = vmatprep.subr.mxu0 0.0
    %4770 = vmatpush2.msra.mxu0 0.0
    %4771 = vmatprep.subr.mxu0 0.0
    %4772 = vmatpush2.msra.mxu0 0.0
    %4773 = vmatprep.subr.mxu0 0.0
    %4774 = vmatpush2.msra.mxu0 0.0
    %4775 = vmatprep.subr.mxu0 0.0
    %4776 = vmatpush2.msra.mxu0 0.0
    %4777 = vmatprep.subr.mxu0 0.0
    %4778 = vmatpush2.msra.mxu0 0.0
    %4779 = vmatprep.subr.mxu0 0.0
    %4780 = vmatpush2.msra.mxu0 0.0
    %4781 = vmatprep.subr.mxu0 0.0
    %4782 = vmatpush2.msra.mxu0 0.0
    %4783 = vmatprep.subr.mxu0 0.0
    %4784 = vmatpush2.msra.mxu0 0.0
    %4785 = vmatprep.subr.mxu0 0.0
    %4786 = vmatpush2.msra.mxu0 0.0
    %4787 = vmatprep.subr.mxu0 0.0
    %4788 = vmatpush2.msra.mxu0 0.0
    %4789 = vmatprep.subr.mxu0 0.0
    %4790 = vmatpush2.msra.mxu0 0.0
    %4791 = vmatprep.subr.mxu0 0.0
    %4792 = vmatpush2.msra.mxu0 0.0
    %4793 = vmatprep.subr.mxu0 0.0
    %4794 = vmatpush2.msra.mxu0 0.0
    %4795 = vmatprep.subr.mxu0 0.0
    %4796 = vmatpush2.msra.mxu0 0.0
    %4797 = vmatprep.subr.mxu0 0.0
    %4798 = vmatpush2.msra.mxu0 0.0
    %4799 = vmatprep.mubr.f32.mxu0 0.0
    %v4800 = vand.u32 %v4414, 4294901760
    %4801 = vmatmul.mubr.f32.gmra.mxu0 %v4800
    %v4802 = vpop.f32.mrf.mxu0
    %v4803 = vadd.f32 %v4725, %v4802
    %v4804 = vpop.f32.mrf.mxu0
    %v4805 = vadd.f32 %v4727, %v4804
    %4806 = vdwg.mxu0
    %4807 = vmatprep.subr.mxu0 0.0
    %4808 = vmatpush1.msra.mxu0 0.0
    %4809 = vmatprep.subr.mxu0 0.0
    %4810 = vmatpush1.msra.mxu0 0.0
    %4811 = vmatprep.subr.mxu0 0.0
    %4812 = vmatpush1.msra.mxu0 0.0
    %4813 = vmatprep.subr.mxu0 0.0
    %4814 = vmatpush1.msra.mxu0 0.0
    %4815 = vmatprep.subr.mxu0 0.0
    %4816 = vmatpush1.msra.mxu0 0.0
    %4817 = vmatprep.subr.mxu0 0.0
    %4818 = vmatpush1.msra.mxu0 0.0
    %4819 = vmatprep.subr.mxu0 0.0
    %4820 = vmatpush1.msra.mxu0 0.0
    %4821 = vmatprep.subr.mxu0 0.0
    %4822 = vmatpush1.msra.mxu0 0.0
    %4823 = vmatprep.subr.mxu0 0.0
    %4824 = vmatpush1.msra.mxu0 0.0
    %4825 = vmatprep.subr.mxu0 0.0
    %4826 = vmatpush1.msra.mxu0 0.0
    %4827 = vmatprep.subr.mxu0 0.0
    %4828 = vmatpush1.msra.mxu0 0.0
    %4829 = vmatprep.subr.mxu0 0.0
    %4830 = vmatpush1.msra.mxu0 0.0
    %4831 = vmatprep.subr.mxu0 0.0
    %4832 = vmatpush1.msra.mxu0 0.0
    %4833 = vmatprep.subr.mxu0 0.0
    %4834 = vmatpush1.msra.mxu0 0.0
    %4835 = vmatprep.subr.mxu0 0.0
    %4836 = vmatpush1.msra.mxu0 0.0
    %v4837 = vand.u32 %v4412, 4294901760
    %4838 = vmatprep.subr.mxu0 %v4837
    %v4839 = vand.u32 %v4411, 4294901760
    %4840 = vmatpush1.msra.mxu0 %v4839
    %4841 = vmatprep.subr.mxu0 0.0
    %4842 = vmatpush2.msra.mxu0 0.0
    %4843 = vmatprep.subr.mxu0 0.0
    %4844 = vmatpush2.msra.mxu0 0.0
    %4845 = vmatprep.subr.mxu0 0.0
    %4846 = vmatpush2.msra.mxu0 0.0
    %4847 = vmatprep.subr.mxu0 0.0
    %4848 = vmatpush2.msra.mxu0 0.0
    %4849 = vmatprep.subr.mxu0 0.0
    %4850 = vmatpush2.msra.mxu0 0.0
    %4851 = vmatprep.subr.mxu0 0.0
    %4852 = vmatpush2.msra.mxu0 0.0
    %4853 = vmatprep.subr.mxu0 0.0
    %4854 = vmatpush2.msra.mxu0 0.0
    %4855 = vmatprep.subr.mxu0 0.0
    %4856 = vmatpush2.msra.mxu0 0.0
    %4857 = vmatprep.subr.mxu0 0.0
    %4858 = vmatpush2.msra.mxu0 0.0
    %4859 = vmatprep.subr.mxu0 0.0
    %4860 = vmatpush2.msra.mxu0 0.0
    %4861 = vmatprep.subr.mxu0 0.0
    %4862 = vmatpush2.msra.mxu0 0.0
    %4863 = vmatprep.subr.mxu0 0.0
    %4864 = vmatpush2.msra.mxu0 0.0
    %4865 = vmatprep.subr.mxu0 0.0
    %4866 = vmatpush2.msra.mxu0 0.0
    %4867 = vmatprep.subr.mxu0 0.0
    %4868 = vmatpush2.msra.mxu0 0.0
    %4869 = vmatprep.subr.mxu0 0.0
    %4870 = vmatpush2.msra.mxu0 0.0
    %4871 = vmatprep.subr.mxu0 0.0
    %4872 = vmatpush2.msra.mxu0 0.0
    %4873 = vmatprep.mubr.f32.mxu0 0.0
    %v4874 = vand.u32 %v4414, 4294901760
    %4875 = vmatmul.mubr.f32.gmra.mxu0 %v4874
    %v4876 = vpop.f32.mrf.mxu0
    %v4877 = vadd.f32 %v4803, %v4876
    %v4878 = vpop.f32.mrf.mxu0
    %v4879 = vadd.f32 %v4805, %v4878
    %4880 = vdwg.mxu0
    %v4882 = vsel %vm115, %v33, 0
    %4884 = vmatprep.subr.mxu0 0.0
    %4885 = vmatpush1.msra.mxu0 0.0
    %4886 = vmatprep.subr.mxu0 0.0
    %4887 = vmatpush1.msra.mxu0 0.0
    %4888 = vmatprep.subr.mxu0 0.0
    %4889 = vmatpush1.msra.mxu0 0.0
    %4890 = vmatprep.subr.mxu0 0.0
    %4891 = vmatpush1.msra.mxu0 0.0
    %4892 = vmatprep.subr.mxu0 0.0
    %4893 = vmatpush1.msra.mxu0 0.0
    %4894 = vmatprep.subr.mxu0 0.0
    %4895 = vmatpush1.msra.mxu0 0.0
    %4896 = vmatprep.subr.mxu0 0.0
    %4897 = vmatpush1.msra.mxu0 0.0
    %4898 = vmatprep.subr.mxu0 0.0
    %4899 = vmatpush1.msra.mxu0 0.0
    %4900 = vmatprep.subr.mxu0 0.0
    %4901 = vmatpush1.msra.mxu0 0.0
    %4902 = vmatprep.subr.mxu0 0.0
    %4903 = vmatpush1.msra.mxu0 0.0
    %4904 = vmatprep.subr.mxu0 0.0
    %4905 = vmatpush1.msra.mxu0 0.0
    %4906 = vmatprep.subr.mxu0 0.0
    %4907 = vmatpush1.msra.mxu0 0.0
    %4908 = vmatprep.subr.mxu0 0.0
    %4909 = vmatpush1.msra.mxu0 0.0
    %4910 = vmatprep.subr.mxu0 0.0
    %4911 = vmatpush1.msra.mxu0 0.0
    %4912 = vmatprep.subr.mxu0 0.0
    %4913 = vmatpush1.msra.mxu0 0.0
    %v4914 = vand.u32 %v4404, 4294901760
    %4915 = vmatprep.subr.mxu0 %v4914
    %v4916 = vand.u32 %v4403, 4294901760
    %4917 = vmatpush1.msra.mxu0 %v4916
    %4918 = vmatprep.subr.mxu0 0.0
    %4919 = vmatpush2.msra.mxu0 0.0
    %4920 = vmatprep.subr.mxu0 0.0
    %4921 = vmatpush2.msra.mxu0 0.0
    %4922 = vmatprep.subr.mxu0 0.0
    %4923 = vmatpush2.msra.mxu0 0.0
    %4924 = vmatprep.subr.mxu0 0.0
    %4925 = vmatpush2.msra.mxu0 0.0
    %4926 = vmatprep.subr.mxu0 0.0
    %4927 = vmatpush2.msra.mxu0 0.0
    %4928 = vmatprep.subr.mxu0 0.0
    %4929 = vmatpush2.msra.mxu0 0.0
    %4930 = vmatprep.subr.mxu0 0.0
    %4931 = vmatpush2.msra.mxu0 0.0
    %4932 = vmatprep.subr.mxu0 0.0
    %4933 = vmatpush2.msra.mxu0 0.0
    %4934 = vmatprep.subr.mxu0 0.0
    %4935 = vmatpush2.msra.mxu0 0.0
    %4936 = vmatprep.subr.mxu0 0.0
    %4937 = vmatpush2.msra.mxu0 0.0
    %4938 = vmatprep.subr.mxu0 0.0
    %4939 = vmatpush2.msra.mxu0 0.0
    %4940 = vmatprep.subr.mxu0 0.0
    %4941 = vmatpush2.msra.mxu0 0.0
    %4942 = vmatprep.subr.mxu0 0.0
    %4943 = vmatpush2.msra.mxu0 0.0
    %4944 = vmatprep.subr.mxu0 0.0
    %4945 = vmatpush2.msra.mxu0 0.0
    %4946 = vmatprep.subr.mxu0 0.0
    %4947 = vmatpush2.msra.mxu0 0.0
    %4948 = vmatprep.subr.mxu0 0.0
    %4949 = vmatpush2.msra.mxu0 0.0
    %4950 = vmatprep.mubr.f32.mxu0 0.0
    %v4951 = vand.u32 %v4882, 4294901760
    %v4952 = vsub.f32 %v4882, %v4951
    %v4953 = vand.u32 %v4952, 4294901760
    %v4954 = vsub.f32 %v4952, %v4953
    %v4955 = vand.u32 %v4954, 4294901760
    %4956 = vmatmul.mubr.f32.gmra.mxu0 %v4955
    %v4957 = vpop.f32.mrf.mxu0
    %v4958 = vadd.f32 %v4877, %v4957
    %v4959 = vpop.f32.mrf.mxu0
    %v4960 = vadd.f32 %v4879, %v4959
    %4961 = vdwg.mxu0
    %4962 = vmatprep.subr.mxu0 0.0
    %4963 = vmatpush1.msra.mxu0 0.0
    %4964 = vmatprep.subr.mxu0 0.0
    %4965 = vmatpush1.msra.mxu0 0.0
    %4966 = vmatprep.subr.mxu0 0.0
    %4967 = vmatpush1.msra.mxu0 0.0
    %4968 = vmatprep.subr.mxu0 0.0
    %4969 = vmatpush1.msra.mxu0 0.0
    %4970 = vmatprep.subr.mxu0 0.0
    %4971 = vmatpush1.msra.mxu0 0.0
    %4972 = vmatprep.subr.mxu0 0.0
    %4973 = vmatpush1.msra.mxu0 0.0
    %4974 = vmatprep.subr.mxu0 0.0
    %4975 = vmatpush1.msra.mxu0 0.0
    %4976 = vmatprep.subr.mxu0 0.0
    %4977 = vmatpush1.msra.mxu0 0.0
    %4978 = vmatprep.subr.mxu0 0.0
    %4979 = vmatpush1.msra.mxu0 0.0
    %4980 = vmatprep.subr.mxu0 0.0
    %4981 = vmatpush1.msra.mxu0 0.0
    %4982 = vmatprep.subr.mxu0 0.0
    %4983 = vmatpush1.msra.mxu0 0.0
    %4984 = vmatprep.subr.mxu0 0.0
    %4985 = vmatpush1.msra.mxu0 0.0
    %4986 = vmatprep.subr.mxu0 0.0
    %4987 = vmatpush1.msra.mxu0 0.0
    %4988 = vmatprep.subr.mxu0 0.0
    %4989 = vmatpush1.msra.mxu0 0.0
    %4990 = vmatprep.subr.mxu0 0.0
    %4991 = vmatpush1.msra.mxu0 0.0
    %v4992 = vand.u32 %v4404, 4294901760
    %v4993 = vsub.f32 %v4404, %v4992
    %v4994 = vand.u32 %v4993, 4294901760
    %v4995 = vsub.f32 %v4993, %v4994
    %v4996 = vand.u32 %v4995, 4294901760
    %4997 = vmatprep.subr.mxu0 %v4996
    %v4998 = vand.u32 %v4403, 4294901760
    %v4999 = vsub.f32 %v4403, %v4998
    %v5000 = vand.u32 %v4999, 4294901760
    %v5001 = vsub.f32 %v4999, %v5000
    %v5002 = vand.u32 %v5001, 4294901760
    %5003 = vmatpush1.msra.mxu0 %v5002
    %5004 = vmatprep.subr.mxu0 0.0
    %5005 = vmatpush2.msra.mxu0 0.0
    %5006 = vmatprep.subr.mxu0 0.0
    %5007 = vmatpush2.msra.mxu0 0.0
    %5008 = vmatprep.subr.mxu0 0.0
    %5009 = vmatpush2.msra.mxu0 0.0
    %5010 = vmatprep.subr.mxu0 0.0
    %5011 = vmatpush2.msra.mxu0 0.0
    %5012 = vmatprep.subr.mxu0 0.0
    %5013 = vmatpush2.msra.mxu0 0.0
    %5014 = vmatprep.subr.mxu0 0.0
    %5015 = vmatpush2.msra.mxu0 0.0
    %5016 = vmatprep.subr.mxu0 0.0
    %5017 = vmatpush2.msra.mxu0 0.0
    %5018 = vmatprep.subr.mxu0 0.0
    %5019 = vmatpush2.msra.mxu0 0.0
    %5020 = vmatprep.subr.mxu0 0.0
    %5021 = vmatpush2.msra.mxu0 0.0
    %5022 = vmatprep.subr.mxu0 0.0
    %5023 = vmatpush2.msra.mxu0 0.0
    %5024 = vmatprep.subr.mxu0 0.0
    %5025 = vmatpush2.msra.mxu0 0.0
    %5026 = vmatprep.subr.mxu0 0.0
    %5027 = vmatpush2.msra.mxu0 0.0
    %5028 = vmatprep.subr.mxu0 0.0
    %5029 = vmatpush2.msra.mxu0 0.0
    %5030 = vmatprep.subr.mxu0 0.0
    %5031 = vmatpush2.msra.mxu0 0.0
    %5032 = vmatprep.subr.mxu0 0.0
    %5033 = vmatpush2.msra.mxu0 0.0
    %5034 = vmatprep.subr.mxu0 0.0
    %5035 = vmatpush2.msra.mxu0 0.0
    %5036 = vmatprep.mubr.f32.mxu0 0.0
    %v5037 = vand.u32 %v4882, 4294901760
    %5038 = vmatmul.mubr.f32.gmra.mxu0 %v5037
    %v5039 = vpop.f32.mrf.mxu0
    %v5040 = vadd.f32 %v4958, %v5039
    %v5041 = vpop.f32.mrf.mxu0
    %v5042 = vadd.f32 %v4960, %v5041
    %5043 = vdwg.mxu0
    %5044 = vmatprep.subr.mxu0 0.0
    %5045 = vmatpush1.msra.mxu0 0.0
    %5046 = vmatprep.subr.mxu0 0.0
    %5047 = vmatpush1.msra.mxu0 0.0
    %5048 = vmatprep.subr.mxu0 0.0
    %5049 = vmatpush1.msra.mxu0 0.0
    %5050 = vmatprep.subr.mxu0 0.0
    %5051 = vmatpush1.msra.mxu0 0.0
    %5052 = vmatprep.subr.mxu0 0.0
    %5053 = vmatpush1.msra.mxu0 0.0
    %5054 = vmatprep.subr.mxu0 0.0
    %5055 = vmatpush1.msra.mxu0 0.0
    %5056 = vmatprep.subr.mxu0 0.0
    %5057 = vmatpush1.msra.mxu0 0.0
    %5058 = vmatprep.subr.mxu0 0.0
    %5059 = vmatpush1.msra.mxu0 0.0
    %5060 = vmatprep.subr.mxu0 0.0
    %5061 = vmatpush1.msra.mxu0 0.0
    %5062 = vmatprep.subr.mxu0 0.0
    %5063 = vmatpush1.msra.mxu0 0.0
    %5064 = vmatprep.subr.mxu0 0.0
    %5065 = vmatpush1.msra.mxu0 0.0
    %5066 = vmatprep.subr.mxu0 0.0
    %5067 = vmatpush1.msra.mxu0 0.0
    %5068 = vmatprep.subr.mxu0 0.0
    %5069 = vmatpush1.msra.mxu0 0.0
    %5070 = vmatprep.subr.mxu0 0.0
    %5071 = vmatpush1.msra.mxu0 0.0
    %5072 = vmatprep.subr.mxu0 0.0
    %5073 = vmatpush1.msra.mxu0 0.0
    %v5074 = vand.u32 %v4404, 4294901760
    %v5075 = vsub.f32 %v4404, %v5074
    %5076 = vmatprep.subr.mxu0 %v5075
    %v5077 = vand.u32 %v4403, 4294901760
    %v5078 = vsub.f32 %v4403, %v5077
    %5079 = vmatpush1.msra.mxu0 %v5078
    %5080 = vmatprep.subr.mxu0 0.0
    %5081 = vmatpush2.msra.mxu0 0.0
    %5082 = vmatprep.subr.mxu0 0.0
    %5083 = vmatpush2.msra.mxu0 0.0
    %5084 = vmatprep.subr.mxu0 0.0
    %5085 = vmatpush2.msra.mxu0 0.0
    %5086 = vmatprep.subr.mxu0 0.0
    %5087 = vmatpush2.msra.mxu0 0.0
    %5088 = vmatprep.subr.mxu0 0.0
    %5089 = vmatpush2.msra.mxu0 0.0
    %5090 = vmatprep.subr.mxu0 0.0
    %5091 = vmatpush2.msra.mxu0 0.0
    %5092 = vmatprep.subr.mxu0 0.0
    %5093 = vmatpush2.msra.mxu0 0.0
    %5094 = vmatprep.subr.mxu0 0.0
    %5095 = vmatpush2.msra.mxu0 0.0
    %5096 = vmatprep.subr.mxu0 0.0
    %5097 = vmatpush2.msra.mxu0 0.0
    %5098 = vmatprep.subr.mxu0 0.0
    %5099 = vmatpush2.msra.mxu0 0.0
    %5100 = vmatprep.subr.mxu0 0.0
    %5101 = vmatpush2.msra.mxu0 0.0
    %5102 = vmatprep.subr.mxu0 0.0
    %5103 = vmatpush2.msra.mxu0 0.0
    %5104 = vmatprep.subr.mxu0 0.0
    %5105 = vmatpush2.msra.mxu0 0.0
    %5106 = vmatprep.subr.mxu0 0.0
    %5107 = vmatpush2.msra.mxu0 0.0
    %5108 = vmatprep.subr.mxu0 0.0
    %5109 = vmatpush2.msra.mxu0 0.0
    %5110 = vmatprep.subr.mxu0 0.0
    %5111 = vmatpush2.msra.mxu0 0.0
    %5112 = vmatprep.mubr.f32.mxu0 0.0
    %v5113 = vand.u32 %v4882, 4294901760
    %v5114 = vsub.f32 %v4882, %v5113
    %5115 = vmatmul.mubr.f32.gmra.mxu0 %v5114
    %v5116 = vpop.f32.mrf.mxu0
    %v5117 = vadd.f32 %v5040, %v5116
    %v5118 = vpop.f32.mrf.mxu0
    %v5119 = vadd.f32 %v5042, %v5118
    %5120 = vdwg.mxu0
    %5121 = vmatprep.subr.mxu0 0.0
    %5122 = vmatpush1.msra.mxu0 0.0
    %5123 = vmatprep.subr.mxu0 0.0
    %5124 = vmatpush1.msra.mxu0 0.0
    %5125 = vmatprep.subr.mxu0 0.0
    %5126 = vmatpush1.msra.mxu0 0.0
    %5127 = vmatprep.subr.mxu0 0.0
    %5128 = vmatpush1.msra.mxu0 0.0
    %5129 = vmatprep.subr.mxu0 0.0
    %5130 = vmatpush1.msra.mxu0 0.0
    %5131 = vmatprep.subr.mxu0 0.0
    %5132 = vmatpush1.msra.mxu0 0.0
    %5133 = vmatprep.subr.mxu0 0.0
    %5134 = vmatpush1.msra.mxu0 0.0
    %5135 = vmatprep.subr.mxu0 0.0
    %5136 = vmatpush1.msra.mxu0 0.0
    %5137 = vmatprep.subr.mxu0 0.0
    %5138 = vmatpush1.msra.mxu0 0.0
    %5139 = vmatprep.subr.mxu0 0.0
    %5140 = vmatpush1.msra.mxu0 0.0
    %5141 = vmatprep.subr.mxu0 0.0
    %5142 = vmatpush1.msra.mxu0 0.0
    %5143 = vmatprep.subr.mxu0 0.0
    %5144 = vmatpush1.msra.mxu0 0.0
    %5145 = vmatprep.subr.mxu0 0.0
    %5146 = vmatpush1.msra.mxu0 0.0
    %5147 = vmatprep.subr.mxu0 0.0
    %5148 = vmatpush1.msra.mxu0 0.0
    %5149 = vmatprep.subr.mxu0 0.0
    %5150 = vmatpush1.msra.mxu0 0.0
    %v5151 = vand.u32 %v4404, 4294901760
    %5152 = vmatprep.subr.mxu0 %v5151
    %v5153 = vand.u32 %v4403, 4294901760
    %5154 = vmatpush1.msra.mxu0 %v5153
    %5155 = vmatprep.subr.mxu0 0.0
    %5156 = vmatpush2.msra.mxu0 0.0
    %5157 = vmatprep.subr.mxu0 0.0
    %5158 = vmatpush2.msra.mxu0 0.0
    %5159 = vmatprep.subr.mxu0 0.0
    %5160 = vmatpush2.msra.mxu0 0.0
    %5161 = vmatprep.subr.mxu0 0.0
    %5162 = vmatpush2.msra.mxu0 0.0
    %5163 = vmatprep.subr.mxu0 0.0
    %5164 = vmatpush2.msra.mxu0 0.0
    %5165 = vmatprep.subr.mxu0 0.0
    %5166 = vmatpush2.msra.mxu0 0.0
    %5167 = vmatprep.subr.mxu0 0.0
    %5168 = vmatpush2.msra.mxu0 0.0
    %5169 = vmatprep.subr.mxu0 0.0
    %5170 = vmatpush2.msra.mxu0 0.0
    %5171 = vmatprep.subr.mxu0 0.0
    %5172 = vmatpush2.msra.mxu0 0.0
    %5173 = vmatprep.subr.mxu0 0.0
    %5174 = vmatpush2.msra.mxu0 0.0
    %5175 = vmatprep.subr.mxu0 0.0
    %5176 = vmatpush2.msra.mxu0 0.0
    %5177 = vmatprep.subr.mxu0 0.0
    %5178 = vmatpush2.msra.mxu0 0.0
    %5179 = vmatprep.subr.mxu0 0.0
    %5180 = vmatpush2.msra.mxu0 0.0
    %5181 = vmatprep.subr.mxu0 0.0
    %5182 = vmatpush2.msra.mxu0 0.0
    %5183 = vmatprep.subr.mxu0 0.0
    %5184 = vmatpush2.msra.mxu0 0.0
    %5185 = vmatprep.subr.mxu0 0.0
    %5186 = vmatpush2.msra.mxu0 0.0
    %5187 = vmatprep.mubr.f32.mxu0 0.0
    %v5188 = vand.u32 %v4882, 4294901760
    %v5189 = vsub.f32 %v4882, %v5188
    %v5190 = vand.u32 %v5189, 4294901760
    %5191 = vmatmul.mubr.f32.gmra.mxu0 %v5190
    %v5192 = vpop.f32.mrf.mxu0
    %v5193 = vadd.f32 %v5117, %v5192
    %v5194 = vpop.f32.mrf.mxu0
    %v5195 = vadd.f32 %v5119, %v5194
    %5196 = vdwg.mxu0
    %5197 = vmatprep.subr.mxu0 0.0
    %5198 = vmatpush1.msra.mxu0 0.0
    %5199 = vmatprep.subr.mxu0 0.0
    %5200 = vmatpush1.msra.mxu0 0.0
    %5201 = vmatprep.subr.mxu0 0.0
    %5202 = vmatpush1.msra.mxu0 0.0
    %5203 = vmatprep.subr.mxu0 0.0
    %5204 = vmatpush1.msra.mxu0 0.0
    %5205 = vmatprep.subr.mxu0 0.0
    %5206 = vmatpush1.msra.mxu0 0.0
    %5207 = vmatprep.subr.mxu0 0.0
    %5208 = vmatpush1.msra.mxu0 0.0
    %5209 = vmatprep.subr.mxu0 0.0
    %5210 = vmatpush1.msra.mxu0 0.0
    %5211 = vmatprep.subr.mxu0 0.0
    %5212 = vmatpush1.msra.mxu0 0.0
    %5213 = vmatprep.subr.mxu0 0.0
    %5214 = vmatpush1.msra.mxu0 0.0
    %5215 = vmatprep.subr.mxu0 0.0
    %5216 = vmatpush1.msra.mxu0 0.0
    %5217 = vmatprep.subr.mxu0 0.0
    %5218 = vmatpush1.msra.mxu0 0.0
    %5219 = vmatprep.subr.mxu0 0.0
    %5220 = vmatpush1.msra.mxu0 0.0
    %5221 = vmatprep.subr.mxu0 0.0
    %5222 = vmatpush1.msra.mxu0 0.0
    %5223 = vmatprep.subr.mxu0 0.0
    %5224 = vmatpush1.msra.mxu0 0.0
    %5225 = vmatprep.subr.mxu0 0.0
    %5226 = vmatpush1.msra.mxu0 0.0
    %v5227 = vand.u32 %v4404, 4294901760
    %v5228 = vsub.f32 %v4404, %v5227
    %v5229 = vand.u32 %v5228, 4294901760
    %5230 = vmatprep.subr.mxu0 %v5229
    %v5231 = vand.u32 %v4403, 4294901760
    %v5232 = vsub.f32 %v4403, %v5231
    %v5233 = vand.u32 %v5232, 4294901760
    %5234 = vmatpush1.msra.mxu0 %v5233
    %5235 = vmatprep.subr.mxu0 0.0
    %5236 = vmatpush2.msra.mxu0 0.0
    %5237 = vmatprep.subr.mxu0 0.0
    %5238 = vmatpush2.msra.mxu0 0.0
    %5239 = vmatprep.subr.mxu0 0.0
    %5240 = vmatpush2.msra.mxu0 0.0
    %5241 = vmatprep.subr.mxu0 0.0
    %5242 = vmatpush2.msra.mxu0 0.0
    %5243 = vmatprep.subr.mxu0 0.0
    %5244 = vmatpush2.msra.mxu0 0.0
    %5245 = vmatprep.subr.mxu0 0.0
    %5246 = vmatpush2.msra.mxu0 0.0
    %5247 = vmatprep.subr.mxu0 0.0
    %5248 = vmatpush2.msra.mxu0 0.0
    %5249 = vmatprep.subr.mxu0 0.0
    %5250 = vmatpush2.msra.mxu0 0.0
    %5251 = vmatprep.subr.mxu0 0.0
    %5252 = vmatpush2.msra.mxu0 0.0
    %5253 = vmatprep.subr.mxu0 0.0
    %5254 = vmatpush2.msra.mxu0 0.0
    %5255 = vmatprep.subr.mxu0 0.0
    %5256 = vmatpush2.msra.mxu0 0.0
    %5257 = vmatprep.subr.mxu0 0.0
    %5258 = vmatpush2.msra.mxu0 0.0
    %5259 = vmatprep.subr.mxu0 0.0
    %5260 = vmatpush2.msra.mxu0 0.0
    %5261 = vmatprep.subr.mxu0 0.0
    %5262 = vmatpush2.msra.mxu0 0.0
    %5263 = vmatprep.subr.mxu0 0.0
    %5264 = vmatpush2.msra.mxu0 0.0
    %5265 = vmatprep.subr.mxu0 0.0
    %5266 = vmatpush2.msra.mxu0 0.0
    %5267 = vmatprep.mubr.f32.mxu0 0.0
    %v5268 = vand.u32 %v4882, 4294901760
    %5269 = vmatmul.mubr.f32.gmra.mxu0 %v5268
    %v5270 = vpop.f32.mrf.mxu0
    %v5271 = vadd.f32 %v5193, %v5270
    %v5272 = vpop.f32.mrf.mxu0
    %v5273 = vadd.f32 %v5195, %v5272
    %5274 = vdwg.mxu0
    %5275 = vmatprep.subr.mxu0 0.0
    %5276 = vmatpush1.msra.mxu0 0.0
    %5277 = vmatprep.subr.mxu0 0.0
    %5278 = vmatpush1.msra.mxu0 0.0
    %5279 = vmatprep.subr.mxu0 0.0
    %5280 = vmatpush1.msra.mxu0 0.0
    %5281 = vmatprep.subr.mxu0 0.0
    %5282 = vmatpush1.msra.mxu0 0.0
    %5283 = vmatprep.subr.mxu0 0.0
    %5284 = vmatpush1.msra.mxu0 0.0
    %5285 = vmatprep.subr.mxu0 0.0
    %5286 = vmatpush1.msra.mxu0 0.0
    %5287 = vmatprep.subr.mxu0 0.0
    %5288 = vmatpush1.msra.mxu0 0.0
    %5289 = vmatprep.subr.mxu0 0.0
    %5290 = vmatpush1.msra.mxu0 0.0
    %5291 = vmatprep.subr.mxu0 0.0
    %5292 = vmatpush1.msra.mxu0 0.0
    %5293 = vmatprep.subr.mxu0 0.0
    %5294 = vmatpush1.msra.mxu0 0.0
    %5295 = vmatprep.subr.mxu0 0.0
    %5296 = vmatpush1.msra.mxu0 0.0
    %5297 = vmatprep.subr.mxu0 0.0
    %5298 = vmatpush1.msra.mxu0 0.0
    %5299 = vmatprep.subr.mxu0 0.0
    %5300 = vmatpush1.msra.mxu0 0.0
    %5301 = vmatprep.subr.mxu0 0.0
    %5302 = vmatpush1.msra.mxu0 0.0
    %5303 = vmatprep.subr.mxu0 0.0
    %5304 = vmatpush1.msra.mxu0 0.0
    %v5305 = vand.u32 %v4404, 4294901760
    %5306 = vmatprep.subr.mxu0 %v5305
    %v5307 = vand.u32 %v4403, 4294901760
    %5308 = vmatpush1.msra.mxu0 %v5307
    %5309 = vmatprep.subr.mxu0 0.0
    %5310 = vmatpush2.msra.mxu0 0.0
    %5311 = vmatprep.subr.mxu0 0.0
    %5312 = vmatpush2.msra.mxu0 0.0
    %5313 = vmatprep.subr.mxu0 0.0
    %5314 = vmatpush2.msra.mxu0 0.0
    %5315 = vmatprep.subr.mxu0 0.0
    %5316 = vmatpush2.msra.mxu0 0.0
    %5317 = vmatprep.subr.mxu0 0.0
    %5318 = vmatpush2.msra.mxu0 0.0
    %5319 = vmatprep.subr.mxu0 0.0
    %5320 = vmatpush2.msra.mxu0 0.0
    %5321 = vmatprep.subr.mxu0 0.0
    %5322 = vmatpush2.msra.mxu0 0.0
    %5323 = vmatprep.subr.mxu0 0.0
    %5324 = vmatpush2.msra.mxu0 0.0
    %5325 = vmatprep.subr.mxu0 0.0
    %5326 = vmatpush2.msra.mxu0 0.0
    %5327 = vmatprep.subr.mxu0 0.0
    %5328 = vmatpush2.msra.mxu0 0.0
    %5329 = vmatprep.subr.mxu0 0.0
    %5330 = vmatpush2.msra.mxu0 0.0
    %5331 = vmatprep.subr.mxu0 0.0
    %5332 = vmatpush2.msra.mxu0 0.0
    %5333 = vmatprep.subr.mxu0 0.0
    %5334 = vmatpush2.msra.mxu0 0.0
    %5335 = vmatprep.subr.mxu0 0.0
    %5336 = vmatpush2.msra.mxu0 0.0
    %5337 = vmatprep.subr.mxu0 0.0
    %5338 = vmatpush2.msra.mxu0 0.0
    %5339 = vmatprep.subr.mxu0 0.0
    %5340 = vmatpush2.msra.mxu0 0.0
    %5341 = vmatprep.mubr.f32.mxu0 0.0
    %v5342 = vand.u32 %v4882, 4294901760
    %5343 = vmatmul.mubr.f32.gmra.mxu0 %v5342
    %v5344 = vpop.f32.mrf.mxu0
    %v5345 = vadd.f32 %v5271, %v5344
    %v5346 = vpop.f32.mrf.mxu0
    %v5347 = vadd.f32 %v5273, %v5346
    %5348 = vdwg.mxu0
    %5349 = vrot.lane.b32.xlu0 %v4403, 16
    %v5350 = vpop.permute.xlu0 %5349
    %5351 = vrot.lane.b32.xlu0 %v4404, 16
    %v5352 = vpop.permute.xlu0 %5351
    %v5353 = vsel %vm1056, %v5350, %v5352
    %v5354 = vsel %vm1056, %v5352, %v5350
    %v5355 = vmul.f32 %v5354, %v51
    %v5356 = vmul.f32 %v5353, %v55
    %v5358 = vsel %vm115, %v30, 0
    %5360 = vmatprep.subr.mxu0 0.0
    %5361 = vmatpush1.msra.mxu0 0.0
    %5362 = vmatprep.subr.mxu0 0.0
    %5363 = vmatpush1.msra.mxu0 0.0
    %5364 = vmatprep.subr.mxu0 0.0
    %5365 = vmatpush1.msra.mxu0 0.0
    %5366 = vmatprep.subr.mxu0 0.0
    %5367 = vmatpush1.msra.mxu0 0.0
    %5368 = vmatprep.subr.mxu0 0.0
    %5369 = vmatpush1.msra.mxu0 0.0
    %5370 = vmatprep.subr.mxu0 0.0
    %5371 = vmatpush1.msra.mxu0 0.0
    %5372 = vmatprep.subr.mxu0 0.0
    %5373 = vmatpush1.msra.mxu0 0.0
    %5374 = vmatprep.subr.mxu0 0.0
    %5375 = vmatpush1.msra.mxu0 0.0
    %5376 = vmatprep.subr.mxu0 0.0
    %5377 = vmatpush1.msra.mxu0 0.0
    %5378 = vmatprep.subr.mxu0 0.0
    %5379 = vmatpush1.msra.mxu0 0.0
    %5380 = vmatprep.subr.mxu0 0.0
    %5381 = vmatpush1.msra.mxu0 0.0
    %5382 = vmatprep.subr.mxu0 0.0
    %5383 = vmatpush1.msra.mxu0 0.0
    %5384 = vmatprep.subr.mxu0 0.0
    %5385 = vmatpush1.msra.mxu0 0.0
    %5386 = vmatprep.subr.mxu0 0.0
    %5387 = vmatpush1.msra.mxu0 0.0
    %5388 = vmatprep.subr.mxu0 0.0
    %5389 = vmatpush1.msra.mxu0 0.0
    %v5390 = vand.u32 %v5356, 4294901760
    %5391 = vmatprep.subr.mxu0 %v5390
    %v5392 = vand.u32 %v5355, 4294901760
    %5393 = vmatpush1.msra.mxu0 %v5392
    %5394 = vmatprep.subr.mxu0 0.0
    %5395 = vmatpush2.msra.mxu0 0.0
    %5396 = vmatprep.subr.mxu0 0.0
    %5397 = vmatpush2.msra.mxu0 0.0
    %5398 = vmatprep.subr.mxu0 0.0
    %5399 = vmatpush2.msra.mxu0 0.0
    %5400 = vmatprep.subr.mxu0 0.0
    %5401 = vmatpush2.msra.mxu0 0.0
    %5402 = vmatprep.subr.mxu0 0.0
    %5403 = vmatpush2.msra.mxu0 0.0
    %5404 = vmatprep.subr.mxu0 0.0
    %5405 = vmatpush2.msra.mxu0 0.0
    %5406 = vmatprep.subr.mxu0 0.0
    %5407 = vmatpush2.msra.mxu0 0.0
    %5408 = vmatprep.subr.mxu0 0.0
    %5409 = vmatpush2.msra.mxu0 0.0
    %5410 = vmatprep.subr.mxu0 0.0
    %5411 = vmatpush2.msra.mxu0 0.0
    %5412 = vmatprep.subr.mxu0 0.0
    %5413 = vmatpush2.msra.mxu0 0.0
    %5414 = vmatprep.subr.mxu0 0.0
    %5415 = vmatpush2.msra.mxu0 0.0
    %5416 = vmatprep.subr.mxu0 0.0
    %5417 = vmatpush2.msra.mxu0 0.0
    %5418 = vmatprep.subr.mxu0 0.0
    %5419 = vmatpush2.msra.mxu0 0.0
    %5420 = vmatprep.subr.mxu0 0.0
    %5421 = vmatpush2.msra.mxu0 0.0
    %5422 = vmatprep.subr.mxu0 0.0
    %5423 = vmatpush2.msra.mxu0 0.0
    %5424 = vmatprep.subr.mxu0 0.0
    %5425 = vmatpush2.msra.mxu0 0.0
    %5426 = vmatprep.mubr.f32.mxu0 0.0
    %v5427 = vand.u32 %v5358, 4294901760
    %v5428 = vsub.f32 %v5358, %v5427
    %v5429 = vand.u32 %v5428, 4294901760
    %v5430 = vsub.f32 %v5428, %v5429
    %v5431 = vand.u32 %v5430, 4294901760
    %5432 = vmatmul.mubr.f32.gmra.mxu0 %v5431
    %v5433 = vpop.f32.mrf.mxu0
    %v5434 = vadd.f32 0.0, %v5433
    %v5435 = vpop.f32.mrf.mxu0
    %v5436 = vadd.f32 0.0, %v5435
    %5437 = vdwg.mxu0
    %5438 = vmatprep.subr.mxu0 0.0
    %5439 = vmatpush1.msra.mxu0 0.0
    %5440 = vmatprep.subr.mxu0 0.0
    %5441 = vmatpush1.msra.mxu0 0.0
    %5442 = vmatprep.subr.mxu0 0.0
    %5443 = vmatpush1.msra.mxu0 0.0
    %5444 = vmatprep.subr.mxu0 0.0
    %5445 = vmatpush1.msra.mxu0 0.0
    %5446 = vmatprep.subr.mxu0 0.0
    %5447 = vmatpush1.msra.mxu0 0.0
    %5448 = vmatprep.subr.mxu0 0.0
    %5449 = vmatpush1.msra.mxu0 0.0
    %5450 = vmatprep.subr.mxu0 0.0
    %5451 = vmatpush1.msra.mxu0 0.0
    %5452 = vmatprep.subr.mxu0 0.0
    %5453 = vmatpush1.msra.mxu0 0.0
    %5454 = vmatprep.subr.mxu0 0.0
    %5455 = vmatpush1.msra.mxu0 0.0
    %5456 = vmatprep.subr.mxu0 0.0
    %5457 = vmatpush1.msra.mxu0 0.0
    %5458 = vmatprep.subr.mxu0 0.0
    %5459 = vmatpush1.msra.mxu0 0.0
    %5460 = vmatprep.subr.mxu0 0.0
    %5461 = vmatpush1.msra.mxu0 0.0
    %5462 = vmatprep.subr.mxu0 0.0
    %5463 = vmatpush1.msra.mxu0 0.0
    %5464 = vmatprep.subr.mxu0 0.0
    %5465 = vmatpush1.msra.mxu0 0.0
    %5466 = vmatprep.subr.mxu0 0.0
    %5467 = vmatpush1.msra.mxu0 0.0
    %v5468 = vand.u32 %v5356, 4294901760
    %v5469 = vsub.f32 %v5356, %v5468
    %v5470 = vand.u32 %v5469, 4294901760
    %v5471 = vsub.f32 %v5469, %v5470
    %v5472 = vand.u32 %v5471, 4294901760
    %5473 = vmatprep.subr.mxu0 %v5472
    %v5474 = vand.u32 %v5355, 4294901760
    %v5475 = vsub.f32 %v5355, %v5474
    %v5476 = vand.u32 %v5475, 4294901760
    %v5477 = vsub.f32 %v5475, %v5476
    %v5478 = vand.u32 %v5477, 4294901760
    %5479 = vmatpush1.msra.mxu0 %v5478
    %5480 = vmatprep.subr.mxu0 0.0
    %5481 = vmatpush2.msra.mxu0 0.0
    %5482 = vmatprep.subr.mxu0 0.0
    %5483 = vmatpush2.msra.mxu0 0.0
    %5484 = vmatprep.subr.mxu0 0.0
    %5485 = vmatpush2.msra.mxu0 0.0
    %5486 = vmatprep.subr.mxu0 0.0
    %5487 = vmatpush2.msra.mxu0 0.0
    %5488 = vmatprep.subr.mxu0 0.0
    %5489 = vmatpush2.msra.mxu0 0.0
    %5490 = vmatprep.subr.mxu0 0.0
    %5491 = vmatpush2.msra.mxu0 0.0
    %5492 = vmatprep.subr.mxu0 0.0
    %5493 = vmatpush2.msra.mxu0 0.0
    %5494 = vmatprep.subr.mxu0 0.0
    %5495 = vmatpush2.msra.mxu0 0.0
    %5496 = vmatprep.subr.mxu0 0.0
    %5497 = vmatpush2.msra.mxu0 0.0
    %5498 = vmatprep.subr.mxu0 0.0
    %5499 = vmatpush2.msra.mxu0 0.0
    %5500 = vmatprep.subr.mxu0 0.0
    %5501 = vmatpush2.msra.mxu0 0.0
    %5502 = vmatprep.subr.mxu0 0.0
    %5503 = vmatpush2.msra.mxu0 0.0
    %5504 = vmatprep.subr.mxu0 0.0
    %5505 = vmatpush2.msra.mxu0 0.0
    %5506 = vmatprep.subr.mxu0 0.0
    %5507 = vmatpush2.msra.mxu0 0.0
    %5508 = vmatprep.subr.mxu0 0.0
    %5509 = vmatpush2.msra.mxu0 0.0
    %5510 = vmatprep.subr.mxu0 0.0
    %5511 = vmatpush2.msra.mxu0 0.0
    %5512 = vmatprep.mubr.f32.mxu0 0.0
    %v5513 = vand.u32 %v5358, 4294901760
    %5514 = vmatmul.mubr.f32.gmra.mxu0 %v5513
    %v5515 = vpop.f32.mrf.mxu0
    %v5516 = vadd.f32 %v5434, %v5515
    %v5517 = vpop.f32.mrf.mxu0
    %v5518 = vadd.f32 %v5436, %v5517
    %5519 = vdwg.mxu0
    %5520 = vmatprep.subr.mxu0 0.0
    %5521 = vmatpush1.msra.mxu0 0.0
    %5522 = vmatprep.subr.mxu0 0.0
    %5523 = vmatpush1.msra.mxu0 0.0
    %5524 = vmatprep.subr.mxu0 0.0
    %5525 = vmatpush1.msra.mxu0 0.0
    %5526 = vmatprep.subr.mxu0 0.0
    %5527 = vmatpush1.msra.mxu0 0.0
    %5528 = vmatprep.subr.mxu0 0.0
    %5529 = vmatpush1.msra.mxu0 0.0
    %5530 = vmatprep.subr.mxu0 0.0
    %5531 = vmatpush1.msra.mxu0 0.0
    %5532 = vmatprep.subr.mxu0 0.0
    %5533 = vmatpush1.msra.mxu0 0.0
    %5534 = vmatprep.subr.mxu0 0.0
    %5535 = vmatpush1.msra.mxu0 0.0
    %5536 = vmatprep.subr.mxu0 0.0
    %5537 = vmatpush1.msra.mxu0 0.0
    %5538 = vmatprep.subr.mxu0 0.0
    %5539 = vmatpush1.msra.mxu0 0.0
    %5540 = vmatprep.subr.mxu0 0.0
    %5541 = vmatpush1.msra.mxu0 0.0
    %5542 = vmatprep.subr.mxu0 0.0
    %5543 = vmatpush1.msra.mxu0 0.0
    %5544 = vmatprep.subr.mxu0 0.0
    %5545 = vmatpush1.msra.mxu0 0.0
    %5546 = vmatprep.subr.mxu0 0.0
    %5547 = vmatpush1.msra.mxu0 0.0
    %5548 = vmatprep.subr.mxu0 0.0
    %5549 = vmatpush1.msra.mxu0 0.0
    %v5550 = vand.u32 %v5356, 4294901760
    %v5551 = vsub.f32 %v5356, %v5550
    %5552 = vmatprep.subr.mxu0 %v5551
    %v5553 = vand.u32 %v5355, 4294901760
    %v5554 = vsub.f32 %v5355, %v5553
    %5555 = vmatpush1.msra.mxu0 %v5554
    %5556 = vmatprep.subr.mxu0 0.0
    %5557 = vmatpush2.msra.mxu0 0.0
    %5558 = vmatprep.subr.mxu0 0.0
    %5559 = vmatpush2.msra.mxu0 0.0
    %5560 = vmatprep.subr.mxu0 0.0
    %5561 = vmatpush2.msra.mxu0 0.0
    %5562 = vmatprep.subr.mxu0 0.0
    %5563 = vmatpush2.msra.mxu0 0.0
    %5564 = vmatprep.subr.mxu0 0.0
    %5565 = vmatpush2.msra.mxu0 0.0
    %5566 = vmatprep.subr.mxu0 0.0
    %5567 = vmatpush2.msra.mxu0 0.0
    %5568 = vmatprep.subr.mxu0 0.0
    %5569 = vmatpush2.msra.mxu0 0.0
    %5570 = vmatprep.subr.mxu0 0.0
    %5571 = vmatpush2.msra.mxu0 0.0
    %5572 = vmatprep.subr.mxu0 0.0
    %5573 = vmatpush2.msra.mxu0 0.0
    %5574 = vmatprep.subr.mxu0 0.0
    %5575 = vmatpush2.msra.mxu0 0.0
    %5576 = vmatprep.subr.mxu0 0.0
    %5577 = vmatpush2.msra.mxu0 0.0
    %5578 = vmatprep.subr.mxu0 0.0
    %5579 = vmatpush2.msra.mxu0 0.0
    %5580 = vmatprep.subr.mxu0 0.0
    %5581 = vmatpush2.msra.mxu0 0.0
    %5582 = vmatprep.subr.mxu0 0.0
    %5583 = vmatpush2.msra.mxu0 0.0
    %5584 = vmatprep.subr.mxu0 0.0
    %5585 = vmatpush2.msra.mxu0 0.0
    %5586 = vmatprep.subr.mxu0 0.0
    %5587 = vmatpush2.msra.mxu0 0.0
    %5588 = vmatprep.mubr.f32.mxu0 0.0
    %v5589 = vand.u32 %v5358, 4294901760
    %v5590 = vsub.f32 %v5358, %v5589
    %5591 = vmatmul.mubr.f32.gmra.mxu0 %v5590
    %v5592 = vpop.f32.mrf.mxu0
    %v5593 = vadd.f32 %v5516, %v5592
    %v5594 = vpop.f32.mrf.mxu0
    %v5595 = vadd.f32 %v5518, %v5594
    %5596 = vdwg.mxu0
    %5597 = vmatprep.subr.mxu0 0.0
    %5598 = vmatpush1.msra.mxu0 0.0
    %5599 = vmatprep.subr.mxu0 0.0
    %5600 = vmatpush1.msra.mxu0 0.0
    %5601 = vmatprep.subr.mxu0 0.0
    %5602 = vmatpush1.msra.mxu0 0.0
    %5603 = vmatprep.subr.mxu0 0.0
    %5604 = vmatpush1.msra.mxu0 0.0
    %5605 = vmatprep.subr.mxu0 0.0
    %5606 = vmatpush1.msra.mxu0 0.0
    %5607 = vmatprep.subr.mxu0 0.0
    %5608 = vmatpush1.msra.mxu0 0.0
    %5609 = vmatprep.subr.mxu0 0.0
    %5610 = vmatpush1.msra.mxu0 0.0
    %5611 = vmatprep.subr.mxu0 0.0
    %5612 = vmatpush1.msra.mxu0 0.0
    %5613 = vmatprep.subr.mxu0 0.0
    %5614 = vmatpush1.msra.mxu0 0.0
    %5615 = vmatprep.subr.mxu0 0.0
    %5616 = vmatpush1.msra.mxu0 0.0
    %5617 = vmatprep.subr.mxu0 0.0
    %5618 = vmatpush1.msra.mxu0 0.0
    %5619 = vmatprep.subr.mxu0 0.0
    %5620 = vmatpush1.msra.mxu0 0.0
    %5621 = vmatprep.subr.mxu0 0.0
    %5622 = vmatpush1.msra.mxu0 0.0
    %5623 = vmatprep.subr.mxu0 0.0
    %5624 = vmatpush1.msra.mxu0 0.0
    %5625 = vmatprep.subr.mxu0 0.0
    %5626 = vmatpush1.msra.mxu0 0.0
    %v5627 = vand.u32 %v5356, 4294901760
    %5628 = vmatprep.subr.mxu0 %v5627
    %v5629 = vand.u32 %v5355, 4294901760
    %5630 = vmatpush1.msra.mxu0 %v5629
    %5631 = vmatprep.subr.mxu0 0.0
    %5632 = vmatpush2.msra.mxu0 0.0
    %5633 = vmatprep.subr.mxu0 0.0
    %5634 = vmatpush2.msra.mxu0 0.0
    %5635 = vmatprep.subr.mxu0 0.0
    %5636 = vmatpush2.msra.mxu0 0.0
    %5637 = vmatprep.subr.mxu0 0.0
    %5638 = vmatpush2.msra.mxu0 0.0
    %5639 = vmatprep.subr.mxu0 0.0
    %5640 = vmatpush2.msra.mxu0 0.0
    %5641 = vmatprep.subr.mxu0 0.0
    %5642 = vmatpush2.msra.mxu0 0.0
    %5643 = vmatprep.subr.mxu0 0.0
    %5644 = vmatpush2.msra.mxu0 0.0
    %5645 = vmatprep.subr.mxu0 0.0
    %5646 = vmatpush2.msra.mxu0 0.0
    %5647 = vmatprep.subr.mxu0 0.0
    %5648 = vmatpush2.msra.mxu0 0.0
    %5649 = vmatprep.subr.mxu0 0.0
    %5650 = vmatpush2.msra.mxu0 0.0
    %5651 = vmatprep.subr.mxu0 0.0
    %5652 = vmatpush2.msra.mxu0 0.0
    %5653 = vmatprep.subr.mxu0 0.0
    %5654 = vmatpush2.msra.mxu0 0.0
    %5655 = vmatprep.subr.mxu0 0.0
    %5656 = vmatpush2.msra.mxu0 0.0
    %5657 = vmatprep.subr.mxu0 0.0
    %5658 = vmatpush2.msra.mxu0 0.0
    %5659 = vmatprep.subr.mxu0 0.0
    %5660 = vmatpush2.msra.mxu0 0.0
    %5661 = vmatprep.subr.mxu0 0.0
    %5662 = vmatpush2.msra.mxu0 0.0
    %5663 = vmatprep.mubr.f32.mxu0 0.0
    %v5664 = vand.u32 %v5358, 4294901760
    %v5665 = vsub.f32 %v5358, %v5664
    %v5666 = vand.u32 %v5665, 4294901760
    %5667 = vmatmul.mubr.f32.gmra.mxu0 %v5666
    %v5668 = vpop.f32.mrf.mxu0
    %v5669 = vadd.f32 %v5593, %v5668
    %v5670 = vpop.f32.mrf.mxu0
    %v5671 = vadd.f32 %v5595, %v5670
    %5672 = vdwg.mxu0
    %5673 = vmatprep.subr.mxu0 0.0
    %5674 = vmatpush1.msra.mxu0 0.0
    %5675 = vmatprep.subr.mxu0 0.0
    %5676 = vmatpush1.msra.mxu0 0.0
    %5677 = vmatprep.subr.mxu0 0.0
    %5678 = vmatpush1.msra.mxu0 0.0
    %5679 = vmatprep.subr.mxu0 0.0
    %5680 = vmatpush1.msra.mxu0 0.0
    %5681 = vmatprep.subr.mxu0 0.0
    %5682 = vmatpush1.msra.mxu0 0.0
    %5683 = vmatprep.subr.mxu0 0.0
    %5684 = vmatpush1.msra.mxu0 0.0
    %5685 = vmatprep.subr.mxu0 0.0
    %5686 = vmatpush1.msra.mxu0 0.0
    %5687 = vmatprep.subr.mxu0 0.0
    %5688 = vmatpush1.msra.mxu0 0.0
    %5689 = vmatprep.subr.mxu0 0.0
    %5690 = vmatpush1.msra.mxu0 0.0
    %5691 = vmatprep.subr.mxu0 0.0
    %5692 = vmatpush1.msra.mxu0 0.0
    %5693 = vmatprep.subr.mxu0 0.0
    %5694 = vmatpush1.msra.mxu0 0.0
    %5695 = vmatprep.subr.mxu0 0.0
    %5696 = vmatpush1.msra.mxu0 0.0
    %5697 = vmatprep.subr.mxu0 0.0
    %5698 = vmatpush1.msra.mxu0 0.0
    %5699 = vmatprep.subr.mxu0 0.0
    %5700 = vmatpush1.msra.mxu0 0.0
    %5701 = vmatprep.subr.mxu0 0.0
    %5702 = vmatpush1.msra.mxu0 0.0
    %v5703 = vand.u32 %v5356, 4294901760
    %v5704 = vsub.f32 %v5356, %v5703
    %v5705 = vand.u32 %v5704, 4294901760
    %5706 = vmatprep.subr.mxu0 %v5705
    %v5707 = vand.u32 %v5355, 4294901760
    %v5708 = vsub.f32 %v5355, %v5707
    %v5709 = vand.u32 %v5708, 4294901760
    %5710 = vmatpush1.msra.mxu0 %v5709
    %5711 = vmatprep.subr.mxu0 0.0
    %5712 = vmatpush2.msra.mxu0 0.0
    %5713 = vmatprep.subr.mxu0 0.0
    %5714 = vmatpush2.msra.mxu0 0.0
    %5715 = vmatprep.subr.mxu0 0.0
    %5716 = vmatpush2.msra.mxu0 0.0
    %5717 = vmatprep.subr.mxu0 0.0
    %5718 = vmatpush2.msra.mxu0 0.0
    %5719 = vmatprep.subr.mxu0 0.0
    %5720 = vmatpush2.msra.mxu0 0.0
    %5721 = vmatprep.subr.mxu0 0.0
    %5722 = vmatpush2.msra.mxu0 0.0
    %5723 = vmatprep.subr.mxu0 0.0
    %5724 = vmatpush2.msra.mxu0 0.0
    %5725 = vmatprep.subr.mxu0 0.0
    %5726 = vmatpush2.msra.mxu0 0.0
    %5727 = vmatprep.subr.mxu0 0.0
    %5728 = vmatpush2.msra.mxu0 0.0
    %5729 = vmatprep.subr.mxu0 0.0
    %5730 = vmatpush2.msra.mxu0 0.0
    %5731 = vmatprep.subr.mxu0 0.0
    %5732 = vmatpush2.msra.mxu0 0.0
    %5733 = vmatprep.subr.mxu0 0.0
    %5734 = vmatpush2.msra.mxu0 0.0
    %5735 = vmatprep.subr.mxu0 0.0
    %5736 = vmatpush2.msra.mxu0 0.0
    %5737 = vmatprep.subr.mxu0 0.0
    %5738 = vmatpush2.msra.mxu0 0.0
    %5739 = vmatprep.subr.mxu0 0.0
    %5740 = vmatpush2.msra.mxu0 0.0
    %5741 = vmatprep.subr.mxu0 0.0
    %5742 = vmatpush2.msra.mxu0 0.0
    %5743 = vmatprep.mubr.f32.mxu0 0.0
    %v5744 = vand.u32 %v5358, 4294901760
    %5745 = vmatmul.mubr.f32.gmra.mxu0 %v5744
    %v5746 = vpop.f32.mrf.mxu0
    %v5747 = vadd.f32 %v5669, %v5746
    %v5748 = vpop.f32.mrf.mxu0
    %v5749 = vadd.f32 %v5671, %v5748
    %5750 = vdwg.mxu0
    %5751 = vmatprep.subr.mxu0 0.0
    %5752 = vmatpush1.msra.mxu0 0.0
    %5753 = vmatprep.subr.mxu0 0.0
    %5754 = vmatpush1.msra.mxu0 0.0
    %5755 = vmatprep.subr.mxu0 0.0
    %5756 = vmatpush1.msra.mxu0 0.0
    %5757 = vmatprep.subr.mxu0 0.0
    %5758 = vmatpush1.msra.mxu0 0.0
    %5759 = vmatprep.subr.mxu0 0.0
    %5760 = vmatpush1.msra.mxu0 0.0
    %5761 = vmatprep.subr.mxu0 0.0
    %5762 = vmatpush1.msra.mxu0 0.0
    %5763 = vmatprep.subr.mxu0 0.0
    %5764 = vmatpush1.msra.mxu0 0.0
    %5765 = vmatprep.subr.mxu0 0.0
    %5766 = vmatpush1.msra.mxu0 0.0
    %5767 = vmatprep.subr.mxu0 0.0
    %5768 = vmatpush1.msra.mxu0 0.0
    %5769 = vmatprep.subr.mxu0 0.0
    %5770 = vmatpush1.msra.mxu0 0.0
    %5771 = vmatprep.subr.mxu0 0.0
    %5772 = vmatpush1.msra.mxu0 0.0
    %5773 = vmatprep.subr.mxu0 0.0
    %5774 = vmatpush1.msra.mxu0 0.0
    %5775 = vmatprep.subr.mxu0 0.0
    %5776 = vmatpush1.msra.mxu0 0.0
    %5777 = vmatprep.subr.mxu0 0.0
    %5778 = vmatpush1.msra.mxu0 0.0
    %5779 = vmatprep.subr.mxu0 0.0
    %5780 = vmatpush1.msra.mxu0 0.0
    %v5781 = vand.u32 %v5356, 4294901760
    %5782 = vmatprep.subr.mxu0 %v5781
    %v5783 = vand.u32 %v5355, 4294901760
    %5784 = vmatpush1.msra.mxu0 %v5783
    %5785 = vmatprep.subr.mxu0 0.0
    %5786 = vmatpush2.msra.mxu0 0.0
    %5787 = vmatprep.subr.mxu0 0.0
    %5788 = vmatpush2.msra.mxu0 0.0
    %5789 = vmatprep.subr.mxu0 0.0
    %5790 = vmatpush2.msra.mxu0 0.0
    %5791 = vmatprep.subr.mxu0 0.0
    %5792 = vmatpush2.msra.mxu0 0.0
    %5793 = vmatprep.subr.mxu0 0.0
    %5794 = vmatpush2.msra.mxu0 0.0
    %5795 = vmatprep.subr.mxu0 0.0
    %5796 = vmatpush2.msra.mxu0 0.0
    %5797 = vmatprep.subr.mxu0 0.0
    %5798 = vmatpush2.msra.mxu0 0.0
    %5799 = vmatprep.subr.mxu0 0.0
    %5800 = vmatpush2.msra.mxu0 0.0
    %5801 = vmatprep.subr.mxu0 0.0
    %5802 = vmatpush2.msra.mxu0 0.0
    %5803 = vmatprep.subr.mxu0 0.0
    %5804 = vmatpush2.msra.mxu0 0.0
    %5805 = vmatprep.subr.mxu0 0.0
    %5806 = vmatpush2.msra.mxu0 0.0
    %5807 = vmatprep.subr.mxu0 0.0
    %5808 = vmatpush2.msra.mxu0 0.0
    %5809 = vmatprep.subr.mxu0 0.0
    %5810 = vmatpush2.msra.mxu0 0.0
    %5811 = vmatprep.subr.mxu0 0.0
    %5812 = vmatpush2.msra.mxu0 0.0
    %5813 = vmatprep.subr.mxu0 0.0
    %5814 = vmatpush2.msra.mxu0 0.0
    %5815 = vmatprep.subr.mxu0 0.0
    %5816 = vmatpush2.msra.mxu0 0.0
    %5817 = vmatprep.mubr.f32.mxu0 0.0
    %v5818 = vand.u32 %v5358, 4294901760
    %5819 = vmatmul.mubr.f32.gmra.mxu0 %v5818
    %v5820 = vpop.f32.mrf.mxu0
    %v5821 = vadd.f32 %v5747, %v5820
    %v5822 = vpop.f32.mrf.mxu0
    %v5823 = vadd.f32 %v5749, %v5822
    %5824 = vdwg.mxu0
    %v5825 = vadd.f32 %v5345, %v5821
    %v5826 = vadd.f32 %v5347, %v5823
    %5827 = vrot.lane.b32.xlu0 %v4403, 15
    %v5828 = vpop.permute.xlu0 %5827
    %5829 = vrot.lane.b32.xlu0 %v4404, 15
    %v5830 = vpop.permute.xlu0 %5829
    %v5831 = vsel %vm1535, %v5828, %v5830
    %v5832 = vsel %vm1535, %v5830, %v5828
    %v5833 = vmul.f32 %v5832, %v59
    %v5834 = vmul.f32 %v5831, %v63
    %v5836 = vsel %vm115, %v31, 0
    %5838 = vmatprep.subr.mxu0 0.0
    %5839 = vmatpush1.msra.mxu0 0.0
    %5840 = vmatprep.subr.mxu0 0.0
    %5841 = vmatpush1.msra.mxu0 0.0
    %5842 = vmatprep.subr.mxu0 0.0
    %5843 = vmatpush1.msra.mxu0 0.0
    %5844 = vmatprep.subr.mxu0 0.0
    %5845 = vmatpush1.msra.mxu0 0.0
    %5846 = vmatprep.subr.mxu0 0.0
    %5847 = vmatpush1.msra.mxu0 0.0
    %5848 = vmatprep.subr.mxu0 0.0
    %5849 = vmatpush1.msra.mxu0 0.0
    %5850 = vmatprep.subr.mxu0 0.0
    %5851 = vmatpush1.msra.mxu0 0.0
    %5852 = vmatprep.subr.mxu0 0.0
    %5853 = vmatpush1.msra.mxu0 0.0
    %5854 = vmatprep.subr.mxu0 0.0
    %5855 = vmatpush1.msra.mxu0 0.0
    %5856 = vmatprep.subr.mxu0 0.0
    %5857 = vmatpush1.msra.mxu0 0.0
    %5858 = vmatprep.subr.mxu0 0.0
    %5859 = vmatpush1.msra.mxu0 0.0
    %5860 = vmatprep.subr.mxu0 0.0
    %5861 = vmatpush1.msra.mxu0 0.0
    %5862 = vmatprep.subr.mxu0 0.0
    %5863 = vmatpush1.msra.mxu0 0.0
    %5864 = vmatprep.subr.mxu0 0.0
    %5865 = vmatpush1.msra.mxu0 0.0
    %5866 = vmatprep.subr.mxu0 0.0
    %5867 = vmatpush1.msra.mxu0 0.0
    %v5868 = vand.u32 %v5834, 4294901760
    %5869 = vmatprep.subr.mxu0 %v5868
    %v5870 = vand.u32 %v5833, 4294901760
    %5871 = vmatpush1.msra.mxu0 %v5870
    %5872 = vmatprep.subr.mxu0 0.0
    %5873 = vmatpush2.msra.mxu0 0.0
    %5874 = vmatprep.subr.mxu0 0.0
    %5875 = vmatpush2.msra.mxu0 0.0
    %5876 = vmatprep.subr.mxu0 0.0
    %5877 = vmatpush2.msra.mxu0 0.0
    %5878 = vmatprep.subr.mxu0 0.0
    %5879 = vmatpush2.msra.mxu0 0.0
    %5880 = vmatprep.subr.mxu0 0.0
    %5881 = vmatpush2.msra.mxu0 0.0
    %5882 = vmatprep.subr.mxu0 0.0
    %5883 = vmatpush2.msra.mxu0 0.0
    %5884 = vmatprep.subr.mxu0 0.0
    %5885 = vmatpush2.msra.mxu0 0.0
    %5886 = vmatprep.subr.mxu0 0.0
    %5887 = vmatpush2.msra.mxu0 0.0
    %5888 = vmatprep.subr.mxu0 0.0
    %5889 = vmatpush2.msra.mxu0 0.0
    %5890 = vmatprep.subr.mxu0 0.0
    %5891 = vmatpush2.msra.mxu0 0.0
    %5892 = vmatprep.subr.mxu0 0.0
    %5893 = vmatpush2.msra.mxu0 0.0
    %5894 = vmatprep.subr.mxu0 0.0
    %5895 = vmatpush2.msra.mxu0 0.0
    %5896 = vmatprep.subr.mxu0 0.0
    %5897 = vmatpush2.msra.mxu0 0.0
    %5898 = vmatprep.subr.mxu0 0.0
    %5899 = vmatpush2.msra.mxu0 0.0
    %5900 = vmatprep.subr.mxu0 0.0
    %5901 = vmatpush2.msra.mxu0 0.0
    %5902 = vmatprep.subr.mxu0 0.0
    %5903 = vmatpush2.msra.mxu0 0.0
    %5904 = vmatprep.mubr.f32.mxu0 0.0
    %v5905 = vand.u32 %v5836, 4294901760
    %v5906 = vsub.f32 %v5836, %v5905
    %v5907 = vand.u32 %v5906, 4294901760
    %v5908 = vsub.f32 %v5906, %v5907
    %v5909 = vand.u32 %v5908, 4294901760
    %5910 = vmatmul.mubr.f32.gmra.mxu0 %v5909
    %v5911 = vpop.f32.mrf.mxu0
    %v5912 = vadd.f32 0.0, %v5911
    %v5913 = vpop.f32.mrf.mxu0
    %v5914 = vadd.f32 0.0, %v5913
    %5915 = vdwg.mxu0
    %5916 = vmatprep.subr.mxu0 0.0
    %5917 = vmatpush1.msra.mxu0 0.0
    %5918 = vmatprep.subr.mxu0 0.0
    %5919 = vmatpush1.msra.mxu0 0.0
    %5920 = vmatprep.subr.mxu0 0.0
    %5921 = vmatpush1.msra.mxu0 0.0
    %5922 = vmatprep.subr.mxu0 0.0
    %5923 = vmatpush1.msra.mxu0 0.0
    %5924 = vmatprep.subr.mxu0 0.0
    %5925 = vmatpush1.msra.mxu0 0.0
    %5926 = vmatprep.subr.mxu0 0.0
    %5927 = vmatpush1.msra.mxu0 0.0
    %5928 = vmatprep.subr.mxu0 0.0
    %5929 = vmatpush1.msra.mxu0 0.0
    %5930 = vmatprep.subr.mxu0 0.0
    %5931 = vmatpush1.msra.mxu0 0.0
    %5932 = vmatprep.subr.mxu0 0.0
    %5933 = vmatpush1.msra.mxu0 0.0
    %5934 = vmatprep.subr.mxu0 0.0
    %5935 = vmatpush1.msra.mxu0 0.0
    %5936 = vmatprep.subr.mxu0 0.0
    %5937 = vmatpush1.msra.mxu0 0.0
    %5938 = vmatprep.subr.mxu0 0.0
    %5939 = vmatpush1.msra.mxu0 0.0
    %5940 = vmatprep.subr.mxu0 0.0
    %5941 = vmatpush1.msra.mxu0 0.0
    %5942 = vmatprep.subr.mxu0 0.0
    %5943 = vmatpush1.msra.mxu0 0.0
    %5944 = vmatprep.subr.mxu0 0.0
    %5945 = vmatpush1.msra.mxu0 0.0
    %v5946 = vand.u32 %v5834, 4294901760
    %v5947 = vsub.f32 %v5834, %v5946
    %v5948 = vand.u32 %v5947, 4294901760
    %v5949 = vsub.f32 %v5947, %v5948
    %v5950 = vand.u32 %v5949, 4294901760
    %5951 = vmatprep.subr.mxu0 %v5950
    %v5952 = vand.u32 %v5833, 4294901760
    %v5953 = vsub.f32 %v5833, %v5952
    %v5954 = vand.u32 %v5953, 4294901760
    %v5955 = vsub.f32 %v5953, %v5954
    %v5956 = vand.u32 %v5955, 4294901760
    %5957 = vmatpush1.msra.mxu0 %v5956
    %5958 = vmatprep.subr.mxu0 0.0
    %5959 = vmatpush2.msra.mxu0 0.0
    %5960 = vmatprep.subr.mxu0 0.0
    %5961 = vmatpush2.msra.mxu0 0.0
    %5962 = vmatprep.subr.mxu0 0.0
    %5963 = vmatpush2.msra.mxu0 0.0
    %5964 = vmatprep.subr.mxu0 0.0
    %5965 = vmatpush2.msra.mxu0 0.0
    %5966 = vmatprep.subr.mxu0 0.0
    %5967 = vmatpush2.msra.mxu0 0.0
    %5968 = vmatprep.subr.mxu0 0.0
    %5969 = vmatpush2.msra.mxu0 0.0
    %5970 = vmatprep.subr.mxu0 0.0
    %5971 = vmatpush2.msra.mxu0 0.0
    %5972 = vmatprep.subr.mxu0 0.0
    %5973 = vmatpush2.msra.mxu0 0.0
    %5974 = vmatprep.subr.mxu0 0.0
    %5975 = vmatpush2.msra.mxu0 0.0
    %5976 = vmatprep.subr.mxu0 0.0
    %5977 = vmatpush2.msra.mxu0 0.0
    %5978 = vmatprep.subr.mxu0 0.0
    %5979 = vmatpush2.msra.mxu0 0.0
    %5980 = vmatprep.subr.mxu0 0.0
    %5981 = vmatpush2.msra.mxu0 0.0
    %5982 = vmatprep.subr.mxu0 0.0
    %5983 = vmatpush2.msra.mxu0 0.0
    %5984 = vmatprep.subr.mxu0 0.0
    %5985 = vmatpush2.msra.mxu0 0.0
    %5986 = vmatprep.subr.mxu0 0.0
    %5987 = vmatpush2.msra.mxu0 0.0
    %5988 = vmatprep.subr.mxu0 0.0
    %5989 = vmatpush2.msra.mxu0 0.0
    %5990 = vmatprep.mubr.f32.mxu0 0.0
    %v5991 = vand.u32 %v5836, 4294901760
    %5992 = vmatmul.mubr.f32.gmra.mxu0 %v5991
    %v5993 = vpop.f32.mrf.mxu0
    %v5994 = vadd.f32 %v5912, %v5993
    %v5995 = vpop.f32.mrf.mxu0
    %v5996 = vadd.f32 %v5914, %v5995
    %5997 = vdwg.mxu0
    %5998 = vmatprep.subr.mxu0 0.0
    %5999 = vmatpush1.msra.mxu0 0.0
    %6000 = vmatprep.subr.mxu0 0.0
    %6001 = vmatpush1.msra.mxu0 0.0
    %6002 = vmatprep.subr.mxu0 0.0
    %6003 = vmatpush1.msra.mxu0 0.0
    %6004 = vmatprep.subr.mxu0 0.0
    %6005 = vmatpush1.msra.mxu0 0.0
    %6006 = vmatprep.subr.mxu0 0.0
    %6007 = vmatpush1.msra.mxu0 0.0
    %6008 = vmatprep.subr.mxu0 0.0
    %6009 = vmatpush1.msra.mxu0 0.0
    %6010 = vmatprep.subr.mxu0 0.0
    %6011 = vmatpush1.msra.mxu0 0.0
    %6012 = vmatprep.subr.mxu0 0.0
    %6013 = vmatpush1.msra.mxu0 0.0
    %6014 = vmatprep.subr.mxu0 0.0
    %6015 = vmatpush1.msra.mxu0 0.0
    %6016 = vmatprep.subr.mxu0 0.0
    %6017 = vmatpush1.msra.mxu0 0.0
    %6018 = vmatprep.subr.mxu0 0.0
    %6019 = vmatpush1.msra.mxu0 0.0
    %6020 = vmatprep.subr.mxu0 0.0
    %6021 = vmatpush1.msra.mxu0 0.0
    %6022 = vmatprep.subr.mxu0 0.0
    %6023 = vmatpush1.msra.mxu0 0.0
    %6024 = vmatprep.subr.mxu0 0.0
    %6025 = vmatpush1.msra.mxu0 0.0
    %6026 = vmatprep.subr.mxu0 0.0
    %6027 = vmatpush1.msra.mxu0 0.0
    %v6028 = vand.u32 %v5834, 4294901760
    %v6029 = vsub.f32 %v5834, %v6028
    %6030 = vmatprep.subr.mxu0 %v6029
    %v6031 = vand.u32 %v5833, 4294901760
    %v6032 = vsub.f32 %v5833, %v6031
    %6033 = vmatpush1.msra.mxu0 %v6032
    %6034 = vmatprep.subr.mxu0 0.0
    %6035 = vmatpush2.msra.mxu0 0.0
    %6036 = vmatprep.subr.mxu0 0.0
    %6037 = vmatpush2.msra.mxu0 0.0
    %6038 = vmatprep.subr.mxu0 0.0
    %6039 = vmatpush2.msra.mxu0 0.0
    %6040 = vmatprep.subr.mxu0 0.0
    %6041 = vmatpush2.msra.mxu0 0.0
    %6042 = vmatprep.subr.mxu0 0.0
    %6043 = vmatpush2.msra.mxu0 0.0
    %6044 = vmatprep.subr.mxu0 0.0
    %6045 = vmatpush2.msra.mxu0 0.0
    %6046 = vmatprep.subr.mxu0 0.0
    %6047 = vmatpush2.msra.mxu0 0.0
    %6048 = vmatprep.subr.mxu0 0.0
    %6049 = vmatpush2.msra.mxu0 0.0
    %6050 = vmatprep.subr.mxu0 0.0
    %6051 = vmatpush2.msra.mxu0 0.0
    %6052 = vmatprep.subr.mxu0 0.0
    %6053 = vmatpush2.msra.mxu0 0.0
    %6054 = vmatprep.subr.mxu0 0.0
    %6055 = vmatpush2.msra.mxu0 0.0
    %6056 = vmatprep.subr.mxu0 0.0
    %6057 = vmatpush2.msra.mxu0 0.0
    %6058 = vmatprep.subr.mxu0 0.0
    %6059 = vmatpush2.msra.mxu0 0.0
    %6060 = vmatprep.subr.mxu0 0.0
    %6061 = vmatpush2.msra.mxu0 0.0
    %6062 = vmatprep.subr.mxu0 0.0
    %6063 = vmatpush2.msra.mxu0 0.0
    %6064 = vmatprep.subr.mxu0 0.0
    %6065 = vmatpush2.msra.mxu0 0.0
    %6066 = vmatprep.mubr.f32.mxu0 0.0
    %v6067 = vand.u32 %v5836, 4294901760
    %v6068 = vsub.f32 %v5836, %v6067
    %6069 = vmatmul.mubr.f32.gmra.mxu0 %v6068
    %v6070 = vpop.f32.mrf.mxu0
    %v6071 = vadd.f32 %v5994, %v6070
    %v6072 = vpop.f32.mrf.mxu0
    %v6073 = vadd.f32 %v5996, %v6072
    %6074 = vdwg.mxu0
    %6075 = vmatprep.subr.mxu0 0.0
    %6076 = vmatpush1.msra.mxu0 0.0
    %6077 = vmatprep.subr.mxu0 0.0
    %6078 = vmatpush1.msra.mxu0 0.0
    %6079 = vmatprep.subr.mxu0 0.0
    %6080 = vmatpush1.msra.mxu0 0.0
    %6081 = vmatprep.subr.mxu0 0.0
    %6082 = vmatpush1.msra.mxu0 0.0
    %6083 = vmatprep.subr.mxu0 0.0
    %6084 = vmatpush1.msra.mxu0 0.0
    %6085 = vmatprep.subr.mxu0 0.0
    %6086 = vmatpush1.msra.mxu0 0.0
    %6087 = vmatprep.subr.mxu0 0.0
    %6088 = vmatpush1.msra.mxu0 0.0
    %6089 = vmatprep.subr.mxu0 0.0
    %6090 = vmatpush1.msra.mxu0 0.0
    %6091 = vmatprep.subr.mxu0 0.0
    %6092 = vmatpush1.msra.mxu0 0.0
    %6093 = vmatprep.subr.mxu0 0.0
    %6094 = vmatpush1.msra.mxu0 0.0
    %6095 = vmatprep.subr.mxu0 0.0
    %6096 = vmatpush1.msra.mxu0 0.0
    %6097 = vmatprep.subr.mxu0 0.0
    %6098 = vmatpush1.msra.mxu0 0.0
    %6099 = vmatprep.subr.mxu0 0.0
    %6100 = vmatpush1.msra.mxu0 0.0
    %6101 = vmatprep.subr.mxu0 0.0
    %6102 = vmatpush1.msra.mxu0 0.0
    %6103 = vmatprep.subr.mxu0 0.0
    %6104 = vmatpush1.msra.mxu0 0.0
    %v6105 = vand.u32 %v5834, 4294901760
    %6106 = vmatprep.subr.mxu0 %v6105
    %v6107 = vand.u32 %v5833, 4294901760
    %6108 = vmatpush1.msra.mxu0 %v6107
    %6109 = vmatprep.subr.mxu0 0.0
    %6110 = vmatpush2.msra.mxu0 0.0
    %6111 = vmatprep.subr.mxu0 0.0
    %6112 = vmatpush2.msra.mxu0 0.0
    %6113 = vmatprep.subr.mxu0 0.0
    %6114 = vmatpush2.msra.mxu0 0.0
    %6115 = vmatprep.subr.mxu0 0.0
    %6116 = vmatpush2.msra.mxu0 0.0
    %6117 = vmatprep.subr.mxu0 0.0
    %6118 = vmatpush2.msra.mxu0 0.0
    %6119 = vmatprep.subr.mxu0 0.0
    %6120 = vmatpush2.msra.mxu0 0.0
    %6121 = vmatprep.subr.mxu0 0.0
    %6122 = vmatpush2.msra.mxu0 0.0
    %6123 = vmatprep.subr.mxu0 0.0
    %6124 = vmatpush2.msra.mxu0 0.0
    %6125 = vmatprep.subr.mxu0 0.0
    %6126 = vmatpush2.msra.mxu0 0.0
    %6127 = vmatprep.subr.mxu0 0.0
    %6128 = vmatpush2.msra.mxu0 0.0
    %6129 = vmatprep.subr.mxu0 0.0
    %6130 = vmatpush2.msra.mxu0 0.0
    %6131 = vmatprep.subr.mxu0 0.0
    %6132 = vmatpush2.msra.mxu0 0.0
    %6133 = vmatprep.subr.mxu0 0.0
    %6134 = vmatpush2.msra.mxu0 0.0
    %6135 = vmatprep.subr.mxu0 0.0
    %6136 = vmatpush2.msra.mxu0 0.0
    %6137 = vmatprep.subr.mxu0 0.0
    %6138 = vmatpush2.msra.mxu0 0.0
    %6139 = vmatprep.subr.mxu0 0.0
    %6140 = vmatpush2.msra.mxu0 0.0
    %6141 = vmatprep.mubr.f32.mxu0 0.0
    %v6142 = vand.u32 %v5836, 4294901760
    %v6143 = vsub.f32 %v5836, %v6142
    %v6144 = vand.u32 %v6143, 4294901760
    %6145 = vmatmul.mubr.f32.gmra.mxu0 %v6144
    %v6146 = vpop.f32.mrf.mxu0
    %v6147 = vadd.f32 %v6071, %v6146
    %v6148 = vpop.f32.mrf.mxu0
    %v6149 = vadd.f32 %v6073, %v6148
    %6150 = vdwg.mxu0
    %6151 = vmatprep.subr.mxu0 0.0
    %6152 = vmatpush1.msra.mxu0 0.0
    %6153 = vmatprep.subr.mxu0 0.0
    %6154 = vmatpush1.msra.mxu0 0.0
    %6155 = vmatprep.subr.mxu0 0.0
    %6156 = vmatpush1.msra.mxu0 0.0
    %6157 = vmatprep.subr.mxu0 0.0
    %6158 = vmatpush1.msra.mxu0 0.0
    %6159 = vmatprep.subr.mxu0 0.0
    %6160 = vmatpush1.msra.mxu0 0.0
    %6161 = vmatprep.subr.mxu0 0.0
    %6162 = vmatpush1.msra.mxu0 0.0
    %6163 = vmatprep.subr.mxu0 0.0
    %6164 = vmatpush1.msra.mxu0 0.0
    %6165 = vmatprep.subr.mxu0 0.0
    %6166 = vmatpush1.msra.mxu0 0.0
    %6167 = vmatprep.subr.mxu0 0.0
    %6168 = vmatpush1.msra.mxu0 0.0
    %6169 = vmatprep.subr.mxu0 0.0
    %6170 = vmatpush1.msra.mxu0 0.0
    %6171 = vmatprep.subr.mxu0 0.0
    %6172 = vmatpush1.msra.mxu0 0.0
    %6173 = vmatprep.subr.mxu0 0.0
    %6174 = vmatpush1.msra.mxu0 0.0
    %6175 = vmatprep.subr.mxu0 0.0
    %6176 = vmatpush1.msra.mxu0 0.0
    %6177 = vmatprep.subr.mxu0 0.0
    %6178 = vmatpush1.msra.mxu0 0.0
    %6179 = vmatprep.subr.mxu0 0.0
    %6180 = vmatpush1.msra.mxu0 0.0
    %v6181 = vand.u32 %v5834, 4294901760
    %v6182 = vsub.f32 %v5834, %v6181
    %v6183 = vand.u32 %v6182, 4294901760
    %6184 = vmatprep.subr.mxu0 %v6183
    %v6185 = vand.u32 %v5833, 4294901760
    %v6186 = vsub.f32 %v5833, %v6185
    %v6187 = vand.u32 %v6186, 4294901760
    %6188 = vmatpush1.msra.mxu0 %v6187
    %6189 = vmatprep.subr.mxu0 0.0
    %6190 = vmatpush2.msra.mxu0 0.0
    %6191 = vmatprep.subr.mxu0 0.0
    %6192 = vmatpush2.msra.mxu0 0.0
    %6193 = vmatprep.subr.mxu0 0.0
    %6194 = vmatpush2.msra.mxu0 0.0
    %6195 = vmatprep.subr.mxu0 0.0
    %6196 = vmatpush2.msra.mxu0 0.0
    %6197 = vmatprep.subr.mxu0 0.0
    %6198 = vmatpush2.msra.mxu0 0.0
    %6199 = vmatprep.subr.mxu0 0.0
    %6200 = vmatpush2.msra.mxu0 0.0
    %6201 = vmatprep.subr.mxu0 0.0
    %6202 = vmatpush2.msra.mxu0 0.0
    %6203 = vmatprep.subr.mxu0 0.0
    %6204 = vmatpush2.msra.mxu0 0.0
    %6205 = vmatprep.subr.mxu0 0.0
    %6206 = vmatpush2.msra.mxu0 0.0
    %6207 = vmatprep.subr.mxu0 0.0
    %6208 = vmatpush2.msra.mxu0 0.0
    %6209 = vmatprep.subr.mxu0 0.0
    %6210 = vmatpush2.msra.mxu0 0.0
    %6211 = vmatprep.subr.mxu0 0.0
    %6212 = vmatpush2.msra.mxu0 0.0
    %6213 = vmatprep.subr.mxu0 0.0
    %6214 = vmatpush2.msra.mxu0 0.0
    %6215 = vmatprep.subr.mxu0 0.0
    %6216 = vmatpush2.msra.mxu0 0.0
    %6217 = vmatprep.subr.mxu0 0.0
    %6218 = vmatpush2.msra.mxu0 0.0
    %6219 = vmatprep.subr.mxu0 0.0
    %6220 = vmatpush2.msra.mxu0 0.0
    %6221 = vmatprep.mubr.f32.mxu0 0.0
    %v6222 = vand.u32 %v5836, 4294901760
    %6223 = vmatmul.mubr.f32.gmra.mxu0 %v6222
    %v6224 = vpop.f32.mrf.mxu0
    %v6225 = vadd.f32 %v6147, %v6224
    %v6226 = vpop.f32.mrf.mxu0
    %v6227 = vadd.f32 %v6149, %v6226
    %6228 = vdwg.mxu0
    %6229 = vmatprep.subr.mxu0 0.0
    %6230 = vmatpush1.msra.mxu0 0.0
    %6231 = vmatprep.subr.mxu0 0.0
    %6232 = vmatpush1.msra.mxu0 0.0
    %6233 = vmatprep.subr.mxu0 0.0
    %6234 = vmatpush1.msra.mxu0 0.0
    %6235 = vmatprep.subr.mxu0 0.0
    %6236 = vmatpush1.msra.mxu0 0.0
    %6237 = vmatprep.subr.mxu0 0.0
    %6238 = vmatpush1.msra.mxu0 0.0
    %6239 = vmatprep.subr.mxu0 0.0
    %6240 = vmatpush1.msra.mxu0 0.0
    %6241 = vmatprep.subr.mxu0 0.0
    %6242 = vmatpush1.msra.mxu0 0.0
    %6243 = vmatprep.subr.mxu0 0.0
    %6244 = vmatpush1.msra.mxu0 0.0
    %6245 = vmatprep.subr.mxu0 0.0
    %6246 = vmatpush1.msra.mxu0 0.0
    %6247 = vmatprep.subr.mxu0 0.0
    %6248 = vmatpush1.msra.mxu0 0.0
    %6249 = vmatprep.subr.mxu0 0.0
    %6250 = vmatpush1.msra.mxu0 0.0
    %6251 = vmatprep.subr.mxu0 0.0
    %6252 = vmatpush1.msra.mxu0 0.0
    %6253 = vmatprep.subr.mxu0 0.0
    %6254 = vmatpush1.msra.mxu0 0.0
    %6255 = vmatprep.subr.mxu0 0.0
    %6256 = vmatpush1.msra.mxu0 0.0
    %6257 = vmatprep.subr.mxu0 0.0
    %6258 = vmatpush1.msra.mxu0 0.0
    %v6259 = vand.u32 %v5834, 4294901760
    %6260 = vmatprep.subr.mxu0 %v6259
    %v6261 = vand.u32 %v5833, 4294901760
    %6262 = vmatpush1.msra.mxu0 %v6261
    %6263 = vmatprep.subr.mxu0 0.0
    %6264 = vmatpush2.msra.mxu0 0.0
    %6265 = vmatprep.subr.mxu0 0.0
    %6266 = vmatpush2.msra.mxu0 0.0
    %6267 = vmatprep.subr.mxu0 0.0
    %6268 = vmatpush2.msra.mxu0 0.0
    %6269 = vmatprep.subr.mxu0 0.0
    %6270 = vmatpush2.msra.mxu0 0.0
    %6271 = vmatprep.subr.mxu0 0.0
    %6272 = vmatpush2.msra.mxu0 0.0
    %6273 = vmatprep.subr.mxu0 0.0
    %6274 = vmatpush2.msra.mxu0 0.0
    %6275 = vmatprep.subr.mxu0 0.0
    %6276 = vmatpush2.msra.mxu0 0.0
    %6277 = vmatprep.subr.mxu0 0.0
    %6278 = vmatpush2.msra.mxu0 0.0
    %6279 = vmatprep.subr.mxu0 0.0
    %6280 = vmatpush2.msra.mxu0 0.0
    %6281 = vmatprep.subr.mxu0 0.0
    %6282 = vmatpush2.msra.mxu0 0.0
    %6283 = vmatprep.subr.mxu0 0.0
    %6284 = vmatpush2.msra.mxu0 0.0
    %6285 = vmatprep.subr.mxu0 0.0
    %6286 = vmatpush2.msra.mxu0 0.0
    %6287 = vmatprep.subr.mxu0 0.0
    %6288 = vmatpush2.msra.mxu0 0.0
    %6289 = vmatprep.subr.mxu0 0.0
    %6290 = vmatpush2.msra.mxu0 0.0
    %6291 = vmatprep.subr.mxu0 0.0
    %6292 = vmatpush2.msra.mxu0 0.0
    %6293 = vmatprep.subr.mxu0 0.0
    %6294 = vmatpush2.msra.mxu0 0.0
    %6295 = vmatprep.mubr.f32.mxu0 0.0
    %v6296 = vand.u32 %v5836, 4294901760
    %6297 = vmatmul.mubr.f32.gmra.mxu0 %v6296
    %v6298 = vpop.f32.mrf.mxu0
    %v6299 = vadd.f32 %v6225, %v6298
    %v6300 = vpop.f32.mrf.mxu0
    %v6301 = vadd.f32 %v6227, %v6300
    %6302 = vdwg.mxu0
    %v6303 = vadd.f32 %v5825, %v6299
    %v6304 = vadd.f32 %v5826, %v6301
    %6305 = vrot.lane.b32.xlu0 %v4403, 1
    %v6306 = vpop.permute.xlu0 %6305
    %6307 = vrot.lane.b32.xlu0 %v4404, 1
    %v6308 = vpop.permute.xlu0 %6307
    %v6309 = vsel %vm2014, %v6306, %v6308
    %v6310 = vsel %vm2014, %v6308, %v6306
    %v6311 = vmul.f32 %v6310, %v67
    %v6312 = vmul.f32 %v6309, %v71
    %v6314 = vsel %vm115, %v32, 0
    %6316 = vmatprep.subr.mxu0 0.0
    %6317 = vmatpush1.msra.mxu0 0.0
    %6318 = vmatprep.subr.mxu0 0.0
    %6319 = vmatpush1.msra.mxu0 0.0
    %6320 = vmatprep.subr.mxu0 0.0
    %6321 = vmatpush1.msra.mxu0 0.0
    %6322 = vmatprep.subr.mxu0 0.0
    %6323 = vmatpush1.msra.mxu0 0.0
    %6324 = vmatprep.subr.mxu0 0.0
    %6325 = vmatpush1.msra.mxu0 0.0
    %6326 = vmatprep.subr.mxu0 0.0
    %6327 = vmatpush1.msra.mxu0 0.0
    %6328 = vmatprep.subr.mxu0 0.0
    %6329 = vmatpush1.msra.mxu0 0.0
    %6330 = vmatprep.subr.mxu0 0.0
    %6331 = vmatpush1.msra.mxu0 0.0
    %6332 = vmatprep.subr.mxu0 0.0
    %6333 = vmatpush1.msra.mxu0 0.0
    %6334 = vmatprep.subr.mxu0 0.0
    %6335 = vmatpush1.msra.mxu0 0.0
    %6336 = vmatprep.subr.mxu0 0.0
    %6337 = vmatpush1.msra.mxu0 0.0
    %6338 = vmatprep.subr.mxu0 0.0
    %6339 = vmatpush1.msra.mxu0 0.0
    %6340 = vmatprep.subr.mxu0 0.0
    %6341 = vmatpush1.msra.mxu0 0.0
    %6342 = vmatprep.subr.mxu0 0.0
    %6343 = vmatpush1.msra.mxu0 0.0
    %6344 = vmatprep.subr.mxu0 0.0
    %6345 = vmatpush1.msra.mxu0 0.0
    %v6346 = vand.u32 %v6312, 4294901760
    %6347 = vmatprep.subr.mxu0 %v6346
    %v6348 = vand.u32 %v6311, 4294901760
    %6349 = vmatpush1.msra.mxu0 %v6348
    %6350 = vmatprep.subr.mxu0 0.0
    %6351 = vmatpush2.msra.mxu0 0.0
    %6352 = vmatprep.subr.mxu0 0.0
    %6353 = vmatpush2.msra.mxu0 0.0
    %6354 = vmatprep.subr.mxu0 0.0
    %6355 = vmatpush2.msra.mxu0 0.0
    %6356 = vmatprep.subr.mxu0 0.0
    %6357 = vmatpush2.msra.mxu0 0.0
    %6358 = vmatprep.subr.mxu0 0.0
    %6359 = vmatpush2.msra.mxu0 0.0
    %6360 = vmatprep.subr.mxu0 0.0
    %6361 = vmatpush2.msra.mxu0 0.0
    %6362 = vmatprep.subr.mxu0 0.0
    %6363 = vmatpush2.msra.mxu0 0.0
    %6364 = vmatprep.subr.mxu0 0.0
    %6365 = vmatpush2.msra.mxu0 0.0
    %6366 = vmatprep.subr.mxu0 0.0
    %6367 = vmatpush2.msra.mxu0 0.0
    %6368 = vmatprep.subr.mxu0 0.0
    %6369 = vmatpush2.msra.mxu0 0.0
    %6370 = vmatprep.subr.mxu0 0.0
    %6371 = vmatpush2.msra.mxu0 0.0
    %6372 = vmatprep.subr.mxu0 0.0
    %6373 = vmatpush2.msra.mxu0 0.0
    %6374 = vmatprep.subr.mxu0 0.0
    %6375 = vmatpush2.msra.mxu0 0.0
    %6376 = vmatprep.subr.mxu0 0.0
    %6377 = vmatpush2.msra.mxu0 0.0
    %6378 = vmatprep.subr.mxu0 0.0
    %6379 = vmatpush2.msra.mxu0 0.0
    %6380 = vmatprep.subr.mxu0 0.0
    %6381 = vmatpush2.msra.mxu0 0.0
    %6382 = vmatprep.mubr.f32.mxu0 0.0
    %v6383 = vand.u32 %v6314, 4294901760
    %v6384 = vsub.f32 %v6314, %v6383
    %v6385 = vand.u32 %v6384, 4294901760
    %v6386 = vsub.f32 %v6384, %v6385
    %v6387 = vand.u32 %v6386, 4294901760
    %6388 = vmatmul.mubr.f32.gmra.mxu0 %v6387
    %v6389 = vpop.f32.mrf.mxu0
    %v6390 = vadd.f32 0.0, %v6389
    %v6391 = vpop.f32.mrf.mxu0
    %v6392 = vadd.f32 0.0, %v6391
    %6393 = vdwg.mxu0
    %6394 = vmatprep.subr.mxu0 0.0
    %6395 = vmatpush1.msra.mxu0 0.0
    %6396 = vmatprep.subr.mxu0 0.0
    %6397 = vmatpush1.msra.mxu0 0.0
    %6398 = vmatprep.subr.mxu0 0.0
    %6399 = vmatpush1.msra.mxu0 0.0
    %6400 = vmatprep.subr.mxu0 0.0
    %6401 = vmatpush1.msra.mxu0 0.0
    %6402 = vmatprep.subr.mxu0 0.0
    %6403 = vmatpush1.msra.mxu0 0.0
    %6404 = vmatprep.subr.mxu0 0.0
    %6405 = vmatpush1.msra.mxu0 0.0
    %6406 = vmatprep.subr.mxu0 0.0
    %6407 = vmatpush1.msra.mxu0 0.0
    %6408 = vmatprep.subr.mxu0 0.0
    %6409 = vmatpush1.msra.mxu0 0.0
    %6410 = vmatprep.subr.mxu0 0.0
    %6411 = vmatpush1.msra.mxu0 0.0
    %6412 = vmatprep.subr.mxu0 0.0
    %6413 = vmatpush1.msra.mxu0 0.0
    %6414 = vmatprep.subr.mxu0 0.0
    %6415 = vmatpush1.msra.mxu0 0.0
    %6416 = vmatprep.subr.mxu0 0.0
    %6417 = vmatpush1.msra.mxu0 0.0
    %6418 = vmatprep.subr.mxu0 0.0
    %6419 = vmatpush1.msra.mxu0 0.0
    %6420 = vmatprep.subr.mxu0 0.0
    %6421 = vmatpush1.msra.mxu0 0.0
    %6422 = vmatprep.subr.mxu0 0.0
    %6423 = vmatpush1.msra.mxu0 0.0
    %v6424 = vand.u32 %v6312, 4294901760
    %v6425 = vsub.f32 %v6312, %v6424
    %v6426 = vand.u32 %v6425, 4294901760
    %v6427 = vsub.f32 %v6425, %v6426
    %v6428 = vand.u32 %v6427, 4294901760
    %6429 = vmatprep.subr.mxu0 %v6428
    %v6430 = vand.u32 %v6311, 4294901760
    %v6431 = vsub.f32 %v6311, %v6430
    %v6432 = vand.u32 %v6431, 4294901760
    %v6433 = vsub.f32 %v6431, %v6432
    %v6434 = vand.u32 %v6433, 4294901760
    %6435 = vmatpush1.msra.mxu0 %v6434
    %6436 = vmatprep.subr.mxu0 0.0
    %6437 = vmatpush2.msra.mxu0 0.0
    %6438 = vmatprep.subr.mxu0 0.0
    %6439 = vmatpush2.msra.mxu0 0.0
    %6440 = vmatprep.subr.mxu0 0.0
    %6441 = vmatpush2.msra.mxu0 0.0
    %6442 = vmatprep.subr.mxu0 0.0
    %6443 = vmatpush2.msra.mxu0 0.0
    %6444 = vmatprep.subr.mxu0 0.0
    %6445 = vmatpush2.msra.mxu0 0.0
    %6446 = vmatprep.subr.mxu0 0.0
    %6447 = vmatpush2.msra.mxu0 0.0
    %6448 = vmatprep.subr.mxu0 0.0
    %6449 = vmatpush2.msra.mxu0 0.0
    %6450 = vmatprep.subr.mxu0 0.0
    %6451 = vmatpush2.msra.mxu0 0.0
    %6452 = vmatprep.subr.mxu0 0.0
    %6453 = vmatpush2.msra.mxu0 0.0
    %6454 = vmatprep.subr.mxu0 0.0
    %6455 = vmatpush2.msra.mxu0 0.0
    %6456 = vmatprep.subr.mxu0 0.0
    %6457 = vmatpush2.msra.mxu0 0.0
    %6458 = vmatprep.subr.mxu0 0.0
    %6459 = vmatpush2.msra.mxu0 0.0
    %6460 = vmatprep.subr.mxu0 0.0
    %6461 = vmatpush2.msra.mxu0 0.0
    %6462 = vmatprep.subr.mxu0 0.0
    %6463 = vmatpush2.msra.mxu0 0.0
    %6464 = vmatprep.subr.mxu0 0.0
    %6465 = vmatpush2.msra.mxu0 0.0
    %6466 = vmatprep.subr.mxu0 0.0
    %6467 = vmatpush2.msra.mxu0 0.0
    %6468 = vmatprep.mubr.f32.mxu0 0.0
    %v6469 = vand.u32 %v6314, 4294901760
    %6470 = vmatmul.mubr.f32.gmra.mxu0 %v6469
    %v6471 = vpop.f32.mrf.mxu0
    %v6472 = vadd.f32 %v6390, %v6471
    %v6473 = vpop.f32.mrf.mxu0
    %v6474 = vadd.f32 %v6392, %v6473
    %6475 = vdwg.mxu0
    %6476 = vmatprep.subr.mxu0 0.0
    %6477 = vmatpush1.msra.mxu0 0.0
    %6478 = vmatprep.subr.mxu0 0.0
    %6479 = vmatpush1.msra.mxu0 0.0
    %6480 = vmatprep.subr.mxu0 0.0
    %6481 = vmatpush1.msra.mxu0 0.0
    %6482 = vmatprep.subr.mxu0 0.0
    %6483 = vmatpush1.msra.mxu0 0.0
    %6484 = vmatprep.subr.mxu0 0.0
    %6485 = vmatpush1.msra.mxu0 0.0
    %6486 = vmatprep.subr.mxu0 0.0
    %6487 = vmatpush1.msra.mxu0 0.0
    %6488 = vmatprep.subr.mxu0 0.0
    %6489 = vmatpush1.msra.mxu0 0.0
    %6490 = vmatprep.subr.mxu0 0.0
    %6491 = vmatpush1.msra.mxu0 0.0
    %6492 = vmatprep.subr.mxu0 0.0
    %6493 = vmatpush1.msra.mxu0 0.0
    %6494 = vmatprep.subr.mxu0 0.0
    %6495 = vmatpush1.msra.mxu0 0.0
    %6496 = vmatprep.subr.mxu0 0.0
    %6497 = vmatpush1.msra.mxu0 0.0
    %6498 = vmatprep.subr.mxu0 0.0
    %6499 = vmatpush1.msra.mxu0 0.0
    %6500 = vmatprep.subr.mxu0 0.0
    %6501 = vmatpush1.msra.mxu0 0.0
    %6502 = vmatprep.subr.mxu0 0.0
    %6503 = vmatpush1.msra.mxu0 0.0
    %6504 = vmatprep.subr.mxu0 0.0
    %6505 = vmatpush1.msra.mxu0 0.0
    %v6506 = vand.u32 %v6312, 4294901760
    %v6507 = vsub.f32 %v6312, %v6506
    %6508 = vmatprep.subr.mxu0 %v6507
    %v6509 = vand.u32 %v6311, 4294901760
    %v6510 = vsub.f32 %v6311, %v6509
    %6511 = vmatpush1.msra.mxu0 %v6510
    %6512 = vmatprep.subr.mxu0 0.0
    %6513 = vmatpush2.msra.mxu0 0.0
    %6514 = vmatprep.subr.mxu0 0.0
    %6515 = vmatpush2.msra.mxu0 0.0
    %6516 = vmatprep.subr.mxu0 0.0
    %6517 = vmatpush2.msra.mxu0 0.0
    %6518 = vmatprep.subr.mxu0 0.0
    %6519 = vmatpush2.msra.mxu0 0.0
    %6520 = vmatprep.subr.mxu0 0.0
    %6521 = vmatpush2.msra.mxu0 0.0
    %6522 = vmatprep.subr.mxu0 0.0
    %6523 = vmatpush2.msra.mxu0 0.0
    %6524 = vmatprep.subr.mxu0 0.0
    %6525 = vmatpush2.msra.mxu0 0.0
    %6526 = vmatprep.subr.mxu0 0.0
    %6527 = vmatpush2.msra.mxu0 0.0
    %6528 = vmatprep.subr.mxu0 0.0
    %6529 = vmatpush2.msra.mxu0 0.0
    %6530 = vmatprep.subr.mxu0 0.0
    %6531 = vmatpush2.msra.mxu0 0.0
    %6532 = vmatprep.subr.mxu0 0.0
    %6533 = vmatpush2.msra.mxu0 0.0
    %6534 = vmatprep.subr.mxu0 0.0
    %6535 = vmatpush2.msra.mxu0 0.0
    %6536 = vmatprep.subr.mxu0 0.0
    %6537 = vmatpush2.msra.mxu0 0.0
    %6538 = vmatprep.subr.mxu0 0.0
    %6539 = vmatpush2.msra.mxu0 0.0
    %6540 = vmatprep.subr.mxu0 0.0
    %6541 = vmatpush2.msra.mxu0 0.0
    %6542 = vmatprep.subr.mxu0 0.0
    %6543 = vmatpush2.msra.mxu0 0.0
    %6544 = vmatprep.mubr.f32.mxu0 0.0
    %v6545 = vand.u32 %v6314, 4294901760
    %v6546 = vsub.f32 %v6314, %v6545
    %6547 = vmatmul.mubr.f32.gmra.mxu0 %v6546
    %v6548 = vpop.f32.mrf.mxu0
    %v6549 = vadd.f32 %v6472, %v6548
    %v6550 = vpop.f32.mrf.mxu0
    %v6551 = vadd.f32 %v6474, %v6550
    %6552 = vdwg.mxu0
    %6553 = vmatprep.subr.mxu0 0.0
    %6554 = vmatpush1.msra.mxu0 0.0
    %6555 = vmatprep.subr.mxu0 0.0
    %6556 = vmatpush1.msra.mxu0 0.0
    %6557 = vmatprep.subr.mxu0 0.0
    %6558 = vmatpush1.msra.mxu0 0.0
    %6559 = vmatprep.subr.mxu0 0.0
    %6560 = vmatpush1.msra.mxu0 0.0
    %6561 = vmatprep.subr.mxu0 0.0
    %6562 = vmatpush1.msra.mxu0 0.0
    %6563 = vmatprep.subr.mxu0 0.0
    %6564 = vmatpush1.msra.mxu0 0.0
    %6565 = vmatprep.subr.mxu0 0.0
    %6566 = vmatpush1.msra.mxu0 0.0
    %6567 = vmatprep.subr.mxu0 0.0
    %6568 = vmatpush1.msra.mxu0 0.0
    %6569 = vmatprep.subr.mxu0 0.0
    %6570 = vmatpush1.msra.mxu0 0.0
    %6571 = vmatprep.subr.mxu0 0.0
    %6572 = vmatpush1.msra.mxu0 0.0
    %6573 = vmatprep.subr.mxu0 0.0
    %6574 = vmatpush1.msra.mxu0 0.0
    %6575 = vmatprep.subr.mxu0 0.0
    %6576 = vmatpush1.msra.mxu0 0.0
    %6577 = vmatprep.subr.mxu0 0.0
    %6578 = vmatpush1.msra.mxu0 0.0
    %6579 = vmatprep.subr.mxu0 0.0
    %6580 = vmatpush1.msra.mxu0 0.0
    %6581 = vmatprep.subr.mxu0 0.0
    %6582 = vmatpush1.msra.mxu0 0.0
    %v6583 = vand.u32 %v6312, 4294901760
    %6584 = vmatprep.subr.mxu0 %v6583
    %v6585 = vand.u32 %v6311, 4294901760
    %6586 = vmatpush1.msra.mxu0 %v6585
    %6587 = vmatprep.subr.mxu0 0.0
    %6588 = vmatpush2.msra.mxu0 0.0
    %6589 = vmatprep.subr.mxu0 0.0
    %6590 = vmatpush2.msra.mxu0 0.0
    %6591 = vmatprep.subr.mxu0 0.0
    %6592 = vmatpush2.msra.mxu0 0.0
    %6593 = vmatprep.subr.mxu0 0.0
    %6594 = vmatpush2.msra.mxu0 0.0
    %6595 = vmatprep.subr.mxu0 0.0
    %6596 = vmatpush2.msra.mxu0 0.0
    %6597 = vmatprep.subr.mxu0 0.0
    %6598 = vmatpush2.msra.mxu0 0.0
    %6599 = vmatprep.subr.mxu0 0.0
    %6600 = vmatpush2.msra.mxu0 0.0
    %6601 = vmatprep.subr.mxu0 0.0
    %6602 = vmatpush2.msra.mxu0 0.0
    %6603 = vmatprep.subr.mxu0 0.0
    %6604 = vmatpush2.msra.mxu0 0.0
    %6605 = vmatprep.subr.mxu0 0.0
    %6606 = vmatpush2.msra.mxu0 0.0
    %6607 = vmatprep.subr.mxu0 0.0
    %6608 = vmatpush2.msra.mxu0 0.0
    %6609 = vmatprep.subr.mxu0 0.0
    %6610 = vmatpush2.msra.mxu0 0.0
    %6611 = vmatprep.subr.mxu0 0.0
    %6612 = vmatpush2.msra.mxu0 0.0
    %6613 = vmatprep.subr.mxu0 0.0
    %6614 = vmatpush2.msra.mxu0 0.0
    %6615 = vmatprep.subr.mxu0 0.0
    %6616 = vmatpush2.msra.mxu0 0.0
    %6617 = vmatprep.subr.mxu0 0.0
    %6618 = vmatpush2.msra.mxu0 0.0
    %6619 = vmatprep.mubr.f32.mxu0 0.0
    %v6620 = vand.u32 %v6314, 4294901760
    %v6621 = vsub.f32 %v6314, %v6620
    %v6622 = vand.u32 %v6621, 4294901760
    %6623 = vmatmul.mubr.f32.gmra.mxu0 %v6622
    %v6624 = vpop.f32.mrf.mxu0
    %v6625 = vadd.f32 %v6549, %v6624
    %v6626 = vpop.f32.mrf.mxu0
    %v6627 = vadd.f32 %v6551, %v6626
    %6628 = vdwg.mxu0
    %6629 = vmatprep.subr.mxu0 0.0
    %6630 = vmatpush1.msra.mxu0 0.0
    %6631 = vmatprep.subr.mxu0 0.0
    %6632 = vmatpush1.msra.mxu0 0.0
    %6633 = vmatprep.subr.mxu0 0.0
    %6634 = vmatpush1.msra.mxu0 0.0
    %6635 = vmatprep.subr.mxu0 0.0
    %6636 = vmatpush1.msra.mxu0 0.0
    %6637 = vmatprep.subr.mxu0 0.0
    %6638 = vmatpush1.msra.mxu0 0.0
    %6639 = vmatprep.subr.mxu0 0.0
    %6640 = vmatpush1.msra.mxu0 0.0
    %6641 = vmatprep.subr.mxu0 0.0
    %6642 = vmatpush1.msra.mxu0 0.0
    %6643 = vmatprep.subr.mxu0 0.0
    %6644 = vmatpush1.msra.mxu0 0.0
    %6645 = vmatprep.subr.mxu0 0.0
    %6646 = vmatpush1.msra.mxu0 0.0
    %6647 = vmatprep.subr.mxu0 0.0
    %6648 = vmatpush1.msra.mxu0 0.0
    %6649 = vmatprep.subr.mxu0 0.0
    %6650 = vmatpush1.msra.mxu0 0.0
    %6651 = vmatprep.subr.mxu0 0.0
    %6652 = vmatpush1.msra.mxu0 0.0
    %6653 = vmatprep.subr.mxu0 0.0
    %6654 = vmatpush1.msra.mxu0 0.0
    %6655 = vmatprep.subr.mxu0 0.0
    %6656 = vmatpush1.msra.mxu0 0.0
    %6657 = vmatprep.subr.mxu0 0.0
    %6658 = vmatpush1.msra.mxu0 0.0
    %v6659 = vand.u32 %v6312, 4294901760
    %v6660 = vsub.f32 %v6312, %v6659
    %v6661 = vand.u32 %v6660, 4294901760
    %6662 = vmatprep.subr.mxu0 %v6661
    %v6663 = vand.u32 %v6311, 4294901760
    %v6664 = vsub.f32 %v6311, %v6663
    %v6665 = vand.u32 %v6664, 4294901760
    %6666 = vmatpush1.msra.mxu0 %v6665
    %6667 = vmatprep.subr.mxu0 0.0
    %6668 = vmatpush2.msra.mxu0 0.0
    %6669 = vmatprep.subr.mxu0 0.0
    %6670 = vmatpush2.msra.mxu0 0.0
    %6671 = vmatprep.subr.mxu0 0.0
    %6672 = vmatpush2.msra.mxu0 0.0
    %6673 = vmatprep.subr.mxu0 0.0
    %6674 = vmatpush2.msra.mxu0 0.0
    %6675 = vmatprep.subr.mxu0 0.0
    %6676 = vmatpush2.msra.mxu0 0.0
    %6677 = vmatprep.subr.mxu0 0.0
    %6678 = vmatpush2.msra.mxu0 0.0
    %6679 = vmatprep.subr.mxu0 0.0
    %6680 = vmatpush2.msra.mxu0 0.0
    %6681 = vmatprep.subr.mxu0 0.0
    %6682 = vmatpush2.msra.mxu0 0.0
    %6683 = vmatprep.subr.mxu0 0.0
    %6684 = vmatpush2.msra.mxu0 0.0
    %6685 = vmatprep.subr.mxu0 0.0
    %6686 = vmatpush2.msra.mxu0 0.0
    %6687 = vmatprep.subr.mxu0 0.0
    %6688 = vmatpush2.msra.mxu0 0.0
    %6689 = vmatprep.subr.mxu0 0.0
    %6690 = vmatpush2.msra.mxu0 0.0
    %6691 = vmatprep.subr.mxu0 0.0
    %6692 = vmatpush2.msra.mxu0 0.0
    %6693 = vmatprep.subr.mxu0 0.0
    %6694 = vmatpush2.msra.mxu0 0.0
    %6695 = vmatprep.subr.mxu0 0.0
    %6696 = vmatpush2.msra.mxu0 0.0
    %6697 = vmatprep.subr.mxu0 0.0
    %6698 = vmatpush2.msra.mxu0 0.0
    %6699 = vmatprep.mubr.f32.mxu0 0.0
    %v6700 = vand.u32 %v6314, 4294901760
    %6701 = vmatmul.mubr.f32.gmra.mxu0 %v6700
    %v6702 = vpop.f32.mrf.mxu0
    %v6703 = vadd.f32 %v6625, %v6702
    %v6704 = vpop.f32.mrf.mxu0
    %v6705 = vadd.f32 %v6627, %v6704
    %6706 = vdwg.mxu0
    %6707 = vmatprep.subr.mxu0 0.0
    %6708 = vmatpush1.msra.mxu0 0.0
    %6709 = vmatprep.subr.mxu0 0.0
    %6710 = vmatpush1.msra.mxu0 0.0
    %6711 = vmatprep.subr.mxu0 0.0
    %6712 = vmatpush1.msra.mxu0 0.0
    %6713 = vmatprep.subr.mxu0 0.0
    %6714 = vmatpush1.msra.mxu0 0.0
    %6715 = vmatprep.subr.mxu0 0.0
    %6716 = vmatpush1.msra.mxu0 0.0
    %6717 = vmatprep.subr.mxu0 0.0
    %6718 = vmatpush1.msra.mxu0 0.0
    %6719 = vmatprep.subr.mxu0 0.0
    %6720 = vmatpush1.msra.mxu0 0.0
    %6721 = vmatprep.subr.mxu0 0.0
    %6722 = vmatpush1.msra.mxu0 0.0
    %6723 = vmatprep.subr.mxu0 0.0
    %6724 = vmatpush1.msra.mxu0 0.0
    %6725 = vmatprep.subr.mxu0 0.0
    %6726 = vmatpush1.msra.mxu0 0.0
    %6727 = vmatprep.subr.mxu0 0.0
    %6728 = vmatpush1.msra.mxu0 0.0
    %6729 = vmatprep.subr.mxu0 0.0
    %6730 = vmatpush1.msra.mxu0 0.0
    %6731 = vmatprep.subr.mxu0 0.0
    %6732 = vmatpush1.msra.mxu0 0.0
    %6733 = vmatprep.subr.mxu0 0.0
    %6734 = vmatpush1.msra.mxu0 0.0
    %6735 = vmatprep.subr.mxu0 0.0
    %6736 = vmatpush1.msra.mxu0 0.0
    %v6737 = vand.u32 %v6312, 4294901760
    %6738 = vmatprep.subr.mxu0 %v6737
    %v6739 = vand.u32 %v6311, 4294901760
    %6740 = vmatpush1.msra.mxu0 %v6739
    %6741 = vmatprep.subr.mxu0 0.0
    %6742 = vmatpush2.msra.mxu0 0.0
    %6743 = vmatprep.subr.mxu0 0.0
    %6744 = vmatpush2.msra.mxu0 0.0
    %6745 = vmatprep.subr.mxu0 0.0
    %6746 = vmatpush2.msra.mxu0 0.0
    %6747 = vmatprep.subr.mxu0 0.0
    %6748 = vmatpush2.msra.mxu0 0.0
    %6749 = vmatprep.subr.mxu0 0.0
    %6750 = vmatpush2.msra.mxu0 0.0
    %6751 = vmatprep.subr.mxu0 0.0
    %6752 = vmatpush2.msra.mxu0 0.0
    %6753 = vmatprep.subr.mxu0 0.0
    %6754 = vmatpush2.msra.mxu0 0.0
    %6755 = vmatprep.subr.mxu0 0.0
    %6756 = vmatpush2.msra.mxu0 0.0
    %6757 = vmatprep.subr.mxu0 0.0
    %6758 = vmatpush2.msra.mxu0 0.0
    %6759 = vmatprep.subr.mxu0 0.0
    %6760 = vmatpush2.msra.mxu0 0.0
    %6761 = vmatprep.subr.mxu0 0.0
    %6762 = vmatpush2.msra.mxu0 0.0
    %6763 = vmatprep.subr.mxu0 0.0
    %6764 = vmatpush2.msra.mxu0 0.0
    %6765 = vmatprep.subr.mxu0 0.0
    %6766 = vmatpush2.msra.mxu0 0.0
    %6767 = vmatprep.subr.mxu0 0.0
    %6768 = vmatpush2.msra.mxu0 0.0
    %6769 = vmatprep.subr.mxu0 0.0
    %6770 = vmatpush2.msra.mxu0 0.0
    %6771 = vmatprep.subr.mxu0 0.0
    %6772 = vmatpush2.msra.mxu0 0.0
    %6773 = vmatprep.mubr.f32.mxu0 0.0
    %v6774 = vand.u32 %v6314, 4294901760
    %6775 = vmatmul.mubr.f32.gmra.mxu0 %v6774
    %v6776 = vpop.f32.mrf.mxu0
    %v6777 = vadd.f32 %v6703, %v6776
    %v6778 = vpop.f32.mrf.mxu0
    %v6779 = vadd.f32 %v6705, %v6778
    %6780 = vdwg.mxu0
    %v6781 = vadd.f32 %v6303, %v6777
    %v6782 = vadd.f32 %v6304, %v6779
    %6783 = vrot.lane.b32.xlu0 %v4403, 127
    %v6784 = vpop.permute.xlu0 %6783
    %6785 = vrot.lane.b32.xlu0 %v4404, 127
    %v6786 = vpop.permute.xlu0 %6785
    %v6787 = vsel %vm2493, %v6784, %v6786
    %v6788 = vsel %vm2493, %v6786, %v6784
    %v6789 = vmul.f32 %v6787, %v75
    %v6790 = vmul.f32 %v6788, %v79
    %v6792 = vsel %vm115, %v34, 0
    %6794 = vmatprep.subr.mxu0 0.0
    %6795 = vmatpush1.msra.mxu0 0.0
    %6796 = vmatprep.subr.mxu0 0.0
    %6797 = vmatpush1.msra.mxu0 0.0
    %6798 = vmatprep.subr.mxu0 0.0
    %6799 = vmatpush1.msra.mxu0 0.0
    %6800 = vmatprep.subr.mxu0 0.0
    %6801 = vmatpush1.msra.mxu0 0.0
    %6802 = vmatprep.subr.mxu0 0.0
    %6803 = vmatpush1.msra.mxu0 0.0
    %6804 = vmatprep.subr.mxu0 0.0
    %6805 = vmatpush1.msra.mxu0 0.0
    %6806 = vmatprep.subr.mxu0 0.0
    %6807 = vmatpush1.msra.mxu0 0.0
    %6808 = vmatprep.subr.mxu0 0.0
    %6809 = vmatpush1.msra.mxu0 0.0
    %6810 = vmatprep.subr.mxu0 0.0
    %6811 = vmatpush1.msra.mxu0 0.0
    %6812 = vmatprep.subr.mxu0 0.0
    %6813 = vmatpush1.msra.mxu0 0.0
    %6814 = vmatprep.subr.mxu0 0.0
    %6815 = vmatpush1.msra.mxu0 0.0
    %6816 = vmatprep.subr.mxu0 0.0
    %6817 = vmatpush1.msra.mxu0 0.0
    %6818 = vmatprep.subr.mxu0 0.0
    %6819 = vmatpush1.msra.mxu0 0.0
    %6820 = vmatprep.subr.mxu0 0.0
    %6821 = vmatpush1.msra.mxu0 0.0
    %6822 = vmatprep.subr.mxu0 0.0
    %6823 = vmatpush1.msra.mxu0 0.0
    %v6824 = vand.u32 %v6790, 4294901760
    %6825 = vmatprep.subr.mxu0 %v6824
    %v6826 = vand.u32 %v6789, 4294901760
    %6827 = vmatpush1.msra.mxu0 %v6826
    %6828 = vmatprep.subr.mxu0 0.0
    %6829 = vmatpush2.msra.mxu0 0.0
    %6830 = vmatprep.subr.mxu0 0.0
    %6831 = vmatpush2.msra.mxu0 0.0
    %6832 = vmatprep.subr.mxu0 0.0
    %6833 = vmatpush2.msra.mxu0 0.0
    %6834 = vmatprep.subr.mxu0 0.0
    %6835 = vmatpush2.msra.mxu0 0.0
    %6836 = vmatprep.subr.mxu0 0.0
    %6837 = vmatpush2.msra.mxu0 0.0
    %6838 = vmatprep.subr.mxu0 0.0
    %6839 = vmatpush2.msra.mxu0 0.0
    %6840 = vmatprep.subr.mxu0 0.0
    %6841 = vmatpush2.msra.mxu0 0.0
    %6842 = vmatprep.subr.mxu0 0.0
    %6843 = vmatpush2.msra.mxu0 0.0
    %6844 = vmatprep.subr.mxu0 0.0
    %6845 = vmatpush2.msra.mxu0 0.0
    %6846 = vmatprep.subr.mxu0 0.0
    %6847 = vmatpush2.msra.mxu0 0.0
    %6848 = vmatprep.subr.mxu0 0.0
    %6849 = vmatpush2.msra.mxu0 0.0
    %6850 = vmatprep.subr.mxu0 0.0
    %6851 = vmatpush2.msra.mxu0 0.0
    %6852 = vmatprep.subr.mxu0 0.0
    %6853 = vmatpush2.msra.mxu0 0.0
    %6854 = vmatprep.subr.mxu0 0.0
    %6855 = vmatpush2.msra.mxu0 0.0
    %6856 = vmatprep.subr.mxu0 0.0
    %6857 = vmatpush2.msra.mxu0 0.0
    %6858 = vmatprep.subr.mxu0 0.0
    %6859 = vmatpush2.msra.mxu0 0.0
    %6860 = vmatprep.mubr.f32.mxu0 0.0
    %v6861 = vand.u32 %v6792, 4294901760
    %v6862 = vsub.f32 %v6792, %v6861
    %v6863 = vand.u32 %v6862, 4294901760
    %v6864 = vsub.f32 %v6862, %v6863
    %v6865 = vand.u32 %v6864, 4294901760
    %6866 = vmatmul.mubr.f32.gmra.mxu0 %v6865
    %v6867 = vpop.f32.mrf.mxu0
    %v6868 = vadd.f32 0.0, %v6867
    %v6869 = vpop.f32.mrf.mxu0
    %v6870 = vadd.f32 0.0, %v6869
    %6871 = vdwg.mxu0
    %6872 = vmatprep.subr.mxu0 0.0
    %6873 = vmatpush1.msra.mxu0 0.0
    %6874 = vmatprep.subr.mxu0 0.0
    %6875 = vmatpush1.msra.mxu0 0.0
    %6876 = vmatprep.subr.mxu0 0.0
    %6877 = vmatpush1.msra.mxu0 0.0
    %6878 = vmatprep.subr.mxu0 0.0
    %6879 = vmatpush1.msra.mxu0 0.0
    %6880 = vmatprep.subr.mxu0 0.0
    %6881 = vmatpush1.msra.mxu0 0.0
    %6882 = vmatprep.subr.mxu0 0.0
    %6883 = vmatpush1.msra.mxu0 0.0
    %6884 = vmatprep.subr.mxu0 0.0
    %6885 = vmatpush1.msra.mxu0 0.0
    %6886 = vmatprep.subr.mxu0 0.0
    %6887 = vmatpush1.msra.mxu0 0.0
    %6888 = vmatprep.subr.mxu0 0.0
    %6889 = vmatpush1.msra.mxu0 0.0
    %6890 = vmatprep.subr.mxu0 0.0
    %6891 = vmatpush1.msra.mxu0 0.0
    %6892 = vmatprep.subr.mxu0 0.0
    %6893 = vmatpush1.msra.mxu0 0.0
    %6894 = vmatprep.subr.mxu0 0.0
    %6895 = vmatpush1.msra.mxu0 0.0
    %6896 = vmatprep.subr.mxu0 0.0
    %6897 = vmatpush1.msra.mxu0 0.0
    %6898 = vmatprep.subr.mxu0 0.0
    %6899 = vmatpush1.msra.mxu0 0.0
    %6900 = vmatprep.subr.mxu0 0.0
    %6901 = vmatpush1.msra.mxu0 0.0
    %v6902 = vand.u32 %v6790, 4294901760
    %v6903 = vsub.f32 %v6790, %v6902
    %v6904 = vand.u32 %v6903, 4294901760
    %v6905 = vsub.f32 %v6903, %v6904
    %v6906 = vand.u32 %v6905, 4294901760
    %6907 = vmatprep.subr.mxu0 %v6906
    %v6908 = vand.u32 %v6789, 4294901760
    %v6909 = vsub.f32 %v6789, %v6908
    %v6910 = vand.u32 %v6909, 4294901760
    %v6911 = vsub.f32 %v6909, %v6910
    %v6912 = vand.u32 %v6911, 4294901760
    %6913 = vmatpush1.msra.mxu0 %v6912
    %6914 = vmatprep.subr.mxu0 0.0
    %6915 = vmatpush2.msra.mxu0 0.0
    %6916 = vmatprep.subr.mxu0 0.0
    %6917 = vmatpush2.msra.mxu0 0.0
    %6918 = vmatprep.subr.mxu0 0.0
    %6919 = vmatpush2.msra.mxu0 0.0
    %6920 = vmatprep.subr.mxu0 0.0
    %6921 = vmatpush2.msra.mxu0 0.0
    %6922 = vmatprep.subr.mxu0 0.0
    %6923 = vmatpush2.msra.mxu0 0.0
    %6924 = vmatprep.subr.mxu0 0.0
    %6925 = vmatpush2.msra.mxu0 0.0
    %6926 = vmatprep.subr.mxu0 0.0
    %6927 = vmatpush2.msra.mxu0 0.0
    %6928 = vmatprep.subr.mxu0 0.0
    %6929 = vmatpush2.msra.mxu0 0.0
    %6930 = vmatprep.subr.mxu0 0.0
    %6931 = vmatpush2.msra.mxu0 0.0
    %6932 = vmatprep.subr.mxu0 0.0
    %6933 = vmatpush2.msra.mxu0 0.0
    %6934 = vmatprep.subr.mxu0 0.0
    %6935 = vmatpush2.msra.mxu0 0.0
    %6936 = vmatprep.subr.mxu0 0.0
    %6937 = vmatpush2.msra.mxu0 0.0
    %6938 = vmatprep.subr.mxu0 0.0
    %6939 = vmatpush2.msra.mxu0 0.0
    %6940 = vmatprep.subr.mxu0 0.0
    %6941 = vmatpush2.msra.mxu0 0.0
    %6942 = vmatprep.subr.mxu0 0.0
    %6943 = vmatpush2.msra.mxu0 0.0
    %6944 = vmatprep.subr.mxu0 0.0
    %6945 = vmatpush2.msra.mxu0 0.0
    %6946 = vmatprep.mubr.f32.mxu0 0.0
    %v6947 = vand.u32 %v6792, 4294901760
    %6948 = vmatmul.mubr.f32.gmra.mxu0 %v6947
    %v6949 = vpop.f32.mrf.mxu0
    %v6950 = vadd.f32 %v6868, %v6949
    %v6951 = vpop.f32.mrf.mxu0
    %v6952 = vadd.f32 %v6870, %v6951
    %6953 = vdwg.mxu0
    %6954 = vmatprep.subr.mxu0 0.0
    %6955 = vmatpush1.msra.mxu0 0.0
    %6956 = vmatprep.subr.mxu0 0.0
    %6957 = vmatpush1.msra.mxu0 0.0
    %6958 = vmatprep.subr.mxu0 0.0
    %6959 = vmatpush1.msra.mxu0 0.0
    %6960 = vmatprep.subr.mxu0 0.0
    %6961 = vmatpush1.msra.mxu0 0.0
    %6962 = vmatprep.subr.mxu0 0.0
    %6963 = vmatpush1.msra.mxu0 0.0
    %6964 = vmatprep.subr.mxu0 0.0
    %6965 = vmatpush1.msra.mxu0 0.0
    %6966 = vmatprep.subr.mxu0 0.0
    %6967 = vmatpush1.msra.mxu0 0.0
    %6968 = vmatprep.subr.mxu0 0.0
    %6969 = vmatpush1.msra.mxu0 0.0
    %6970 = vmatprep.subr.mxu0 0.0
    %6971 = vmatpush1.msra.mxu0 0.0
    %6972 = vmatprep.subr.mxu0 0.0
    %6973 = vmatpush1.msra.mxu0 0.0
    %6974 = vmatprep.subr.mxu0 0.0
    %6975 = vmatpush1.msra.mxu0 0.0
    %6976 = vmatprep.subr.mxu0 0.0
    %6977 = vmatpush1.msra.mxu0 0.0
    %6978 = vmatprep.subr.mxu0 0.0
    %6979 = vmatpush1.msra.mxu0 0.0
    %6980 = vmatprep.subr.mxu0 0.0
    %6981 = vmatpush1.msra.mxu0 0.0
    %6982 = vmatprep.subr.mxu0 0.0
    %6983 = vmatpush1.msra.mxu0 0.0
    %v6984 = vand.u32 %v6790, 4294901760
    %v6985 = vsub.f32 %v6790, %v6984
    %6986 = vmatprep.subr.mxu0 %v6985
    %v6987 = vand.u32 %v6789, 4294901760
    %v6988 = vsub.f32 %v6789, %v6987
    %6989 = vmatpush1.msra.mxu0 %v6988
    %6990 = vmatprep.subr.mxu0 0.0
    %6991 = vmatpush2.msra.mxu0 0.0
    %6992 = vmatprep.subr.mxu0 0.0
    %6993 = vmatpush2.msra.mxu0 0.0
    %6994 = vmatprep.subr.mxu0 0.0
    %6995 = vmatpush2.msra.mxu0 0.0
    %6996 = vmatprep.subr.mxu0 0.0
    %6997 = vmatpush2.msra.mxu0 0.0
    %6998 = vmatprep.subr.mxu0 0.0
    %6999 = vmatpush2.msra.mxu0 0.0
    %7000 = vmatprep.subr.mxu0 0.0
    %7001 = vmatpush2.msra.mxu0 0.0
    %7002 = vmatprep.subr.mxu0 0.0
    %7003 = vmatpush2.msra.mxu0 0.0
    %7004 = vmatprep.subr.mxu0 0.0
    %7005 = vmatpush2.msra.mxu0 0.0
    %7006 = vmatprep.subr.mxu0 0.0
    %7007 = vmatpush2.msra.mxu0 0.0
    %7008 = vmatprep.subr.mxu0 0.0
    %7009 = vmatpush2.msra.mxu0 0.0
    %7010 = vmatprep.subr.mxu0 0.0
    %7011 = vmatpush2.msra.mxu0 0.0
    %7012 = vmatprep.subr.mxu0 0.0
    %7013 = vmatpush2.msra.mxu0 0.0
    %7014 = vmatprep.subr.mxu0 0.0
    %7015 = vmatpush2.msra.mxu0 0.0
    %7016 = vmatprep.subr.mxu0 0.0
    %7017 = vmatpush2.msra.mxu0 0.0
    %7018 = vmatprep.subr.mxu0 0.0
    %7019 = vmatpush2.msra.mxu0 0.0
    %7020 = vmatprep.subr.mxu0 0.0
    %7021 = vmatpush2.msra.mxu0 0.0
    %7022 = vmatprep.mubr.f32.mxu0 0.0
    %v7023 = vand.u32 %v6792, 4294901760
    %v7024 = vsub.f32 %v6792, %v7023
    %7025 = vmatmul.mubr.f32.gmra.mxu0 %v7024
    %v7026 = vpop.f32.mrf.mxu0
    %v7027 = vadd.f32 %v6950, %v7026
    %v7028 = vpop.f32.mrf.mxu0
    %v7029 = vadd.f32 %v6952, %v7028
    %7030 = vdwg.mxu0
    %7031 = vmatprep.subr.mxu0 0.0
    %7032 = vmatpush1.msra.mxu0 0.0
    %7033 = vmatprep.subr.mxu0 0.0
    %7034 = vmatpush1.msra.mxu0 0.0
    %7035 = vmatprep.subr.mxu0 0.0
    %7036 = vmatpush1.msra.mxu0 0.0
    %7037 = vmatprep.subr.mxu0 0.0
    %7038 = vmatpush1.msra.mxu0 0.0
    %7039 = vmatprep.subr.mxu0 0.0
    %7040 = vmatpush1.msra.mxu0 0.0
    %7041 = vmatprep.subr.mxu0 0.0
    %7042 = vmatpush1.msra.mxu0 0.0
    %7043 = vmatprep.subr.mxu0 0.0
    %7044 = vmatpush1.msra.mxu0 0.0
    %7045 = vmatprep.subr.mxu0 0.0
    %7046 = vmatpush1.msra.mxu0 0.0
    %7047 = vmatprep.subr.mxu0 0.0
    %7048 = vmatpush1.msra.mxu0 0.0
    %7049 = vmatprep.subr.mxu0 0.0
    %7050 = vmatpush1.msra.mxu0 0.0
    %7051 = vmatprep.subr.mxu0 0.0
    %7052 = vmatpush1.msra.mxu0 0.0
    %7053 = vmatprep.subr.mxu0 0.0
    %7054 = vmatpush1.msra.mxu0 0.0
    %7055 = vmatprep.subr.mxu0 0.0
    %7056 = vmatpush1.msra.mxu0 0.0
    %7057 = vmatprep.subr.mxu0 0.0
    %7058 = vmatpush1.msra.mxu0 0.0
    %7059 = vmatprep.subr.mxu0 0.0
    %7060 = vmatpush1.msra.mxu0 0.0
    %v7061 = vand.u32 %v6790, 4294901760
    %7062 = vmatprep.subr.mxu0 %v7061
    %v7063 = vand.u32 %v6789, 4294901760
    %7064 = vmatpush1.msra.mxu0 %v7063
    %7065 = vmatprep.subr.mxu0 0.0
    %7066 = vmatpush2.msra.mxu0 0.0
    %7067 = vmatprep.subr.mxu0 0.0
    %7068 = vmatpush2.msra.mxu0 0.0
    %7069 = vmatprep.subr.mxu0 0.0
    %7070 = vmatpush2.msra.mxu0 0.0
    %7071 = vmatprep.subr.mxu0 0.0
    %7072 = vmatpush2.msra.mxu0 0.0
    %7073 = vmatprep.subr.mxu0 0.0
    %7074 = vmatpush2.msra.mxu0 0.0
    %7075 = vmatprep.subr.mxu0 0.0
    %7076 = vmatpush2.msra.mxu0 0.0
    %7077 = vmatprep.subr.mxu0 0.0
    %7078 = vmatpush2.msra.mxu0 0.0
    %7079 = vmatprep.subr.mxu0 0.0
    %7080 = vmatpush2.msra.mxu0 0.0
    %7081 = vmatprep.subr.mxu0 0.0
    %7082 = vmatpush2.msra.mxu0 0.0
    %7083 = vmatprep.subr.mxu0 0.0
    %7084 = vmatpush2.msra.mxu0 0.0
    %7085 = vmatprep.subr.mxu0 0.0
    %7086 = vmatpush2.msra.mxu0 0.0
    %7087 = vmatprep.subr.mxu0 0.0
    %7088 = vmatpush2.msra.mxu0 0.0
    %7089 = vmatprep.subr.mxu0 0.0
    %7090 = vmatpush2.msra.mxu0 0.0
    %7091 = vmatprep.subr.mxu0 0.0
    %7092 = vmatpush2.msra.mxu0 0.0
    %7093 = vmatprep.subr.mxu0 0.0
    %7094 = vmatpush2.msra.mxu0 0.0
    %7095 = vmatprep.subr.mxu0 0.0
    %7096 = vmatpush2.msra.mxu0 0.0
    %7097 = vmatprep.mubr.f32.mxu0 0.0
    %v7098 = vand.u32 %v6792, 4294901760
    %v7099 = vsub.f32 %v6792, %v7098
    %v7100 = vand.u32 %v7099, 4294901760
    %7101 = vmatmul.mubr.f32.gmra.mxu0 %v7100
    %v7102 = vpop.f32.mrf.mxu0
    %v7103 = vadd.f32 %v7027, %v7102
    %v7104 = vpop.f32.mrf.mxu0
    %v7105 = vadd.f32 %v7029, %v7104
    %7106 = vdwg.mxu0
    %7107 = vmatprep.subr.mxu0 0.0
    %7108 = vmatpush1.msra.mxu0 0.0
    %7109 = vmatprep.subr.mxu0 0.0
    %7110 = vmatpush1.msra.mxu0 0.0
    %7111 = vmatprep.subr.mxu0 0.0
    %7112 = vmatpush1.msra.mxu0 0.0
    %7113 = vmatprep.subr.mxu0 0.0
    %7114 = vmatpush1.msra.mxu0 0.0
    %7115 = vmatprep.subr.mxu0 0.0
    %7116 = vmatpush1.msra.mxu0 0.0
    %7117 = vmatprep.subr.mxu0 0.0
    %7118 = vmatpush1.msra.mxu0 0.0
    %7119 = vmatprep.subr.mxu0 0.0
    %7120 = vmatpush1.msra.mxu0 0.0
    %7121 = vmatprep.subr.mxu0 0.0
    %7122 = vmatpush1.msra.mxu0 0.0
    %7123 = vmatprep.subr.mxu0 0.0
    %7124 = vmatpush1.msra.mxu0 0.0
    %7125 = vmatprep.subr.mxu0 0.0
    %7126 = vmatpush1.msra.mxu0 0.0
    %7127 = vmatprep.subr.mxu0 0.0
    %7128 = vmatpush1.msra.mxu0 0.0
    %7129 = vmatprep.subr.mxu0 0.0
    %7130 = vmatpush1.msra.mxu0 0.0
    %7131 = vmatprep.subr.mxu0 0.0
    %7132 = vmatpush1.msra.mxu0 0.0
    %7133 = vmatprep.subr.mxu0 0.0
    %7134 = vmatpush1.msra.mxu0 0.0
    %7135 = vmatprep.subr.mxu0 0.0
    %7136 = vmatpush1.msra.mxu0 0.0
    %v7137 = vand.u32 %v6790, 4294901760
    %v7138 = vsub.f32 %v6790, %v7137
    %v7139 = vand.u32 %v7138, 4294901760
    %7140 = vmatprep.subr.mxu0 %v7139
    %v7141 = vand.u32 %v6789, 4294901760
    %v7142 = vsub.f32 %v6789, %v7141
    %v7143 = vand.u32 %v7142, 4294901760
    %7144 = vmatpush1.msra.mxu0 %v7143
    %7145 = vmatprep.subr.mxu0 0.0
    %7146 = vmatpush2.msra.mxu0 0.0
    %7147 = vmatprep.subr.mxu0 0.0
    %7148 = vmatpush2.msra.mxu0 0.0
    %7149 = vmatprep.subr.mxu0 0.0
    %7150 = vmatpush2.msra.mxu0 0.0
    %7151 = vmatprep.subr.mxu0 0.0
    %7152 = vmatpush2.msra.mxu0 0.0
    %7153 = vmatprep.subr.mxu0 0.0
    %7154 = vmatpush2.msra.mxu0 0.0
    %7155 = vmatprep.subr.mxu0 0.0
    %7156 = vmatpush2.msra.mxu0 0.0
    %7157 = vmatprep.subr.mxu0 0.0
    %7158 = vmatpush2.msra.mxu0 0.0
    %7159 = vmatprep.subr.mxu0 0.0
    %7160 = vmatpush2.msra.mxu0 0.0
    %7161 = vmatprep.subr.mxu0 0.0
    %7162 = vmatpush2.msra.mxu0 0.0
    %7163 = vmatprep.subr.mxu0 0.0
    %7164 = vmatpush2.msra.mxu0 0.0
    %7165 = vmatprep.subr.mxu0 0.0
    %7166 = vmatpush2.msra.mxu0 0.0
    %7167 = vmatprep.subr.mxu0 0.0
    %7168 = vmatpush2.msra.mxu0 0.0
    %7169 = vmatprep.subr.mxu0 0.0
    %7170 = vmatpush2.msra.mxu0 0.0
    %7171 = vmatprep.subr.mxu0 0.0
    %7172 = vmatpush2.msra.mxu0 0.0
    %7173 = vmatprep.subr.mxu0 0.0
    %7174 = vmatpush2.msra.mxu0 0.0
    %7175 = vmatprep.subr.mxu0 0.0
    %7176 = vmatpush2.msra.mxu0 0.0
    %7177 = vmatprep.mubr.f32.mxu0 0.0
    %v7178 = vand.u32 %v6792, 4294901760
    %7179 = vmatmul.mubr.f32.gmra.mxu0 %v7178
    %v7180 = vpop.f32.mrf.mxu0
    %v7181 = vadd.f32 %v7103, %v7180
    %v7182 = vpop.f32.mrf.mxu0
    %v7183 = vadd.f32 %v7105, %v7182
    %7184 = vdwg.mxu0
    %7185 = vmatprep.subr.mxu0 0.0
    %7186 = vmatpush1.msra.mxu0 0.0
    %7187 = vmatprep.subr.mxu0 0.0
    %7188 = vmatpush1.msra.mxu0 0.0
    %7189 = vmatprep.subr.mxu0 0.0
    %7190 = vmatpush1.msra.mxu0 0.0
    %7191 = vmatprep.subr.mxu0 0.0
    %7192 = vmatpush1.msra.mxu0 0.0
    %7193 = vmatprep.subr.mxu0 0.0
    %7194 = vmatpush1.msra.mxu0 0.0
    %7195 = vmatprep.subr.mxu0 0.0
    %7196 = vmatpush1.msra.mxu0 0.0
    %7197 = vmatprep.subr.mxu0 0.0
    %7198 = vmatpush1.msra.mxu0 0.0
    %7199 = vmatprep.subr.mxu0 0.0
    %7200 = vmatpush1.msra.mxu0 0.0
    %7201 = vmatprep.subr.mxu0 0.0
    %7202 = vmatpush1.msra.mxu0 0.0
    %7203 = vmatprep.subr.mxu0 0.0
    %7204 = vmatpush1.msra.mxu0 0.0
    %7205 = vmatprep.subr.mxu0 0.0
    %7206 = vmatpush1.msra.mxu0 0.0
    %7207 = vmatprep.subr.mxu0 0.0
    %7208 = vmatpush1.msra.mxu0 0.0
    %7209 = vmatprep.subr.mxu0 0.0
    %7210 = vmatpush1.msra.mxu0 0.0
    %7211 = vmatprep.subr.mxu0 0.0
    %7212 = vmatpush1.msra.mxu0 0.0
    %7213 = vmatprep.subr.mxu0 0.0
    %7214 = vmatpush1.msra.mxu0 0.0
    %v7215 = vand.u32 %v6790, 4294901760
    %7216 = vmatprep.subr.mxu0 %v7215
    %v7217 = vand.u32 %v6789, 4294901760
    %7218 = vmatpush1.msra.mxu0 %v7217
    %7219 = vmatprep.subr.mxu0 0.0
    %7220 = vmatpush2.msra.mxu0 0.0
    %7221 = vmatprep.subr.mxu0 0.0
    %7222 = vmatpush2.msra.mxu0 0.0
    %7223 = vmatprep.subr.mxu0 0.0
    %7224 = vmatpush2.msra.mxu0 0.0
    %7225 = vmatprep.subr.mxu0 0.0
    %7226 = vmatpush2.msra.mxu0 0.0
    %7227 = vmatprep.subr.mxu0 0.0
    %7228 = vmatpush2.msra.mxu0 0.0
    %7229 = vmatprep.subr.mxu0 0.0
    %7230 = vmatpush2.msra.mxu0 0.0
    %7231 = vmatprep.subr.mxu0 0.0
    %7232 = vmatpush2.msra.mxu0 0.0
    %7233 = vmatprep.subr.mxu0 0.0
    %7234 = vmatpush2.msra.mxu0 0.0
    %7235 = vmatprep.subr.mxu0 0.0
    %7236 = vmatpush2.msra.mxu0 0.0
    %7237 = vmatprep.subr.mxu0 0.0
    %7238 = vmatpush2.msra.mxu0 0.0
    %7239 = vmatprep.subr.mxu0 0.0
    %7240 = vmatpush2.msra.mxu0 0.0
    %7241 = vmatprep.subr.mxu0 0.0
    %7242 = vmatpush2.msra.mxu0 0.0
    %7243 = vmatprep.subr.mxu0 0.0
    %7244 = vmatpush2.msra.mxu0 0.0
    %7245 = vmatprep.subr.mxu0 0.0
    %7246 = vmatpush2.msra.mxu0 0.0
    %7247 = vmatprep.subr.mxu0 0.0
    %7248 = vmatpush2.msra.mxu0 0.0
    %7249 = vmatprep.subr.mxu0 0.0
    %7250 = vmatpush2.msra.mxu0 0.0
    %7251 = vmatprep.mubr.f32.mxu0 0.0
    %v7252 = vand.u32 %v6792, 4294901760
    %7253 = vmatmul.mubr.f32.gmra.mxu0 %v7252
    %v7254 = vpop.f32.mrf.mxu0
    %v7255 = vadd.f32 %v7181, %v7254
    %v7256 = vpop.f32.mrf.mxu0
    %v7257 = vadd.f32 %v7183, %v7256
    %7258 = vdwg.mxu0
    %v7259 = vadd.f32 %v6781, %v7255
    %v7260 = vadd.f32 %v6782, %v7257
    %7261 = vrot.lane.b32.xlu0 %v4403, 113
    %v7262 = vpop.permute.xlu0 %7261
    %7263 = vrot.lane.b32.xlu0 %v4404, 113
    %v7264 = vpop.permute.xlu0 %7263
    %v7265 = vsel %vm2972, %v7262, %v7264
    %v7266 = vsel %vm2972, %v7264, %v7262
    %v7267 = vmul.f32 %v7265, %v83
    %v7268 = vmul.f32 %v7266, %v87
    %v7270 = vsel %vm115, %v35, 0
    %7272 = vmatprep.subr.mxu0 0.0
    %7273 = vmatpush1.msra.mxu0 0.0
    %7274 = vmatprep.subr.mxu0 0.0
    %7275 = vmatpush1.msra.mxu0 0.0
    %7276 = vmatprep.subr.mxu0 0.0
    %7277 = vmatpush1.msra.mxu0 0.0
    %7278 = vmatprep.subr.mxu0 0.0
    %7279 = vmatpush1.msra.mxu0 0.0
    %7280 = vmatprep.subr.mxu0 0.0
    %7281 = vmatpush1.msra.mxu0 0.0
    %7282 = vmatprep.subr.mxu0 0.0
    %7283 = vmatpush1.msra.mxu0 0.0
    %7284 = vmatprep.subr.mxu0 0.0
    %7285 = vmatpush1.msra.mxu0 0.0
    %7286 = vmatprep.subr.mxu0 0.0
    %7287 = vmatpush1.msra.mxu0 0.0
    %7288 = vmatprep.subr.mxu0 0.0
    %7289 = vmatpush1.msra.mxu0 0.0
    %7290 = vmatprep.subr.mxu0 0.0
    %7291 = vmatpush1.msra.mxu0 0.0
    %7292 = vmatprep.subr.mxu0 0.0
    %7293 = vmatpush1.msra.mxu0 0.0
    %7294 = vmatprep.subr.mxu0 0.0
    %7295 = vmatpush1.msra.mxu0 0.0
    %7296 = vmatprep.subr.mxu0 0.0
    %7297 = vmatpush1.msra.mxu0 0.0
    %7298 = vmatprep.subr.mxu0 0.0
    %7299 = vmatpush1.msra.mxu0 0.0
    %7300 = vmatprep.subr.mxu0 0.0
    %7301 = vmatpush1.msra.mxu0 0.0
    %v7302 = vand.u32 %v7268, 4294901760
    %7303 = vmatprep.subr.mxu0 %v7302
    %v7304 = vand.u32 %v7267, 4294901760
    %7305 = vmatpush1.msra.mxu0 %v7304
    %7306 = vmatprep.subr.mxu0 0.0
    %7307 = vmatpush2.msra.mxu0 0.0
    %7308 = vmatprep.subr.mxu0 0.0
    %7309 = vmatpush2.msra.mxu0 0.0
    %7310 = vmatprep.subr.mxu0 0.0
    %7311 = vmatpush2.msra.mxu0 0.0
    %7312 = vmatprep.subr.mxu0 0.0
    %7313 = vmatpush2.msra.mxu0 0.0
    %7314 = vmatprep.subr.mxu0 0.0
    %7315 = vmatpush2.msra.mxu0 0.0
    %7316 = vmatprep.subr.mxu0 0.0
    %7317 = vmatpush2.msra.mxu0 0.0
    %7318 = vmatprep.subr.mxu0 0.0
    %7319 = vmatpush2.msra.mxu0 0.0
    %7320 = vmatprep.subr.mxu0 0.0
    %7321 = vmatpush2.msra.mxu0 0.0
    %7322 = vmatprep.subr.mxu0 0.0
    %7323 = vmatpush2.msra.mxu0 0.0
    %7324 = vmatprep.subr.mxu0 0.0
    %7325 = vmatpush2.msra.mxu0 0.0
    %7326 = vmatprep.subr.mxu0 0.0
    %7327 = vmatpush2.msra.mxu0 0.0
    %7328 = vmatprep.subr.mxu0 0.0
    %7329 = vmatpush2.msra.mxu0 0.0
    %7330 = vmatprep.subr.mxu0 0.0
    %7331 = vmatpush2.msra.mxu0 0.0
    %7332 = vmatprep.subr.mxu0 0.0
    %7333 = vmatpush2.msra.mxu0 0.0
    %7334 = vmatprep.subr.mxu0 0.0
    %7335 = vmatpush2.msra.mxu0 0.0
    %7336 = vmatprep.subr.mxu0 0.0
    %7337 = vmatpush2.msra.mxu0 0.0
    %7338 = vmatprep.mubr.f32.mxu0 0.0
    %v7339 = vand.u32 %v7270, 4294901760
    %v7340 = vsub.f32 %v7270, %v7339
    %v7341 = vand.u32 %v7340, 4294901760
    %v7342 = vsub.f32 %v7340, %v7341
    %v7343 = vand.u32 %v7342, 4294901760
    %7344 = vmatmul.mubr.f32.gmra.mxu0 %v7343
    %v7345 = vpop.f32.mrf.mxu0
    %v7346 = vadd.f32 0.0, %v7345
    %v7347 = vpop.f32.mrf.mxu0
    %v7348 = vadd.f32 0.0, %v7347
    %7349 = vdwg.mxu0
    %7350 = vmatprep.subr.mxu0 0.0
    %7351 = vmatpush1.msra.mxu0 0.0
    %7352 = vmatprep.subr.mxu0 0.0
    %7353 = vmatpush1.msra.mxu0 0.0
    %7354 = vmatprep.subr.mxu0 0.0
    %7355 = vmatpush1.msra.mxu0 0.0
    %7356 = vmatprep.subr.mxu0 0.0
    %7357 = vmatpush1.msra.mxu0 0.0
    %7358 = vmatprep.subr.mxu0 0.0
    %7359 = vmatpush1.msra.mxu0 0.0
    %7360 = vmatprep.subr.mxu0 0.0
    %7361 = vmatpush1.msra.mxu0 0.0
    %7362 = vmatprep.subr.mxu0 0.0
    %7363 = vmatpush1.msra.mxu0 0.0
    %7364 = vmatprep.subr.mxu0 0.0
    %7365 = vmatpush1.msra.mxu0 0.0
    %7366 = vmatprep.subr.mxu0 0.0
    %7367 = vmatpush1.msra.mxu0 0.0
    %7368 = vmatprep.subr.mxu0 0.0
    %7369 = vmatpush1.msra.mxu0 0.0
    %7370 = vmatprep.subr.mxu0 0.0
    %7371 = vmatpush1.msra.mxu0 0.0
    %7372 = vmatprep.subr.mxu0 0.0
    %7373 = vmatpush1.msra.mxu0 0.0
    %7374 = vmatprep.subr.mxu0 0.0
    %7375 = vmatpush1.msra.mxu0 0.0
    %7376 = vmatprep.subr.mxu0 0.0
    %7377 = vmatpush1.msra.mxu0 0.0
    %7378 = vmatprep.subr.mxu0 0.0
    %7379 = vmatpush1.msra.mxu0 0.0
    %v7380 = vand.u32 %v7268, 4294901760
    %v7381 = vsub.f32 %v7268, %v7380
    %v7382 = vand.u32 %v7381, 4294901760
    %v7383 = vsub.f32 %v7381, %v7382
    %v7384 = vand.u32 %v7383, 4294901760
    %7385 = vmatprep.subr.mxu0 %v7384
    %v7386 = vand.u32 %v7267, 4294901760
    %v7387 = vsub.f32 %v7267, %v7386
    %v7388 = vand.u32 %v7387, 4294901760
    %v7389 = vsub.f32 %v7387, %v7388
    %v7390 = vand.u32 %v7389, 4294901760
    %7391 = vmatpush1.msra.mxu0 %v7390
    %7392 = vmatprep.subr.mxu0 0.0
    %7393 = vmatpush2.msra.mxu0 0.0
    %7394 = vmatprep.subr.mxu0 0.0
    %7395 = vmatpush2.msra.mxu0 0.0
    %7396 = vmatprep.subr.mxu0 0.0
    %7397 = vmatpush2.msra.mxu0 0.0
    %7398 = vmatprep.subr.mxu0 0.0
    %7399 = vmatpush2.msra.mxu0 0.0
    %7400 = vmatprep.subr.mxu0 0.0
    %7401 = vmatpush2.msra.mxu0 0.0
    %7402 = vmatprep.subr.mxu0 0.0
    %7403 = vmatpush2.msra.mxu0 0.0
    %7404 = vmatprep.subr.mxu0 0.0
    %7405 = vmatpush2.msra.mxu0 0.0
    %7406 = vmatprep.subr.mxu0 0.0
    %7407 = vmatpush2.msra.mxu0 0.0
    %7408 = vmatprep.subr.mxu0 0.0
    %7409 = vmatpush2.msra.mxu0 0.0
    %7410 = vmatprep.subr.mxu0 0.0
    %7411 = vmatpush2.msra.mxu0 0.0
    %7412 = vmatprep.subr.mxu0 0.0
    %7413 = vmatpush2.msra.mxu0 0.0
    %7414 = vmatprep.subr.mxu0 0.0
    %7415 = vmatpush2.msra.mxu0 0.0
    %7416 = vmatprep.subr.mxu0 0.0
    %7417 = vmatpush2.msra.mxu0 0.0
    %7418 = vmatprep.subr.mxu0 0.0
    %7419 = vmatpush2.msra.mxu0 0.0
    %7420 = vmatprep.subr.mxu0 0.0
    %7421 = vmatpush2.msra.mxu0 0.0
    %7422 = vmatprep.subr.mxu0 0.0
    %7423 = vmatpush2.msra.mxu0 0.0
    %7424 = vmatprep.mubr.f32.mxu0 0.0
    %v7425 = vand.u32 %v7270, 4294901760
    %7426 = vmatmul.mubr.f32.gmra.mxu0 %v7425
    %v7427 = vpop.f32.mrf.mxu0
    %v7428 = vadd.f32 %v7346, %v7427
    %v7429 = vpop.f32.mrf.mxu0
    %v7430 = vadd.f32 %v7348, %v7429
    %7431 = vdwg.mxu0
    %7432 = vmatprep.subr.mxu0 0.0
    %7433 = vmatpush1.msra.mxu0 0.0
    %7434 = vmatprep.subr.mxu0 0.0
    %7435 = vmatpush1.msra.mxu0 0.0
    %7436 = vmatprep.subr.mxu0 0.0
    %7437 = vmatpush1.msra.mxu0 0.0
    %7438 = vmatprep.subr.mxu0 0.0
    %7439 = vmatpush1.msra.mxu0 0.0
    %7440 = vmatprep.subr.mxu0 0.0
    %7441 = vmatpush1.msra.mxu0 0.0
    %7442 = vmatprep.subr.mxu0 0.0
    %7443 = vmatpush1.msra.mxu0 0.0
    %7444 = vmatprep.subr.mxu0 0.0
    %7445 = vmatpush1.msra.mxu0 0.0
    %7446 = vmatprep.subr.mxu0 0.0
    %7447 = vmatpush1.msra.mxu0 0.0
    %7448 = vmatprep.subr.mxu0 0.0
    %7449 = vmatpush1.msra.mxu0 0.0
    %7450 = vmatprep.subr.mxu0 0.0
    %7451 = vmatpush1.msra.mxu0 0.0
    %7452 = vmatprep.subr.mxu0 0.0
    %7453 = vmatpush1.msra.mxu0 0.0
    %7454 = vmatprep.subr.mxu0 0.0
    %7455 = vmatpush1.msra.mxu0 0.0
    %7456 = vmatprep.subr.mxu0 0.0
    %7457 = vmatpush1.msra.mxu0 0.0
    %7458 = vmatprep.subr.mxu0 0.0
    %7459 = vmatpush1.msra.mxu0 0.0
    %7460 = vmatprep.subr.mxu0 0.0
    %7461 = vmatpush1.msra.mxu0 0.0
    %v7462 = vand.u32 %v7268, 4294901760
    %v7463 = vsub.f32 %v7268, %v7462
    %7464 = vmatprep.subr.mxu0 %v7463
    %v7465 = vand.u32 %v7267, 4294901760
    %v7466 = vsub.f32 %v7267, %v7465
    %7467 = vmatpush1.msra.mxu0 %v7466
    %7468 = vmatprep.subr.mxu0 0.0
    %7469 = vmatpush2.msra.mxu0 0.0
    %7470 = vmatprep.subr.mxu0 0.0
    %7471 = vmatpush2.msra.mxu0 0.0
    %7472 = vmatprep.subr.mxu0 0.0
    %7473 = vmatpush2.msra.mxu0 0.0
    %7474 = vmatprep.subr.mxu0 0.0
    %7475 = vmatpush2.msra.mxu0 0.0
    %7476 = vmatprep.subr.mxu0 0.0
    %7477 = vmatpush2.msra.mxu0 0.0
    %7478 = vmatprep.subr.mxu0 0.0
    %7479 = vmatpush2.msra.mxu0 0.0
    %7480 = vmatprep.subr.mxu0 0.0
    %7481 = vmatpush2.msra.mxu0 0.0
    %7482 = vmatprep.subr.mxu0 0.0
    %7483 = vmatpush2.msra.mxu0 0.0
    %7484 = vmatprep.subr.mxu0 0.0
    %7485 = vmatpush2.msra.mxu0 0.0
    %7486 = vmatprep.subr.mxu0 0.0
    %7487 = vmatpush2.msra.mxu0 0.0
    %7488 = vmatprep.subr.mxu0 0.0
    %7489 = vmatpush2.msra.mxu0 0.0
    %7490 = vmatprep.subr.mxu0 0.0
    %7491 = vmatpush2.msra.mxu0 0.0
    %7492 = vmatprep.subr.mxu0 0.0
    %7493 = vmatpush2.msra.mxu0 0.0
    %7494 = vmatprep.subr.mxu0 0.0
    %7495 = vmatpush2.msra.mxu0 0.0
    %7496 = vmatprep.subr.mxu0 0.0
    %7497 = vmatpush2.msra.mxu0 0.0
    %7498 = vmatprep.subr.mxu0 0.0
    %7499 = vmatpush2.msra.mxu0 0.0
    %7500 = vmatprep.mubr.f32.mxu0 0.0
    %v7501 = vand.u32 %v7270, 4294901760
    %v7502 = vsub.f32 %v7270, %v7501
    %7503 = vmatmul.mubr.f32.gmra.mxu0 %v7502
    %v7504 = vpop.f32.mrf.mxu0
    %v7505 = vadd.f32 %v7428, %v7504
    %v7506 = vpop.f32.mrf.mxu0
    %v7507 = vadd.f32 %v7430, %v7506
    %7508 = vdwg.mxu0
    %7509 = vmatprep.subr.mxu0 0.0
    %7510 = vmatpush1.msra.mxu0 0.0
    %7511 = vmatprep.subr.mxu0 0.0
    %7512 = vmatpush1.msra.mxu0 0.0
    %7513 = vmatprep.subr.mxu0 0.0
    %7514 = vmatpush1.msra.mxu0 0.0
    %7515 = vmatprep.subr.mxu0 0.0
    %7516 = vmatpush1.msra.mxu0 0.0
    %7517 = vmatprep.subr.mxu0 0.0
    %7518 = vmatpush1.msra.mxu0 0.0
    %7519 = vmatprep.subr.mxu0 0.0
    %7520 = vmatpush1.msra.mxu0 0.0
    %7521 = vmatprep.subr.mxu0 0.0
    %7522 = vmatpush1.msra.mxu0 0.0
    %7523 = vmatprep.subr.mxu0 0.0
    %7524 = vmatpush1.msra.mxu0 0.0
    %7525 = vmatprep.subr.mxu0 0.0
    %7526 = vmatpush1.msra.mxu0 0.0
    %7527 = vmatprep.subr.mxu0 0.0
    %7528 = vmatpush1.msra.mxu0 0.0
    %7529 = vmatprep.subr.mxu0 0.0
    %7530 = vmatpush1.msra.mxu0 0.0
    %7531 = vmatprep.subr.mxu0 0.0
    %7532 = vmatpush1.msra.mxu0 0.0
    %7533 = vmatprep.subr.mxu0 0.0
    %7534 = vmatpush1.msra.mxu0 0.0
    %7535 = vmatprep.subr.mxu0 0.0
    %7536 = vmatpush1.msra.mxu0 0.0
    %7537 = vmatprep.subr.mxu0 0.0
    %7538 = vmatpush1.msra.mxu0 0.0
    %v7539 = vand.u32 %v7268, 4294901760
    %7540 = vmatprep.subr.mxu0 %v7539
    %v7541 = vand.u32 %v7267, 4294901760
    %7542 = vmatpush1.msra.mxu0 %v7541
    %7543 = vmatprep.subr.mxu0 0.0
    %7544 = vmatpush2.msra.mxu0 0.0
    %7545 = vmatprep.subr.mxu0 0.0
    %7546 = vmatpush2.msra.mxu0 0.0
    %7547 = vmatprep.subr.mxu0 0.0
    %7548 = vmatpush2.msra.mxu0 0.0
    %7549 = vmatprep.subr.mxu0 0.0
    %7550 = vmatpush2.msra.mxu0 0.0
    %7551 = vmatprep.subr.mxu0 0.0
    %7552 = vmatpush2.msra.mxu0 0.0
    %7553 = vmatprep.subr.mxu0 0.0
    %7554 = vmatpush2.msra.mxu0 0.0
    %7555 = vmatprep.subr.mxu0 0.0
    %7556 = vmatpush2.msra.mxu0 0.0
    %7557 = vmatprep.subr.mxu0 0.0
    %7558 = vmatpush2.msra.mxu0 0.0
    %7559 = vmatprep.subr.mxu0 0.0
    %7560 = vmatpush2.msra.mxu0 0.0
    %7561 = vmatprep.subr.mxu0 0.0
    %7562 = vmatpush2.msra.mxu0 0.0
    %7563 = vmatprep.subr.mxu0 0.0
    %7564 = vmatpush2.msra.mxu0 0.0
    %7565 = vmatprep.subr.mxu0 0.0
    %7566 = vmatpush2.msra.mxu0 0.0
    %7567 = vmatprep.subr.mxu0 0.0
    %7568 = vmatpush2.msra.mxu0 0.0
    %7569 = vmatprep.subr.mxu0 0.0
    %7570 = vmatpush2.msra.mxu0 0.0
    %7571 = vmatprep.subr.mxu0 0.0
    %7572 = vmatpush2.msra.mxu0 0.0
    %7573 = vmatprep.subr.mxu0 0.0
    %7574 = vmatpush2.msra.mxu0 0.0
    %7575 = vmatprep.mubr.f32.mxu0 0.0
    %v7576 = vand.u32 %v7270, 4294901760
    %v7577 = vsub.f32 %v7270, %v7576
    %v7578 = vand.u32 %v7577, 4294901760
    %7579 = vmatmul.mubr.f32.gmra.mxu0 %v7578
    %v7580 = vpop.f32.mrf.mxu0
    %v7581 = vadd.f32 %v7505, %v7580
    %v7582 = vpop.f32.mrf.mxu0
    %v7583 = vadd.f32 %v7507, %v7582
    %7584 = vdwg.mxu0
    %7585 = vmatprep.subr.mxu0 0.0
    %7586 = vmatpush1.msra.mxu0 0.0
    %7587 = vmatprep.subr.mxu0 0.0
    %7588 = vmatpush1.msra.mxu0 0.0
    %7589 = vmatprep.subr.mxu0 0.0
    %7590 = vmatpush1.msra.mxu0 0.0
    %7591 = vmatprep.subr.mxu0 0.0
    %7592 = vmatpush1.msra.mxu0 0.0
    %7593 = vmatprep.subr.mxu0 0.0
    %7594 = vmatpush1.msra.mxu0 0.0
    %7595 = vmatprep.subr.mxu0 0.0
    %7596 = vmatpush1.msra.mxu0 0.0
    %7597 = vmatprep.subr.mxu0 0.0
    %7598 = vmatpush1.msra.mxu0 0.0
    %7599 = vmatprep.subr.mxu0 0.0
    %7600 = vmatpush1.msra.mxu0 0.0
    %7601 = vmatprep.subr.mxu0 0.0
    %7602 = vmatpush1.msra.mxu0 0.0
    %7603 = vmatprep.subr.mxu0 0.0
    %7604 = vmatpush1.msra.mxu0 0.0
    %7605 = vmatprep.subr.mxu0 0.0
    %7606 = vmatpush1.msra.mxu0 0.0
    %7607 = vmatprep.subr.mxu0 0.0
    %7608 = vmatpush1.msra.mxu0 0.0
    %7609 = vmatprep.subr.mxu0 0.0
    %7610 = vmatpush1.msra.mxu0 0.0
    %7611 = vmatprep.subr.mxu0 0.0
    %7612 = vmatpush1.msra.mxu0 0.0
    %7613 = vmatprep.subr.mxu0 0.0
    %7614 = vmatpush1.msra.mxu0 0.0
    %v7615 = vand.u32 %v7268, 4294901760
    %v7616 = vsub.f32 %v7268, %v7615
    %v7617 = vand.u32 %v7616, 4294901760
    %7618 = vmatprep.subr.mxu0 %v7617
    %v7619 = vand.u32 %v7267, 4294901760
    %v7620 = vsub.f32 %v7267, %v7619
    %v7621 = vand.u32 %v7620, 4294901760
    %7622 = vmatpush1.msra.mxu0 %v7621
    %7623 = vmatprep.subr.mxu0 0.0
    %7624 = vmatpush2.msra.mxu0 0.0
    %7625 = vmatprep.subr.mxu0 0.0
    %7626 = vmatpush2.msra.mxu0 0.0
    %7627 = vmatprep.subr.mxu0 0.0
    %7628 = vmatpush2.msra.mxu0 0.0
    %7629 = vmatprep.subr.mxu0 0.0
    %7630 = vmatpush2.msra.mxu0 0.0
    %7631 = vmatprep.subr.mxu0 0.0
    %7632 = vmatpush2.msra.mxu0 0.0
    %7633 = vmatprep.subr.mxu0 0.0
    %7634 = vmatpush2.msra.mxu0 0.0
    %7635 = vmatprep.subr.mxu0 0.0
    %7636 = vmatpush2.msra.mxu0 0.0
    %7637 = vmatprep.subr.mxu0 0.0
    %7638 = vmatpush2.msra.mxu0 0.0
    %7639 = vmatprep.subr.mxu0 0.0
    %7640 = vmatpush2.msra.mxu0 0.0
    %7641 = vmatprep.subr.mxu0 0.0
    %7642 = vmatpush2.msra.mxu0 0.0
    %7643 = vmatprep.subr.mxu0 0.0
    %7644 = vmatpush2.msra.mxu0 0.0
    %7645 = vmatprep.subr.mxu0 0.0
    %7646 = vmatpush2.msra.mxu0 0.0
    %7647 = vmatprep.subr.mxu0 0.0
    %7648 = vmatpush2.msra.mxu0 0.0
    %7649 = vmatprep.subr.mxu0 0.0
    %7650 = vmatpush2.msra.mxu0 0.0
    %7651 = vmatprep.subr.mxu0 0.0
    %7652 = vmatpush2.msra.mxu0 0.0
    %7653 = vmatprep.subr.mxu0 0.0
    %7654 = vmatpush2.msra.mxu0 0.0
    %7655 = vmatprep.mubr.f32.mxu0 0.0
    %v7656 = vand.u32 %v7270, 4294901760
    %7657 = vmatmul.mubr.f32.gmra.mxu0 %v7656
    %v7658 = vpop.f32.mrf.mxu0
    %v7659 = vadd.f32 %v7581, %v7658
    %v7660 = vpop.f32.mrf.mxu0
    %v7661 = vadd.f32 %v7583, %v7660
    %7662 = vdwg.mxu0
    %7663 = vmatprep.subr.mxu0 0.0
    %7664 = vmatpush1.msra.mxu0 0.0
    %7665 = vmatprep.subr.mxu0 0.0
    %7666 = vmatpush1.msra.mxu0 0.0
    %7667 = vmatprep.subr.mxu0 0.0
    %7668 = vmatpush1.msra.mxu0 0.0
    %7669 = vmatprep.subr.mxu0 0.0
    %7670 = vmatpush1.msra.mxu0 0.0
    %7671 = vmatprep.subr.mxu0 0.0
    %7672 = vmatpush1.msra.mxu0 0.0
    %7673 = vmatprep.subr.mxu0 0.0
    %7674 = vmatpush1.msra.mxu0 0.0
    %7675 = vmatprep.subr.mxu0 0.0
    %7676 = vmatpush1.msra.mxu0 0.0
    %7677 = vmatprep.subr.mxu0 0.0
    %7678 = vmatpush1.msra.mxu0 0.0
    %7679 = vmatprep.subr.mxu0 0.0
    %7680 = vmatpush1.msra.mxu0 0.0
    %7681 = vmatprep.subr.mxu0 0.0
    %7682 = vmatpush1.msra.mxu0 0.0
    %7683 = vmatprep.subr.mxu0 0.0
    %7684 = vmatpush1.msra.mxu0 0.0
    %7685 = vmatprep.subr.mxu0 0.0
    %7686 = vmatpush1.msra.mxu0 0.0
    %7687 = vmatprep.subr.mxu0 0.0
    %7688 = vmatpush1.msra.mxu0 0.0
    %7689 = vmatprep.subr.mxu0 0.0
    %7690 = vmatpush1.msra.mxu0 0.0
    %7691 = vmatprep.subr.mxu0 0.0
    %7692 = vmatpush1.msra.mxu0 0.0
    %v7693 = vand.u32 %v7268, 4294901760
    %7694 = vmatprep.subr.mxu0 %v7693
    %v7695 = vand.u32 %v7267, 4294901760
    %7696 = vmatpush1.msra.mxu0 %v7695
    %7697 = vmatprep.subr.mxu0 0.0
    %7698 = vmatpush2.msra.mxu0 0.0
    %7699 = vmatprep.subr.mxu0 0.0
    %7700 = vmatpush2.msra.mxu0 0.0
    %7701 = vmatprep.subr.mxu0 0.0
    %7702 = vmatpush2.msra.mxu0 0.0
    %7703 = vmatprep.subr.mxu0 0.0
    %7704 = vmatpush2.msra.mxu0 0.0
    %7705 = vmatprep.subr.mxu0 0.0
    %7706 = vmatpush2.msra.mxu0 0.0
    %7707 = vmatprep.subr.mxu0 0.0
    %7708 = vmatpush2.msra.mxu0 0.0
    %7709 = vmatprep.subr.mxu0 0.0
    %7710 = vmatpush2.msra.mxu0 0.0
    %7711 = vmatprep.subr.mxu0 0.0
    %7712 = vmatpush2.msra.mxu0 0.0
    %7713 = vmatprep.subr.mxu0 0.0
    %7714 = vmatpush2.msra.mxu0 0.0
    %7715 = vmatprep.subr.mxu0 0.0
    %7716 = vmatpush2.msra.mxu0 0.0
    %7717 = vmatprep.subr.mxu0 0.0
    %7718 = vmatpush2.msra.mxu0 0.0
    %7719 = vmatprep.subr.mxu0 0.0
    %7720 = vmatpush2.msra.mxu0 0.0
    %7721 = vmatprep.subr.mxu0 0.0
    %7722 = vmatpush2.msra.mxu0 0.0
    %7723 = vmatprep.subr.mxu0 0.0
    %7724 = vmatpush2.msra.mxu0 0.0
    %7725 = vmatprep.subr.mxu0 0.0
    %7726 = vmatpush2.msra.mxu0 0.0
    %7727 = vmatprep.subr.mxu0 0.0
    %7728 = vmatpush2.msra.mxu0 0.0
    %7729 = vmatprep.mubr.f32.mxu0 0.0
    %v7730 = vand.u32 %v7270, 4294901760
    %7731 = vmatmul.mubr.f32.gmra.mxu0 %v7730
    %v7732 = vpop.f32.mrf.mxu0
    %v7733 = vadd.f32 %v7659, %v7732
    %v7734 = vpop.f32.mrf.mxu0
    %v7735 = vadd.f32 %v7661, %v7734
    %7736 = vdwg.mxu0
    %v7737 = vadd.f32 %v7259, %v7733
    %v7738 = vadd.f32 %v7260, %v7735
    %7739 = vrot.lane.b32.xlu0 %v4403, 112
    %v7740 = vpop.permute.xlu0 %7739
    %7741 = vrot.lane.b32.xlu0 %v4404, 112
    %v7742 = vpop.permute.xlu0 %7741
    %v7743 = vsel %vm3451, %v7740, %v7742
    %v7744 = vsel %vm3451, %v7742, %v7740
    %v7745 = vmul.f32 %v7743, %v91
    %v7746 = vmul.f32 %v7744, %v95
    %v7748 = vsel %vm115, %v36, 0
    %7750 = vmatprep.subr.mxu0 0.0
    %7751 = vmatpush1.msra.mxu0 0.0
    %7752 = vmatprep.subr.mxu0 0.0
    %7753 = vmatpush1.msra.mxu0 0.0
    %7754 = vmatprep.subr.mxu0 0.0
    %7755 = vmatpush1.msra.mxu0 0.0
    %7756 = vmatprep.subr.mxu0 0.0
    %7757 = vmatpush1.msra.mxu0 0.0
    %7758 = vmatprep.subr.mxu0 0.0
    %7759 = vmatpush1.msra.mxu0 0.0
    %7760 = vmatprep.subr.mxu0 0.0
    %7761 = vmatpush1.msra.mxu0 0.0
    %7762 = vmatprep.subr.mxu0 0.0
    %7763 = vmatpush1.msra.mxu0 0.0
    %7764 = vmatprep.subr.mxu0 0.0
    %7765 = vmatpush1.msra.mxu0 0.0
    %7766 = vmatprep.subr.mxu0 0.0
    %7767 = vmatpush1.msra.mxu0 0.0
    %7768 = vmatprep.subr.mxu0 0.0
    %7769 = vmatpush1.msra.mxu0 0.0
    %7770 = vmatprep.subr.mxu0 0.0
    %7771 = vmatpush1.msra.mxu0 0.0
    %7772 = vmatprep.subr.mxu0 0.0
    %7773 = vmatpush1.msra.mxu0 0.0
    %7774 = vmatprep.subr.mxu0 0.0
    %7775 = vmatpush1.msra.mxu0 0.0
    %7776 = vmatprep.subr.mxu0 0.0
    %7777 = vmatpush1.msra.mxu0 0.0
    %7778 = vmatprep.subr.mxu0 0.0
    %7779 = vmatpush1.msra.mxu0 0.0
    %v7780 = vand.u32 %v7746, 4294901760
    %7781 = vmatprep.subr.mxu0 %v7780
    %v7782 = vand.u32 %v7745, 4294901760
    %7783 = vmatpush1.msra.mxu0 %v7782
    %7784 = vmatprep.subr.mxu0 0.0
    %7785 = vmatpush2.msra.mxu0 0.0
    %7786 = vmatprep.subr.mxu0 0.0
    %7787 = vmatpush2.msra.mxu0 0.0
    %7788 = vmatprep.subr.mxu0 0.0
    %7789 = vmatpush2.msra.mxu0 0.0
    %7790 = vmatprep.subr.mxu0 0.0
    %7791 = vmatpush2.msra.mxu0 0.0
    %7792 = vmatprep.subr.mxu0 0.0
    %7793 = vmatpush2.msra.mxu0 0.0
    %7794 = vmatprep.subr.mxu0 0.0
    %7795 = vmatpush2.msra.mxu0 0.0
    %7796 = vmatprep.subr.mxu0 0.0
    %7797 = vmatpush2.msra.mxu0 0.0
    %7798 = vmatprep.subr.mxu0 0.0
    %7799 = vmatpush2.msra.mxu0 0.0
    %7800 = vmatprep.subr.mxu0 0.0
    %7801 = vmatpush2.msra.mxu0 0.0
    %7802 = vmatprep.subr.mxu0 0.0
    %7803 = vmatpush2.msra.mxu0 0.0
    %7804 = vmatprep.subr.mxu0 0.0
    %7805 = vmatpush2.msra.mxu0 0.0
    %7806 = vmatprep.subr.mxu0 0.0
    %7807 = vmatpush2.msra.mxu0 0.0
    %7808 = vmatprep.subr.mxu0 0.0
    %7809 = vmatpush2.msra.mxu0 0.0
    %7810 = vmatprep.subr.mxu0 0.0
    %7811 = vmatpush2.msra.mxu0 0.0
    %7812 = vmatprep.subr.mxu0 0.0
    %7813 = vmatpush2.msra.mxu0 0.0
    %7814 = vmatprep.subr.mxu0 0.0
    %7815 = vmatpush2.msra.mxu0 0.0
    %7816 = vmatprep.mubr.f32.mxu0 0.0
    %v7817 = vand.u32 %v7748, 4294901760
    %v7818 = vsub.f32 %v7748, %v7817
    %v7819 = vand.u32 %v7818, 4294901760
    %v7820 = vsub.f32 %v7818, %v7819
    %v7821 = vand.u32 %v7820, 4294901760
    %7822 = vmatmul.mubr.f32.gmra.mxu0 %v7821
    %v7823 = vpop.f32.mrf.mxu0
    %v7824 = vadd.f32 0.0, %v7823
    %v7825 = vpop.f32.mrf.mxu0
    %v7826 = vadd.f32 0.0, %v7825
    %7827 = vdwg.mxu0
    %7828 = vmatprep.subr.mxu0 0.0
    %7829 = vmatpush1.msra.mxu0 0.0
    %7830 = vmatprep.subr.mxu0 0.0
    %7831 = vmatpush1.msra.mxu0 0.0
    %7832 = vmatprep.subr.mxu0 0.0
    %7833 = vmatpush1.msra.mxu0 0.0
    %7834 = vmatprep.subr.mxu0 0.0
    %7835 = vmatpush1.msra.mxu0 0.0
    %7836 = vmatprep.subr.mxu0 0.0
    %7837 = vmatpush1.msra.mxu0 0.0
    %7838 = vmatprep.subr.mxu0 0.0
    %7839 = vmatpush1.msra.mxu0 0.0
    %7840 = vmatprep.subr.mxu0 0.0
    %7841 = vmatpush1.msra.mxu0 0.0
    %7842 = vmatprep.subr.mxu0 0.0
    %7843 = vmatpush1.msra.mxu0 0.0
    %7844 = vmatprep.subr.mxu0 0.0
    %7845 = vmatpush1.msra.mxu0 0.0
    %7846 = vmatprep.subr.mxu0 0.0
    %7847 = vmatpush1.msra.mxu0 0.0
    %7848 = vmatprep.subr.mxu0 0.0
    %7849 = vmatpush1.msra.mxu0 0.0
    %7850 = vmatprep.subr.mxu0 0.0
    %7851 = vmatpush1.msra.mxu0 0.0
    %7852 = vmatprep.subr.mxu0 0.0
    %7853 = vmatpush1.msra.mxu0 0.0
    %7854 = vmatprep.subr.mxu0 0.0
    %7855 = vmatpush1.msra.mxu0 0.0
    %7856 = vmatprep.subr.mxu0 0.0
    %7857 = vmatpush1.msra.mxu0 0.0
    %v7858 = vand.u32 %v7746, 4294901760
    %v7859 = vsub.f32 %v7746, %v7858
    %v7860 = vand.u32 %v7859, 4294901760
    %v7861 = vsub.f32 %v7859, %v7860
    %v7862 = vand.u32 %v7861, 4294901760
    %7863 = vmatprep.subr.mxu0 %v7862
    %v7864 = vand.u32 %v7745, 4294901760
    %v7865 = vsub.f32 %v7745, %v7864
    %v7866 = vand.u32 %v7865, 4294901760
    %v7867 = vsub.f32 %v7865, %v7866
    %v7868 = vand.u32 %v7867, 4294901760
    %7869 = vmatpush1.msra.mxu0 %v7868
    %7870 = vmatprep.subr.mxu0 0.0
    %7871 = vmatpush2.msra.mxu0 0.0
    %7872 = vmatprep.subr.mxu0 0.0
    %7873 = vmatpush2.msra.mxu0 0.0
    %7874 = vmatprep.subr.mxu0 0.0
    %7875 = vmatpush2.msra.mxu0 0.0
    %7876 = vmatprep.subr.mxu0 0.0
    %7877 = vmatpush2.msra.mxu0 0.0
    %7878 = vmatprep.subr.mxu0 0.0
    %7879 = vmatpush2.msra.mxu0 0.0
    %7880 = vmatprep.subr.mxu0 0.0
    %7881 = vmatpush2.msra.mxu0 0.0
    %7882 = vmatprep.subr.mxu0 0.0
    %7883 = vmatpush2.msra.mxu0 0.0
    %7884 = vmatprep.subr.mxu0 0.0
    %7885 = vmatpush2.msra.mxu0 0.0
    %7886 = vmatprep.subr.mxu0 0.0
    %7887 = vmatpush2.msra.mxu0 0.0
    %7888 = vmatprep.subr.mxu0 0.0
    %7889 = vmatpush2.msra.mxu0 0.0
    %7890 = vmatprep.subr.mxu0 0.0
    %7891 = vmatpush2.msra.mxu0 0.0
    %7892 = vmatprep.subr.mxu0 0.0
    %7893 = vmatpush2.msra.mxu0 0.0
    %7894 = vmatprep.subr.mxu0 0.0
    %7895 = vmatpush2.msra.mxu0 0.0
    %7896 = vmatprep.subr.mxu0 0.0
    %7897 = vmatpush2.msra.mxu0 0.0
    %7898 = vmatprep.subr.mxu0 0.0
    %7899 = vmatpush2.msra.mxu0 0.0
    %7900 = vmatprep.subr.mxu0 0.0
    %7901 = vmatpush2.msra.mxu0 0.0
    %7902 = vmatprep.mubr.f32.mxu0 0.0
    %v7903 = vand.u32 %v7748, 4294901760
    %7904 = vmatmul.mubr.f32.gmra.mxu0 %v7903
    %v7905 = vpop.f32.mrf.mxu0
    %v7906 = vadd.f32 %v7824, %v7905
    %v7907 = vpop.f32.mrf.mxu0
    %v7908 = vadd.f32 %v7826, %v7907
    %7909 = vdwg.mxu0
    %7910 = vmatprep.subr.mxu0 0.0
    %7911 = vmatpush1.msra.mxu0 0.0
    %7912 = vmatprep.subr.mxu0 0.0
    %7913 = vmatpush1.msra.mxu0 0.0
    %7914 = vmatprep.subr.mxu0 0.0
    %7915 = vmatpush1.msra.mxu0 0.0
    %7916 = vmatprep.subr.mxu0 0.0
    %7917 = vmatpush1.msra.mxu0 0.0
    %7918 = vmatprep.subr.mxu0 0.0
    %7919 = vmatpush1.msra.mxu0 0.0
    %7920 = vmatprep.subr.mxu0 0.0
    %7921 = vmatpush1.msra.mxu0 0.0
    %7922 = vmatprep.subr.mxu0 0.0
    %7923 = vmatpush1.msra.mxu0 0.0
    %7924 = vmatprep.subr.mxu0 0.0
    %7925 = vmatpush1.msra.mxu0 0.0
    %7926 = vmatprep.subr.mxu0 0.0
    %7927 = vmatpush1.msra.mxu0 0.0
    %7928 = vmatprep.subr.mxu0 0.0
    %7929 = vmatpush1.msra.mxu0 0.0
    %7930 = vmatprep.subr.mxu0 0.0
    %7931 = vmatpush1.msra.mxu0 0.0
    %7932 = vmatprep.subr.mxu0 0.0
    %7933 = vmatpush1.msra.mxu0 0.0
    %7934 = vmatprep.subr.mxu0 0.0
    %7935 = vmatpush1.msra.mxu0 0.0
    %7936 = vmatprep.subr.mxu0 0.0
    %7937 = vmatpush1.msra.mxu0 0.0
    %7938 = vmatprep.subr.mxu0 0.0
    %7939 = vmatpush1.msra.mxu0 0.0
    %v7940 = vand.u32 %v7746, 4294901760
    %v7941 = vsub.f32 %v7746, %v7940
    %7942 = vmatprep.subr.mxu0 %v7941
    %v7943 = vand.u32 %v7745, 4294901760
    %v7944 = vsub.f32 %v7745, %v7943
    %7945 = vmatpush1.msra.mxu0 %v7944
    %7946 = vmatprep.subr.mxu0 0.0
    %7947 = vmatpush2.msra.mxu0 0.0
    %7948 = vmatprep.subr.mxu0 0.0
    %7949 = vmatpush2.msra.mxu0 0.0
    %7950 = vmatprep.subr.mxu0 0.0
    %7951 = vmatpush2.msra.mxu0 0.0
    %7952 = vmatprep.subr.mxu0 0.0
    %7953 = vmatpush2.msra.mxu0 0.0
    %7954 = vmatprep.subr.mxu0 0.0
    %7955 = vmatpush2.msra.mxu0 0.0
    %7956 = vmatprep.subr.mxu0 0.0
    %7957 = vmatpush2.msra.mxu0 0.0
    %7958 = vmatprep.subr.mxu0 0.0
    %7959 = vmatpush2.msra.mxu0 0.0
    %7960 = vmatprep.subr.mxu0 0.0
    %7961 = vmatpush2.msra.mxu0 0.0
    %7962 = vmatprep.subr.mxu0 0.0
    %7963 = vmatpush2.msra.mxu0 0.0
    %7964 = vmatprep.subr.mxu0 0.0
    %7965 = vmatpush2.msra.mxu0 0.0
    %7966 = vmatprep.subr.mxu0 0.0
    %7967 = vmatpush2.msra.mxu0 0.0
    %7968 = vmatprep.subr.mxu0 0.0
    %7969 = vmatpush2.msra.mxu0 0.0
    %7970 = vmatprep.subr.mxu0 0.0
    %7971 = vmatpush2.msra.mxu0 0.0
    %7972 = vmatprep.subr.mxu0 0.0
    %7973 = vmatpush2.msra.mxu0 0.0
    %7974 = vmatprep.subr.mxu0 0.0
    %7975 = vmatpush2.msra.mxu0 0.0
    %7976 = vmatprep.subr.mxu0 0.0
    %7977 = vmatpush2.msra.mxu0 0.0
    %7978 = vmatprep.mubr.f32.mxu0 0.0
    %v7979 = vand.u32 %v7748, 4294901760
    %v7980 = vsub.f32 %v7748, %v7979
    %7981 = vmatmul.mubr.f32.gmra.mxu0 %v7980
    %v7982 = vpop.f32.mrf.mxu0
    %v7983 = vadd.f32 %v7906, %v7982
    %v7984 = vpop.f32.mrf.mxu0
    %v7985 = vadd.f32 %v7908, %v7984
    %7986 = vdwg.mxu0
    %7987 = vmatprep.subr.mxu0 0.0
    %7988 = vmatpush1.msra.mxu0 0.0
    %7989 = vmatprep.subr.mxu0 0.0
    %7990 = vmatpush1.msra.mxu0 0.0
    %7991 = vmatprep.subr.mxu0 0.0
    %7992 = vmatpush1.msra.mxu0 0.0
    %7993 = vmatprep.subr.mxu0 0.0
    %7994 = vmatpush1.msra.mxu0 0.0
    %7995 = vmatprep.subr.mxu0 0.0
    %7996 = vmatpush1.msra.mxu0 0.0
    %7997 = vmatprep.subr.mxu0 0.0
    %7998 = vmatpush1.msra.mxu0 0.0
    %7999 = vmatprep.subr.mxu0 0.0
    %8000 = vmatpush1.msra.mxu0 0.0
    %8001 = vmatprep.subr.mxu0 0.0
    %8002 = vmatpush1.msra.mxu0 0.0
    %8003 = vmatprep.subr.mxu0 0.0
    %8004 = vmatpush1.msra.mxu0 0.0
    %8005 = vmatprep.subr.mxu0 0.0
    %8006 = vmatpush1.msra.mxu0 0.0
    %8007 = vmatprep.subr.mxu0 0.0
    %8008 = vmatpush1.msra.mxu0 0.0
    %8009 = vmatprep.subr.mxu0 0.0
    %8010 = vmatpush1.msra.mxu0 0.0
    %8011 = vmatprep.subr.mxu0 0.0
    %8012 = vmatpush1.msra.mxu0 0.0
    %8013 = vmatprep.subr.mxu0 0.0
    %8014 = vmatpush1.msra.mxu0 0.0
    %8015 = vmatprep.subr.mxu0 0.0
    %8016 = vmatpush1.msra.mxu0 0.0
    %v8017 = vand.u32 %v7746, 4294901760
    %8018 = vmatprep.subr.mxu0 %v8017
    %v8019 = vand.u32 %v7745, 4294901760
    %8020 = vmatpush1.msra.mxu0 %v8019
    %8021 = vmatprep.subr.mxu0 0.0
    %8022 = vmatpush2.msra.mxu0 0.0
    %8023 = vmatprep.subr.mxu0 0.0
    %8024 = vmatpush2.msra.mxu0 0.0
    %8025 = vmatprep.subr.mxu0 0.0
    %8026 = vmatpush2.msra.mxu0 0.0
    %8027 = vmatprep.subr.mxu0 0.0
    %8028 = vmatpush2.msra.mxu0 0.0
    %8029 = vmatprep.subr.mxu0 0.0
    %8030 = vmatpush2.msra.mxu0 0.0
    %8031 = vmatprep.subr.mxu0 0.0
    %8032 = vmatpush2.msra.mxu0 0.0
    %8033 = vmatprep.subr.mxu0 0.0
    %8034 = vmatpush2.msra.mxu0 0.0
    %8035 = vmatprep.subr.mxu0 0.0
    %8036 = vmatpush2.msra.mxu0 0.0
    %8037 = vmatprep.subr.mxu0 0.0
    %8038 = vmatpush2.msra.mxu0 0.0
    %8039 = vmatprep.subr.mxu0 0.0
    %8040 = vmatpush2.msra.mxu0 0.0
    %8041 = vmatprep.subr.mxu0 0.0
    %8042 = vmatpush2.msra.mxu0 0.0
    %8043 = vmatprep.subr.mxu0 0.0
    %8044 = vmatpush2.msra.mxu0 0.0
    %8045 = vmatprep.subr.mxu0 0.0
    %8046 = vmatpush2.msra.mxu0 0.0
    %8047 = vmatprep.subr.mxu0 0.0
    %8048 = vmatpush2.msra.mxu0 0.0
    %8049 = vmatprep.subr.mxu0 0.0
    %8050 = vmatpush2.msra.mxu0 0.0
    %8051 = vmatprep.subr.mxu0 0.0
    %8052 = vmatpush2.msra.mxu0 0.0
    %8053 = vmatprep.mubr.f32.mxu0 0.0
    %v8054 = vand.u32 %v7748, 4294901760
    %v8055 = vsub.f32 %v7748, %v8054
    %v8056 = vand.u32 %v8055, 4294901760
    %8057 = vmatmul.mubr.f32.gmra.mxu0 %v8056
    %v8058 = vpop.f32.mrf.mxu0
    %v8059 = vadd.f32 %v7983, %v8058
    %v8060 = vpop.f32.mrf.mxu0
    %v8061 = vadd.f32 %v7985, %v8060
    %8062 = vdwg.mxu0
    %8063 = vmatprep.subr.mxu0 0.0
    %8064 = vmatpush1.msra.mxu0 0.0
    %8065 = vmatprep.subr.mxu0 0.0
    %8066 = vmatpush1.msra.mxu0 0.0
    %8067 = vmatprep.subr.mxu0 0.0
    %8068 = vmatpush1.msra.mxu0 0.0
    %8069 = vmatprep.subr.mxu0 0.0
    %8070 = vmatpush1.msra.mxu0 0.0
    %8071 = vmatprep.subr.mxu0 0.0
    %8072 = vmatpush1.msra.mxu0 0.0
    %8073 = vmatprep.subr.mxu0 0.0
    %8074 = vmatpush1.msra.mxu0 0.0
    %8075 = vmatprep.subr.mxu0 0.0
    %8076 = vmatpush1.msra.mxu0 0.0
    %8077 = vmatprep.subr.mxu0 0.0
    %8078 = vmatpush1.msra.mxu0 0.0
    %8079 = vmatprep.subr.mxu0 0.0
    %8080 = vmatpush1.msra.mxu0 0.0
    %8081 = vmatprep.subr.mxu0 0.0
    %8082 = vmatpush1.msra.mxu0 0.0
    %8083 = vmatprep.subr.mxu0 0.0
    %8084 = vmatpush1.msra.mxu0 0.0
    %8085 = vmatprep.subr.mxu0 0.0
    %8086 = vmatpush1.msra.mxu0 0.0
    %8087 = vmatprep.subr.mxu0 0.0
    %8088 = vmatpush1.msra.mxu0 0.0
    %8089 = vmatprep.subr.mxu0 0.0
    %8090 = vmatpush1.msra.mxu0 0.0
    %8091 = vmatprep.subr.mxu0 0.0
    %8092 = vmatpush1.msra.mxu0 0.0
    %v8093 = vand.u32 %v7746, 4294901760
    %v8094 = vsub.f32 %v7746, %v8093
    %v8095 = vand.u32 %v8094, 4294901760
    %8096 = vmatprep.subr.mxu0 %v8095
    %v8097 = vand.u32 %v7745, 4294901760
    %v8098 = vsub.f32 %v7745, %v8097
    %v8099 = vand.u32 %v8098, 4294901760
    %8100 = vmatpush1.msra.mxu0 %v8099
    %8101 = vmatprep.subr.mxu0 0.0
    %8102 = vmatpush2.msra.mxu0 0.0
    %8103 = vmatprep.subr.mxu0 0.0
    %8104 = vmatpush2.msra.mxu0 0.0
    %8105 = vmatprep.subr.mxu0 0.0
    %8106 = vmatpush2.msra.mxu0 0.0
    %8107 = vmatprep.subr.mxu0 0.0
    %8108 = vmatpush2.msra.mxu0 0.0
    %8109 = vmatprep.subr.mxu0 0.0
    %8110 = vmatpush2.msra.mxu0 0.0
    %8111 = vmatprep.subr.mxu0 0.0
    %8112 = vmatpush2.msra.mxu0 0.0
    %8113 = vmatprep.subr.mxu0 0.0
    %8114 = vmatpush2.msra.mxu0 0.0
    %8115 = vmatprep.subr.mxu0 0.0
    %8116 = vmatpush2.msra.mxu0 0.0
    %8117 = vmatprep.subr.mxu0 0.0
    %8118 = vmatpush2.msra.mxu0 0.0
    %8119 = vmatprep.subr.mxu0 0.0
    %8120 = vmatpush2.msra.mxu0 0.0
    %8121 = vmatprep.subr.mxu0 0.0
    %8122 = vmatpush2.msra.mxu0 0.0
    %8123 = vmatprep.subr.mxu0 0.0
    %8124 = vmatpush2.msra.mxu0 0.0
    %8125 = vmatprep.subr.mxu0 0.0
    %8126 = vmatpush2.msra.mxu0 0.0
    %8127 = vmatprep.subr.mxu0 0.0
    %8128 = vmatpush2.msra.mxu0 0.0
    %8129 = vmatprep.subr.mxu0 0.0
    %8130 = vmatpush2.msra.mxu0 0.0
    %8131 = vmatprep.subr.mxu0 0.0
    %8132 = vmatpush2.msra.mxu0 0.0
    %8133 = vmatprep.mubr.f32.mxu0 0.0
    %v8134 = vand.u32 %v7748, 4294901760
    %8135 = vmatmul.mubr.f32.gmra.mxu0 %v8134
    %v8136 = vpop.f32.mrf.mxu0
    %v8137 = vadd.f32 %v8059, %v8136
    %v8138 = vpop.f32.mrf.mxu0
    %v8139 = vadd.f32 %v8061, %v8138
    %8140 = vdwg.mxu0
    %8141 = vmatprep.subr.mxu0 0.0
    %8142 = vmatpush1.msra.mxu0 0.0
    %8143 = vmatprep.subr.mxu0 0.0
    %8144 = vmatpush1.msra.mxu0 0.0
    %8145 = vmatprep.subr.mxu0 0.0
    %8146 = vmatpush1.msra.mxu0 0.0
    %8147 = vmatprep.subr.mxu0 0.0
    %8148 = vmatpush1.msra.mxu0 0.0
    %8149 = vmatprep.subr.mxu0 0.0
    %8150 = vmatpush1.msra.mxu0 0.0
    %8151 = vmatprep.subr.mxu0 0.0
    %8152 = vmatpush1.msra.mxu0 0.0
    %8153 = vmatprep.subr.mxu0 0.0
    %8154 = vmatpush1.msra.mxu0 0.0
    %8155 = vmatprep.subr.mxu0 0.0
    %8156 = vmatpush1.msra.mxu0 0.0
    %8157 = vmatprep.subr.mxu0 0.0
    %8158 = vmatpush1.msra.mxu0 0.0
    %8159 = vmatprep.subr.mxu0 0.0
    %8160 = vmatpush1.msra.mxu0 0.0
    %8161 = vmatprep.subr.mxu0 0.0
    %8162 = vmatpush1.msra.mxu0 0.0
    %8163 = vmatprep.subr.mxu0 0.0
    %8164 = vmatpush1.msra.mxu0 0.0
    %8165 = vmatprep.subr.mxu0 0.0
    %8166 = vmatpush1.msra.mxu0 0.0
    %8167 = vmatprep.subr.mxu0 0.0
    %8168 = vmatpush1.msra.mxu0 0.0
    %8169 = vmatprep.subr.mxu0 0.0
    %8170 = vmatpush1.msra.mxu0 0.0
    %v8171 = vand.u32 %v7746, 4294901760
    %8172 = vmatprep.subr.mxu0 %v8171
    %v8173 = vand.u32 %v7745, 4294901760
    %8174 = vmatpush1.msra.mxu0 %v8173
    %8175 = vmatprep.subr.mxu0 0.0
    %8176 = vmatpush2.msra.mxu0 0.0
    %8177 = vmatprep.subr.mxu0 0.0
    %8178 = vmatpush2.msra.mxu0 0.0
    %8179 = vmatprep.subr.mxu0 0.0
    %8180 = vmatpush2.msra.mxu0 0.0
    %8181 = vmatprep.subr.mxu0 0.0
    %8182 = vmatpush2.msra.mxu0 0.0
    %8183 = vmatprep.subr.mxu0 0.0
    %8184 = vmatpush2.msra.mxu0 0.0
    %8185 = vmatprep.subr.mxu0 0.0
    %8186 = vmatpush2.msra.mxu0 0.0
    %8187 = vmatprep.subr.mxu0 0.0
    %8188 = vmatpush2.msra.mxu0 0.0
    %8189 = vmatprep.subr.mxu0 0.0
    %8190 = vmatpush2.msra.mxu0 0.0
    %8191 = vmatprep.subr.mxu0 0.0
    %8192 = vmatpush2.msra.mxu0 0.0
    %8193 = vmatprep.subr.mxu0 0.0
    %8194 = vmatpush2.msra.mxu0 0.0
    %8195 = vmatprep.subr.mxu0 0.0
    %8196 = vmatpush2.msra.mxu0 0.0
    %8197 = vmatprep.subr.mxu0 0.0
    %8198 = vmatpush2.msra.mxu0 0.0
    %8199 = vmatprep.subr.mxu0 0.0
    %8200 = vmatpush2.msra.mxu0 0.0
    %8201 = vmatprep.subr.mxu0 0.0
    %8202 = vmatpush2.msra.mxu0 0.0
    %8203 = vmatprep.subr.mxu0 0.0
    %8204 = vmatpush2.msra.mxu0 0.0
    %8205 = vmatprep.subr.mxu0 0.0
    %8206 = vmatpush2.msra.mxu0 0.0
    %8207 = vmatprep.mubr.f32.mxu0 0.0
    %v8208 = vand.u32 %v7748, 4294901760
    %8209 = vmatmul.mubr.f32.gmra.mxu0 %v8208
    %v8210 = vpop.f32.mrf.mxu0
    %v8211 = vadd.f32 %v8137, %v8210
    %v8212 = vpop.f32.mrf.mxu0
    %v8213 = vadd.f32 %v8139, %v8212
    %8214 = vdwg.mxu0
    %v8215 = vadd.f32 %v7737, %v8211
    %v8216 = vadd.f32 %v7738, %v8213
    %8217 = vrot.lane.b32.xlu0 %v4403, 111
    %v8218 = vpop.permute.xlu0 %8217
    %8219 = vrot.lane.b32.xlu0 %v4404, 111
    %v8220 = vpop.permute.xlu0 %8219
    %v8221 = vsel %vm3930, %v8218, %v8220
    %v8222 = vsel %vm3930, %v8220, %v8218
    %v8223 = vmul.f32 %v8221, %v99
    %v8224 = vmul.f32 %v8222, %v103
    %v8226 = vsel %vm115, %v37, 0
    %8228 = vmatprep.subr.mxu0 0.0
    %8229 = vmatpush1.msra.mxu0 0.0
    %8230 = vmatprep.subr.mxu0 0.0
    %8231 = vmatpush1.msra.mxu0 0.0
    %8232 = vmatprep.subr.mxu0 0.0
    %8233 = vmatpush1.msra.mxu0 0.0
    %8234 = vmatprep.subr.mxu0 0.0
    %8235 = vmatpush1.msra.mxu0 0.0
    %8236 = vmatprep.subr.mxu0 0.0
    %8237 = vmatpush1.msra.mxu0 0.0
    %8238 = vmatprep.subr.mxu0 0.0
    %8239 = vmatpush1.msra.mxu0 0.0
    %8240 = vmatprep.subr.mxu0 0.0
    %8241 = vmatpush1.msra.mxu0 0.0
    %8242 = vmatprep.subr.mxu0 0.0
    %8243 = vmatpush1.msra.mxu0 0.0
    %8244 = vmatprep.subr.mxu0 0.0
    %8245 = vmatpush1.msra.mxu0 0.0
    %8246 = vmatprep.subr.mxu0 0.0
    %8247 = vmatpush1.msra.mxu0 0.0
    %8248 = vmatprep.subr.mxu0 0.0
    %8249 = vmatpush1.msra.mxu0 0.0
    %8250 = vmatprep.subr.mxu0 0.0
    %8251 = vmatpush1.msra.mxu0 0.0
    %8252 = vmatprep.subr.mxu0 0.0
    %8253 = vmatpush1.msra.mxu0 0.0
    %8254 = vmatprep.subr.mxu0 0.0
    %8255 = vmatpush1.msra.mxu0 0.0
    %8256 = vmatprep.subr.mxu0 0.0
    %8257 = vmatpush1.msra.mxu0 0.0
    %v8258 = vand.u32 %v8224, 4294901760
    %8259 = vmatprep.subr.mxu0 %v8258
    %v8260 = vand.u32 %v8223, 4294901760
    %8261 = vmatpush1.msra.mxu0 %v8260
    %8262 = vmatprep.subr.mxu0 0.0
    %8263 = vmatpush2.msra.mxu0 0.0
    %8264 = vmatprep.subr.mxu0 0.0
    %8265 = vmatpush2.msra.mxu0 0.0
    %8266 = vmatprep.subr.mxu0 0.0
    %8267 = vmatpush2.msra.mxu0 0.0
    %8268 = vmatprep.subr.mxu0 0.0
    %8269 = vmatpush2.msra.mxu0 0.0
    %8270 = vmatprep.subr.mxu0 0.0
    %8271 = vmatpush2.msra.mxu0 0.0
    %8272 = vmatprep.subr.mxu0 0.0
    %8273 = vmatpush2.msra.mxu0 0.0
    %8274 = vmatprep.subr.mxu0 0.0
    %8275 = vmatpush2.msra.mxu0 0.0
    %8276 = vmatprep.subr.mxu0 0.0
    %8277 = vmatpush2.msra.mxu0 0.0
    %8278 = vmatprep.subr.mxu0 0.0
    %8279 = vmatpush2.msra.mxu0 0.0
    %8280 = vmatprep.subr.mxu0 0.0
    %8281 = vmatpush2.msra.mxu0 0.0
    %8282 = vmatprep.subr.mxu0 0.0
    %8283 = vmatpush2.msra.mxu0 0.0
    %8284 = vmatprep.subr.mxu0 0.0
    %8285 = vmatpush2.msra.mxu0 0.0
    %8286 = vmatprep.subr.mxu0 0.0
    %8287 = vmatpush2.msra.mxu0 0.0
    %8288 = vmatprep.subr.mxu0 0.0
    %8289 = vmatpush2.msra.mxu0 0.0
    %8290 = vmatprep.subr.mxu0 0.0
    %8291 = vmatpush2.msra.mxu0 0.0
    %8292 = vmatprep.subr.mxu0 0.0
    %8293 = vmatpush2.msra.mxu0 0.0
    %8294 = vmatprep.mubr.f32.mxu0 0.0
    %v8295 = vand.u32 %v8226, 4294901760
    %v8296 = vsub.f32 %v8226, %v8295
    %v8297 = vand.u32 %v8296, 4294901760
    %v8298 = vsub.f32 %v8296, %v8297
    %v8299 = vand.u32 %v8298, 4294901760
    %8300 = vmatmul.mubr.f32.gmra.mxu0 %v8299
    %v8301 = vpop.f32.mrf.mxu0
    %v8302 = vadd.f32 0.0, %v8301
    %v8303 = vpop.f32.mrf.mxu0
    %v8304 = vadd.f32 0.0, %v8303
    %8305 = vdwg.mxu0
    %8306 = vmatprep.subr.mxu0 0.0
    %8307 = vmatpush1.msra.mxu0 0.0
    %8308 = vmatprep.subr.mxu0 0.0
    %8309 = vmatpush1.msra.mxu0 0.0
    %8310 = vmatprep.subr.mxu0 0.0
    %8311 = vmatpush1.msra.mxu0 0.0
    %8312 = vmatprep.subr.mxu0 0.0
    %8313 = vmatpush1.msra.mxu0 0.0
    %8314 = vmatprep.subr.mxu0 0.0
    %8315 = vmatpush1.msra.mxu0 0.0
    %8316 = vmatprep.subr.mxu0 0.0
    %8317 = vmatpush1.msra.mxu0 0.0
    %8318 = vmatprep.subr.mxu0 0.0
    %8319 = vmatpush1.msra.mxu0 0.0
    %8320 = vmatprep.subr.mxu0 0.0
    %8321 = vmatpush1.msra.mxu0 0.0
    %8322 = vmatprep.subr.mxu0 0.0
    %8323 = vmatpush1.msra.mxu0 0.0
    %8324 = vmatprep.subr.mxu0 0.0
    %8325 = vmatpush1.msra.mxu0 0.0
    %8326 = vmatprep.subr.mxu0 0.0
    %8327 = vmatpush1.msra.mxu0 0.0
    %8328 = vmatprep.subr.mxu0 0.0
    %8329 = vmatpush1.msra.mxu0 0.0
    %8330 = vmatprep.subr.mxu0 0.0
    %8331 = vmatpush1.msra.mxu0 0.0
    %8332 = vmatprep.subr.mxu0 0.0
    %8333 = vmatpush1.msra.mxu0 0.0
    %8334 = vmatprep.subr.mxu0 0.0
    %8335 = vmatpush1.msra.mxu0 0.0
    %v8336 = vand.u32 %v8224, 4294901760
    %v8337 = vsub.f32 %v8224, %v8336
    %v8338 = vand.u32 %v8337, 4294901760
    %v8339 = vsub.f32 %v8337, %v8338
    %v8340 = vand.u32 %v8339, 4294901760
    %8341 = vmatprep.subr.mxu0 %v8340
    %v8342 = vand.u32 %v8223, 4294901760
    %v8343 = vsub.f32 %v8223, %v8342
    %v8344 = vand.u32 %v8343, 4294901760
    %v8345 = vsub.f32 %v8343, %v8344
    %v8346 = vand.u32 %v8345, 4294901760
    %8347 = vmatpush1.msra.mxu0 %v8346
    %8348 = vmatprep.subr.mxu0 0.0
    %8349 = vmatpush2.msra.mxu0 0.0
    %8350 = vmatprep.subr.mxu0 0.0
    %8351 = vmatpush2.msra.mxu0 0.0
    %8352 = vmatprep.subr.mxu0 0.0
    %8353 = vmatpush2.msra.mxu0 0.0
    %8354 = vmatprep.subr.mxu0 0.0
    %8355 = vmatpush2.msra.mxu0 0.0
    %8356 = vmatprep.subr.mxu0 0.0
    %8357 = vmatpush2.msra.mxu0 0.0
    %8358 = vmatprep.subr.mxu0 0.0
    %8359 = vmatpush2.msra.mxu0 0.0
    %8360 = vmatprep.subr.mxu0 0.0
    %8361 = vmatpush2.msra.mxu0 0.0
    %8362 = vmatprep.subr.mxu0 0.0
    %8363 = vmatpush2.msra.mxu0 0.0
    %8364 = vmatprep.subr.mxu0 0.0
    %8365 = vmatpush2.msra.mxu0 0.0
    %8366 = vmatprep.subr.mxu0 0.0
    %8367 = vmatpush2.msra.mxu0 0.0
    %8368 = vmatprep.subr.mxu0 0.0
    %8369 = vmatpush2.msra.mxu0 0.0
    %8370 = vmatprep.subr.mxu0 0.0
    %8371 = vmatpush2.msra.mxu0 0.0
    %8372 = vmatprep.subr.mxu0 0.0
    %8373 = vmatpush2.msra.mxu0 0.0
    %8374 = vmatprep.subr.mxu0 0.0
    %8375 = vmatpush2.msra.mxu0 0.0
    %8376 = vmatprep.subr.mxu0 0.0
    %8377 = vmatpush2.msra.mxu0 0.0
    %8378 = vmatprep.subr.mxu0 0.0
    %8379 = vmatpush2.msra.mxu0 0.0
    %8380 = vmatprep.mubr.f32.mxu0 0.0
    %v8381 = vand.u32 %v8226, 4294901760
    %8382 = vmatmul.mubr.f32.gmra.mxu0 %v8381
    %v8383 = vpop.f32.mrf.mxu0
    %v8384 = vadd.f32 %v8302, %v8383
    %v8385 = vpop.f32.mrf.mxu0
    %v8386 = vadd.f32 %v8304, %v8385
    %8387 = vdwg.mxu0
    %8388 = vmatprep.subr.mxu0 0.0
    %8389 = vmatpush1.msra.mxu0 0.0
    %8390 = vmatprep.subr.mxu0 0.0
    %8391 = vmatpush1.msra.mxu0 0.0
    %8392 = vmatprep.subr.mxu0 0.0
    %8393 = vmatpush1.msra.mxu0 0.0
    %8394 = vmatprep.subr.mxu0 0.0
    %8395 = vmatpush1.msra.mxu0 0.0
    %8396 = vmatprep.subr.mxu0 0.0
    %8397 = vmatpush1.msra.mxu0 0.0
    %8398 = vmatprep.subr.mxu0 0.0
    %8399 = vmatpush1.msra.mxu0 0.0
    %8400 = vmatprep.subr.mxu0 0.0
    %8401 = vmatpush1.msra.mxu0 0.0
    %8402 = vmatprep.subr.mxu0 0.0
    %8403 = vmatpush1.msra.mxu0 0.0
    %8404 = vmatprep.subr.mxu0 0.0
    %8405 = vmatpush1.msra.mxu0 0.0
    %8406 = vmatprep.subr.mxu0 0.0
    %8407 = vmatpush1.msra.mxu0 0.0
    %8408 = vmatprep.subr.mxu0 0.0
    %8409 = vmatpush1.msra.mxu0 0.0
    %8410 = vmatprep.subr.mxu0 0.0
    %8411 = vmatpush1.msra.mxu0 0.0
    %8412 = vmatprep.subr.mxu0 0.0
    %8413 = vmatpush1.msra.mxu0 0.0
    %8414 = vmatprep.subr.mxu0 0.0
    %8415 = vmatpush1.msra.mxu0 0.0
    %8416 = vmatprep.subr.mxu0 0.0
    %8417 = vmatpush1.msra.mxu0 0.0
    %v8418 = vand.u32 %v8224, 4294901760
    %v8419 = vsub.f32 %v8224, %v8418
    %8420 = vmatprep.subr.mxu0 %v8419
    %v8421 = vand.u32 %v8223, 4294901760
    %v8422 = vsub.f32 %v8223, %v8421
    %8423 = vmatpush1.msra.mxu0 %v8422
    %8424 = vmatprep.subr.mxu0 0.0
    %8425 = vmatpush2.msra.mxu0 0.0
    %8426 = vmatprep.subr.mxu0 0.0
    %8427 = vmatpush2.msra.mxu0 0.0
    %8428 = vmatprep.subr.mxu0 0.0
    %8429 = vmatpush2.msra.mxu0 0.0
    %8430 = vmatprep.subr.mxu0 0.0
    %8431 = vmatpush2.msra.mxu0 0.0
    %8432 = vmatprep.subr.mxu0 0.0
    %8433 = vmatpush2.msra.mxu0 0.0
    %8434 = vmatprep.subr.mxu0 0.0
    %8435 = vmatpush2.msra.mxu0 0.0
    %8436 = vmatprep.subr.mxu0 0.0
    %8437 = vmatpush2.msra.mxu0 0.0
    %8438 = vmatprep.subr.mxu0 0.0
    %8439 = vmatpush2.msra.mxu0 0.0
    %8440 = vmatprep.subr.mxu0 0.0
    %8441 = vmatpush2.msra.mxu0 0.0
    %8442 = vmatprep.subr.mxu0 0.0
    %8443 = vmatpush2.msra.mxu0 0.0
    %8444 = vmatprep.subr.mxu0 0.0
    %8445 = vmatpush2.msra.mxu0 0.0
    %8446 = vmatprep.subr.mxu0 0.0
    %8447 = vmatpush2.msra.mxu0 0.0
    %8448 = vmatprep.subr.mxu0 0.0
    %8449 = vmatpush2.msra.mxu0 0.0
    %8450 = vmatprep.subr.mxu0 0.0
    %8451 = vmatpush2.msra.mxu0 0.0
    %8452 = vmatprep.subr.mxu0 0.0
    %8453 = vmatpush2.msra.mxu0 0.0
    %8454 = vmatprep.subr.mxu0 0.0
    %8455 = vmatpush2.msra.mxu0 0.0
    %8456 = vmatprep.mubr.f32.mxu0 0.0
    %v8457 = vand.u32 %v8226, 4294901760
    %v8458 = vsub.f32 %v8226, %v8457
    %8459 = vmatmul.mubr.f32.gmra.mxu0 %v8458
    %v8460 = vpop.f32.mrf.mxu0
    %v8461 = vadd.f32 %v8384, %v8460
    %v8462 = vpop.f32.mrf.mxu0
    %v8463 = vadd.f32 %v8386, %v8462
    %8464 = vdwg.mxu0
    %8465 = vmatprep.subr.mxu0 0.0
    %8466 = vmatpush1.msra.mxu0 0.0
    %8467 = vmatprep.subr.mxu0 0.0
    %8468 = vmatpush1.msra.mxu0 0.0
    %8469 = vmatprep.subr.mxu0 0.0
    %8470 = vmatpush1.msra.mxu0 0.0
    %8471 = vmatprep.subr.mxu0 0.0
    %8472 = vmatpush1.msra.mxu0 0.0
    %8473 = vmatprep.subr.mxu0 0.0
    %8474 = vmatpush1.msra.mxu0 0.0
    %8475 = vmatprep.subr.mxu0 0.0
    %8476 = vmatpush1.msra.mxu0 0.0
    %8477 = vmatprep.subr.mxu0 0.0
    %8478 = vmatpush1.msra.mxu0 0.0
    %8479 = vmatprep.subr.mxu0 0.0
    %8480 = vmatpush1.msra.mxu0 0.0
    %8481 = vmatprep.subr.mxu0 0.0
    %8482 = vmatpush1.msra.mxu0 0.0
    %8483 = vmatprep.subr.mxu0 0.0
    %8484 = vmatpush1.msra.mxu0 0.0
    %8485 = vmatprep.subr.mxu0 0.0
    %8486 = vmatpush1.msra.mxu0 0.0
    %8487 = vmatprep.subr.mxu0 0.0
    %8488 = vmatpush1.msra.mxu0 0.0
    %8489 = vmatprep.subr.mxu0 0.0
    %8490 = vmatpush1.msra.mxu0 0.0
    %8491 = vmatprep.subr.mxu0 0.0
    %8492 = vmatpush1.msra.mxu0 0.0
    %8493 = vmatprep.subr.mxu0 0.0
    %8494 = vmatpush1.msra.mxu0 0.0
    %v8495 = vand.u32 %v8224, 4294901760
    %8496 = vmatprep.subr.mxu0 %v8495
    %v8497 = vand.u32 %v8223, 4294901760
    %8498 = vmatpush1.msra.mxu0 %v8497
    %8499 = vmatprep.subr.mxu0 0.0
    %8500 = vmatpush2.msra.mxu0 0.0
    %8501 = vmatprep.subr.mxu0 0.0
    %8502 = vmatpush2.msra.mxu0 0.0
    %8503 = vmatprep.subr.mxu0 0.0
    %8504 = vmatpush2.msra.mxu0 0.0
    %8505 = vmatprep.subr.mxu0 0.0
    %8506 = vmatpush2.msra.mxu0 0.0
    %8507 = vmatprep.subr.mxu0 0.0
    %8508 = vmatpush2.msra.mxu0 0.0
    %8509 = vmatprep.subr.mxu0 0.0
    %8510 = vmatpush2.msra.mxu0 0.0
    %8511 = vmatprep.subr.mxu0 0.0
    %8512 = vmatpush2.msra.mxu0 0.0
    %8513 = vmatprep.subr.mxu0 0.0
    %8514 = vmatpush2.msra.mxu0 0.0
    %8515 = vmatprep.subr.mxu0 0.0
    %8516 = vmatpush2.msra.mxu0 0.0
    %8517 = vmatprep.subr.mxu0 0.0
    %8518 = vmatpush2.msra.mxu0 0.0
    %8519 = vmatprep.subr.mxu0 0.0
    %8520 = vmatpush2.msra.mxu0 0.0
    %8521 = vmatprep.subr.mxu0 0.0
    %8522 = vmatpush2.msra.mxu0 0.0
    %8523 = vmatprep.subr.mxu0 0.0
    %8524 = vmatpush2.msra.mxu0 0.0
    %8525 = vmatprep.subr.mxu0 0.0
    %8526 = vmatpush2.msra.mxu0 0.0
    %8527 = vmatprep.subr.mxu0 0.0
    %8528 = vmatpush2.msra.mxu0 0.0
    %8529 = vmatprep.subr.mxu0 0.0
    %8530 = vmatpush2.msra.mxu0 0.0
    %8531 = vmatprep.mubr.f32.mxu0 0.0
    %v8532 = vand.u32 %v8226, 4294901760
    %v8533 = vsub.f32 %v8226, %v8532
    %v8534 = vand.u32 %v8533, 4294901760
    %8535 = vmatmul.mubr.f32.gmra.mxu0 %v8534
    %v8536 = vpop.f32.mrf.mxu0
    %v8537 = vadd.f32 %v8461, %v8536
    %v8538 = vpop.f32.mrf.mxu0
    %v8539 = vadd.f32 %v8463, %v8538
    %8540 = vdwg.mxu0
    %8541 = vmatprep.subr.mxu0 0.0
    %8542 = vmatpush1.msra.mxu0 0.0
    %8543 = vmatprep.subr.mxu0 0.0
    %8544 = vmatpush1.msra.mxu0 0.0
    %8545 = vmatprep.subr.mxu0 0.0
    %8546 = vmatpush1.msra.mxu0 0.0
    %8547 = vmatprep.subr.mxu0 0.0
    %8548 = vmatpush1.msra.mxu0 0.0
    %8549 = vmatprep.subr.mxu0 0.0
    %8550 = vmatpush1.msra.mxu0 0.0
    %8551 = vmatprep.subr.mxu0 0.0
    %8552 = vmatpush1.msra.mxu0 0.0
    %8553 = vmatprep.subr.mxu0 0.0
    %8554 = vmatpush1.msra.mxu0 0.0
    %8555 = vmatprep.subr.mxu0 0.0
    %8556 = vmatpush1.msra.mxu0 0.0
    %8557 = vmatprep.subr.mxu0 0.0
    %8558 = vmatpush1.msra.mxu0 0.0
    %8559 = vmatprep.subr.mxu0 0.0
    %8560 = vmatpush1.msra.mxu0 0.0
    %8561 = vmatprep.subr.mxu0 0.0
    %8562 = vmatpush1.msra.mxu0 0.0
    %8563 = vmatprep.subr.mxu0 0.0
    %8564 = vmatpush1.msra.mxu0 0.0
    %8565 = vmatprep.subr.mxu0 0.0
    %8566 = vmatpush1.msra.mxu0 0.0
    %8567 = vmatprep.subr.mxu0 0.0
    %8568 = vmatpush1.msra.mxu0 0.0
    %8569 = vmatprep.subr.mxu0 0.0
    %8570 = vmatpush1.msra.mxu0 0.0
    %v8571 = vand.u32 %v8224, 4294901760
    %v8572 = vsub.f32 %v8224, %v8571
    %v8573 = vand.u32 %v8572, 4294901760
    %8574 = vmatprep.subr.mxu0 %v8573
    %v8575 = vand.u32 %v8223, 4294901760
    %v8576 = vsub.f32 %v8223, %v8575
    %v8577 = vand.u32 %v8576, 4294901760
    %8578 = vmatpush1.msra.mxu0 %v8577
    %8579 = vmatprep.subr.mxu0 0.0
    %8580 = vmatpush2.msra.mxu0 0.0
    %8581 = vmatprep.subr.mxu0 0.0
    %8582 = vmatpush2.msra.mxu0 0.0
    %8583 = vmatprep.subr.mxu0 0.0
    %8584 = vmatpush2.msra.mxu0 0.0
    %8585 = vmatprep.subr.mxu0 0.0
    %8586 = vmatpush2.msra.mxu0 0.0
    %8587 = vmatprep.subr.mxu0 0.0
    %8588 = vmatpush2.msra.mxu0 0.0
    %8589 = vmatprep.subr.mxu0 0.0
    %8590 = vmatpush2.msra.mxu0 0.0
    %8591 = vmatprep.subr.mxu0 0.0
    %8592 = vmatpush2.msra.mxu0 0.0
    %8593 = vmatprep.subr.mxu0 0.0
    %8594 = vmatpush2.msra.mxu0 0.0
    %8595 = vmatprep.subr.mxu0 0.0
    %8596 = vmatpush2.msra.mxu0 0.0
    %8597 = vmatprep.subr.mxu0 0.0
    %8598 = vmatpush2.msra.mxu0 0.0
    %8599 = vmatprep.subr.mxu0 0.0
    %8600 = vmatpush2.msra.mxu0 0.0
    %8601 = vmatprep.subr.mxu0 0.0
    %8602 = vmatpush2.msra.mxu0 0.0
    %8603 = vmatprep.subr.mxu0 0.0
    %8604 = vmatpush2.msra.mxu0 0.0
    %8605 = vmatprep.subr.mxu0 0.0
    %8606 = vmatpush2.msra.mxu0 0.0
    %8607 = vmatprep.subr.mxu0 0.0
    %8608 = vmatpush2.msra.mxu0 0.0
    %8609 = vmatprep.subr.mxu0 0.0
    %8610 = vmatpush2.msra.mxu0 0.0
    %8611 = vmatprep.mubr.f32.mxu0 0.0
    %v8612 = vand.u32 %v8226, 4294901760
    %8613 = vmatmul.mubr.f32.gmra.mxu0 %v8612
    %v8614 = vpop.f32.mrf.mxu0
    %v8615 = vadd.f32 %v8537, %v8614
    %v8616 = vpop.f32.mrf.mxu0
    %v8617 = vadd.f32 %v8539, %v8616
    %8618 = vdwg.mxu0
    %8619 = vmatprep.subr.mxu0 0.0
    %8620 = vmatpush1.msra.mxu0 0.0
    %8621 = vmatprep.subr.mxu0 0.0
    %8622 = vmatpush1.msra.mxu0 0.0
    %8623 = vmatprep.subr.mxu0 0.0
    %8624 = vmatpush1.msra.mxu0 0.0
    %8625 = vmatprep.subr.mxu0 0.0
    %8626 = vmatpush1.msra.mxu0 0.0
    %8627 = vmatprep.subr.mxu0 0.0
    %8628 = vmatpush1.msra.mxu0 0.0
    %8629 = vmatprep.subr.mxu0 0.0
    %8630 = vmatpush1.msra.mxu0 0.0
    %8631 = vmatprep.subr.mxu0 0.0
    %8632 = vmatpush1.msra.mxu0 0.0
    %8633 = vmatprep.subr.mxu0 0.0
    %8634 = vmatpush1.msra.mxu0 0.0
    %8635 = vmatprep.subr.mxu0 0.0
    %8636 = vmatpush1.msra.mxu0 0.0
    %8637 = vmatprep.subr.mxu0 0.0
    %8638 = vmatpush1.msra.mxu0 0.0
    %8639 = vmatprep.subr.mxu0 0.0
    %8640 = vmatpush1.msra.mxu0 0.0
    %8641 = vmatprep.subr.mxu0 0.0
    %8642 = vmatpush1.msra.mxu0 0.0
    %8643 = vmatprep.subr.mxu0 0.0
    %8644 = vmatpush1.msra.mxu0 0.0
    %8645 = vmatprep.subr.mxu0 0.0
    %8646 = vmatpush1.msra.mxu0 0.0
    %8647 = vmatprep.subr.mxu0 0.0
    %8648 = vmatpush1.msra.mxu0 0.0
    %v8649 = vand.u32 %v8224, 4294901760
    %8650 = vmatprep.subr.mxu0 %v8649
    %v8651 = vand.u32 %v8223, 4294901760
    %8652 = vmatpush1.msra.mxu0 %v8651
    %8653 = vmatprep.subr.mxu0 0.0
    %8654 = vmatpush2.msra.mxu0 0.0
    %8655 = vmatprep.subr.mxu0 0.0
    %8656 = vmatpush2.msra.mxu0 0.0
    %8657 = vmatprep.subr.mxu0 0.0
    %8658 = vmatpush2.msra.mxu0 0.0
    %8659 = vmatprep.subr.mxu0 0.0
    %8660 = vmatpush2.msra.mxu0 0.0
    %8661 = vmatprep.subr.mxu0 0.0
    %8662 = vmatpush2.msra.mxu0 0.0
    %8663 = vmatprep.subr.mxu0 0.0
    %8664 = vmatpush2.msra.mxu0 0.0
    %8665 = vmatprep.subr.mxu0 0.0
    %8666 = vmatpush2.msra.mxu0 0.0
    %8667 = vmatprep.subr.mxu0 0.0
    %8668 = vmatpush2.msra.mxu0 0.0
    %8669 = vmatprep.subr.mxu0 0.0
    %8670 = vmatpush2.msra.mxu0 0.0
    %8671 = vmatprep.subr.mxu0 0.0
    %8672 = vmatpush2.msra.mxu0 0.0
    %8673 = vmatprep.subr.mxu0 0.0
    %8674 = vmatpush2.msra.mxu0 0.0
    %8675 = vmatprep.subr.mxu0 0.0
    %8676 = vmatpush2.msra.mxu0 0.0
    %8677 = vmatprep.subr.mxu0 0.0
    %8678 = vmatpush2.msra.mxu0 0.0
    %8679 = vmatprep.subr.mxu0 0.0
    %8680 = vmatpush2.msra.mxu0 0.0
    %8681 = vmatprep.subr.mxu0 0.0
    %8682 = vmatpush2.msra.mxu0 0.0
    %8683 = vmatprep.subr.mxu0 0.0
    %8684 = vmatpush2.msra.mxu0 0.0
    %8685 = vmatprep.mubr.f32.mxu0 0.0
    %v8686 = vand.u32 %v8226, 4294901760
    %8687 = vmatmul.mubr.f32.gmra.mxu0 %v8686
    %v8688 = vpop.f32.mrf.mxu0
    %v8689 = vadd.f32 %v8615, %v8688
    %v8690 = vpop.f32.mrf.mxu0
    %v8691 = vadd.f32 %v8617, %v8690
    %8692 = vdwg.mxu0
    %v8693 = vadd.f32 %v8215, %v8689
    %v8694 = vadd.f32 %v8216, %v8691
    %v8695 = vadd.f32 %v8693, %v18
    %v8696 = vadd.f32 %v8694, %v19
    %v8697 = vmul.f32 %v8695, 0.70710677
    %v8698 = vmul.f32 %v8696, 0.70710677
    %8699 = vst [vmem:[#allocation2] sm:$0xff] %v8697
    %8700 = vst [vmem:[#allocation2 + $0x8] sm:$0xff] %v8698
    // Predicated region
    $region18: #{tpu_custom_call.1} parent=1 // pred_check
      _
    $region19: #{tpu_custom_call.1} parent=1 // pred_check_branch
      %8702 = sbr.rel (0) target = $region21
    $region20: #{tpu_custom_call.1} parent=1 // pred_region
      %s8704 = ssub.s32 256, 256
      %8705 = vsyncadd [#allocation3], %s8704
      %s8707 = sshll.u32 [#allocation2], 4
      %s8708 = int_to_ptr.vmem [resolvable:$true] %s8707
      %8710 = dma.vmem_to_hbm [thread:$0]  %s8708, 256, %s4, [#allocation3]
    $region21: #{tpu_custom_call.1} parent=1 // pred_fallthru
      _
    // Predicated region
    $region22: #{tpu_custom_call.1} parent=1 // pred_check
      _
    $region23: #{tpu_custom_call.1} parent=1 // pred_check_branch
      %8712 = sbr.rel (0) target = $region25
    $region24: #{tpu_custom_call.1} parent=1 // pred_region
      %8713 = dma.done [#allocation3], 256
    $region25: #{tpu_custom_call.1} parent=1 // pred_fallthru
      _
    %8714 = vsyncpa [#allocation3], 1

</llo_original>
